<compile_context>
chip_gen: v7x
topology: tpu7x:2x2x1
jax: 0.10.0
libtpu: 0.0.40
codegen_flags: <defaults>
</compile_context>

<pallas_src>
import functools

import jax
import jax.numpy as jnp
from jax import lax
from jax.experimental import pallas as pl
from jax.experimental.pallas import tpu as pltpu

EPS = 1e-5  # eps used by weight standardization (f32 path) and nn.GroupNorm


def _silu_k(v):
    # SiLU with the divide moved onto the EUP via the approximate reciprocal.
    return v * pl.reciprocal(1.0 + jnp.exp(-v), approx=True)


# ---------------------------------------------------------------------------
# Fused per-sample kernel
# ---------------------------------------------------------------------------
def _make_fused_block_kernel(H, W, Cin, Cout, has_ss, has_res):
    M = H * W

    def fill_window(win_ref, img_bf16, c):
        # Zero only the border ring (corners covered by the two full-width rows);
        # the (H, W) core is overwritten every step, so no full-window memset.
        zrow = jnp.zeros((1, W + 2, c), jnp.bfloat16)
        zcol = jnp.zeros((H, 1, c), jnp.bfloat16)
        win_ref[0:1, :, :] = zrow
        win_ref[H + 1:H + 2, :, :] = zrow
        win_ref[1:H + 1, 0:1, :] = zcol
        win_ref[1:H + 1, W + 1:W + 2, :] = zcol
        win_ref[1:H + 1, 1:W + 1, :] = img_bf16

    def conv3x3(win_ref, w_ref, b_ref, c):
        # im2col in VMEM: concatenate the 9 shifted taps along lanes -> K = 9*c,
        # then a single MXU matmul with f32 accumulation.
        taps = []
        for kh in range(3):
            for kw in range(3):
                taps.append(win_ref[kh:kh + H, kw:kw + W, :].reshape(M, c))
        patch = jnp.concatenate(taps, axis=-1)                       # (M, 9c) bf16
        acc = jnp.dot(patch, w_ref[...], preferred_element_type=jnp.float32)
        return acc + b_ref[...]                                      # (M, Cout) f32

    def gn_affine(acc, p_ref, gamma_ref, beta_ref):
        # Per-sample GroupNorm folded into a per-channel affine y = acc*A + B.
        # p_ref[c, c'] = [group(c)==group(c')] / (Cg*H*W): one tiny matmul does the
        # group reduction AND the broadcast back to channels.
        stats = jnp.concatenate(
            [jnp.sum(acc, axis=0, keepdims=True),
             jnp.sum(acc * acc, axis=0, keepdims=True)], axis=0)     # (2, Cout) f32
        red = jnp.dot(stats, p_ref[...], preferred_element_type=jnp.float32)
        mean_c = red[0:1, :]                                         # E[x]  per channel's group
        msq_c = red[1:2, :]                                          # E[x^2]
        inv_c = lax.rsqrt(msq_c - mean_c * mean_c + EPS)
        a = inv_c * gamma_ref[...]
        b = beta_ref[...] - mean_c * a
        return a, b

    def kernel(*refs):
        it = iter(refs)
        x_ref = next(it)
        if has_ss:
            sc_ref = next(it)
            sh_ref = next(it)
        w1_ref = next(it); b1_ref = next(it); g1w_ref = next(it); g1b_ref = next(it)
        w2_ref = next(it); b2_ref = next(it); g2w_ref = next(it); g2b_ref = next(it)
        p_ref = next(it)
        if has_res:
            wr_ref = next(it); br_ref = next(it)
        o_ref = next(it)
        win1_ref = next(it)
        win2_ref = next(it)

        x_img = x_ref[0]                                             # (H, W, Cin) bf16

        # ---- block1: WS conv3x3 -> GroupNorm -> *(scale+1)+shift -> SiLU ------
        fill_window(win1_ref, x_img, Cin)
        acc1 = conv3x3(win1_ref, w1_ref, b1_ref, Cin)                # (M, Cout) f32
        a1, b1 = gn_affine(acc1, p_ref, g1w_ref, g1b_ref)
        if has_ss:
            s = sc_ref[0] + 1.0                                      # (1, Cout)
            a1 = a1 * s
            b1 = b1 * s + sh_ref[0]
        h1 = _silu_k(acc1 * a1 + b1)                                 # (M, Cout) f32

        # ---- block2: WS conv3x3 -> GroupNorm -> SiLU ---------------------------
        fill_window(win2_ref, h1.reshape(H, W, Cout).astype(jnp.bfloat16), Cout)
        acc2 = conv3x3(win2_ref, w2_ref, b2_ref, Cout)
        a2, b2 = gn_affine(acc2, p_ref, g2w_ref, g2b_ref)
        h2 = _silu_k(acc2 * a2 + b2)

        # ---- residual 1x1 conv (or identity) + final add -----------------------
        if has_res:
            xm = x_img.reshape(M, Cin)                               # bf16
            res = jnp.dot(xm, wr_ref[...], preferred_element_type=jnp.float32)
            res = res + br_ref[...]
        else:
            res = x_img.reshape(M, Cin).astype(jnp.float32)

        o_ref[...] = (h2 + res)[None].astype(o_ref.dtype)

    return kernel


# ---------------------------------------------------------------------------
# Wrapper: parameter-sized preprocessing in plain JAX + the pallas_call
# ---------------------------------------------------------------------------
def _standardize_and_pack(w):
    """WeightStandardizedConv2d weights -> (9*Cin, Cout) bf16 matmul operand.
    Faithful to the reference module, which computes (w - mean) / (var + eps).rsqrt()
    (i.e. it literally DIVIDES by rsqrt)."""
    w = w.astype(jnp.float32)
    mean = jnp.mean(w, axis=(1, 2, 3), keepdims=True)
    var = jnp.mean((w - mean) ** 2, axis=(1, 2, 3), keepdims=True)   # unbiased=False
    w = (w - mean) / lax.rsqrt(var + EPS)
    cout, cin = w.shape[0], w.shape[1]
    # (Cout, Cin, 3, 3) -> (kh, kw, Cin, Cout) -> (9*Cin, Cout); row = (kh*3+kw)*Cin + ci
    return jnp.transpose(w, (2, 3, 1, 0)).reshape(9 * cin, cout).astype(jnp.bfloat16)


def wide_weighted_resnet_block(x_nchw, time_emb, params, *, groups=8):
    N, Cin, H, W = x_nchw.shape
    Cout = params["w1"].shape[0]
    Cg = Cout // groups

    has_ss = (time_emb is not None) and ("mlp_w" in params)
    has_res = ("wres" in params) and (params["wres"] is not None)

    # TODO(synk): time-embedding MLP and weight standardization are parameter-sized;
    # they stay in plain JAX rather than a dedicated Pallas kernel.
    if has_ss:
        t = jax.nn.silu(time_emb.astype(jnp.float32))
        t = t @ params["mlp_w"].T + params["mlp_b"]                  # (N, 2*Cout)
        scale = t[:, :Cout].reshape(N, 1, Cout)
        shift = t[:, Cout:].reshape(N, 1, Cout)

    w1 = _standardize_and_pack(params["w1"])                         # (9*Cin,  Cout) bf16
    w2 = _standardize_and_pack(params["w2"])                         # (9*Cout, Cout) bf16
    b1 = params["b1"].reshape(1, Cout).astype(jnp.float32)
    b2 = params["b2"].reshape(1, Cout).astype(jnp.float32)
    g1w = params["gn1_w"].reshape(1, Cout).astype(jnp.float32)
    g1b = params["gn1_b"].reshape(1, Cout).astype(jnp.float32)
    g2w = params["gn2_w"].reshape(1, Cout).astype(jnp.float32)
    g2b = params["gn2_b"].reshape(1, Cout).astype(jnp.float32)
    gid = jnp.arange(Cout) // Cg
    pmat = (gid[:, None] == gid[None, :]).astype(jnp.float32) / float(Cg * H * W)

    # TODO(synk): the NCHW<->NHWC adapter transposes remain in XLA because the module
    # interface is NCHW; in an NHWC end-to-end UNet they disappear.
    x = jnp.transpose(x_nchw, (0, 2, 3, 1)).astype(jnp.bfloat16)     # (N, H, W, Cin) bf16

    kernel = _make_fused_block_kernel(H, W, Cin, Cout, has_ss, has_res)

    inputs = [x]
    in_specs = [pl.BlockSpec((1, H, W, Cin), lambda n: (n, 0, 0, 0))]
    if has_ss:
        inputs += [scale, shift]
        in_specs += [pl.BlockSpec((1, 1, Cout), lambda n: (n, 0, 0)),
                     pl.BlockSpec((1, 1, Cout), lambda n: (n, 0, 0))]
    inputs += [w1, b1, g1w, g1b, w2, b2, g2w, g2b, pmat]
    in_specs += [pl.BlockSpec((9 * Cin, Cout), lambda n: (0, 0)),
                 pl.BlockSpec((1, Cout), lambda n: (0, 0)),
                 pl.BlockSpec((1, Cout), lambda n: (0, 0)),
                 pl.BlockSpec((1, Cout), lambda n: (0, 0)),
                 pl.BlockSpec((9 * Cout, Cout), lambda n: (0, 0)),
                 pl.BlockSpec((1, Cout), lambda n: (0, 0)),
                 pl.BlockSpec((1, Cout), lambda n: (0, 0)),
                 pl.BlockSpec((1, Cout), lambda n: (0, 0)),
                 pl.BlockSpec((Cout, Cout), lambda n: (0, 0))]
    if has_res:
        wres = params["wres"].reshape(Cout, Cin).T.astype(jnp.bfloat16)
        bres = params["bres"].reshape(1, Cout).astype(jnp.float32)
        inputs += [wres, bres]
        in_specs += [pl.BlockSpec((Cin, Cout), lambda n: (0, 0)),
                     pl.BlockSpec((1, Cout), lambda n: (0, 0))]

    out = pl.pallas_call(
        kernel,
        grid=(N,),
        in_specs=in_specs,
        out_specs=pl.BlockSpec((1, H * W, Cout), lambda n: (n, 0, 0)),
        out_shape=jax.ShapeDtypeStruct((N, H * W, Cout), jnp.float32),
        scratch_shapes=[pltpu.VMEM((H + 2, W + 2, Cin), jnp.bfloat16),
                        pltpu.VMEM((H + 2, W + 2, Cout), jnp.bfloat16)],
        compiler_params=pltpu.CompilerParams(
            dimension_semantics=("parallel",)),
    )(*inputs)

    out = out.reshape(N, H, W, Cout)
    return jnp.transpose(out, (0, 3, 1, 2))                          # back to NCHW


# ---------------------------------------------------------------------------
# Pure-JAX f32 reference (mirrors the PyTorch module) + params + test harness
# ---------------------------------------------------------------------------
def _reference_forward(x, time_emb, params, *, groups=8):
    def ws_conv(h, w, b):
        mean = jnp.mean(w, axis=(1, 2, 3), keepdims=True)
        var = jnp.mean((w - mean) ** 2, axis=(1, 2, 3), keepdims=True)
        wn = (w - mean) / lax.rsqrt(var + EPS)
        y = lax.conv_general_dilated(h, wn, (1, 1), ((1, 1), (1, 1)),
                                     dimension_numbers=("NCHW", "OIHW", "NCHW"))
        return y + b.reshape(1, -1, 1, 1)

    def group_norm(h, gamma, beta):
        n, c, hh, ww = h.shape
        hg = h.reshape(n, groups, c // groups, hh, ww)
        mean = jnp.mean(hg, axis=(2, 3, 4), keepdims=True)
        var = jnp.mean((hg - mean) ** 2, axis=(2, 3, 4), keepdims=True)
        hg = (hg - mean) * lax.rsqrt(var + EPS)
        h = hg.reshape(n, c, hh, ww)
        return h * gamma.reshape(1, -1, 1, 1) + beta.reshape(1, -1, 1, 1)

    scale = shift = None
    if time_emb is not None and "mlp_w" in params:
        t = jax.nn.silu(time_emb) @ params["mlp_w"].T + params["mlp_b"]
        c = t.shape[1] // 2
        scale = t[:, :c][:, :, None, None]
        shift = t[:, c:][:, :, None, None]

    h = ws_conv(x, params["w1"], params["b1"])
    h = group_norm(h, params["gn1_w"], params["gn1_b"])
    if scale is not None:
        h = h * (scale + 1.0) + shift
    h = jax.nn.silu(h)
    h = ws_conv(h, params["w2"], params["b2"])
    h = group_norm(h, params["gn2_w"], params["gn2_b"])
    h = jax.nn.silu(h)
    if "wres" in params and params["wres"] is not None:
        res = lax.conv_general_dilated(x, params["wres"], (1, 1), ((0, 0), (0, 0)),
                                       dimension_numbers=("NCHW", "OIHW", "NCHW"))
        res = res + params["bres"].reshape(1, -1, 1, 1)
    else:
        res = x
    return h + res


def init_params(key, dim_in, dim_out, time_emb_dim):
    ks = jax.random.split(key, 8)
    return {
        # WeightStandardizedConv2d: (out, in, 3, 3) + bias
        "w1": 0.1 * jax.random.normal(ks[0], (dim_out, dim_in, 3, 3), jnp.float32),
        "b1": 0.1 * jax.random.normal(ks[1], (dim_out,), jnp.float32),
        "w2": 0.1 * jax.random.normal(ks[2], (dim_out, dim_out, 3, 3), jnp.float32),
        "b2": 0.1 * jax.random.normal(ks[3], (dim_out,), jnp.float32),
        # nn.GroupNorm learnable affine (PyTorch init: gamma=1, beta=0)
        "gn1_w": jnp.ones((dim_out,), jnp.float32),
        "gn1_b": jnp.zeros((dim_out,), jnp.float32),
        "gn2_w": jnp.ones((dim_out,), jnp.float32),
        "gn2_b": jnp.zeros((dim_out,), jnp.float32),
        # res_conv = Conv2d(dim_in, dim_out, 1)  (dim_in != dim_out)
        "wres": 0.1 * jax.random.normal(ks[4], (dim_out, dim_in, 1, 1), jnp.float32),
        "bres": 0.1 * jax.random.normal(ks[5], (dim_out,), jnp.float32),
        # mlp = SiLU -> Linear(time_emb_dim, dim_out * 2)
        "mlp_w": 0.1 * jax.random.normal(ks[6], (2 * dim_out, time_emb_dim), jnp.float32),
        "mlp_b": 0.1 * jax.random.normal(ks[7], (2 * dim_out,), jnp.float32),
    }


if __name__ == "__main__":
    dim_in, dim_out, groups, time_emb_dim = 32, 64, 8, 32
    B, H, W = 2, 16, 16

    key = jax.random.PRNGKey(0)
    kp, kx, kt = jax.random.split(key, 3)
    params = init_params(kp, dim_in, dim_out, time_emb_dim)
    x = jax.random.normal(kx, (B, dim_in, H, W), jnp.float32)
    temb = jax.random.normal(kt, (B, time_emb_dim), jnp.float32)

    fwd = jax.jit(functools.partial(wide_weighted_resnet_block, groups=groups))
    out = jax.block_until_ready(fwd(x, temb, params))
    assert out.shape == (B, dim_out, H, W), out.shape

    ref = jax.block_until_ready(
        jax.jit(functools.partial(_reference_forward, groups=groups))(x, temb, params))
    max_err = float(jnp.max(jnp.abs(out - ref)))
    # bf16 activations/weights on the MXU + approx-reciprocal SiLU => loose tolerance.
    assert max_err < 2.5e-1, f"max abs error vs reference: {max_err}"
    print("KERNEL_OK")
</pallas_src>

<mosaic_0001>
module attributes {stable_mosaic.version = 11 : i64} {
  func.func @kernel(%arg0: i32, %arg1: memref<1x16x16x32xbf16, #tpu.memory_space<vmem>>, %arg2: memref<1x1x64xf32, #tpu.memory_space<vmem>>, %arg3: memref<1x1x64xf32, #tpu.memory_space<vmem>>, %arg4: memref<288x64xbf16, #tpu.memory_space<vmem>>, %arg5: memref<1x64xf32, #tpu.memory_space<vmem>>, %arg6: memref<1x64xf32, #tpu.memory_space<vmem>>, %arg7: memref<1x64xf32, #tpu.memory_space<vmem>>, %arg8: memref<576x64xbf16, #tpu.memory_space<vmem>>, %arg9: memref<1x64xf32, #tpu.memory_space<vmem>>, %arg10: memref<1x64xf32, #tpu.memory_space<vmem>>, %arg11: memref<1x64xf32, #tpu.memory_space<vmem>>, %arg12: memref<64x64xf32, #tpu.memory_space<vmem>>, %arg13: memref<32x64xbf16, #tpu.memory_space<vmem>>, %arg14: memref<1x64xf32, #tpu.memory_space<vmem>>, %arg15: memref<1x256x64xf32, #tpu.memory_space<vmem>>, %arg16: memref<18x18x32xbf16, #tpu.memory_space<vmem>>, %arg17: memref<18x18x64xbf16, #tpu.memory_space<vmem>>) attributes {dimension_semantics = [#tpu.dimension_semantics<parallel>], iteration_bounds = array<i64: 2>, scalar_prefetch = 0 : i64, scratch_operands = 2 : i64, tpu.core_type = #tpu.core_type<tc>, window_params = [{transform_indices = @transform_0, window_bounds = array<i64: 1, 16, 16, 32>}, {transform_indices = @transform_1, window_bounds = array<i64: 1, 1, 64>}, {transform_indices = @transform_2, window_bounds = array<i64: 1, 1, 64>}, {pipeline_mode = #tpu.pipeline_mode<synchronous>, transform_indices = @transform_3, window_bounds = array<i64: 288, 64>}, {pipeline_mode = #tpu.pipeline_mode<synchronous>, transform_indices = @transform_4, window_bounds = array<i64: 1, 64>}, {pipeline_mode = #tpu.pipeline_mode<synchronous>, transform_indices = @transform_5, window_bounds = array<i64: 1, 64>}, {pipeline_mode = #tpu.pipeline_mode<synchronous>, transform_indices = @transform_6, window_bounds = array<i64: 1, 64>}, {pipeline_mode = #tpu.pipeline_mode<synchronous>, transform_indices = @transform_7, window_bounds = array<i64: 576, 64>}, {pipeline_mode = #tpu.pipeline_mode<synchronous>, transform_indices = @transform_8, window_bounds = array<i64: 1, 64>}, {pipeline_mode = #tpu.pipeline_mode<synchronous>, transform_indices = @transform_9, window_bounds = array<i64: 1, 64>}, {pipeline_mode = #tpu.pipeline_mode<synchronous>, transform_indices = @transform_10, window_bounds = array<i64: 1, 64>}, {pipeline_mode = #tpu.pipeline_mode<synchronous>, transform_indices = @transform_11, window_bounds = array<i64: 64, 64>}, {pipeline_mode = #tpu.pipeline_mode<synchronous>, transform_indices = @transform_12, window_bounds = array<i64: 32, 64>}, {pipeline_mode = #tpu.pipeline_mode<synchronous>, transform_indices = @transform_13, window_bounds = array<i64: 1, 64>}, {transform_indices = @transform_14, window_bounds = array<i64: 1, 256, 64>}]} {
    %c0 = arith.constant 0 : index
    %c0_0 = arith.constant 0 : index
    %c0_1 = arith.constant 0 : index
    %c0_2 = arith.constant 0 : index
    %0 = vector.load %arg1[%c0, %c0_0, %c0_1, %c0_2] : memref<1x16x16x32xbf16, #tpu.memory_space<vmem>>, vector<1x16x16x32xbf16>
    %1 = vector.shape_cast %0 : vector<1x16x16x32xbf16> to vector<16x16x32xbf16>
    %cst = arith.constant 0.000000e+00 : bf16
    %2 = vector.broadcast %cst : bf16 to vector<1x18x32xbf16>
    %cst_3 = arith.constant 0.000000e+00 : bf16
    %3 = vector.broadcast %cst_3 : bf16 to vector<16x1x32xbf16>
    %c0_4 = arith.constant 0 : index
    %c0_5 = arith.constant 0 : index
    %c0_6 = arith.constant 0 : index
    %4 = vector.load %arg16[%c0_4, %c0_5, %c0_6] : memref<18x18x32xbf16, #tpu.memory_space<vmem>>, vector<1x18x32xbf16>
    tpu.vector_store %arg16[%c0_4, %c0_5, %c0_6], %2 {strides = array<i32>} : memref<18x18x32xbf16, #tpu.memory_space<vmem>>, vector<1x18x32xbf16>,
    %c17 = arith.constant 17 : index
    %c0_7 = arith.constant 0 : index
    %c0_8 = arith.constant 0 : index
    %5 = vector.load %arg16[%c17, %c0_7, %c0_8] : memref<18x18x32xbf16, #tpu.memory_space<vmem>>, vector<1x18x32xbf16>
    tpu.vector_store %arg16[%c17, %c0_7, %c0_8], %2 {strides = array<i32>} : memref<18x18x32xbf16, #tpu.memory_space<vmem>>, vector<1x18x32xbf16>,
    %c1 = arith.constant 1 : index
    %c0_9 = arith.constant 0 : index
    %c0_10 = arith.constant 0 : index
    %6 = vector.load %arg16[%c1, %c0_9, %c0_10] : memref<18x18x32xbf16, #tpu.memory_space<vmem>>, vector<16x1x32xbf16>
    tpu.vector_store %arg16[%c1, %c0_9, %c0_10], %3 {strides = array<i32>} : memref<18x18x32xbf16, #tpu.memory_space<vmem>>, vector<16x1x32xbf16>,
    %c1_11 = arith.constant 1 : index
    %c17_12 = arith.constant 17 : index
    %c0_13 = arith.constant 0 : index
    %7 = vector.load %arg16[%c1_11, %c17_12, %c0_13] : memref<18x18x32xbf16, #tpu.memory_space<vmem>>, vector<16x1x32xbf16>
    tpu.vector_store %arg16[%c1_11, %c17_12, %c0_13], %3 {strides = array<i32>} : memref<18x18x32xbf16, #tpu.memory_space<vmem>>, vector<16x1x32xbf16>,
    %c1_14 = arith.constant 1 : index
    %c1_15 = arith.constant 1 : index
    %c0_16 = arith.constant 0 : index
    %8 = vector.load %arg16[%c1_14, %c1_15, %c0_16] : memref<18x18x32xbf16, #tpu.memory_space<vmem>>, vector<16x16x32xbf16>
    tpu.vector_store %arg16[%c1_14, %c1_15, %c0_16], %1 {strides = array<i32>} : memref<18x18x32xbf16, #tpu.memory_space<vmem>>, vector<16x16x32xbf16>,
    %c0_17 = arith.constant 0 : index
    %c0_18 = arith.constant 0 : index
    %c0_19 = arith.constant 0 : index
    %9 = vector.load %arg16[%c0_17, %c0_18, %c0_19] : memref<18x18x32xbf16, #tpu.memory_space<vmem>>, vector<16x16x32xbf16>
    %10 = vector.shape_cast %9 : vector<16x16x32xbf16> to vector<256x32xbf16>
    %c0_20 = arith.constant 0 : index
    %c1_21 = arith.constant 1 : index
    %c0_22 = arith.constant 0 : index
    %11 = vector.load %arg16[%c0_20, %c1_21, %c0_22] : memref<18x18x32xbf16, #tpu.memory_space<vmem>>, vector<16x16x32xbf16>
    %12 = vector.shape_cast %11 : vector<16x16x32xbf16> to vector<256x32xbf16>
    %c0_23 = arith.constant 0 : index
    %c2 = arith.constant 2 : index
    %c0_24 = arith.constant 0 : index
    %13 = vector.load %arg16[%c0_23, %c2, %c0_24] : memref<18x18x32xbf16, #tpu.memory_space<vmem>>, vector<16x16x32xbf16>
    %14 = vector.shape_cast %13 : vector<16x16x32xbf16> to vector<256x32xbf16>
    %c1_25 = arith.constant 1 : index
    %c0_26 = arith.constant 0 : index
    %c0_27 = arith.constant 0 : index
    %15 = vector.load %arg16[%c1_25, %c0_26, %c0_27] : memref<18x18x32xbf16, #tpu.memory_space<vmem>>, vector<16x16x32xbf16>
    %16 = vector.shape_cast %15 : vector<16x16x32xbf16> to vector<256x32xbf16>
    %c1_28 = arith.constant 1 : index
    %c1_29 = arith.constant 1 : index
    %c0_30 = arith.constant 0 : index
    %17 = vector.load %arg16[%c1_28, %c1_29, %c0_30] : memref<18x18x32xbf16, #tpu.memory_space<vmem>>, vector<16x16x32xbf16>
    %18 = vector.shape_cast %17 : vector<16x16x32xbf16> to vector<256x32xbf16>
    %c1_31 = arith.constant 1 : index
    %c2_32 = arith.constant 2 : index
    %c0_33 = arith.constant 0 : index
    %19 = vector.load %arg16[%c1_31, %c2_32, %c0_33] : memref<18x18x32xbf16, #tpu.memory_space<vmem>>, vector<16x16x32xbf16>
    %20 = vector.shape_cast %19 : vector<16x16x32xbf16> to vector<256x32xbf16>
    %c2_34 = arith.constant 2 : index
    %c0_35 = arith.constant 0 : index
    %c0_36 = arith.constant 0 : index
    %21 = vector.load %arg16[%c2_34, %c0_35, %c0_36] : memref<18x18x32xbf16, #tpu.memory_space<vmem>>, vector<16x16x32xbf16>
    %22 = vector.shape_cast %21 : vector<16x16x32xbf16> to vector<256x32xbf16>
    %c2_37 = arith.constant 2 : index
    %c1_38 = arith.constant 1 : index
    %c0_39 = arith.constant 0 : index
    %23 = vector.load %arg16[%c2_37, %c1_38, %c0_39] : memref<18x18x32xbf16, #tpu.memory_space<vmem>>, vector<16x16x32xbf16>
    %24 = vector.shape_cast %23 : vector<16x16x32xbf16> to vector<256x32xbf16>
    %c2_40 = arith.constant 2 : index
    %c2_41 = arith.constant 2 : index
    %c0_42 = arith.constant 0 : index
    %25 = vector.load %arg16[%c2_40, %c2_41, %c0_42] : memref<18x18x32xbf16, #tpu.memory_space<vmem>>, vector<16x16x32xbf16>
    %26 = vector.shape_cast %25 : vector<16x16x32xbf16> to vector<256x32xbf16>
    %27 = tpu.concatenate %10, %12, %14, %16, %18, %20, %22, %24, %26 in 1 : vector<256x32xbf16>, vector<256x32xbf16>, vector<256x32xbf16>, vector<256x32xbf16>, vector<256x32xbf16>, vector<256x32xbf16>, vector<256x32xbf16>, vector<256x32xbf16>, vector<256x32xbf16> -> vector<256x288xbf16>
    %c0_43 = arith.constant 0 : index
    %c0_44 = arith.constant 0 : index
    %28 = vector.load %arg4[%c0_43, %c0_44] : memref<288x64xbf16, #tpu.memory_space<vmem>>, vector<288x64xbf16>
    %cst_45 = arith.constant dense<0.000000e+00> : vector<256x64xf32>
    %29 = tpu.matmul %27, %28, %cst_45 {dimension_numbers = #tpu.dot_dimension_numbers<[1], [0], [0], [1], [0, 0, 1, 1], [], []>} : vector<256x288xbf16>, vector<288x64xbf16>, vector<256x64xf32> -> vector<256x64xf32>
    %c0_46 = arith.constant 0 : index
    %c0_47 = arith.constant 0 : index
    %30 = vector.load %arg5[%c0_46, %c0_47] : memref<1x64xf32, #tpu.memory_space<vmem>>, vector<1x64xf32>
    %31 = vector.broadcast %30 : vector<1x64xf32> to vector<256x64xf32>
    %32 = arith.addf %29, %31 : vector<256x64xf32>
    %cst_48 = arith.constant dense<0.000000e+00> : vector<64xf32>
    %33 = vector.multi_reduction <add>, %32, %cst_48 [0] : vector<256x64xf32> to vector<64xf32>
    %34 = vector.shape_cast %33 : vector<64xf32> to vector<1x64xf32>
    %35 = arith.mulf %32, %32 : vector<256x64xf32>
    %cst_49 = arith.constant dense<0.000000e+00> : vector<64xf32>
    %36 = vector.multi_reduction <add>, %35, %cst_49 [0] : vector<256x64xf32> to vector<64xf32>
    %37 = vector.shape_cast %36 : vector<64xf32> to vector<1x64xf32>
    %38 = tpu.concatenate %34, %37 in 0 : vector<1x64xf32>, vector<1x64xf32> -> vector<2x64xf32>
    %c0_50 = arith.constant 0 : index
    %c0_51 = arith.constant 0 : index
    %39 = vector.load %arg12[%c0_50, %c0_51] : memref<64x64xf32, #tpu.memory_space<vmem>>, vector<64x64xf32>
    %cst_52 = arith.constant dense<0.000000e+00> : vector<2x64xf32>
    %40 = tpu.matmul %38, %39, %cst_52 {dimension_numbers = #tpu.dot_dimension_numbers<[1], [0], [0], [1], [0, 0, 1, 1], [], []>} : vector<2x64xf32>, vector<64x64xf32>, vector<2x64xf32> -> vector<2x64xf32>
    %41 = vector.extract_strided_slice %40 {offsets = [0, 0], sizes = [1, 64], strides = [1, 1]} : vector<2x64xf32> to vector<1x64xf32>
    %42 = vector.extract_strided_slice %40 {offsets = [1, 0], sizes = [1, 64], strides = [1, 1]} : vector<2x64xf32> to vector<1x64xf32>
    %43 = arith.mulf %41, %41 : vector<1x64xf32>
    %44 = arith.subf %42, %43 : vector<1x64xf32>
    %cst_53 = arith.constant 9.99999974E-6 : f32
    %45 = vector.broadcast %cst_53 : f32 to vector<1x64xf32>
    %46 = arith.addf %44, %45 : vector<1x64xf32>
    %47 = math.rsqrt %46 : vector<1x64xf32>
    %c0_54 = arith.constant 0 : index
    %c0_55 = arith.constant 0 : index
    %48 = vector.load %arg6[%c0_54, %c0_55] : memref<1x64xf32, #tpu.memory_space<vmem>>, vector<1x64xf32>
    %49 = arith.mulf %47, %48 : vector<1x64xf32>
    %c0_56 = arith.constant 0 : index
    %c0_57 = arith.constant 0 : index
    %50 = vector.load %arg7[%c0_56, %c0_57] : memref<1x64xf32, #tpu.memory_space<vmem>>, vector<1x64xf32>
    %51 = arith.mulf %41, %49 : vector<1x64xf32>
    %52 = arith.subf %50, %51 : vector<1x64xf32>
    %c0_58 = arith.constant 0 : index
    %c0_59 = arith.constant 0 : index
    %c0_60 = arith.constant 0 : index
    %53 = vector.load %arg2[%c0_58, %c0_59, %c0_60] : memref<1x1x64xf32, #tpu.memory_space<vmem>>, vector<1x1x64xf32>
    %54 = vector.shape_cast %53 : vector<1x1x64xf32> to vector<1x64xf32>
    %cst_61 = arith.constant 1.000000e+00 : f32
    %55 = vector.broadcast %cst_61 : f32 to vector<1x64xf32>
    %56 = arith.addf %54, %55 : vector<1x64xf32>
    %57 = arith.mulf %49, %56 : vector<1x64xf32>
    %58 = arith.mulf %52, %56 : vector<1x64xf32>
    %c0_62 = arith.constant 0 : index
    %c0_63 = arith.constant 0 : index
    %c0_64 = arith.constant 0 : index
    %59 = vector.load %arg3[%c0_62, %c0_63, %c0_64] : memref<1x1x64xf32, #tpu.memory_space<vmem>>, vector<1x1x64xf32>
    %60 = vector.shape_cast %59 : vector<1x1x64xf32> to vector<1x64xf32>
    %61 = arith.addf %58, %60 : vector<1x64xf32>
    %62 = vector.broadcast %57 : vector<1x64xf32> to vector<256x64xf32>
    %63 = arith.mulf %32, %62 : vector<256x64xf32>
    %64 = vector.broadcast %61 : vector<1x64xf32> to vector<256x64xf32>
    %65 = arith.addf %63, %64 : vector<256x64xf32>
    %cst_65 = arith.constant 0.000000e+00 : f32
    %66 = vector.broadcast %cst_65 : f32 to vector<256x64xf32>
    %67 = arith.subf %66, %65 : vector<256x64xf32>
    %68 = math.exp %67 : vector<256x64xf32>
    %cst_66 = arith.constant 1.000000e+00 : f32
    %69 = vector.broadcast %cst_66 : f32 to vector<256x64xf32>
    %70 = arith.addf %69, %68 : vector<256x64xf32>
    %71 = tpu.reciprocal %70 {approx = true} : vector<256x64xf32> -> vector<256x64xf32>
    %72 = arith.mulf %65, %71 : vector<256x64xf32>
    %73 = vector.shape_cast %72 : vector<256x64xf32> to vector<16x16x64xf32>
    %74 = arith.truncf %73 : vector<16x16x64xf32> to vector<16x16x64xbf16>
    %cst_67 = arith.constant 0.000000e+00 : bf16
    %75 = vector.broadcast %cst_67 : bf16 to vector<1x18x64xbf16>
    %cst_68 = arith.constant 0.000000e+00 : bf16
    %76 = vector.broadcast %cst_68 : bf16 to vector<16x1x64xbf16>
    %c0_69 = arith.constant 0 : index
    %c0_70 = arith.constant 0 : index
    %c0_71 = arith.constant 0 : index
    %77 = vector.load %arg17[%c0_69, %c0_70, %c0_71] : memref<18x18x64xbf16, #tpu.memory_space<vmem>>, vector<1x18x64xbf16>
    tpu.vector_store %arg17[%c0_69, %c0_70, %c0_71], %75 {strides = array<i32>} : memref<18x18x64xbf16, #tpu.memory_space<vmem>>, vector<1x18x64xbf16>,
    %c17_72 = arith.constant 17 : index
    %c0_73 = arith.constant 0 : index
    %c0_74 = arith.constant 0 : index
    %78 = vector.load %arg17[%c17_72, %c0_73, %c0_74] : memref<18x18x64xbf16, #tpu.memory_space<vmem>>, vector<1x18x64xbf16>
    tpu.vector_store %arg17[%c17_72, %c0_73, %c0_74], %75 {strides = array<i32>} : memref<18x18x64xbf16, #tpu.memory_space<vmem>>, vector<1x18x64xbf16>,
    %c1_75 = arith.constant 1 : index
    %c0_76 = arith.constant 0 : index
    %c0_77 = arith.constant 0 : index
    %79 = vector.load %arg17[%c1_75, %c0_76, %c0_77] : memref<18x18x64xbf16, #tpu.memory_space<vmem>>, vector<16x1x64xbf16>
    tpu.vector_store %arg17[%c1_75, %c0_76, %c0_77], %76 {strides = array<i32>} : memref<18x18x64xbf16, #tpu.memory_space<vmem>>, vector<16x1x64xbf16>,
    %c1_78 = arith.constant 1 : index
    %c17_79 = arith.constant 17 : index
    %c0_80 = arith.constant 0 : index
    %80 = vector.load %arg17[%c1_78, %c17_79, %c0_80] : memref<18x18x64xbf16, #tpu.memory_space<vmem>>, vector<16x1x64xbf16>
    tpu.vector_store %arg17[%c1_78, %c17_79, %c0_80], %76 {strides = array<i32>} : memref<18x18x64xbf16, #tpu.memory_space<vmem>>, vector<16x1x64xbf16>,
    %c1_81 = arith.constant 1 : index
    %c1_82 = arith.constant 1 : index
    %c0_83 = arith.constant 0 : index
    %81 = vector.load %arg17[%c1_81, %c1_82, %c0_83] : memref<18x18x64xbf16, #tpu.memory_space<vmem>>, vector<16x16x64xbf16>
    tpu.vector_store %arg17[%c1_81, %c1_82, %c0_83], %74 {strides = array<i32>} : memref<18x18x64xbf16, #tpu.memory_space<vmem>>, vector<16x16x64xbf16>,
    %c0_84 = arith.constant 0 : index
    %c0_85 = arith.constant 0 : index
    %c0_86 = arith.constant 0 : index
    %82 = vector.load %arg17[%c0_84, %c0_85, %c0_86] : memref<18x18x64xbf16, #tpu.memory_space<vmem>>, vector<16x16x64xbf16>
    %83 = vector.shape_cast %82 : vector<16x16x64xbf16> to vector<256x64xbf16>
    %c0_87 = arith.constant 0 : index
    %c1_88 = arith.constant 1 : index
    %c0_89 = arith.constant 0 : index
    %84 = vector.load %arg17[%c0_87, %c1_88, %c0_89] : memref<18x18x64xbf16, #tpu.memory_space<vmem>>, vector<16x16x64xbf16>
    %85 = vector.shape_cast %84 : vector<16x16x64xbf16> to vector<256x64xbf16>
    %c0_90 = arith.constant 0 : index
    %c2_91 = arith.constant 2 : index
    %c0_92 = arith.constant 0 : index
    %86 = vector.load %arg17[%c0_90, %c2_91, %c0_92] : memref<18x18x64xbf16, #tpu.memory_space<vmem>>, vector<16x16x64xbf16>
    %87 = vector.shape_cast %86 : vector<16x16x64xbf16> to vector<256x64xbf16>
    %c1_93 = arith.constant 1 : index
    %c0_94 = arith.constant 0 : index
    %c0_95 = arith.constant 0 : index
    %88 = vector.load %arg17[%c1_93, %c0_94, %c0_95] : memref<18x18x64xbf16, #tpu.memory_space<vmem>>, vector<16x16x64xbf16>
    %89 = vector.shape_cast %88 : vector<16x16x64xbf16> to vector<256x64xbf16>
    %c1_96 = arith.constant 1 : index
    %c1_97 = arith.constant 1 : index
    %c0_98 = arith.constant 0 : index
    %90 = vector.load %arg17[%c1_96, %c1_97, %c0_98] : memref<18x18x64xbf16, #tpu.memory_space<vmem>>, vector<16x16x64xbf16>
    %91 = vector.shape_cast %90 : vector<16x16x64xbf16> to vector<256x64xbf16>
    %c1_99 = arith.constant 1 : index
    %c2_100 = arith.constant 2 : index
    %c0_101 = arith.constant 0 : index
    %92 = vector.load %arg17[%c1_99, %c2_100, %c0_101] : memref<18x18x64xbf16, #tpu.memory_space<vmem>>, vector<16x16x64xbf16>
    %93 = vector.shape_cast %92 : vector<16x16x64xbf16> to vector<256x64xbf16>
    %c2_102 = arith.constant 2 : index
    %c0_103 = arith.constant 0 : index
    %c0_104 = arith.constant 0 : index
    %94 = vector.load %arg17[%c2_102, %c0_103, %c0_104] : memref<18x18x64xbf16, #tpu.memory_space<vmem>>, vector<16x16x64xbf16>
    %95 = vector.shape_cast %94 : vector<16x16x64xbf16> to vector<256x64xbf16>
    %c2_105 = arith.constant 2 : index
    %c1_106 = arith.constant 1 : index
    %c0_107 = arith.constant 0 : index
    %96 = vector.load %arg17[%c2_105, %c1_106, %c0_107] : memref<18x18x64xbf16, #tpu.memory_space<vmem>>, vector<16x16x64xbf16>
    %97 = vector.shape_cast %96 : vector<16x16x64xbf16> to vector<256x64xbf16>
    %c2_108 = arith.constant 2 : index
    %c2_109 = arith.constant 2 : index
    %c0_110 = arith.constant 0 : index
    %98 = vector.load %arg17[%c2_108, %c2_109, %c0_110] : memref<18x18x64xbf16, #tpu.memory_space<vmem>>, vector<16x16x64xbf16>
    %99 = vector.shape_cast %98 : vector<16x16x64xbf16> to vector<256x64xbf16>
    %100 = tpu.concatenate %83, %85, %87, %89, %91, %93, %95, %97, %99 in 1 : vector<256x64xbf16>, vector<256x64xbf16>, vector<256x64xbf16>, vector<256x64xbf16>, vector<256x64xbf16>, vector<256x64xbf16>, vector<256x64xbf16>, vector<256x64xbf16>, vector<256x64xbf16> -> vector<256x576xbf16>
    %c0_111 = arith.constant 0 : index
    %c0_112 = arith.constant 0 : index
    %101 = vector.load %arg8[%c0_111, %c0_112] : memref<576x64xbf16, #tpu.memory_space<vmem>>, vector<576x64xbf16>
    %cst_113 = arith.constant dense<0.000000e+00> : vector<256x64xf32>
    %102 = tpu.matmul %100, %101, %cst_113 {dimension_numbers = #tpu.dot_dimension_numbers<[1], [0], [0], [1], [0, 0, 1, 1], [], []>} : vector<256x576xbf16>, vector<576x64xbf16>, vector<256x64xf32> -> vector<256x64xf32>
    %c0_114 = arith.constant 0 : index
    %c0_115 = arith.constant 0 : index
    %103 = vector.load %arg9[%c0_114, %c0_115] : memref<1x64xf32, #tpu.memory_space<vmem>>, vector<1x64xf32>
    %104 = vector.broadcast %103 : vector<1x64xf32> to vector<256x64xf32>
    %105 = arith.addf %102, %104 : vector<256x64xf32>
    %cst_116 = arith.constant dense<0.000000e+00> : vector<64xf32>
    %106 = vector.multi_reduction <add>, %105, %cst_116 [0] : vector<256x64xf32> to vector<64xf32>
    %107 = vector.shape_cast %106 : vector<64xf32> to vector<1x64xf32>
    %108 = arith.mulf %105, %105 : vector<256x64xf32>
    %cst_117 = arith.constant dense<0.000000e+00> : vector<64xf32>
    %109 = vector.multi_reduction <add>, %108, %cst_117 [0] : vector<256x64xf32> to vector<64xf32>
    %110 = vector.shape_cast %109 : vector<64xf32> to vector<1x64xf32>
    %111 = tpu.concatenate %107, %110 in 0 : vector<1x64xf32>, vector<1x64xf32> -> vector<2x64xf32>
    %c0_118 = arith.constant 0 : index
    %c0_119 = arith.constant 0 : index
    %112 = vector.load %arg12[%c0_118, %c0_119] : memref<64x64xf32, #tpu.memory_space<vmem>>, vector<64x64xf32>
    %cst_120 = arith.constant dense<0.000000e+00> : vector<2x64xf32>
    %113 = tpu.matmul %111, %112, %cst_120 {dimension_numbers = #tpu.dot_dimension_numbers<[1], [0], [0], [1], [0, 0, 1, 1], [], []>} : vector<2x64xf32>, vector<64x64xf32>, vector<2x64xf32> -> vector<2x64xf32>
    %114 = vector.extract_strided_slice %113 {offsets = [0, 0], sizes = [1, 64], strides = [1, 1]} : vector<2x64xf32> to vector<1x64xf32>
    %115 = vector.extract_strided_slice %113 {offsets = [1, 0], sizes = [1, 64], strides = [1, 1]} : vector<2x64xf32> to vector<1x64xf32>
    %116 = arith.mulf %114, %114 : vector<1x64xf32>
    %117 = arith.subf %115, %116 : vector<1x64xf32>
    %cst_121 = arith.constant 9.99999974E-6 : f32
    %118 = vector.broadcast %cst_121 : f32 to vector<1x64xf32>
    %119 = arith.addf %117, %118 : vector<1x64xf32>
    %120 = math.rsqrt %119 : vector<1x64xf32>
    %c0_122 = arith.constant 0 : index
    %c0_123 = arith.constant 0 : index
    %121 = vector.load %arg10[%c0_122, %c0_123] : memref<1x64xf32, #tpu.memory_space<vmem>>, vector<1x64xf32>
    %122 = arith.mulf %120, %121 : vector<1x64xf32>
    %c0_124 = arith.constant 0 : index
    %c0_125 = arith.constant 0 : index
    %123 = vector.load %arg11[%c0_124, %c0_125] : memref<1x64xf32, #tpu.memory_space<vmem>>, vector<1x64xf32>
    %124 = arith.mulf %114, %122 : vector<1x64xf32>
    %125 = arith.subf %123, %124 : vector<1x64xf32>
    %126 = vector.broadcast %122 : vector<1x64xf32> to vector<256x64xf32>
    %127 = arith.mulf %105, %126 : vector<256x64xf32>
    %128 = vector.broadcast %125 : vector<1x64xf32> to vector<256x64xf32>
    %129 = arith.addf %127, %128 : vector<256x64xf32>
    %cst_126 = arith.constant 0.000000e+00 : f32
    %130 = vector.broadcast %cst_126 : f32 to vector<256x64xf32>
    %131 = arith.subf %130, %129 : vector<256x64xf32>
    %132 = math.exp %131 : vector<256x64xf32>
    %cst_127 = arith.constant 1.000000e+00 : f32
    %133 = vector.broadcast %cst_127 : f32 to vector<256x64xf32>
    %134 = arith.addf %133, %132 : vector<256x64xf32>
    %135 = tpu.reciprocal %134 {approx = true} : vector<256x64xf32> -> vector<256x64xf32>
    %136 = arith.mulf %129, %135 : vector<256x64xf32>
    %137 = vector.shape_cast %1 : vector<16x16x32xbf16> to vector<256x32xbf16>
    %c0_128 = arith.constant 0 : index
    %c0_129 = arith.constant 0 : index
    %138 = vector.load %arg13[%c0_128, %c0_129] : memref<32x64xbf16, #tpu.memory_space<vmem>>, vector<32x64xbf16>
    %cst_130 = arith.constant dense<0.000000e+00> : vector<256x64xf32>
    %139 = tpu.matmul %137, %138, %cst_130 {dimension_numbers = #tpu.dot_dimension_numbers<[1], [0], [0], [1], [0, 0, 1, 1], [], []>} : vector<256x32xbf16>, vector<32x64xbf16>, vector<256x64xf32> -> vector<256x64xf32>
    %c0_131 = arith.constant 0 : index
    %c0_132 = arith.constant 0 : index
    %140 = vector.load %arg14[%c0_131, %c0_132] : memref<1x64xf32, #tpu.memory_space<vmem>>, vector<1x64xf32>
    %141 = vector.broadcast %140 : vector<1x64xf32> to vector<256x64xf32>
    %142 = arith.addf %139, %141 : vector<256x64xf32>
    %143 = arith.addf %136, %142 : vector<256x64xf32>
    %144 = vector.shape_cast %143 : vector<256x64xf32> to vector<1x256x64xf32>
    %c0_133 = arith.constant 0 : index
    %c0_134 = arith.constant 0 : index
    %c0_135 = arith.constant 0 : index
    %145 = vector.load %arg15[%c0_133, %c0_134, %c0_135] : memref<1x256x64xf32, #tpu.memory_space<vmem>>, vector<1x256x64xf32>
    tpu.vector_store %arg15[%c0_133, %c0_134, %c0_135], %144 {strides = array<i32>} : memref<1x256x64xf32, #tpu.memory_space<vmem>>, vector<1x256x64xf32>,
    return
  }
  func.func @transform_0(%arg0: i32) -> (i32, i32, i32, i32) {
    %c0_i32 = arith.constant 0 : i32
    %c0_i32_0 = arith.constant 0 : i32
    %c0_i32_1 = arith.constant 0 : i32
    %c0_i32_2 = arith.constant 0 : i32
    return %arg0, %c0_i32, %c0_i32_0, %c0_i32_1 : i32, i32, i32, i32
  }
  func.func @transform_1(%arg0: i32) -> (i32, i32, i32) {
    %c0_i32 = arith.constant 0 : i32
    %c0_i32_0 = arith.constant 0 : i32
    %c0_i32_1 = arith.constant 0 : i32
    return %arg0, %c0_i32, %c0_i32_0 : i32, i32, i32
  }
  func.func @transform_2(%arg0: i32) -> (i32, i32, i32) {
    %c0_i32 = arith.constant 0 : i32
    %c0_i32_0 = arith.constant 0 : i32
    %c0_i32_1 = arith.constant 0 : i32
    return %arg0, %c0_i32, %c0_i32_0 : i32, i32, i32
  }
  func.func @transform_3(%arg0: i32) -> (i32, i32) {
    %c0_i32 = arith.constant 0 : i32
    %c0_i32_0 = arith.constant 0 : i32
    %c0_i32_1 = arith.constant 0 : i32
    return %c0_i32, %c0_i32_0 : i32, i32
  }
  func.func @transform_4(%arg0: i32) -> (i32, i32) {
    %c0_i32 = arith.constant 0 : i32
    %c0_i32_0 = arith.constant 0 : i32
    %c0_i32_1 = arith.constant 0 : i32
    return %c0_i32, %c0_i32_0 : i32, i32
  }
  func.func @transform_5(%arg0: i32) -> (i32, i32) {
    %c0_i32 = arith.constant 0 : i32
    %c0_i32_0 = arith.constant 0 : i32
    %c0_i32_1 = arith.constant 0 : i32
    return %c0_i32, %c0_i32_0 : i32, i32
  }
  func.func @transform_6(%arg0: i32) -> (i32, i32) {
    %c0_i32 = arith.constant 0 : i32
    %c0_i32_0 = arith.constant 0 : i32
    %c0_i32_1 = arith.constant 0 : i32
    return %c0_i32, %c0_i32_0 : i32, i32
  }
  func.func @transform_7(%arg0: i32) -> (i32, i32) {
    %c0_i32 = arith.constant 0 : i32
    %c0_i32_0 = arith.constant 0 : i32
    %c0_i32_1 = arith.constant 0 : i32
    return %c0_i32, %c0_i32_0 : i32, i32
  }
  func.func @transform_8(%arg0: i32) -> (i32, i32) {
    %c0_i32 = arith.constant 0 : i32
    %c0_i32_0 = arith.constant 0 : i32
    %c0_i32_1 = arith.constant 0 : i32
    return %c0_i32, %c0_i32_0 : i32, i32
  }
  func.func @transform_9(%arg0: i32) -> (i32, i32) {
    %c0_i32 = arith.constant 0 : i32
    %c0_i32_0 = arith.constant 0 : i32
    %c0_i32_1 = arith.constant 0 : i32
    return %c0_i32, %c0_i32_0 : i32, i32
  }
  func.func @transform_10(%arg0: i32) -> (i32, i32) {
    %c0_i32 = arith.constant 0 : i32
    %c0_i32_0 = arith.constant 0 : i32
    %c0_i32_1 = arith.constant 0 : i32
    return %c0_i32, %c0_i32_0 : i32, i32
  }
  func.func @transform_11(%arg0: i32) -> (i32, i32) {
    %c0_i32 = arith.constant 0 : i32
    %c0_i32_0 = arith.constant 0 : i32
    %c0_i32_1 = arith.constant 0 : i32
    return %c0_i32, %c0_i32_0 : i32, i32
  }
  func.func @transform_12(%arg0: i32) -> (i32, i32) {
    %c0_i32 = arith.constant 0 : i32
    %c0_i32_0 = arith.constant 0 : i32
    %c0_i32_1 = arith.constant 0 : i32
    return %c0_i32, %c0_i32_0 : i32, i32
  }
  func.func @transform_13(%arg0: i32) -> (i32, i32) {
    %c0_i32 = arith.constant 0 : i32
    %c0_i32_0 = arith.constant 0 : i32
    %c0_i32_1 = arith.constant 0 : i32
    return %c0_i32, %c0_i32_0 : i32, i32
  }
  func.func @transform_14(%arg0: i32) -> (i32, i32, i32) {
    %c0_i32 = arith.constant 0 : i32
    %c0_i32_0 = arith.constant 0 : i32
    %c0_i32_1 = arith.constant 0 : i32
    return %arg0, %c0_i32, %c0_i32_0 : i32, i32, i32
  }
}

</mosaic_0001>

<llo_original>
// kernel: wide_weighted_resnet_block.1
$region0: #{wide_weighted_resnet_block.1}
  #allocation0 [shape = 'u32[]', space=smem, size = 0x4, offset = 0x4, fixed_abs, tag = 'smem constant byte address 0x4 - core index']
  #allocation1 [shape = 'u32[144,128]{1,0:T(1,128)}', space=vmem, size = 0x12000, scoped, tag = 'internal scratch']
  #allocation2 [shape = 'bf16[18,18,32]{2,1,0:T(8,128)(2,1)}', space=vmem, size = 0x1b000, scoped, tag = 'scratch operand']
  #allocation3 [shape = 'bf16[18,18,64]{2,1,0:T(8,128)(2,1)}', space=vmem, size = 0x1b000, scoped, tag = 'scratch operand']
  %s0 = inlined_call_operand.vmem [shape: bf16[2,16,16,32], index: 0, kind: input, shape index: {}]
  %s1 = inlined_call_operand.vmem [shape: f32[2,1,64], index: 1, kind: input, shape index: {}]
  %s2 = inlined_call_operand.vmem [shape: f32[2,1,64], index: 2, kind: input, shape index: {}]
  %s3 = inlined_call_operand.vmem [shape: bf16[288,64], index: 3, kind: input, shape index: {}]
  %s4 = inlined_call_operand.vmem [shape: f32[1,64], index: 4, kind: input, shape index: {}]
  %s5 = inlined_call_operand.vmem [shape: f32[1,64], index: 5, kind: input, shape index: {}]
  %s6 = inlined_call_operand.vmem [shape: f32[1,64], index: 6, kind: input, shape index: {}]
  %s7 = inlined_call_operand.vmem [shape: bf16[576,64], index: 7, kind: input, shape index: {}]
  %s8 = inlined_call_operand.vmem [shape: f32[1,64], index: 8, kind: input, shape index: {}]
  %s9 = inlined_call_operand.vmem [shape: f32[1,64], index: 9, kind: input, shape index: {}]
  %s10 = inlined_call_operand.vmem [shape: f32[1,64], index: 10, kind: input, shape index: {}]
  %s11 = inlined_call_operand.vmem [shape: f32[64,64], index: 11, kind: input, shape index: {}]
  %s12 = inlined_call_operand.vmem [shape: bf16[32,64], index: 12, kind: input, shape index: {}]
  %s13 = inlined_call_operand.vmem [shape: f32[1,64], index: 13, kind: input, shape index: {}]
  %s14 = inlined_call_operand.hbm [shape: f32[2,256,64], index: 14, kind: output, shape index: {}]
  %s15 = sld [smem:[#allocation0]]
  $region89: #{wide_weighted_resnet_block.1} parent=0
    _
  %s17 = ssub.s32 1, %s15
  %s18 = scalar_select 0, %s17, %s15
  $region1: #{wide_weighted_resnet_block.1} parent=0
    #allocation4 [shape = 'u8[262144]{0}', space=vmem, size = 0x40000, scoped, tag = 'output window, operand 0']
    #allocation5 [shape = 's32[2]{0}', space=sflag, size = 0x8, scoped, tag = 'scoped memory for wide_weighted_resnet_block.1']
    %19 = vsyncpa [#allocation5], 0
    %s20 = scalar_lea.sflag [#allocation5], 1
    %21 = vsyncpa %s20, 0
    loop: start=0, step=1, limit=4
    $region2: #{wide_weighted_resnet_block.1} parent=1 // loop_pre_header
      _
    $region3: #{wide_weighted_resnet_block.1} parent=1 // loop_header
      %s23 = sphi 0, %s27
      %p24 = scmp.ge.s32.totalorder %s23, 4
      %s33 = sphi 0, %s35
      %s36 = sphi 0, %s33
      %s37 = sphi 0, %s36
      %s53 = sphi 0, %s37
      %s59 = sphi 0, %s61
      %s62 = sphi 0, %s59
      %s63 = sphi 0, %s62
      %s79 = sphi 0, %s63
      %s85 = sphi 0, %s87
      %s88 = sphi 0, %s85
      %s89 = sphi 0, %s88
      %s105 = sphi 0, %s89
      %s109 = sphi 0, %s109
      %s111 = sphi 0, %s109
      %s112 = sphi 0, %s111
      %s126 = sphi 0, %s112
      %s130 = sphi 0, %s130
      %s132 = sphi 0, %s130
      %s133 = sphi 0, %s132
      %s147 = sphi 0, %s133
      %s151 = sphi 0, %s151
      %s153 = sphi 0, %s151
      %s154 = sphi 0, %s153
      %s168 = sphi 0, %s154
      %s172 = sphi 0, %s172
      %s174 = sphi 0, %s172
      %s175 = sphi 0, %s174
      %s189 = sphi 0, %s175
      %s193 = sphi 0, %s193
      %s195 = sphi 0, %s193
      %s196 = sphi 0, %s195
      %s210 = sphi 0, %s196
      %s214 = sphi 0, %s214
      %s216 = sphi 0, %s214
      %s217 = sphi 0, %s216
      %s231 = sphi 0, %s217
      %s235 = sphi 0, %s235
      %s237 = sphi 0, %s235
      %s238 = sphi 0, %s237
      %s252 = sphi 0, %s238
      %s256 = sphi 0, %s256
      %s258 = sphi 0, %s256
      %s259 = sphi 0, %s258
      %s273 = sphi 0, %s259
      %s277 = sphi 0, %s277
      %s279 = sphi 0, %s277
      %s280 = sphi 0, %s279
      %s294 = sphi 0, %s280
      %s298 = sphi 0, %s298
      %s300 = sphi 0, %s298
      %s301 = sphi 0, %s300
      %s315 = sphi 0, %s301
      %s319 = sphi 0, %s319
      %s321 = sphi 0, %s319
      %s322 = sphi 0, %s321
      %s336 = sphi 0, %s322
      %s342 = sphi 0, %s344
      %s345 = sphi 0, %s342
      %s346 = sphi 0, %s345
      %s362 = sphi 0, %s346
    $region4: #{wide_weighted_resnet_block.1} parent=1 // loop_header_branch
      %26 = sbr.rel (%p24) target = $region8
    $region5: #{wide_weighted_resnet_block.1} parent=1 // loop_body
      %s28 = ssub.s32 %s23, 1
      %s29 = ssub.s32 %s23, 2
      %s30 = sadd.s32 %s23, 1
      %s31 = ssub.s32 %s23, %s30
      %p32 = scmp.eq.s32.totalorder %s31, 0
      %s34 = sadd.s32 %s33, 1
      %s35 = scalar_select %p32, %s33, %s34
      %p38 = pneg %p32
      %p39 = scmp.eq.s32.totalorder %s23, 1
      %p40 = por %p38, %p39
      %p41 = scmp.ne.s32.totalorder %s33, %s36
      %p42 = scmp.eq.s32.totalorder %s23, 0
      %p43 = por %p41, %p42
      %p44 = scmp.ne.s32.totalorder %s33, %s36
      %p45 = scmp.eq.s32.totalorder %s28, 1
      %p46 = por %p44, %p45
      %p47 = scmp.ne.s32.totalorder %s36, %s37
      %p48 = scmp.eq.s32.totalorder %s28, 0
      %p49 = por %p47, %p48
      %p50 = scmp.ne.s32.totalorder %s36, %s37
      %p51 = scmp.eq.s32.totalorder %s29, 1
      %p52 = por %p50, %p51
      %p54 = scmp.ne.s32.totalorder %s37, %s53
      %p55 = scmp.eq.s32.totalorder %s29, 0
      %p56 = por %p54, %p55
      %s57 = ssub.s32 %s23, %s30
      %p58 = scmp.eq.s32.totalorder %s57, 0
      %s60 = sadd.s32 %s59, 1
      %s61 = scalar_select %p58, %s59, %s60
      %p64 = pneg %p58
      %p65 = scmp.eq.s32.totalorder %s23, 1
      %p66 = por %p64, %p65
      %p67 = scmp.ne.s32.totalorder %s59, %s62
      %p68 = scmp.eq.s32.totalorder %s23, 0
      %p69 = por %p67, %p68
      %p70 = scmp.ne.s32.totalorder %s59, %s62
      %p71 = scmp.eq.s32.totalorder %s28, 1
      %p72 = por %p70, %p71
      %p73 = scmp.ne.s32.totalorder %s62, %s63
      %p74 = scmp.eq.s32.totalorder %s28, 0
      %p75 = por %p73, %p74
      %p76 = scmp.ne.s32.totalorder %s62, %s63
      %p77 = scmp.eq.s32.totalorder %s29, 1
      %p78 = por %p76, %p77
      %p80 = scmp.ne.s32.totalorder %s63, %s79
      %p81 = scmp.eq.s32.totalorder %s29, 0
      %p82 = por %p80, %p81
      %s83 = ssub.s32 %s23, %s30
      %p84 = scmp.eq.s32.totalorder %s83, 0
      %s86 = sadd.s32 %s85, 1
      %s87 = scalar_select %p84, %s85, %s86
      %p90 = pneg %p84
      %p91 = scmp.eq.s32.totalorder %s23, 1
      %p92 = por %p90, %p91
      %p93 = scmp.ne.s32.totalorder %s85, %s88
      %p94 = scmp.eq.s32.totalorder %s23, 0
      %p95 = por %p93, %p94
      %p96 = scmp.ne.s32.totalorder %s85, %s88
      %p97 = scmp.eq.s32.totalorder %s28, 1
      %p98 = por %p96, %p97
      %p99 = scmp.ne.s32.totalorder %s88, %s89
      %p100 = scmp.eq.s32.totalorder %s28, 0
      %p101 = por %p99, %p100
      %p102 = scmp.ne.s32.totalorder %s88, %s89
      %p103 = scmp.eq.s32.totalorder %s29, 1
      %p104 = por %p102, %p103
      %p106 = scmp.ne.s32.totalorder %s89, %s105
      %p107 = scmp.eq.s32.totalorder %s29, 0
      %p108 = por %p106, %p107
      %s110 = sadd.s32 %s109, 1
      %p113 = scmp.eq.s32.totalorder %s23, 1
      %p114 = scmp.ne.s32.totalorder %s109, %s111
      %p115 = scmp.eq.s32.totalorder %s23, 0
      %p116 = por %p114, %p115
      %p117 = scmp.ne.s32.totalorder %s109, %s111
      %p118 = scmp.eq.s32.totalorder %s28, 1
      %p119 = por %p117, %p118
      %p120 = scmp.ne.s32.totalorder %s111, %s112
      %p121 = scmp.eq.s32.totalorder %s28, 0
      %p122 = por %p120, %p121
      %p123 = scmp.ne.s32.totalorder %s111, %s112
      %p124 = scmp.eq.s32.totalorder %s29, 1
      %p125 = por %p123, %p124
      %p127 = scmp.ne.s32.totalorder %s112, %s126
      %p128 = scmp.eq.s32.totalorder %s29, 0
      %p129 = por %p127, %p128
      %s131 = sadd.s32 %s130, 1
      %p134 = scmp.eq.s32.totalorder %s23, 1
      %p135 = scmp.ne.s32.totalorder %s130, %s132
      %p136 = scmp.eq.s32.totalorder %s23, 0
      %p137 = por %p135, %p136
      %p138 = scmp.ne.s32.totalorder %s130, %s132
      %p139 = scmp.eq.s32.totalorder %s28, 1
      %p140 = por %p138, %p139
      %p141 = scmp.ne.s32.totalorder %s132, %s133
      %p142 = scmp.eq.s32.totalorder %s28, 0
      %p143 = por %p141, %p142
      %p144 = scmp.ne.s32.totalorder %s132, %s133
      %p145 = scmp.eq.s32.totalorder %s29, 1
      %p146 = por %p144, %p145
      %p148 = scmp.ne.s32.totalorder %s133, %s147
      %p149 = scmp.eq.s32.totalorder %s29, 0
      %p150 = por %p148, %p149
      %s152 = sadd.s32 %s151, 1
      %p155 = scmp.eq.s32.totalorder %s23, 1
      %p156 = scmp.ne.s32.totalorder %s151, %s153
      %p157 = scmp.eq.s32.totalorder %s23, 0
      %p158 = por %p156, %p157
      %p159 = scmp.ne.s32.totalorder %s151, %s153
      %p160 = scmp.eq.s32.totalorder %s28, 1
      %p161 = por %p159, %p160
      %p162 = scmp.ne.s32.totalorder %s153, %s154
      %p163 = scmp.eq.s32.totalorder %s28, 0
      %p164 = por %p162, %p163
      %p165 = scmp.ne.s32.totalorder %s153, %s154
      %p166 = scmp.eq.s32.totalorder %s29, 1
      %p167 = por %p165, %p166
      %p169 = scmp.ne.s32.totalorder %s154, %s168
      %p170 = scmp.eq.s32.totalorder %s29, 0
      %p171 = por %p169, %p170
      %s173 = sadd.s32 %s172, 1
      %p176 = scmp.eq.s32.totalorder %s23, 1
      %p177 = scmp.ne.s32.totalorder %s172, %s174
      %p178 = scmp.eq.s32.totalorder %s23, 0
      %p179 = por %p177, %p178
      %p180 = scmp.ne.s32.totalorder %s172, %s174
      %p181 = scmp.eq.s32.totalorder %s28, 1
      %p182 = por %p180, %p181
      %p183 = scmp.ne.s32.totalorder %s174, %s175
      %p184 = scmp.eq.s32.totalorder %s28, 0
      %p185 = por %p183, %p184
      %p186 = scmp.ne.s32.totalorder %s174, %s175
      %p187 = scmp.eq.s32.totalorder %s29, 1
      %p188 = por %p186, %p187
      %p190 = scmp.ne.s32.totalorder %s175, %s189
      %p191 = scmp.eq.s32.totalorder %s29, 0
      %p192 = por %p190, %p191
      %s194 = sadd.s32 %s193, 1
      %p197 = scmp.eq.s32.totalorder %s23, 1
      %p198 = scmp.ne.s32.totalorder %s193, %s195
      %p199 = scmp.eq.s32.totalorder %s23, 0
      %p200 = por %p198, %p199
      %p201 = scmp.ne.s32.totalorder %s193, %s195
      %p202 = scmp.eq.s32.totalorder %s28, 1
      %p203 = por %p201, %p202
      %p204 = scmp.ne.s32.totalorder %s195, %s196
      %p205 = scmp.eq.s32.totalorder %s28, 0
      %p206 = por %p204, %p205
      %p207 = scmp.ne.s32.totalorder %s195, %s196
      %p208 = scmp.eq.s32.totalorder %s29, 1
      %p209 = por %p207, %p208
      %p211 = scmp.ne.s32.totalorder %s196, %s210
      %p212 = scmp.eq.s32.totalorder %s29, 0
      %p213 = por %p211, %p212
      %s215 = sadd.s32 %s214, 1
      %p218 = scmp.eq.s32.totalorder %s23, 1
      %p219 = scmp.ne.s32.totalorder %s214, %s216
      %p220 = scmp.eq.s32.totalorder %s23, 0
      %p221 = por %p219, %p220
      %p222 = scmp.ne.s32.totalorder %s214, %s216
      %p223 = scmp.eq.s32.totalorder %s28, 1
      %p224 = por %p222, %p223
      %p225 = scmp.ne.s32.totalorder %s216, %s217
      %p226 = scmp.eq.s32.totalorder %s28, 0
      %p227 = por %p225, %p226
      %p228 = scmp.ne.s32.totalorder %s216, %s217
      %p229 = scmp.eq.s32.totalorder %s29, 1
      %p230 = por %p228, %p229
      %p232 = scmp.ne.s32.totalorder %s217, %s231
      %p233 = scmp.eq.s32.totalorder %s29, 0
      %p234 = por %p232, %p233
      %s236 = sadd.s32 %s235, 1
      %p239 = scmp.eq.s32.totalorder %s23, 1
      %p240 = scmp.ne.s32.totalorder %s235, %s237
      %p241 = scmp.eq.s32.totalorder %s23, 0
      %p242 = por %p240, %p241
      %p243 = scmp.ne.s32.totalorder %s235, %s237
      %p244 = scmp.eq.s32.totalorder %s28, 1
      %p245 = por %p243, %p244
      %p246 = scmp.ne.s32.totalorder %s237, %s238
      %p247 = scmp.eq.s32.totalorder %s28, 0
      %p248 = por %p246, %p247
      %p249 = scmp.ne.s32.totalorder %s237, %s238
      %p250 = scmp.eq.s32.totalorder %s29, 1
      %p251 = por %p249, %p250
      %p253 = scmp.ne.s32.totalorder %s238, %s252
      %p254 = scmp.eq.s32.totalorder %s29, 0
      %p255 = por %p253, %p254
      %s257 = sadd.s32 %s256, 1
      %p260 = scmp.eq.s32.totalorder %s23, 1
      %p261 = scmp.ne.s32.totalorder %s256, %s258
      %p262 = scmp.eq.s32.totalorder %s23, 0
      %p263 = por %p261, %p262
      %p264 = scmp.ne.s32.totalorder %s256, %s258
      %p265 = scmp.eq.s32.totalorder %s28, 1
      %p266 = por %p264, %p265
      %p267 = scmp.ne.s32.totalorder %s258, %s259
      %p268 = scmp.eq.s32.totalorder %s28, 0
      %p269 = por %p267, %p268
      %p270 = scmp.ne.s32.totalorder %s258, %s259
      %p271 = scmp.eq.s32.totalorder %s29, 1
      %p272 = por %p270, %p271
      %p274 = scmp.ne.s32.totalorder %s259, %s273
      %p275 = scmp.eq.s32.totalorder %s29, 0
      %p276 = por %p274, %p275
      %s278 = sadd.s32 %s277, 1
      %p281 = scmp.eq.s32.totalorder %s23, 1
      %p282 = scmp.ne.s32.totalorder %s277, %s279
      %p283 = scmp.eq.s32.totalorder %s23, 0
      %p284 = por %p282, %p283
      %p285 = scmp.ne.s32.totalorder %s277, %s279
      %p286 = scmp.eq.s32.totalorder %s28, 1
      %p287 = por %p285, %p286
      %p288 = scmp.ne.s32.totalorder %s279, %s280
      %p289 = scmp.eq.s32.totalorder %s28, 0
      %p290 = por %p288, %p289
      %p291 = scmp.ne.s32.totalorder %s279, %s280
      %p292 = scmp.eq.s32.totalorder %s29, 1
      %p293 = por %p291, %p292
      %p295 = scmp.ne.s32.totalorder %s280, %s294
      %p296 = scmp.eq.s32.totalorder %s29, 0
      %p297 = por %p295, %p296
      %s299 = sadd.s32 %s298, 1
      %p302 = scmp.eq.s32.totalorder %s23, 1
      %p303 = scmp.ne.s32.totalorder %s298, %s300
      %p304 = scmp.eq.s32.totalorder %s23, 0
      %p305 = por %p303, %p304
      %p306 = scmp.ne.s32.totalorder %s298, %s300
      %p307 = scmp.eq.s32.totalorder %s28, 1
      %p308 = por %p306, %p307
      %p309 = scmp.ne.s32.totalorder %s300, %s301
      %p310 = scmp.eq.s32.totalorder %s28, 0
      %p311 = por %p309, %p310
      %p312 = scmp.ne.s32.totalorder %s300, %s301
      %p313 = scmp.eq.s32.totalorder %s29, 1
      %p314 = por %p312, %p313
      %p316 = scmp.ne.s32.totalorder %s301, %s315
      %p317 = scmp.eq.s32.totalorder %s29, 0
      %p318 = por %p316, %p317
      %s320 = sadd.s32 %s319, 1
      %p323 = scmp.eq.s32.totalorder %s23, 1
      %p324 = scmp.ne.s32.totalorder %s319, %s321
      %p325 = scmp.eq.s32.totalorder %s23, 0
      %p326 = por %p324, %p325
      %p327 = scmp.ne.s32.totalorder %s319, %s321
      %p328 = scmp.eq.s32.totalorder %s28, 1
      %p329 = por %p327, %p328
      %p330 = scmp.ne.s32.totalorder %s321, %s322
      %p331 = scmp.eq.s32.totalorder %s28, 0
      %p332 = por %p330, %p331
      %p333 = scmp.ne.s32.totalorder %s321, %s322
      %p334 = scmp.eq.s32.totalorder %s29, 1
      %p335 = por %p333, %p334
      %p337 = scmp.ne.s32.totalorder %s322, %s336
      %p338 = scmp.eq.s32.totalorder %s29, 0
      %p339 = por %p337, %p338
      %s340 = ssub.s32 %s23, %s30
      %p341 = scmp.eq.s32.totalorder %s340, 0
      %s343 = sadd.s32 %s342, 1
      %s344 = scalar_select %p341, %s342, %s343
      %p347 = pneg %p341
      %p348 = scmp.eq.s32.totalorder %s23, 1
      %p349 = por %p347, %p348
      %p350 = scmp.ne.s32.totalorder %s342, %s345
      %p351 = scmp.eq.s32.totalorder %s23, 0
      %p352 = por %p350, %p351
      %p353 = scmp.ne.s32.totalorder %s342, %s345
      %p354 = scmp.eq.s32.totalorder %s28, 1
      %p355 = por %p353, %p354
      %p356 = scmp.ne.s32.totalorder %s345, %s346
      %p357 = scmp.eq.s32.totalorder %s28, 0
      %p358 = por %p356, %p357
      %p359 = scmp.ne.s32.totalorder %s345, %s346
      %p360 = scmp.eq.s32.totalorder %s29, 1
      %p361 = por %p359, %p360
      %p363 = scmp.ne.s32.totalorder %s346, %s362
      %p364 = scmp.eq.s32.totalorder %s29, 0
      %p365 = por %p363, %p364
      %p366 = scmp.le.s32.totalorder 1, %s23
      %p367 = scmp.lt.s32.totalorder %s23, 3
      %p368 = pnand %p366, %p367
      %p369 = pneg %p368
      // Predicated region
      $region9: #{wide_weighted_resnet_block.1} parent=5 // pred_check
        _
      $region10: #{wide_weighted_resnet_block.1} parent=5 // pred_check_branch
        %371 = sbr.rel (%p368) target = $region12
      $region11: #{wide_weighted_resnet_block.1} parent=5 // pred_region
        %s372 = ssub.s32 %s23, 1
        // Predicated region
        $region13: #{wide_weighted_resnet_block.1} parent=11 // pred_check
          %p373 = pneg %p122
        $region14: #{wide_weighted_resnet_block.1} parent=11 // pred_check_branch
          %375 = sbr.rel (%p373) target = $region16
        $region15: #{wide_weighted_resnet_block.1} parent=11 // pred_region
          _
        $region16: #{wide_weighted_resnet_block.1} parent=11 // pred_fallthru
          _
        // Predicated region
        $region17: #{wide_weighted_resnet_block.1} parent=11 // pred_check
          %p376 = pneg %p143
        $region18: #{wide_weighted_resnet_block.1} parent=11 // pred_check_branch
          %378 = sbr.rel (%p376) target = $region20
        $region19: #{wide_weighted_resnet_block.1} parent=11 // pred_region
          _
        $region20: #{wide_weighted_resnet_block.1} parent=11 // pred_fallthru
          _
        // Predicated region
        $region21: #{wide_weighted_resnet_block.1} parent=11 // pred_check
          %p379 = pneg %p164
        $region22: #{wide_weighted_resnet_block.1} parent=11 // pred_check_branch
          %381 = sbr.rel (%p379) target = $region24
        $region23: #{wide_weighted_resnet_block.1} parent=11 // pred_region
          _
        $region24: #{wide_weighted_resnet_block.1} parent=11 // pred_fallthru
          _
        // Predicated region
        $region25: #{wide_weighted_resnet_block.1} parent=11 // pred_check
          %p382 = pneg %p185
        $region26: #{wide_weighted_resnet_block.1} parent=11 // pred_check_branch
          %384 = sbr.rel (%p382) target = $region28
        $region27: #{wide_weighted_resnet_block.1} parent=11 // pred_region
          _
        $region28: #{wide_weighted_resnet_block.1} parent=11 // pred_fallthru
          _
        // Predicated region
        $region29: #{wide_weighted_resnet_block.1} parent=11 // pred_check
          %p385 = pneg %p206
        $region30: #{wide_weighted_resnet_block.1} parent=11 // pred_check_branch
          %387 = sbr.rel (%p385) target = $region32
        $region31: #{wide_weighted_resnet_block.1} parent=11 // pred_region
          _
        $region32: #{wide_weighted_resnet_block.1} parent=11 // pred_fallthru
          _
        // Predicated region
        $region33: #{wide_weighted_resnet_block.1} parent=11 // pred_check
          %p388 = pneg %p227
        $region34: #{wide_weighted_resnet_block.1} parent=11 // pred_check_branch
          %390 = sbr.rel (%p388) target = $region36
        $region35: #{wide_weighted_resnet_block.1} parent=11 // pred_region
          _
        $region36: #{wide_weighted_resnet_block.1} parent=11 // pred_fallthru
          _
        // Predicated region
        $region37: #{wide_weighted_resnet_block.1} parent=11 // pred_check
          %p391 = pneg %p248
        $region38: #{wide_weighted_resnet_block.1} parent=11 // pred_check_branch
          %393 = sbr.rel (%p391) target = $region40
        $region39: #{wide_weighted_resnet_block.1} parent=11 // pred_region
          _
        $region40: #{wide_weighted_resnet_block.1} parent=11 // pred_fallthru
          _
        // Predicated region
        $region41: #{wide_weighted_resnet_block.1} parent=11 // pred_check
          %p394 = pneg %p269
        $region42: #{wide_weighted_resnet_block.1} parent=11 // pred_check_branch
          %396 = sbr.rel (%p394) target = $region44
        $region43: #{wide_weighted_resnet_block.1} parent=11 // pred_region
          _
        $region44: #{wide_weighted_resnet_block.1} parent=11 // pred_fallthru
          _
        // Predicated region
        $region45: #{wide_weighted_resnet_block.1} parent=11 // pred_check
          %p397 = pneg %p290
        $region46: #{wide_weighted_resnet_block.1} parent=11 // pred_check_branch
          %399 = sbr.rel (%p397) target = $region48
        $region47: #{wide_weighted_resnet_block.1} parent=11 // pred_region
          _
        $region48: #{wide_weighted_resnet_block.1} parent=11 // pred_fallthru
          _
        // Predicated region
        $region49: #{wide_weighted_resnet_block.1} parent=11 // pred_check
          %p400 = pneg %p311
        $region50: #{wide_weighted_resnet_block.1} parent=11 // pred_check_branch
          %402 = sbr.rel (%p400) target = $region52
        $region51: #{wide_weighted_resnet_block.1} parent=11 // pred_region
          _
        $region52: #{wide_weighted_resnet_block.1} parent=11 // pred_fallthru
          _
        // Predicated region
        $region53: #{wide_weighted_resnet_block.1} parent=11 // pred_check
          %p403 = pneg %p332
        $region54: #{wide_weighted_resnet_block.1} parent=11 // pred_check_branch
          %405 = sbr.rel (%p403) target = $region56
        $region55: #{wide_weighted_resnet_block.1} parent=11 // pred_region
          _
        $region56: #{wide_weighted_resnet_block.1} parent=11 // pred_fallthru
          _
      $region12: #{wide_weighted_resnet_block.1} parent=5 // pred_fallthru
        _
      %p406 = scmp.lt.s32.totalorder %s23, 2
      // Predicated region
      $region57: #{wide_weighted_resnet_block.1} parent=5 // pred_check
        %p407 = pneg %p406
      $region58: #{wide_weighted_resnet_block.1} parent=5 // pred_check_branch
        %409 = sbr.rel (%p407) target = $region60
      $region59: #{wide_weighted_resnet_block.1} parent=5 // pred_region
        // Predicated region
        $region61: #{wide_weighted_resnet_block.1} parent=59 // pred_check
          %p410 = pneg %p43
        $region62: #{wide_weighted_resnet_block.1} parent=59 // pred_check_branch
          %412 = sbr.rel (%p410) target = $region64
        $region63: #{wide_weighted_resnet_block.1} parent=59 // pred_region
          %p413 = scmp.lt.s32.totalorder %s23, 1
          %s414 = scalar_select %p413, %s23, 1
          %s415 = smul.addr %s414, 32
          %s416 = smul.addr %s415, 4
          %s417 = scalar_lea.vmem %s0, %s416
        $region64: #{wide_weighted_resnet_block.1} parent=59 // pred_fallthru
          _
        // Predicated region
        $region65: #{wide_weighted_resnet_block.1} parent=59 // pred_check
          %p418 = pneg %p69
        $region66: #{wide_weighted_resnet_block.1} parent=59 // pred_check_branch
          %420 = sbr.rel (%p418) target = $region68
        $region67: #{wide_weighted_resnet_block.1} parent=59 // pred_region
          %p421 = scmp.lt.s32.totalorder %s23, 1
          %s422 = scalar_select %p421, %s23, 1
          %s423 = scalar_lea.vmem %s1, %s422
        $region68: #{wide_weighted_resnet_block.1} parent=59 // pred_fallthru
          _
        // Predicated region
        $region69: #{wide_weighted_resnet_block.1} parent=59 // pred_check
          %p424 = pneg %p95
        $region70: #{wide_weighted_resnet_block.1} parent=59 // pred_check_branch
          %426 = sbr.rel (%p424) target = $region72
        $region71: #{wide_weighted_resnet_block.1} parent=59 // pred_region
          %p427 = scmp.lt.s32.totalorder %s23, 1
          %s428 = scalar_select %p427, %s23, 1
          %s429 = scalar_lea.vmem %s2, %s428
        $region72: #{wide_weighted_resnet_block.1} parent=59 // pred_fallthru
          _
      $region60: #{wide_weighted_resnet_block.1} parent=5 // pred_fallthru
        _
      %p430 = scmp.le.s32.totalorder 1, %s23
      %p431 = scmp.lt.s32.totalorder %s23, 3
      %p432 = pnand %p430, %p431
      %p433 = pneg %p432
      // Predicated region
      $region73: #{wide_weighted_resnet_block.1} parent=5 // pred_check
        _
      $region74: #{wide_weighted_resnet_block.1} parent=5 // pred_check_branch
        %435 = sbr.rel (%p432) target = $region76
      $region75: #{wide_weighted_resnet_block.1} parent=5 // pred_region
        %s436 = ssub.s32 %s23, 1
        %p437 = scmp.lt.s32.totalorder %s28, 1
        %s438 = scalar_select %p437, %s28, 1
        %s439 = smul.addr %s438, 32
        %s440 = smul.addr %s439, 4
        %s441 = scalar_lea.vmem %s0, %s440
        %p442 = pneg %p49
        %p443 = pneg %p46
        %p444 = scmp.lt.s32.totalorder %s28, 1
        %s445 = scalar_select %p444, %s28, 1
        %s446 = scalar_lea.vmem %s1, %s445
        %p447 = pneg %p75
        %p448 = pneg %p72
        %p449 = scmp.lt.s32.totalorder %s28, 1
        %s450 = scalar_select %p449, %s28, 1
        %s451 = scalar_lea.vmem %s2, %s450
        %p452 = pneg %p101
        %p453 = pneg %p98
        %p454 = pneg %p122
        %p455 = pneg %p119
        %p456 = pneg %p143
        %p457 = pneg %p140
        %p458 = pneg %p164
        %p459 = pneg %p161
        %p460 = pneg %p185
        %p461 = pneg %p182
        %p462 = pneg %p206
        %p463 = pneg %p203
        %p464 = pneg %p227
        %p465 = pneg %p224
        %p466 = pneg %p248
        %p467 = pneg %p245
        %p468 = pneg %p269
        %p469 = pneg %p266
        %p470 = pneg %p290
        %p471 = pneg %p287
        %p472 = pneg %p311
        %p473 = pneg %p308
        %p474 = pneg %p332
        %p475 = pneg %p329
        %p476 = pneg %p358
        %p477 = pneg %p355
        %s478 = sand.u32 %s345, 1
        %s479 = scalar_lea.sflag [#allocation5], %s478
        %s480 = sand.u32 %s345, 1
        %s481 = smul.addr %s480, 256
        %s482 = scalar_lea.vmem [#allocation4], %s481
        %p483 = scmp.lt.s32.totalorder %s28, 1
        %s484 = scalar_select %p483, %s28, 1
        %s485 = smul.addr %s484, 32
        %s486 = smul.addr %s485, 4
        %s487 = scalar_lea.vmem %s0, %s486
        %p488 = scmp.lt.s32.totalorder %s28, 1
        %s489 = scalar_select %p488, %s28, 1
        %s490 = scalar_lea.vmem %s1, %s489
        %p491 = scmp.lt.s32.totalorder %s28, 1
        %s492 = scalar_select %p491, %s28, 1
        %s493 = scalar_lea.vmem %s2, %s492
        %v495 = vld [vmem:[%s487] sm:$0xf]
        %v496 = vld [vmem:[%s487 + $0x4] sm:$0xf]
        %v497 = vld [vmem:[%s487 + $0x8] sm:$0xf]
        %v498 = vld [vmem:[%s487 + $0xc] sm:$0xf]
        %v499 = vld [vmem:[%s487 + $0x10] sm:$0xf]
        %v500 = vld [vmem:[%s487 + $0x14] sm:$0xf]
        %v501 = vld [vmem:[%s487 + $0x18] sm:$0xf]
        %v502 = vld [vmem:[%s487 + $0x1c] sm:$0xf]
        %v503 = vld [vmem:[%s487 + $0x20] sm:$0xf]
        %v504 = vld [vmem:[%s487 + $0x24] sm:$0xf]
        %v505 = vld [vmem:[%s487 + $0x28] sm:$0xf]
        %v506 = vld [vmem:[%s487 + $0x2c] sm:$0xf]
        %v507 = vld [vmem:[%s487 + $0x30] sm:$0xf]
        %v508 = vld [vmem:[%s487 + $0x34] sm:$0xf]
        %v509 = vld [vmem:[%s487 + $0x38] sm:$0xf]
        %v510 = vld [vmem:[%s487 + $0x3c] sm:$0xf]
        %v511 = vld [vmem:[%s487 + $0x40] sm:$0xf]
        %v512 = vld [vmem:[%s487 + $0x44] sm:$0xf]
        %v513 = vld [vmem:[%s487 + $0x48] sm:$0xf]
        %v514 = vld [vmem:[%s487 + $0x4c] sm:$0xf]
        %v515 = vld [vmem:[%s487 + $0x50] sm:$0xf]
        %v516 = vld [vmem:[%s487 + $0x54] sm:$0xf]
        %v517 = vld [vmem:[%s487 + $0x58] sm:$0xf]
        %v518 = vld [vmem:[%s487 + $0x5c] sm:$0xf]
        %v519 = vld [vmem:[%s487 + $0x60] sm:$0xf]
        %v520 = vld [vmem:[%s487 + $0x64] sm:$0xf]
        %v521 = vld [vmem:[%s487 + $0x68] sm:$0xf]
        %v522 = vld [vmem:[%s487 + $0x6c] sm:$0xf]
        %v523 = vld [vmem:[%s487 + $0x70] sm:$0xf]
        %v524 = vld [vmem:[%s487 + $0x74] sm:$0xf]
        %v525 = vld [vmem:[%s487 + $0x78] sm:$0xf]
        %v526 = vld [vmem:[%s487 + $0x7c] sm:$0xf]
        %vm527 = vcmask 257024
        %528 = vst.msk [vmem:[#allocation2] sm:$0xf] %vm527, 0
        %529 = vst.msk [vmem:[#allocation2 + $0x4] sm:$0xf] %vm527, 0
        %vm530 = vcmask 253952
        %531 = vst.msk [vmem:[#allocation2 + $0x8] sm:$0x1] %vm530, 0
        %s532 = scalar_lea.vmem [#allocation2], 204
        %533 = vst.msk [vmem:[%s532] sm:$0xf] %vm527, 0
        %534 = vst.msk [vmem:[%s532 + $0x4] sm:$0xf] %vm527, 0
        %535 = vst.msk [vmem:[%s532 + $0x8] sm:$0x1] %vm530, 0
        %s536 = scalar_lea.vmem [#allocation2], 12
        %vm537 = vcmask 253952
        %vm538 = vsmask.f32 256
        %vm539 = vmand %vm537, %vm538
        %v540 = vld [vmem:[%s536] sm:$0x1]
        %v541 = vsel %vm539, 0, %v540
        %542 = vst [vmem:[%s536] sm:$0x1] %v541
        %v543 = vld [vmem:[%s536 + $0xc] sm:$0x1]
        %v544 = vsel %vm539, 0, %v543
        %545 = vst [vmem:[%s536 + $0xc] sm:$0x1] %v544
        %v546 = vld [vmem:[%s536 + $0x18] sm:$0x1]
        %v547 = vsel %vm539, 0, %v546
        %548 = vst [vmem:[%s536 + $0x18] sm:$0x1] %v547
        %v549 = vld [vmem:[%s536 + $0x24] sm:$0x1]
        %v550 = vsel %vm539, 0, %v549
        %551 = vst [vmem:[%s536 + $0x24] sm:$0x1] %v550
        %v552 = vld [vmem:[%s536 + $0x30] sm:$0x1]
        %v553 = vsel %vm539, 0, %v552
        %554 = vst [vmem:[%s536 + $0x30] sm:$0x1] %v553
        %v555 = vld [vmem:[%s536 + $0x3c] sm:$0x1]
        %v556 = vsel %vm539, 0, %v555
        %557 = vst [vmem:[%s536 + $0x3c] sm:$0x1] %v556
        %v558 = vld [vmem:[%s536 + $0x48] sm:$0x1]
        %v559 = vsel %vm539, 0, %v558
        %560 = vst [vmem:[%s536 + $0x48] sm:$0x1] %v559
        %v561 = vld [vmem:[%s536 + $0x54] sm:$0x1]
        %v562 = vsel %vm539, 0, %v561
        %563 = vst [vmem:[%s536 + $0x54] sm:$0x1] %v562
        %v564 = vld [vmem:[%s536 + $0x60] sm:$0x1]
        %v565 = vsel %vm539, 0, %v564
        %566 = vst [vmem:[%s536 + $0x60] sm:$0x1] %v565
        %v567 = vld [vmem:[%s536 + $0x6c] sm:$0x1]
        %v568 = vsel %vm539, 0, %v567
        %569 = vst [vmem:[%s536 + $0x6c] sm:$0x1] %v568
        %v570 = vld [vmem:[%s536 + $0x78] sm:$0x1]
        %v571 = vsel %vm539, 0, %v570
        %572 = vst [vmem:[%s536 + $0x78] sm:$0x1] %v571
        %v573 = vld [vmem:[%s536 + $0x84] sm:$0x1]
        %v574 = vsel %vm539, 0, %v573
        %575 = vst [vmem:[%s536 + $0x84] sm:$0x1] %v574
        %v576 = vld [vmem:[%s536 + $0x90] sm:$0x1]
        %v577 = vsel %vm539, 0, %v576
        %578 = vst [vmem:[%s536 + $0x90] sm:$0x1] %v577
        %v579 = vld [vmem:[%s536 + $0x9c] sm:$0x1]
        %v580 = vsel %vm539, 0, %v579
        %581 = vst [vmem:[%s536 + $0x9c] sm:$0x1] %v580
        %v582 = vld [vmem:[%s536 + $0xa8] sm:$0x1]
        %v583 = vsel %vm539, 0, %v582
        %584 = vst [vmem:[%s536 + $0xa8] sm:$0x1] %v583
        %v585 = vld [vmem:[%s536 + $0xb4] sm:$0x1]
        %v586 = vsel %vm539, 0, %v585
        %587 = vst [vmem:[%s536 + $0xb4] sm:$0x1] %v586
        %vm588 = vsmask.f32 7938
        %vm589 = vmand %vm537, %vm588
        %v590 = vld [vmem:[%s536 + $0x8] sm:$0x1]
        %v591 = vsel %vm589, 0, %v590
        %592 = vst [vmem:[%s536 + $0x8] sm:$0x1] %v591
        %v593 = vld [vmem:[%s536 + $0x14] sm:$0x1]
        %v594 = vsel %vm589, 0, %v593
        %595 = vst [vmem:[%s536 + $0x14] sm:$0x1] %v594
        %v596 = vld [vmem:[%s536 + $0x20] sm:$0x1]
        %v597 = vsel %vm589, 0, %v596
        %598 = vst [vmem:[%s536 + $0x20] sm:$0x1] %v597
        %v599 = vld [vmem:[%s536 + $0x2c] sm:$0x1]
        %v600 = vsel %vm589, 0, %v599
        %601 = vst [vmem:[%s536 + $0x2c] sm:$0x1] %v600
        %v602 = vld [vmem:[%s536 + $0x38] sm:$0x1]
        %v603 = vsel %vm589, 0, %v602
        %604 = vst [vmem:[%s536 + $0x38] sm:$0x1] %v603
        %v605 = vld [vmem:[%s536 + $0x44] sm:$0x1]
        %v606 = vsel %vm589, 0, %v605
        %607 = vst [vmem:[%s536 + $0x44] sm:$0x1] %v606
        %v608 = vld [vmem:[%s536 + $0x50] sm:$0x1]
        %v609 = vsel %vm589, 0, %v608
        %610 = vst [vmem:[%s536 + $0x50] sm:$0x1] %v609
        %v611 = vld [vmem:[%s536 + $0x5c] sm:$0x1]
        %v612 = vsel %vm589, 0, %v611
        %613 = vst [vmem:[%s536 + $0x5c] sm:$0x1] %v612
        %v614 = vld [vmem:[%s536 + $0x68] sm:$0x1]
        %v615 = vsel %vm589, 0, %v614
        %616 = vst [vmem:[%s536 + $0x68] sm:$0x1] %v615
        %v617 = vld [vmem:[%s536 + $0x74] sm:$0x1]
        %v618 = vsel %vm589, 0, %v617
        %619 = vst [vmem:[%s536 + $0x74] sm:$0x1] %v618
        %v620 = vld [vmem:[%s536 + $0x80] sm:$0x1]
        %v621 = vsel %vm589, 0, %v620
        %622 = vst [vmem:[%s536 + $0x80] sm:$0x1] %v621
        %v623 = vld [vmem:[%s536 + $0x8c] sm:$0x1]
        %v624 = vsel %vm589, 0, %v623
        %625 = vst [vmem:[%s536 + $0x8c] sm:$0x1] %v624
        %v626 = vld [vmem:[%s536 + $0x98] sm:$0x1]
        %v627 = vsel %vm589, 0, %v626
        %628 = vst [vmem:[%s536 + $0x98] sm:$0x1] %v627
        %v629 = vld [vmem:[%s536 + $0xa4] sm:$0x1]
        %v630 = vsel %vm589, 0, %v629
        %631 = vst [vmem:[%s536 + $0xa4] sm:$0x1] %v630
        %v632 = vld [vmem:[%s536 + $0xb0] sm:$0x1]
        %v633 = vsel %vm589, 0, %v632
        %634 = vst [vmem:[%s536 + $0xb0] sm:$0x1] %v633
        %v635 = vld [vmem:[%s536 + $0xbc] sm:$0x1]
        %v636 = vsel %vm589, 0, %v635
        %637 = vst [vmem:[%s536 + $0xbc] sm:$0x1] %v636
        %vm638 = vsmask.f32 4368
        %vm639 = vmor %vm538, %vm638
        %v641 = vshrl.u32 %v495, 16
        %v643 = vrot.slane %v641, 7
        %v644 = vshll.u32 %v495, 16
        %v646 = vor.u32 %v643, %v644
        %v647 = vrot.slane %v643, 4
        %v649 = vshrl.u32 %v496, 16
        %v651 = vrot.slane %v649, 7
        %v652 = vshll.u32 %v496, 16
        %v654 = vor.u32 %v651, %v652
        %v655 = vsel %vm639, %v647, %v654
        %v656 = vrot.slane %v651, 4
        %v658 = vshrl.u32 %v497, 16
        %v660 = vrot.slane %v658, 7
        %v661 = vshll.u32 %v497, 16
        %v663 = vor.u32 %v660, %v661
        %v664 = vrot.slane %v660, 4
        %v666 = vshrl.u32 %v498, 16
        %v668 = vrot.slane %v666, 7
        %v669 = vshll.u32 %v498, 16
        %v671 = vor.u32 %v668, %v669
        %v672 = vsel %vm639, %v664, %v671
        %v673 = vrot.slane %v668, 4
        %v675 = vshrl.u32 %v499, 16
        %v677 = vrot.slane %v675, 7
        %v678 = vshll.u32 %v499, 16
        %v680 = vor.u32 %v677, %v678
        %v681 = vrot.slane %v677, 4
        %v683 = vshrl.u32 %v500, 16
        %v685 = vrot.slane %v683, 7
        %v686 = vshll.u32 %v500, 16
        %v688 = vor.u32 %v685, %v686
        %v689 = vsel %vm639, %v681, %v688
        %v690 = vrot.slane %v685, 4
        %v692 = vshrl.u32 %v501, 16
        %v694 = vrot.slane %v692, 7
        %v695 = vshll.u32 %v501, 16
        %v697 = vor.u32 %v694, %v695
        %v698 = vrot.slane %v694, 4
        %v700 = vshrl.u32 %v502, 16
        %v702 = vrot.slane %v700, 7
        %v703 = vshll.u32 %v502, 16
        %v705 = vor.u32 %v702, %v703
        %v706 = vsel %vm639, %v698, %v705
        %v707 = vrot.slane %v702, 4
        %v709 = vshrl.u32 %v503, 16
        %v711 = vrot.slane %v709, 7
        %v712 = vshll.u32 %v503, 16
        %v714 = vor.u32 %v711, %v712
        %v715 = vrot.slane %v711, 4
        %v717 = vshrl.u32 %v504, 16
        %v719 = vrot.slane %v717, 7
        %v720 = vshll.u32 %v504, 16
        %v722 = vor.u32 %v719, %v720
        %v723 = vsel %vm639, %v715, %v722
        %v724 = vrot.slane %v719, 4
        %v726 = vshrl.u32 %v505, 16
        %v728 = vrot.slane %v726, 7
        %v729 = vshll.u32 %v505, 16
        %v731 = vor.u32 %v728, %v729
        %v732 = vrot.slane %v728, 4
        %v734 = vshrl.u32 %v506, 16
        %v736 = vrot.slane %v734, 7
        %v737 = vshll.u32 %v506, 16
        %v739 = vor.u32 %v736, %v737
        %v740 = vsel %vm639, %v732, %v739
        %v741 = vrot.slane %v736, 4
        %v743 = vshrl.u32 %v507, 16
        %v745 = vrot.slane %v743, 7
        %v746 = vshll.u32 %v507, 16
        %v748 = vor.u32 %v745, %v746
        %v749 = vrot.slane %v745, 4
        %v751 = vshrl.u32 %v508, 16
        %v753 = vrot.slane %v751, 7
        %v754 = vshll.u32 %v508, 16
        %v756 = vor.u32 %v753, %v754
        %v757 = vsel %vm639, %v749, %v756
        %v758 = vrot.slane %v753, 4
        %v760 = vshrl.u32 %v509, 16
        %v762 = vrot.slane %v760, 7
        %v763 = vshll.u32 %v509, 16
        %v765 = vor.u32 %v762, %v763
        %v766 = vrot.slane %v762, 4
        %v768 = vshrl.u32 %v510, 16
        %v770 = vrot.slane %v768, 7
        %v771 = vshll.u32 %v510, 16
        %v773 = vor.u32 %v770, %v771
        %v774 = vsel %vm639, %v766, %v773
        %v775 = vrot.slane %v770, 4
        %v777 = vshrl.u32 %v511, 16
        %v779 = vrot.slane %v777, 7
        %v780 = vshll.u32 %v511, 16
        %v782 = vor.u32 %v779, %v780
        %v783 = vrot.slane %v779, 4
        %v785 = vshrl.u32 %v512, 16
        %v787 = vrot.slane %v785, 7
        %v788 = vshll.u32 %v512, 16
        %v790 = vor.u32 %v787, %v788
        %v791 = vsel %vm639, %v783, %v790
        %v792 = vrot.slane %v787, 4
        %v794 = vshrl.u32 %v513, 16
        %v796 = vrot.slane %v794, 7
        %v797 = vshll.u32 %v513, 16
        %v799 = vor.u32 %v796, %v797
        %v800 = vrot.slane %v796, 4
        %v802 = vshrl.u32 %v514, 16
        %v804 = vrot.slane %v802, 7
        %v805 = vshll.u32 %v514, 16
        %v807 = vor.u32 %v804, %v805
        %v808 = vsel %vm639, %v800, %v807
        %v809 = vrot.slane %v804, 4
        %v811 = vshrl.u32 %v515, 16
        %v813 = vrot.slane %v811, 7
        %v814 = vshll.u32 %v515, 16
        %v816 = vor.u32 %v813, %v814
        %v817 = vrot.slane %v813, 4
        %v819 = vshrl.u32 %v516, 16
        %v821 = vrot.slane %v819, 7
        %v822 = vshll.u32 %v516, 16
        %v824 = vor.u32 %v821, %v822
        %v825 = vsel %vm639, %v817, %v824
        %v826 = vrot.slane %v821, 4
        %v828 = vshrl.u32 %v517, 16
        %v830 = vrot.slane %v828, 7
        %v831 = vshll.u32 %v517, 16
        %v833 = vor.u32 %v830, %v831
        %v834 = vrot.slane %v830, 4
        %v836 = vshrl.u32 %v518, 16
        %v838 = vrot.slane %v836, 7
        %v839 = vshll.u32 %v518, 16
        %v841 = vor.u32 %v838, %v839
        %v842 = vsel %vm639, %v834, %v841
        %v843 = vrot.slane %v838, 4
        %v845 = vshrl.u32 %v519, 16
        %v847 = vrot.slane %v845, 7
        %v848 = vshll.u32 %v519, 16
        %v850 = vor.u32 %v847, %v848
        %v851 = vrot.slane %v847, 4
        %v853 = vshrl.u32 %v520, 16
        %v855 = vrot.slane %v853, 7
        %v856 = vshll.u32 %v520, 16
        %v858 = vor.u32 %v855, %v856
        %v859 = vsel %vm639, %v851, %v858
        %v860 = vrot.slane %v855, 4
        %v862 = vshrl.u32 %v521, 16
        %v864 = vrot.slane %v862, 7
        %v865 = vshll.u32 %v521, 16
        %v867 = vor.u32 %v864, %v865
        %v868 = vrot.slane %v864, 4
        %v870 = vshrl.u32 %v522, 16
        %v872 = vrot.slane %v870, 7
        %v873 = vshll.u32 %v522, 16
        %v875 = vor.u32 %v872, %v873
        %v876 = vsel %vm639, %v868, %v875
        %v877 = vrot.slane %v872, 4
        %v879 = vshrl.u32 %v523, 16
        %v881 = vrot.slane %v879, 7
        %v882 = vshll.u32 %v523, 16
        %v884 = vor.u32 %v881, %v882
        %v885 = vrot.slane %v881, 4
        %v887 = vshrl.u32 %v524, 16
        %v889 = vrot.slane %v887, 7
        %v890 = vshll.u32 %v524, 16
        %v892 = vor.u32 %v889, %v890
        %v893 = vsel %vm639, %v885, %v892
        %v894 = vrot.slane %v889, 4
        %v896 = vshrl.u32 %v525, 16
        %v898 = vrot.slane %v896, 7
        %v899 = vshll.u32 %v525, 16
        %v901 = vor.u32 %v898, %v899
        %v902 = vrot.slane %v898, 4
        %v904 = vshrl.u32 %v526, 16
        %v906 = vrot.slane %v904, 7
        %v907 = vshll.u32 %v526, 16
        %v909 = vor.u32 %v906, %v907
        %v910 = vsel %vm639, %v902, %v909
        %v911 = vrot.slane %v906, 4
        %vm960 = vcmask 257024
        %vm961 = vmand %vm960, %vm588
        %v962 = vld [vmem:[%s536] sm:$0xf]
        %v963 = vsel %vm961, %v646, %v962
        %964 = vst [vmem:[%s536] sm:$0xf] %v963
        %965 = vst.msk [vmem:[%s536 + $0x4] sm:$0xf] %vm527, %v655
        %v966 = vld [vmem:[%s536 + $0x8] sm:$0x1]
        %v967 = vsel %vm539, %v656, %v966
        %968 = vst [vmem:[%s536 + $0x8] sm:$0x1] %v967
        %v969 = vld [vmem:[%s536 + $0xc] sm:$0xf]
        %v970 = vsel %vm961, %v663, %v969
        %971 = vst [vmem:[%s536 + $0xc] sm:$0xf] %v970
        %972 = vst.msk [vmem:[%s536 + $0x10] sm:$0xf] %vm527, %v672
        %v973 = vld [vmem:[%s536 + $0x14] sm:$0x1]
        %v974 = vsel %vm539, %v673, %v973
        %975 = vst [vmem:[%s536 + $0x14] sm:$0x1] %v974
        %v976 = vld [vmem:[%s536 + $0x18] sm:$0xf]
        %v977 = vsel %vm961, %v680, %v976
        %978 = vst [vmem:[%s536 + $0x18] sm:$0xf] %v977
        %979 = vst.msk [vmem:[%s536 + $0x1c] sm:$0xf] %vm527, %v689
        %v980 = vld [vmem:[%s536 + $0x20] sm:$0x1]
        %v981 = vsel %vm539, %v690, %v980
        %982 = vst [vmem:[%s536 + $0x20] sm:$0x1] %v981
        %v983 = vld [vmem:[%s536 + $0x24] sm:$0xf]
        %v984 = vsel %vm961, %v697, %v983
        %985 = vst [vmem:[%s536 + $0x24] sm:$0xf] %v984
        %986 = vst.msk [vmem:[%s536 + $0x28] sm:$0xf] %vm527, %v706
        %v987 = vld [vmem:[%s536 + $0x2c] sm:$0x1]
        %v988 = vsel %vm539, %v707, %v987
        %989 = vst [vmem:[%s536 + $0x2c] sm:$0x1] %v988
        %v990 = vld [vmem:[%s536 + $0x30] sm:$0xf]
        %v991 = vsel %vm961, %v714, %v990
        %992 = vst [vmem:[%s536 + $0x30] sm:$0xf] %v991
        %993 = vst.msk [vmem:[%s536 + $0x34] sm:$0xf] %vm527, %v723
        %v994 = vld [vmem:[%s536 + $0x38] sm:$0x1]
        %v995 = vsel %vm539, %v724, %v994
        %996 = vst [vmem:[%s536 + $0x38] sm:$0x1] %v995
        %v997 = vld [vmem:[%s536 + $0x3c] sm:$0xf]
        %v998 = vsel %vm961, %v731, %v997
        %999 = vst [vmem:[%s536 + $0x3c] sm:$0xf] %v998
        %1000 = vst.msk [vmem:[%s536 + $0x40] sm:$0xf] %vm527, %v740
        %v1001 = vld [vmem:[%s536 + $0x44] sm:$0x1]
        %v1002 = vsel %vm539, %v741, %v1001
        %1003 = vst [vmem:[%s536 + $0x44] sm:$0x1] %v1002
        %v1004 = vld [vmem:[%s536 + $0x48] sm:$0xf]
        %v1005 = vsel %vm961, %v748, %v1004
        %1006 = vst [vmem:[%s536 + $0x48] sm:$0xf] %v1005
        %1007 = vst.msk [vmem:[%s536 + $0x4c] sm:$0xf] %vm527, %v757
        %v1008 = vld [vmem:[%s536 + $0x50] sm:$0x1]
        %v1009 = vsel %vm539, %v758, %v1008
        %1010 = vst [vmem:[%s536 + $0x50] sm:$0x1] %v1009
        %v1011 = vld [vmem:[%s536 + $0x54] sm:$0xf]
        %v1012 = vsel %vm961, %v765, %v1011
        %1013 = vst [vmem:[%s536 + $0x54] sm:$0xf] %v1012
        %1014 = vst.msk [vmem:[%s536 + $0x58] sm:$0xf] %vm527, %v774
        %v1015 = vld [vmem:[%s536 + $0x5c] sm:$0x1]
        %v1016 = vsel %vm539, %v775, %v1015
        %1017 = vst [vmem:[%s536 + $0x5c] sm:$0x1] %v1016
        %v1018 = vld [vmem:[%s536 + $0x60] sm:$0xf]
        %v1019 = vsel %vm961, %v782, %v1018
        %1020 = vst [vmem:[%s536 + $0x60] sm:$0xf] %v1019
        %1021 = vst.msk [vmem:[%s536 + $0x64] sm:$0xf] %vm527, %v791
        %v1022 = vld [vmem:[%s536 + $0x68] sm:$0x1]
        %v1023 = vsel %vm539, %v792, %v1022
        %1024 = vst [vmem:[%s536 + $0x68] sm:$0x1] %v1023
        %v1025 = vld [vmem:[%s536 + $0x6c] sm:$0xf]
        %v1026 = vsel %vm961, %v799, %v1025
        %1027 = vst [vmem:[%s536 + $0x6c] sm:$0xf] %v1026
        %1028 = vst.msk [vmem:[%s536 + $0x70] sm:$0xf] %vm527, %v808
        %v1029 = vld [vmem:[%s536 + $0x74] sm:$0x1]
        %v1030 = vsel %vm539, %v809, %v1029
        %1031 = vst [vmem:[%s536 + $0x74] sm:$0x1] %v1030
        %v1032 = vld [vmem:[%s536 + $0x78] sm:$0xf]
        %v1033 = vsel %vm961, %v816, %v1032
        %1034 = vst [vmem:[%s536 + $0x78] sm:$0xf] %v1033
        %1035 = vst.msk [vmem:[%s536 + $0x7c] sm:$0xf] %vm527, %v825
        %v1036 = vld [vmem:[%s536 + $0x80] sm:$0x1]
        %v1037 = vsel %vm539, %v826, %v1036
        %1038 = vst [vmem:[%s536 + $0x80] sm:$0x1] %v1037
        %v1039 = vld [vmem:[%s536 + $0x84] sm:$0xf]
        %v1040 = vsel %vm961, %v833, %v1039
        %1041 = vst [vmem:[%s536 + $0x84] sm:$0xf] %v1040
        %1042 = vst.msk [vmem:[%s536 + $0x88] sm:$0xf] %vm527, %v842
        %v1043 = vld [vmem:[%s536 + $0x8c] sm:$0x1]
        %v1044 = vsel %vm539, %v843, %v1043
        %1045 = vst [vmem:[%s536 + $0x8c] sm:$0x1] %v1044
        %v1046 = vld [vmem:[%s536 + $0x90] sm:$0xf]
        %v1047 = vsel %vm961, %v850, %v1046
        %1048 = vst [vmem:[%s536 + $0x90] sm:$0xf] %v1047
        %1049 = vst.msk [vmem:[%s536 + $0x94] sm:$0xf] %vm527, %v859
        %v1050 = vld [vmem:[%s536 + $0x98] sm:$0x1]
        %v1051 = vsel %vm539, %v860, %v1050
        %1052 = vst [vmem:[%s536 + $0x98] sm:$0x1] %v1051
        %v1053 = vld [vmem:[%s536 + $0x9c] sm:$0xf]
        %v1054 = vsel %vm961, %v867, %v1053
        %1055 = vst [vmem:[%s536 + $0x9c] sm:$0xf] %v1054
        %1056 = vst.msk [vmem:[%s536 + $0xa0] sm:$0xf] %vm527, %v876
        %v1057 = vld [vmem:[%s536 + $0xa4] sm:$0x1]
        %v1058 = vsel %vm539, %v877, %v1057
        %1059 = vst [vmem:[%s536 + $0xa4] sm:$0x1] %v1058
        %v1060 = vld [vmem:[%s536 + $0xa8] sm:$0xf]
        %v1061 = vsel %vm961, %v884, %v1060
        %1062 = vst [vmem:[%s536 + $0xa8] sm:$0xf] %v1061
        %1063 = vst.msk [vmem:[%s536 + $0xac] sm:$0xf] %vm527, %v893
        %v1064 = vld [vmem:[%s536 + $0xb0] sm:$0x1]
        %v1065 = vsel %vm539, %v894, %v1064
        %1066 = vst [vmem:[%s536 + $0xb0] sm:$0x1] %v1065
        %v1067 = vld [vmem:[%s536 + $0xb4] sm:$0xf]
        %v1068 = vsel %vm961, %v901, %v1067
        %1069 = vst [vmem:[%s536 + $0xb4] sm:$0xf] %v1068
        %1070 = vst.msk [vmem:[%s536 + $0xb8] sm:$0xf] %vm527, %v910
        %v1071 = vld [vmem:[%s536 + $0xbc] sm:$0x1]
        %v1072 = vsel %vm539, %v911, %v1071
        %1073 = vst [vmem:[%s536 + $0xbc] sm:$0x1] %v1072
        %v1074 = vld [vmem:[#allocation2] sm:$0xf]
        %v1075 = vld [vmem:[#allocation2 + $0x4] sm:$0xf]
        %v1076 = vld [vmem:[#allocation2 + $0xc] sm:$0xf]
        %v1077 = vld [vmem:[#allocation2 + $0x10] sm:$0xf]
        %v1078 = vld [vmem:[#allocation2 + $0x18] sm:$0xf]
        %v1079 = vld [vmem:[#allocation2 + $0x1c] sm:$0xf]
        %v1080 = vld [vmem:[#allocation2 + $0x24] sm:$0xf]
        %v1081 = vld [vmem:[#allocation2 + $0x28] sm:$0xf]
        %v1082 = vld [vmem:[#allocation2 + $0x30] sm:$0xf]
        %v1083 = vld [vmem:[#allocation2 + $0x34] sm:$0xf]
        %v1084 = vld [vmem:[#allocation2 + $0x3c] sm:$0xf]
        %v1085 = vld [vmem:[#allocation2 + $0x40] sm:$0xf]
        %v1086 = vld [vmem:[#allocation2 + $0x48] sm:$0xf]
        %v1087 = vld [vmem:[#allocation2 + $0x4c] sm:$0xf]
        %v1088 = vld [vmem:[#allocation2 + $0x54] sm:$0xf]
        %v1089 = vld [vmem:[#allocation2 + $0x58] sm:$0xf]
        %v1090 = vld [vmem:[#allocation2 + $0x60] sm:$0xf]
        %v1091 = vld [vmem:[#allocation2 + $0x64] sm:$0xf]
        %v1092 = vld [vmem:[#allocation2 + $0x6c] sm:$0xf]
        %v1093 = vld [vmem:[#allocation2 + $0x70] sm:$0xf]
        %v1094 = vld [vmem:[#allocation2 + $0x78] sm:$0xf]
        %v1095 = vld [vmem:[#allocation2 + $0x7c] sm:$0xf]
        %v1096 = vld [vmem:[#allocation2 + $0x84] sm:$0xf]
        %v1097 = vld [vmem:[#allocation2 + $0x88] sm:$0xf]
        %v1098 = vld [vmem:[#allocation2 + $0x90] sm:$0xf]
        %v1099 = vld [vmem:[#allocation2 + $0x94] sm:$0xf]
        %v1100 = vld [vmem:[#allocation2 + $0x9c] sm:$0xf]
        %v1101 = vld [vmem:[#allocation2 + $0xa0] sm:$0xf]
        %v1102 = vld [vmem:[#allocation2 + $0xa8] sm:$0xf]
        %v1103 = vld [vmem:[#allocation2 + $0xac] sm:$0xf]
        %v1104 = vld [vmem:[#allocation2 + $0xb4] sm:$0xf]
        %v1105 = vld [vmem:[#allocation2 + $0xb8] sm:$0xf]
        %v1106 = vld [vmem:[#allocation2 + $0x8] sm:$0x1]
        %v1107 = vld [vmem:[#allocation2 + $0x14] sm:$0x1]
        %v1108 = vld [vmem:[#allocation2 + $0x20] sm:$0x1]
        %v1109 = vld [vmem:[#allocation2 + $0x2c] sm:$0x1]
        %v1110 = vld [vmem:[#allocation2 + $0x38] sm:$0x1]
        %v1111 = vld [vmem:[#allocation2 + $0x44] sm:$0x1]
        %v1112 = vld [vmem:[#allocation2 + $0x50] sm:$0x1]
        %v1113 = vld [vmem:[#allocation2 + $0x5c] sm:$0x1]
        %v1114 = vld [vmem:[#allocation2 + $0x68] sm:$0x1]
        %v1115 = vld [vmem:[#allocation2 + $0x74] sm:$0x1]
        %v1116 = vld [vmem:[#allocation2 + $0x80] sm:$0x1]
        %v1117 = vld [vmem:[#allocation2 + $0x8c] sm:$0x1]
        %v1118 = vld [vmem:[#allocation2 + $0x98] sm:$0x1]
        %v1119 = vld [vmem:[#allocation2 + $0xa4] sm:$0x1]
        %v1120 = vld [vmem:[#allocation2 + $0xb0] sm:$0x1]
        %v1121 = vld [vmem:[#allocation2 + $0xbc] sm:$0x1]
        %vm1122 = vsmask.f32 3328
        %vm1123 = vsmask.f32 7440
        %vm1124 = vmor %vm1122, %vm1123
        %v1126 = vshrl.u32 %v1074, 16
        %v1128 = vrot.slane %v1126, 4
        %v1129 = vshll.u32 %v1074, 16
        %v1131 = vrot.slane %v1129, 5
        %v1132 = vor.u32 %v1128, %v1131
        %v1133 = vrot.slane %v1132, 4
        %v1135 = vshll.u32 %v1075, 16
        %v1137 = vrot.slane %v1135, 5
        %v1138 = vsel %vm1124, %v1133, %v1137
        %v1139 = vshrl.u32 %v1075, 16
        %v1141 = vrot.slane %v1139, 4
        %v1142 = vor.u32 %v1141, %v1137
        %v1143 = vrot.slane %v1142, 4
        %v1145 = vshll.u32 %v1106, 16
        %v1147 = vrot.slane %v1145, 5
        %v1148 = vsel %vm1124, %v1143, %v1147
        %v1150 = vshrl.u32 %v1076, 16
        %v1152 = vrot.slane %v1150, 4
        %v1153 = vshll.u32 %v1076, 16
        %v1155 = vrot.slane %v1153, 5
        %v1156 = vor.u32 %v1152, %v1155
        %v1157 = vrot.slane %v1156, 4
        %v1159 = vshll.u32 %v1077, 16
        %v1161 = vrot.slane %v1159, 5
        %v1162 = vsel %vm1124, %v1157, %v1161
        %v1163 = vshrl.u32 %v1077, 16
        %v1165 = vrot.slane %v1163, 4
        %v1166 = vor.u32 %v1165, %v1161
        %v1167 = vrot.slane %v1166, 4
        %v1169 = vshll.u32 %v1107, 16
        %v1171 = vrot.slane %v1169, 5
        %v1172 = vsel %vm1124, %v1167, %v1171
        %v1174 = vshrl.u32 %v1078, 16
        %v1176 = vrot.slane %v1174, 4
        %v1177 = vshll.u32 %v1078, 16
        %v1179 = vrot.slane %v1177, 5
        %v1180 = vor.u32 %v1176, %v1179
        %v1181 = vrot.slane %v1180, 4
        %v1183 = vshll.u32 %v1079, 16
        %v1185 = vrot.slane %v1183, 5
        %v1186 = vsel %vm1124, %v1181, %v1185
        %v1187 = vshrl.u32 %v1079, 16
        %v1189 = vrot.slane %v1187, 4
        %v1190 = vor.u32 %v1189, %v1185
        %v1191 = vrot.slane %v1190, 4
        %v1193 = vshll.u32 %v1108, 16
        %v1195 = vrot.slane %v1193, 5
        %v1196 = vsel %vm1124, %v1191, %v1195
        %v1198 = vshrl.u32 %v1080, 16
        %v1200 = vrot.slane %v1198, 4
        %v1201 = vshll.u32 %v1080, 16
        %v1203 = vrot.slane %v1201, 5
        %v1204 = vor.u32 %v1200, %v1203
        %v1205 = vrot.slane %v1204, 4
        %v1207 = vshll.u32 %v1081, 16
        %v1209 = vrot.slane %v1207, 5
        %v1210 = vsel %vm1124, %v1205, %v1209
        %v1211 = vshrl.u32 %v1081, 16
        %v1213 = vrot.slane %v1211, 4
        %v1214 = vor.u32 %v1213, %v1209
        %v1215 = vrot.slane %v1214, 4
        %v1217 = vshll.u32 %v1109, 16
        %v1219 = vrot.slane %v1217, 5
        %v1220 = vsel %vm1124, %v1215, %v1219
        %v1222 = vshrl.u32 %v1082, 16
        %v1224 = vrot.slane %v1222, 4
        %v1225 = vshll.u32 %v1082, 16
        %v1227 = vrot.slane %v1225, 5
        %v1228 = vor.u32 %v1224, %v1227
        %v1229 = vrot.slane %v1228, 4
        %v1231 = vshll.u32 %v1083, 16
        %v1233 = vrot.slane %v1231, 5
        %v1234 = vsel %vm1124, %v1229, %v1233
        %v1235 = vshrl.u32 %v1083, 16
        %v1237 = vrot.slane %v1235, 4
        %v1238 = vor.u32 %v1237, %v1233
        %v1239 = vrot.slane %v1238, 4
        %v1241 = vshll.u32 %v1110, 16
        %v1243 = vrot.slane %v1241, 5
        %v1244 = vsel %vm1124, %v1239, %v1243
        %v1246 = vshrl.u32 %v1084, 16
        %v1248 = vrot.slane %v1246, 4
        %v1249 = vshll.u32 %v1084, 16
        %v1251 = vrot.slane %v1249, 5
        %v1252 = vor.u32 %v1248, %v1251
        %v1253 = vrot.slane %v1252, 4
        %v1255 = vshll.u32 %v1085, 16
        %v1257 = vrot.slane %v1255, 5
        %v1258 = vsel %vm1124, %v1253, %v1257
        %v1259 = vshrl.u32 %v1085, 16
        %v1261 = vrot.slane %v1259, 4
        %v1262 = vor.u32 %v1261, %v1257
        %v1263 = vrot.slane %v1262, 4
        %v1265 = vshll.u32 %v1111, 16
        %v1267 = vrot.slane %v1265, 5
        %v1268 = vsel %vm1124, %v1263, %v1267
        %v1270 = vshrl.u32 %v1086, 16
        %v1272 = vrot.slane %v1270, 4
        %v1273 = vshll.u32 %v1086, 16
        %v1275 = vrot.slane %v1273, 5
        %v1276 = vor.u32 %v1272, %v1275
        %v1277 = vrot.slane %v1276, 4
        %v1279 = vshll.u32 %v1087, 16
        %v1281 = vrot.slane %v1279, 5
        %v1282 = vsel %vm1124, %v1277, %v1281
        %v1283 = vshrl.u32 %v1087, 16
        %v1285 = vrot.slane %v1283, 4
        %v1286 = vor.u32 %v1285, %v1281
        %v1287 = vrot.slane %v1286, 4
        %v1289 = vshll.u32 %v1112, 16
        %v1291 = vrot.slane %v1289, 5
        %v1292 = vsel %vm1124, %v1287, %v1291
        %v1294 = vshrl.u32 %v1088, 16
        %v1296 = vrot.slane %v1294, 4
        %v1297 = vshll.u32 %v1088, 16
        %v1299 = vrot.slane %v1297, 5
        %v1300 = vor.u32 %v1296, %v1299
        %v1301 = vrot.slane %v1300, 4
        %v1303 = vshll.u32 %v1089, 16
        %v1305 = vrot.slane %v1303, 5
        %v1306 = vsel %vm1124, %v1301, %v1305
        %v1307 = vshrl.u32 %v1089, 16
        %v1309 = vrot.slane %v1307, 4
        %v1310 = vor.u32 %v1309, %v1305
        %v1311 = vrot.slane %v1310, 4
        %v1313 = vshll.u32 %v1113, 16
        %v1315 = vrot.slane %v1313, 5
        %v1316 = vsel %vm1124, %v1311, %v1315
        %v1318 = vshrl.u32 %v1090, 16
        %v1320 = vrot.slane %v1318, 4
        %v1321 = vshll.u32 %v1090, 16
        %v1323 = vrot.slane %v1321, 5
        %v1324 = vor.u32 %v1320, %v1323
        %v1325 = vrot.slane %v1324, 4
        %v1327 = vshll.u32 %v1091, 16
        %v1329 = vrot.slane %v1327, 5
        %v1330 = vsel %vm1124, %v1325, %v1329
        %v1331 = vshrl.u32 %v1091, 16
        %v1333 = vrot.slane %v1331, 4
        %v1334 = vor.u32 %v1333, %v1329
        %v1335 = vrot.slane %v1334, 4
        %v1337 = vshll.u32 %v1114, 16
        %v1339 = vrot.slane %v1337, 5
        %v1340 = vsel %vm1124, %v1335, %v1339
        %v1342 = vshrl.u32 %v1092, 16
        %v1344 = vrot.slane %v1342, 4
        %v1345 = vshll.u32 %v1092, 16
        %v1347 = vrot.slane %v1345, 5
        %v1348 = vor.u32 %v1344, %v1347
        %v1349 = vrot.slane %v1348, 4
        %v1351 = vshll.u32 %v1093, 16
        %v1353 = vrot.slane %v1351, 5
        %v1354 = vsel %vm1124, %v1349, %v1353
        %v1355 = vshrl.u32 %v1093, 16
        %v1357 = vrot.slane %v1355, 4
        %v1358 = vor.u32 %v1357, %v1353
        %v1359 = vrot.slane %v1358, 4
        %v1361 = vshll.u32 %v1115, 16
        %v1363 = vrot.slane %v1361, 5
        %v1364 = vsel %vm1124, %v1359, %v1363
        %v1366 = vshrl.u32 %v1094, 16
        %v1368 = vrot.slane %v1366, 4
        %v1369 = vshll.u32 %v1094, 16
        %v1371 = vrot.slane %v1369, 5
        %v1372 = vor.u32 %v1368, %v1371
        %v1373 = vrot.slane %v1372, 4
        %v1375 = vshll.u32 %v1095, 16
        %v1377 = vrot.slane %v1375, 5
        %v1378 = vsel %vm1124, %v1373, %v1377
        %v1379 = vshrl.u32 %v1095, 16
        %v1381 = vrot.slane %v1379, 4
        %v1382 = vor.u32 %v1381, %v1377
        %v1383 = vrot.slane %v1382, 4
        %v1385 = vshll.u32 %v1116, 16
        %v1387 = vrot.slane %v1385, 5
        %v1388 = vsel %vm1124, %v1383, %v1387
        %v1390 = vshrl.u32 %v1096, 16
        %v1392 = vrot.slane %v1390, 4
        %v1393 = vshll.u32 %v1096, 16
        %v1395 = vrot.slane %v1393, 5
        %v1396 = vor.u32 %v1392, %v1395
        %v1397 = vrot.slane %v1396, 4
        %v1399 = vshll.u32 %v1097, 16
        %v1401 = vrot.slane %v1399, 5
        %v1402 = vsel %vm1124, %v1397, %v1401
        %v1403 = vshrl.u32 %v1097, 16
        %v1405 = vrot.slane %v1403, 4
        %v1406 = vor.u32 %v1405, %v1401
        %v1407 = vrot.slane %v1406, 4
        %v1409 = vshll.u32 %v1117, 16
        %v1411 = vrot.slane %v1409, 5
        %v1412 = vsel %vm1124, %v1407, %v1411
        %v1414 = vshrl.u32 %v1098, 16
        %v1416 = vrot.slane %v1414, 4
        %v1417 = vshll.u32 %v1098, 16
        %v1419 = vrot.slane %v1417, 5
        %v1420 = vor.u32 %v1416, %v1419
        %v1421 = vrot.slane %v1420, 4
        %v1423 = vshll.u32 %v1099, 16
        %v1425 = vrot.slane %v1423, 5
        %v1426 = vsel %vm1124, %v1421, %v1425
        %v1427 = vshrl.u32 %v1099, 16
        %v1429 = vrot.slane %v1427, 4
        %v1430 = vor.u32 %v1429, %v1425
        %v1431 = vrot.slane %v1430, 4
        %v1433 = vshll.u32 %v1118, 16
        %v1435 = vrot.slane %v1433, 5
        %v1436 = vsel %vm1124, %v1431, %v1435
        %v1438 = vshrl.u32 %v1100, 16
        %v1440 = vrot.slane %v1438, 4
        %v1441 = vshll.u32 %v1100, 16
        %v1443 = vrot.slane %v1441, 5
        %v1444 = vor.u32 %v1440, %v1443
        %v1445 = vrot.slane %v1444, 4
        %v1447 = vshll.u32 %v1101, 16
        %v1449 = vrot.slane %v1447, 5
        %v1450 = vsel %vm1124, %v1445, %v1449
        %v1451 = vshrl.u32 %v1101, 16
        %v1453 = vrot.slane %v1451, 4
        %v1454 = vor.u32 %v1453, %v1449
        %v1455 = vrot.slane %v1454, 4
        %v1457 = vshll.u32 %v1119, 16
        %v1459 = vrot.slane %v1457, 5
        %v1460 = vsel %vm1124, %v1455, %v1459
        %v1462 = vshrl.u32 %v1102, 16
        %v1464 = vrot.slane %v1462, 4
        %v1465 = vshll.u32 %v1102, 16
        %v1467 = vrot.slane %v1465, 5
        %v1468 = vor.u32 %v1464, %v1467
        %v1469 = vrot.slane %v1468, 4
        %v1471 = vshll.u32 %v1103, 16
        %v1473 = vrot.slane %v1471, 5
        %v1474 = vsel %vm1124, %v1469, %v1473
        %v1475 = vshrl.u32 %v1103, 16
        %v1477 = vrot.slane %v1475, 4
        %v1478 = vor.u32 %v1477, %v1473
        %v1479 = vrot.slane %v1478, 4
        %v1481 = vshll.u32 %v1120, 16
        %v1483 = vrot.slane %v1481, 5
        %v1484 = vsel %vm1124, %v1479, %v1483
        %v1486 = vshrl.u32 %v1104, 16
        %v1488 = vrot.slane %v1486, 4
        %v1489 = vshll.u32 %v1104, 16
        %v1491 = vrot.slane %v1489, 5
        %v1492 = vor.u32 %v1488, %v1491
        %v1493 = vrot.slane %v1492, 4
        %v1495 = vshll.u32 %v1105, 16
        %v1497 = vrot.slane %v1495, 5
        %v1498 = vsel %vm1124, %v1493, %v1497
        %v1499 = vshrl.u32 %v1105, 16
        %v1501 = vrot.slane %v1499, 4
        %v1502 = vor.u32 %v1501, %v1497
        %v1503 = vrot.slane %v1502, 4
        %v1505 = vshll.u32 %v1121, 16
        %v1507 = vrot.slane %v1505, 5
        %v1508 = vsel %vm1124, %v1503, %v1507
        %v1509 = vld [vmem:[#allocation2] sm:$0xe]
        %v1510 = vld [vmem:[#allocation2 + $0xc] sm:$0xe]
        %v1511 = vld [vmem:[#allocation2 + $0x18] sm:$0xe]
        %v1512 = vld [vmem:[#allocation2 + $0x24] sm:$0xe]
        %v1513 = vld [vmem:[#allocation2 + $0x30] sm:$0xe]
        %v1514 = vld [vmem:[#allocation2 + $0x3c] sm:$0xe]
        %v1515 = vld [vmem:[#allocation2 + $0x48] sm:$0xe]
        %v1516 = vld [vmem:[#allocation2 + $0x54] sm:$0xe]
        %v1517 = vld [vmem:[#allocation2 + $0x60] sm:$0xe]
        %v1518 = vld [vmem:[#allocation2 + $0x6c] sm:$0xe]
        %v1519 = vld [vmem:[#allocation2 + $0x78] sm:$0xe]
        %v1520 = vld [vmem:[#allocation2 + $0x84] sm:$0xe]
        %v1521 = vld [vmem:[#allocation2 + $0x90] sm:$0xe]
        %v1522 = vld [vmem:[#allocation2 + $0x9c] sm:$0xe]
        %v1523 = vld [vmem:[#allocation2 + $0xa8] sm:$0xe]
        %v1524 = vld [vmem:[#allocation2 + $0xb4] sm:$0xe]
        %vm1573 = vcmask 1042432
        %vm1574 = vcmask 1046532
        %vm1575 = vmor %vm1573, %vm1574
        %v1576 = vrot.slane %v1509, 5
        %v1577 = vrot.slane %v1576, 4
        %v1578 = vrot.slane %v1075, 5
        %v1579 = vsel %vm1575, %v1577, %v1578
        %v1580 = vrot.slane %v1578, 4
        %v1581 = vrot.slane %v1106, 5
        %v1582 = vsel %vm1575, %v1580, %v1581
        %v1583 = vrot.slane %v1510, 5
        %v1584 = vrot.slane %v1583, 4
        %v1585 = vrot.slane %v1077, 5
        %v1586 = vsel %vm1575, %v1584, %v1585
        %v1587 = vrot.slane %v1585, 4
        %v1588 = vrot.slane %v1107, 5
        %v1589 = vsel %vm1575, %v1587, %v1588
        %v1590 = vrot.slane %v1511, 5
        %v1591 = vrot.slane %v1590, 4
        %v1592 = vrot.slane %v1079, 5
        %v1593 = vsel %vm1575, %v1591, %v1592
        %v1594 = vrot.slane %v1592, 4
        %v1595 = vrot.slane %v1108, 5
        %v1596 = vsel %vm1575, %v1594, %v1595
        %v1597 = vrot.slane %v1512, 5
        %v1598 = vrot.slane %v1597, 4
        %v1599 = vrot.slane %v1081, 5
        %v1600 = vsel %vm1575, %v1598, %v1599
        %v1601 = vrot.slane %v1599, 4
        %v1602 = vrot.slane %v1109, 5
        %v1603 = vsel %vm1575, %v1601, %v1602
        %v1604 = vrot.slane %v1513, 5
        %v1605 = vrot.slane %v1604, 4
        %v1606 = vrot.slane %v1083, 5
        %v1607 = vsel %vm1575, %v1605, %v1606
        %v1608 = vrot.slane %v1606, 4
        %v1609 = vrot.slane %v1110, 5
        %v1610 = vsel %vm1575, %v1608, %v1609
        %v1611 = vrot.slane %v1514, 5
        %v1612 = vrot.slane %v1611, 4
        %v1613 = vrot.slane %v1085, 5
        %v1614 = vsel %vm1575, %v1612, %v1613
        %v1615 = vrot.slane %v1613, 4
        %v1616 = vrot.slane %v1111, 5
        %v1617 = vsel %vm1575, %v1615, %v1616
        %v1618 = vrot.slane %v1515, 5
        %v1619 = vrot.slane %v1618, 4
        %v1620 = vrot.slane %v1087, 5
        %v1621 = vsel %vm1575, %v1619, %v1620
        %v1622 = vrot.slane %v1620, 4
        %v1623 = vrot.slane %v1112, 5
        %v1624 = vsel %vm1575, %v1622, %v1623
        %v1625 = vrot.slane %v1516, 5
        %v1626 = vrot.slane %v1625, 4
        %v1627 = vrot.slane %v1089, 5
        %v1628 = vsel %vm1575, %v1626, %v1627
        %v1629 = vrot.slane %v1627, 4
        %v1630 = vrot.slane %v1113, 5
        %v1631 = vsel %vm1575, %v1629, %v1630
        %v1632 = vrot.slane %v1517, 5
        %v1633 = vrot.slane %v1632, 4
        %v1634 = vrot.slane %v1091, 5
        %v1635 = vsel %vm1575, %v1633, %v1634
        %v1636 = vrot.slane %v1634, 4
        %v1637 = vrot.slane %v1114, 5
        %v1638 = vsel %vm1575, %v1636, %v1637
        %v1639 = vrot.slane %v1518, 5
        %v1640 = vrot.slane %v1639, 4
        %v1641 = vrot.slane %v1093, 5
        %v1642 = vsel %vm1575, %v1640, %v1641
        %v1643 = vrot.slane %v1641, 4
        %v1644 = vrot.slane %v1115, 5
        %v1645 = vsel %vm1575, %v1643, %v1644
        %v1646 = vrot.slane %v1519, 5
        %v1647 = vrot.slane %v1646, 4
        %v1648 = vrot.slane %v1095, 5
        %v1649 = vsel %vm1575, %v1647, %v1648
        %v1650 = vrot.slane %v1648, 4
        %v1651 = vrot.slane %v1116, 5
        %v1652 = vsel %vm1575, %v1650, %v1651
        %v1653 = vrot.slane %v1520, 5
        %v1654 = vrot.slane %v1653, 4
        %v1655 = vrot.slane %v1097, 5
        %v1656 = vsel %vm1575, %v1654, %v1655
        %v1657 = vrot.slane %v1655, 4
        %v1658 = vrot.slane %v1117, 5
        %v1659 = vsel %vm1575, %v1657, %v1658
        %v1660 = vrot.slane %v1521, 5
        %v1661 = vrot.slane %v1660, 4
        %v1662 = vrot.slane %v1099, 5
        %v1663 = vsel %vm1575, %v1661, %v1662
        %v1664 = vrot.slane %v1662, 4
        %v1665 = vrot.slane %v1118, 5
        %v1666 = vsel %vm1575, %v1664, %v1665
        %v1667 = vrot.slane %v1522, 5
        %v1668 = vrot.slane %v1667, 4
        %v1669 = vrot.slane %v1101, 5
        %v1670 = vsel %vm1575, %v1668, %v1669
        %v1671 = vrot.slane %v1669, 4
        %v1672 = vrot.slane %v1119, 5
        %v1673 = vsel %vm1575, %v1671, %v1672
        %v1674 = vrot.slane %v1523, 5
        %v1675 = vrot.slane %v1674, 4
        %v1676 = vrot.slane %v1103, 5
        %v1677 = vsel %vm1575, %v1675, %v1676
        %v1678 = vrot.slane %v1676, 4
        %v1679 = vrot.slane %v1120, 5
        %v1680 = vsel %vm1575, %v1678, %v1679
        %v1681 = vrot.slane %v1524, 5
        %v1682 = vrot.slane %v1681, 4
        %v1683 = vrot.slane %v1105, 5
        %v1684 = vsel %vm1575, %v1682, %v1683
        %v1685 = vrot.slane %v1683, 4
        %v1686 = vrot.slane %v1121, 5
        %v1687 = vsel %vm1575, %v1685, %v1686
        %v1688 = vld [vmem:[%s536] sm:$0xf]
        %v1689 = vld [vmem:[%s536 + $0x4] sm:$0xf]
        %v1690 = vld [vmem:[%s536 + $0xc] sm:$0xf]
        %v1691 = vld [vmem:[%s536 + $0x10] sm:$0xf]
        %v1692 = vld [vmem:[%s536 + $0x18] sm:$0xf]
        %v1693 = vld [vmem:[%s536 + $0x1c] sm:$0xf]
        %v1694 = vld [vmem:[%s536 + $0x24] sm:$0xf]
        %v1695 = vld [vmem:[%s536 + $0x28] sm:$0xf]
        %v1696 = vld [vmem:[%s536 + $0x30] sm:$0xf]
        %v1697 = vld [vmem:[%s536 + $0x34] sm:$0xf]
        %v1698 = vld [vmem:[%s536 + $0x3c] sm:$0xf]
        %v1699 = vld [vmem:[%s536 + $0x40] sm:$0xf]
        %v1700 = vld [vmem:[%s536 + $0x48] sm:$0xf]
        %v1701 = vld [vmem:[%s536 + $0x4c] sm:$0xf]
        %v1702 = vld [vmem:[%s536 + $0x54] sm:$0xf]
        %v1703 = vld [vmem:[%s536 + $0x58] sm:$0xf]
        %v1704 = vld [vmem:[%s536 + $0x60] sm:$0xf]
        %v1705 = vld [vmem:[%s536 + $0x64] sm:$0xf]
        %v1706 = vld [vmem:[%s536 + $0x6c] sm:$0xf]
        %v1707 = vld [vmem:[%s536 + $0x70] sm:$0xf]
        %v1708 = vld [vmem:[%s536 + $0x78] sm:$0xf]
        %v1709 = vld [vmem:[%s536 + $0x7c] sm:$0xf]
        %v1710 = vld [vmem:[%s536 + $0x84] sm:$0xf]
        %v1711 = vld [vmem:[%s536 + $0x88] sm:$0xf]
        %v1712 = vld [vmem:[%s536 + $0x90] sm:$0xf]
        %v1713 = vld [vmem:[%s536 + $0x94] sm:$0xf]
        %v1714 = vld [vmem:[%s536 + $0x9c] sm:$0xf]
        %v1715 = vld [vmem:[%s536 + $0xa0] sm:$0xf]
        %v1716 = vld [vmem:[%s536 + $0xa8] sm:$0xf]
        %v1717 = vld [vmem:[%s536 + $0xac] sm:$0xf]
        %v1718 = vld [vmem:[%s536 + $0xb4] sm:$0xf]
        %v1719 = vld [vmem:[%s536 + $0xb8] sm:$0xf]
        %v1720 = vld [vmem:[%s536 + $0x8] sm:$0x1]
        %v1721 = vld [vmem:[%s536 + $0x14] sm:$0x1]
        %v1722 = vld [vmem:[%s536 + $0x20] sm:$0x1]
        %v1723 = vld [vmem:[%s536 + $0x2c] sm:$0x1]
        %v1724 = vld [vmem:[%s536 + $0x38] sm:$0x1]
        %v1725 = vld [vmem:[%s536 + $0x44] sm:$0x1]
        %v1726 = vld [vmem:[%s536 + $0x50] sm:$0x1]
        %v1727 = vld [vmem:[%s536 + $0x5c] sm:$0x1]
        %v1728 = vld [vmem:[%s536 + $0x68] sm:$0x1]
        %v1729 = vld [vmem:[%s536 + $0x74] sm:$0x1]
        %v1730 = vld [vmem:[%s536 + $0x80] sm:$0x1]
        %v1731 = vld [vmem:[%s536 + $0x8c] sm:$0x1]
        %v1732 = vld [vmem:[%s536 + $0x98] sm:$0x1]
        %v1733 = vld [vmem:[%s536 + $0xa4] sm:$0x1]
        %v1734 = vld [vmem:[%s536 + $0xb0] sm:$0x1]
        %v1735 = vld [vmem:[%s536 + $0xbc] sm:$0x1]
        %v1737 = vshrl.u32 %v1688, 16
        %v1739 = vrot.slane %v1737, 4
        %v1740 = vshll.u32 %v1688, 16
        %v1742 = vrot.slane %v1740, 5
        %v1743 = vor.u32 %v1739, %v1742
        %v1744 = vrot.slane %v1743, 4
        %v1746 = vshll.u32 %v1689, 16
        %v1748 = vrot.slane %v1746, 5
        %v1749 = vsel %vm1124, %v1744, %v1748
        %v1750 = vshrl.u32 %v1689, 16
        %v1752 = vrot.slane %v1750, 4
        %v1753 = vor.u32 %v1752, %v1748
        %v1754 = vrot.slane %v1753, 4
        %v1756 = vshll.u32 %v1720, 16
        %v1758 = vrot.slane %v1756, 5
        %v1759 = vsel %vm1124, %v1754, %v1758
        %v1761 = vshrl.u32 %v1690, 16
        %v1763 = vrot.slane %v1761, 4
        %v1764 = vshll.u32 %v1690, 16
        %v1766 = vrot.slane %v1764, 5
        %v1767 = vor.u32 %v1763, %v1766
        %v1768 = vrot.slane %v1767, 4
        %v1770 = vshll.u32 %v1691, 16
        %v1772 = vrot.slane %v1770, 5
        %v1773 = vsel %vm1124, %v1768, %v1772
        %v1774 = vshrl.u32 %v1691, 16
        %v1776 = vrot.slane %v1774, 4
        %v1777 = vor.u32 %v1776, %v1772
        %v1778 = vrot.slane %v1777, 4
        %v1780 = vshll.u32 %v1721, 16
        %v1782 = vrot.slane %v1780, 5
        %v1783 = vsel %vm1124, %v1778, %v1782
        %v1785 = vshrl.u32 %v1692, 16
        %v1787 = vrot.slane %v1785, 4
        %v1788 = vshll.u32 %v1692, 16
        %v1790 = vrot.slane %v1788, 5
        %v1791 = vor.u32 %v1787, %v1790
        %v1792 = vrot.slane %v1791, 4
        %v1794 = vshll.u32 %v1693, 16
        %v1796 = vrot.slane %v1794, 5
        %v1797 = vsel %vm1124, %v1792, %v1796
        %v1798 = vshrl.u32 %v1693, 16
        %v1800 = vrot.slane %v1798, 4
        %v1801 = vor.u32 %v1800, %v1796
        %v1802 = vrot.slane %v1801, 4
        %v1804 = vshll.u32 %v1722, 16
        %v1806 = vrot.slane %v1804, 5
        %v1807 = vsel %vm1124, %v1802, %v1806
        %v1809 = vshrl.u32 %v1694, 16
        %v1811 = vrot.slane %v1809, 4
        %v1812 = vshll.u32 %v1694, 16
        %v1814 = vrot.slane %v1812, 5
        %v1815 = vor.u32 %v1811, %v1814
        %v1816 = vrot.slane %v1815, 4
        %v1818 = vshll.u32 %v1695, 16
        %v1820 = vrot.slane %v1818, 5
        %v1821 = vsel %vm1124, %v1816, %v1820
        %v1822 = vshrl.u32 %v1695, 16
        %v1824 = vrot.slane %v1822, 4
        %v1825 = vor.u32 %v1824, %v1820
        %v1826 = vrot.slane %v1825, 4
        %v1828 = vshll.u32 %v1723, 16
        %v1830 = vrot.slane %v1828, 5
        %v1831 = vsel %vm1124, %v1826, %v1830
        %v1833 = vshrl.u32 %v1696, 16
        %v1835 = vrot.slane %v1833, 4
        %v1836 = vshll.u32 %v1696, 16
        %v1838 = vrot.slane %v1836, 5
        %v1839 = vor.u32 %v1835, %v1838
        %v1840 = vrot.slane %v1839, 4
        %v1842 = vshll.u32 %v1697, 16
        %v1844 = vrot.slane %v1842, 5
        %v1845 = vsel %vm1124, %v1840, %v1844
        %v1846 = vshrl.u32 %v1697, 16
        %v1848 = vrot.slane %v1846, 4
        %v1849 = vor.u32 %v1848, %v1844
        %v1850 = vrot.slane %v1849, 4
        %v1852 = vshll.u32 %v1724, 16
        %v1854 = vrot.slane %v1852, 5
        %v1855 = vsel %vm1124, %v1850, %v1854
        %v1857 = vshrl.u32 %v1698, 16
        %v1859 = vrot.slane %v1857, 4
        %v1860 = vshll.u32 %v1698, 16
        %v1862 = vrot.slane %v1860, 5
        %v1863 = vor.u32 %v1859, %v1862
        %v1864 = vrot.slane %v1863, 4
        %v1866 = vshll.u32 %v1699, 16
        %v1868 = vrot.slane %v1866, 5
        %v1869 = vsel %vm1124, %v1864, %v1868
        %v1870 = vshrl.u32 %v1699, 16
        %v1872 = vrot.slane %v1870, 4
        %v1873 = vor.u32 %v1872, %v1868
        %v1874 = vrot.slane %v1873, 4
        %v1876 = vshll.u32 %v1725, 16
        %v1878 = vrot.slane %v1876, 5
        %v1879 = vsel %vm1124, %v1874, %v1878
        %v1881 = vshrl.u32 %v1700, 16
        %v1883 = vrot.slane %v1881, 4
        %v1884 = vshll.u32 %v1700, 16
        %v1886 = vrot.slane %v1884, 5
        %v1887 = vor.u32 %v1883, %v1886
        %v1888 = vrot.slane %v1887, 4
        %v1890 = vshll.u32 %v1701, 16
        %v1892 = vrot.slane %v1890, 5
        %v1893 = vsel %vm1124, %v1888, %v1892
        %v1894 = vshrl.u32 %v1701, 16
        %v1896 = vrot.slane %v1894, 4
        %v1897 = vor.u32 %v1896, %v1892
        %v1898 = vrot.slane %v1897, 4
        %v1900 = vshll.u32 %v1726, 16
        %v1902 = vrot.slane %v1900, 5
        %v1903 = vsel %vm1124, %v1898, %v1902
        %v1905 = vshrl.u32 %v1702, 16
        %v1907 = vrot.slane %v1905, 4
        %v1908 = vshll.u32 %v1702, 16
        %v1910 = vrot.slane %v1908, 5
        %v1911 = vor.u32 %v1907, %v1910
        %v1912 = vrot.slane %v1911, 4
        %v1914 = vshll.u32 %v1703, 16
        %v1916 = vrot.slane %v1914, 5
        %v1917 = vsel %vm1124, %v1912, %v1916
        %v1918 = vshrl.u32 %v1703, 16
        %v1920 = vrot.slane %v1918, 4
        %v1921 = vor.u32 %v1920, %v1916
        %v1922 = vrot.slane %v1921, 4
        %v1924 = vshll.u32 %v1727, 16
        %v1926 = vrot.slane %v1924, 5
        %v1927 = vsel %vm1124, %v1922, %v1926
        %v1929 = vshrl.u32 %v1704, 16
        %v1931 = vrot.slane %v1929, 4
        %v1932 = vshll.u32 %v1704, 16
        %v1934 = vrot.slane %v1932, 5
        %v1935 = vor.u32 %v1931, %v1934
        %v1936 = vrot.slane %v1935, 4
        %v1938 = vshll.u32 %v1705, 16
        %v1940 = vrot.slane %v1938, 5
        %v1941 = vsel %vm1124, %v1936, %v1940
        %v1942 = vshrl.u32 %v1705, 16
        %v1944 = vrot.slane %v1942, 4
        %v1945 = vor.u32 %v1944, %v1940
        %v1946 = vrot.slane %v1945, 4
        %v1948 = vshll.u32 %v1728, 16
        %v1950 = vrot.slane %v1948, 5
        %v1951 = vsel %vm1124, %v1946, %v1950
        %v1953 = vshrl.u32 %v1706, 16
        %v1955 = vrot.slane %v1953, 4
        %v1956 = vshll.u32 %v1706, 16
        %v1958 = vrot.slane %v1956, 5
        %v1959 = vor.u32 %v1955, %v1958
        %v1960 = vrot.slane %v1959, 4
        %v1962 = vshll.u32 %v1707, 16
        %v1964 = vrot.slane %v1962, 5
        %v1965 = vsel %vm1124, %v1960, %v1964
        %v1966 = vshrl.u32 %v1707, 16
        %v1968 = vrot.slane %v1966, 4
        %v1969 = vor.u32 %v1968, %v1964
        %v1970 = vrot.slane %v1969, 4
        %v1972 = vshll.u32 %v1729, 16
        %v1974 = vrot.slane %v1972, 5
        %v1975 = vsel %vm1124, %v1970, %v1974
        %v1977 = vshrl.u32 %v1708, 16
        %v1979 = vrot.slane %v1977, 4
        %v1980 = vshll.u32 %v1708, 16
        %v1982 = vrot.slane %v1980, 5
        %v1983 = vor.u32 %v1979, %v1982
        %v1984 = vrot.slane %v1983, 4
        %v1986 = vshll.u32 %v1709, 16
        %v1988 = vrot.slane %v1986, 5
        %v1989 = vsel %vm1124, %v1984, %v1988
        %v1990 = vshrl.u32 %v1709, 16
        %v1992 = vrot.slane %v1990, 4
        %v1993 = vor.u32 %v1992, %v1988
        %v1994 = vrot.slane %v1993, 4
        %v1996 = vshll.u32 %v1730, 16
        %v1998 = vrot.slane %v1996, 5
        %v1999 = vsel %vm1124, %v1994, %v1998
        %v2001 = vshrl.u32 %v1710, 16
        %v2003 = vrot.slane %v2001, 4
        %v2004 = vshll.u32 %v1710, 16
        %v2006 = vrot.slane %v2004, 5
        %v2007 = vor.u32 %v2003, %v2006
        %v2008 = vrot.slane %v2007, 4
        %v2010 = vshll.u32 %v1711, 16
        %v2012 = vrot.slane %v2010, 5
        %v2013 = vsel %vm1124, %v2008, %v2012
        %v2014 = vshrl.u32 %v1711, 16
        %v2016 = vrot.slane %v2014, 4
        %v2017 = vor.u32 %v2016, %v2012
        %v2018 = vrot.slane %v2017, 4
        %v2020 = vshll.u32 %v1731, 16
        %v2022 = vrot.slane %v2020, 5
        %v2023 = vsel %vm1124, %v2018, %v2022
        %v2025 = vshrl.u32 %v1712, 16
        %v2027 = vrot.slane %v2025, 4
        %v2028 = vshll.u32 %v1712, 16
        %v2030 = vrot.slane %v2028, 5
        %v2031 = vor.u32 %v2027, %v2030
        %v2032 = vrot.slane %v2031, 4
        %v2034 = vshll.u32 %v1713, 16
        %v2036 = vrot.slane %v2034, 5
        %v2037 = vsel %vm1124, %v2032, %v2036
        %v2038 = vshrl.u32 %v1713, 16
        %v2040 = vrot.slane %v2038, 4
        %v2041 = vor.u32 %v2040, %v2036
        %v2042 = vrot.slane %v2041, 4
        %v2044 = vshll.u32 %v1732, 16
        %v2046 = vrot.slane %v2044, 5
        %v2047 = vsel %vm1124, %v2042, %v2046
        %v2049 = vshrl.u32 %v1714, 16
        %v2051 = vrot.slane %v2049, 4
        %v2052 = vshll.u32 %v1714, 16
        %v2054 = vrot.slane %v2052, 5
        %v2055 = vor.u32 %v2051, %v2054
        %v2056 = vrot.slane %v2055, 4
        %v2058 = vshll.u32 %v1715, 16
        %v2060 = vrot.slane %v2058, 5
        %v2061 = vsel %vm1124, %v2056, %v2060
        %v2062 = vshrl.u32 %v1715, 16
        %v2064 = vrot.slane %v2062, 4
        %v2065 = vor.u32 %v2064, %v2060
        %v2066 = vrot.slane %v2065, 4
        %v2068 = vshll.u32 %v1733, 16
        %v2070 = vrot.slane %v2068, 5
        %v2071 = vsel %vm1124, %v2066, %v2070
        %v2073 = vshrl.u32 %v1716, 16
        %v2075 = vrot.slane %v2073, 4
        %v2076 = vshll.u32 %v1716, 16
        %v2078 = vrot.slane %v2076, 5
        %v2079 = vor.u32 %v2075, %v2078
        %v2080 = vrot.slane %v2079, 4
        %v2082 = vshll.u32 %v1717, 16
        %v2084 = vrot.slane %v2082, 5
        %v2085 = vsel %vm1124, %v2080, %v2084
        %v2086 = vshrl.u32 %v1717, 16
        %v2088 = vrot.slane %v2086, 4
        %v2089 = vor.u32 %v2088, %v2084
        %v2090 = vrot.slane %v2089, 4
        %v2092 = vshll.u32 %v1734, 16
        %v2094 = vrot.slane %v2092, 5
        %v2095 = vsel %vm1124, %v2090, %v2094
        %v2097 = vshrl.u32 %v1718, 16
        %v2099 = vrot.slane %v2097, 4
        %v2100 = vshll.u32 %v1718, 16
        %v2102 = vrot.slane %v2100, 5
        %v2103 = vor.u32 %v2099, %v2102
        %v2104 = vrot.slane %v2103, 4
        %v2106 = vshll.u32 %v1719, 16
        %v2108 = vrot.slane %v2106, 5
        %v2109 = vsel %vm1124, %v2104, %v2108
        %v2110 = vshrl.u32 %v1719, 16
        %v2112 = vrot.slane %v2110, 4
        %v2113 = vor.u32 %v2112, %v2108
        %v2114 = vrot.slane %v2113, 4
        %v2116 = vshll.u32 %v1735, 16
        %v2118 = vrot.slane %v2116, 5
        %v2119 = vsel %vm1124, %v2114, %v2118
        %v2120 = vld [vmem:[%s536] sm:$0xe]
        %v2121 = vld [vmem:[%s536 + $0xc] sm:$0xe]
        %v2122 = vld [vmem:[%s536 + $0x18] sm:$0xe]
        %v2123 = vld [vmem:[%s536 + $0x24] sm:$0xe]
        %v2124 = vld [vmem:[%s536 + $0x30] sm:$0xe]
        %v2125 = vld [vmem:[%s536 + $0x3c] sm:$0xe]
        %v2126 = vld [vmem:[%s536 + $0x48] sm:$0xe]
        %v2127 = vld [vmem:[%s536 + $0x54] sm:$0xe]
        %v2128 = vld [vmem:[%s536 + $0x60] sm:$0xe]
        %v2129 = vld [vmem:[%s536 + $0x6c] sm:$0xe]
        %v2130 = vld [vmem:[%s536 + $0x78] sm:$0xe]
        %v2131 = vld [vmem:[%s536 + $0x84] sm:$0xe]
        %v2132 = vld [vmem:[%s536 + $0x90] sm:$0xe]
        %v2133 = vld [vmem:[%s536 + $0x9c] sm:$0xe]
        %v2134 = vld [vmem:[%s536 + $0xa8] sm:$0xe]
        %v2135 = vld [vmem:[%s536 + $0xb4] sm:$0xe]
        %v2184 = vrot.slane %v2120, 5
        %v2185 = vrot.slane %v2184, 4
        %v2186 = vrot.slane %v1689, 5
        %v2187 = vsel %vm1575, %v2185, %v2186
        %v2188 = vrot.slane %v2186, 4
        %v2189 = vrot.slane %v1720, 5
        %v2190 = vsel %vm1575, %v2188, %v2189
        %v2191 = vrot.slane %v2121, 5
        %v2192 = vrot.slane %v2191, 4
        %v2193 = vrot.slane %v1691, 5
        %v2194 = vsel %vm1575, %v2192, %v2193
        %v2195 = vrot.slane %v2193, 4
        %v2196 = vrot.slane %v1721, 5
        %v2197 = vsel %vm1575, %v2195, %v2196
        %v2198 = vrot.slane %v2122, 5
        %v2199 = vrot.slane %v2198, 4
        %v2200 = vrot.slane %v1693, 5
        %v2201 = vsel %vm1575, %v2199, %v2200
        %v2202 = vrot.slane %v2200, 4
        %v2203 = vrot.slane %v1722, 5
        %v2204 = vsel %vm1575, %v2202, %v2203
        %v2205 = vrot.slane %v2123, 5
        %v2206 = vrot.slane %v2205, 4
        %v2207 = vrot.slane %v1695, 5
        %v2208 = vsel %vm1575, %v2206, %v2207
        %v2209 = vrot.slane %v2207, 4
        %v2210 = vrot.slane %v1723, 5
        %v2211 = vsel %vm1575, %v2209, %v2210
        %v2212 = vrot.slane %v2124, 5
        %v2213 = vrot.slane %v2212, 4
        %v2214 = vrot.slane %v1697, 5
        %v2215 = vsel %vm1575, %v2213, %v2214
        %v2216 = vrot.slane %v2214, 4
        %v2217 = vrot.slane %v1724, 5
        %v2218 = vsel %vm1575, %v2216, %v2217
        %v2219 = vrot.slane %v2125, 5
        %v2220 = vrot.slane %v2219, 4
        %v2221 = vrot.slane %v1699, 5
        %v2222 = vsel %vm1575, %v2220, %v2221
        %v2223 = vrot.slane %v2221, 4
        %v2224 = vrot.slane %v1725, 5
        %v2225 = vsel %vm1575, %v2223, %v2224
        %v2226 = vrot.slane %v2126, 5
        %v2227 = vrot.slane %v2226, 4
        %v2228 = vrot.slane %v1701, 5
        %v2229 = vsel %vm1575, %v2227, %v2228
        %v2230 = vrot.slane %v2228, 4
        %v2231 = vrot.slane %v1726, 5
        %v2232 = vsel %vm1575, %v2230, %v2231
        %v2233 = vrot.slane %v2127, 5
        %v2234 = vrot.slane %v2233, 4
        %v2235 = vrot.slane %v1703, 5
        %v2236 = vsel %vm1575, %v2234, %v2235
        %v2237 = vrot.slane %v2235, 4
        %v2238 = vrot.slane %v1727, 5
        %v2239 = vsel %vm1575, %v2237, %v2238
        %v2240 = vrot.slane %v2128, 5
        %v2241 = vrot.slane %v2240, 4
        %v2242 = vrot.slane %v1705, 5
        %v2243 = vsel %vm1575, %v2241, %v2242
        %v2244 = vrot.slane %v2242, 4
        %v2245 = vrot.slane %v1728, 5
        %v2246 = vsel %vm1575, %v2244, %v2245
        %v2247 = vrot.slane %v2129, 5
        %v2248 = vrot.slane %v2247, 4
        %v2249 = vrot.slane %v1707, 5
        %v2250 = vsel %vm1575, %v2248, %v2249
        %v2251 = vrot.slane %v2249, 4
        %v2252 = vrot.slane %v1729, 5
        %v2253 = vsel %vm1575, %v2251, %v2252
        %v2254 = vrot.slane %v2130, 5
        %v2255 = vrot.slane %v2254, 4
        %v2256 = vrot.slane %v1709, 5
        %v2257 = vsel %vm1575, %v2255, %v2256
        %v2258 = vrot.slane %v2256, 4
        %v2259 = vrot.slane %v1730, 5
        %v2260 = vsel %vm1575, %v2258, %v2259
        %v2261 = vrot.slane %v2131, 5
        %v2262 = vrot.slane %v2261, 4
        %v2263 = vrot.slane %v1711, 5
        %v2264 = vsel %vm1575, %v2262, %v2263
        %v2265 = vrot.slane %v2263, 4
        %v2266 = vrot.slane %v1731, 5
        %v2267 = vsel %vm1575, %v2265, %v2266
        %v2268 = vrot.slane %v2132, 5
        %v2269 = vrot.slane %v2268, 4
        %v2270 = vrot.slane %v1713, 5
        %v2271 = vsel %vm1575, %v2269, %v2270
        %v2272 = vrot.slane %v2270, 4
        %v2273 = vrot.slane %v1732, 5
        %v2274 = vsel %vm1575, %v2272, %v2273
        %v2275 = vrot.slane %v2133, 5
        %v2276 = vrot.slane %v2275, 4
        %v2277 = vrot.slane %v1715, 5
        %v2278 = vsel %vm1575, %v2276, %v2277
        %v2279 = vrot.slane %v2277, 4
        %v2280 = vrot.slane %v1733, 5
        %v2281 = vsel %vm1575, %v2279, %v2280
        %v2282 = vrot.slane %v2134, 5
        %v2283 = vrot.slane %v2282, 4
        %v2284 = vrot.slane %v1717, 5
        %v2285 = vsel %vm1575, %v2283, %v2284
        %v2286 = vrot.slane %v2284, 4
        %v2287 = vrot.slane %v1734, 5
        %v2288 = vsel %vm1575, %v2286, %v2287
        %v2289 = vrot.slane %v2135, 5
        %v2290 = vrot.slane %v2289, 4
        %v2291 = vrot.slane %v1719, 5
        %v2292 = vsel %vm1575, %v2290, %v2291
        %v2293 = vrot.slane %v2291, 4
        %v2294 = vrot.slane %v1735, 5
        %v2295 = vsel %vm1575, %v2293, %v2294
        %s2296 = scalar_lea.vmem [#allocation2], 24
        %v2297 = vld [vmem:[%s2296] sm:$0xf]
        %v2298 = vld [vmem:[%s2296 + $0x4] sm:$0xf]
        %v2299 = vld [vmem:[%s2296 + $0xc] sm:$0xf]
        %v2300 = vld [vmem:[%s2296 + $0x10] sm:$0xf]
        %v2301 = vld [vmem:[%s2296 + $0x18] sm:$0xf]
        %v2302 = vld [vmem:[%s2296 + $0x1c] sm:$0xf]
        %v2303 = vld [vmem:[%s2296 + $0x24] sm:$0xf]
        %v2304 = vld [vmem:[%s2296 + $0x28] sm:$0xf]
        %v2305 = vld [vmem:[%s2296 + $0x30] sm:$0xf]
        %v2306 = vld [vmem:[%s2296 + $0x34] sm:$0xf]
        %v2307 = vld [vmem:[%s2296 + $0x3c] sm:$0xf]
        %v2308 = vld [vmem:[%s2296 + $0x40] sm:$0xf]
        %v2309 = vld [vmem:[%s2296 + $0x48] sm:$0xf]
        %v2310 = vld [vmem:[%s2296 + $0x4c] sm:$0xf]
        %v2311 = vld [vmem:[%s2296 + $0x54] sm:$0xf]
        %v2312 = vld [vmem:[%s2296 + $0x58] sm:$0xf]
        %v2313 = vld [vmem:[%s2296 + $0x60] sm:$0xf]
        %v2314 = vld [vmem:[%s2296 + $0x64] sm:$0xf]
        %v2315 = vld [vmem:[%s2296 + $0x6c] sm:$0xf]
        %v2316 = vld [vmem:[%s2296 + $0x70] sm:$0xf]
        %v2317 = vld [vmem:[%s2296 + $0x78] sm:$0xf]
        %v2318 = vld [vmem:[%s2296 + $0x7c] sm:$0xf]
        %v2319 = vld [vmem:[%s2296 + $0x84] sm:$0xf]
        %v2320 = vld [vmem:[%s2296 + $0x88] sm:$0xf]
        %v2321 = vld [vmem:[%s2296 + $0x90] sm:$0xf]
        %v2322 = vld [vmem:[%s2296 + $0x94] sm:$0xf]
        %v2323 = vld [vmem:[%s2296 + $0x9c] sm:$0xf]
        %v2324 = vld [vmem:[%s2296 + $0xa0] sm:$0xf]
        %v2325 = vld [vmem:[%s2296 + $0xa8] sm:$0xf]
        %v2326 = vld [vmem:[%s2296 + $0xac] sm:$0xf]
        %v2327 = vld [vmem:[%s2296 + $0xb4] sm:$0xf]
        %v2328 = vld [vmem:[%s2296 + $0xb8] sm:$0xf]
        %v2329 = vld [vmem:[%s2296 + $0x8] sm:$0x1]
        %v2330 = vld [vmem:[%s2296 + $0x14] sm:$0x1]
        %v2331 = vld [vmem:[%s2296 + $0x20] sm:$0x1]
        %v2332 = vld [vmem:[%s2296 + $0x2c] sm:$0x1]
        %v2333 = vld [vmem:[%s2296 + $0x38] sm:$0x1]
        %v2334 = vld [vmem:[%s2296 + $0x44] sm:$0x1]
        %v2335 = vld [vmem:[%s2296 + $0x50] sm:$0x1]
        %v2336 = vld [vmem:[%s2296 + $0x5c] sm:$0x1]
        %v2337 = vld [vmem:[%s2296 + $0x68] sm:$0x1]
        %v2338 = vld [vmem:[%s2296 + $0x74] sm:$0x1]
        %v2339 = vld [vmem:[%s2296 + $0x80] sm:$0x1]
        %v2340 = vld [vmem:[%s2296 + $0x8c] sm:$0x1]
        %v2341 = vld [vmem:[%s2296 + $0x98] sm:$0x1]
        %v2342 = vld [vmem:[%s2296 + $0xa4] sm:$0x1]
        %v2343 = vld [vmem:[%s2296 + $0xb0] sm:$0x1]
        %v2344 = vld [vmem:[%s2296 + $0xbc] sm:$0x1]
        %v2346 = vshrl.u32 %v2297, 16
        %v2348 = vrot.slane %v2346, 4
        %v2349 = vshll.u32 %v2297, 16
        %v2351 = vrot.slane %v2349, 5
        %v2352 = vor.u32 %v2348, %v2351
        %v2353 = vrot.slane %v2352, 4
        %v2355 = vshll.u32 %v2298, 16
        %v2357 = vrot.slane %v2355, 5
        %v2358 = vsel %vm1124, %v2353, %v2357
        %v2359 = vshrl.u32 %v2298, 16
        %v2361 = vrot.slane %v2359, 4
        %v2362 = vor.u32 %v2361, %v2357
        %v2363 = vrot.slane %v2362, 4
        %v2365 = vshll.u32 %v2329, 16
        %v2367 = vrot.slane %v2365, 5
        %v2368 = vsel %vm1124, %v2363, %v2367
        %v2370 = vshrl.u32 %v2299, 16
        %v2372 = vrot.slane %v2370, 4
        %v2373 = vshll.u32 %v2299, 16
        %v2375 = vrot.slane %v2373, 5
        %v2376 = vor.u32 %v2372, %v2375
        %v2377 = vrot.slane %v2376, 4
        %v2379 = vshll.u32 %v2300, 16
        %v2381 = vrot.slane %v2379, 5
        %v2382 = vsel %vm1124, %v2377, %v2381
        %v2383 = vshrl.u32 %v2300, 16
        %v2385 = vrot.slane %v2383, 4
        %v2386 = vor.u32 %v2385, %v2381
        %v2387 = vrot.slane %v2386, 4
        %v2389 = vshll.u32 %v2330, 16
        %v2391 = vrot.slane %v2389, 5
        %v2392 = vsel %vm1124, %v2387, %v2391
        %v2394 = vshrl.u32 %v2301, 16
        %v2396 = vrot.slane %v2394, 4
        %v2397 = vshll.u32 %v2301, 16
        %v2399 = vrot.slane %v2397, 5
        %v2400 = vor.u32 %v2396, %v2399
        %v2401 = vrot.slane %v2400, 4
        %v2403 = vshll.u32 %v2302, 16
        %v2405 = vrot.slane %v2403, 5
        %v2406 = vsel %vm1124, %v2401, %v2405
        %v2407 = vshrl.u32 %v2302, 16
        %v2409 = vrot.slane %v2407, 4
        %v2410 = vor.u32 %v2409, %v2405
        %v2411 = vrot.slane %v2410, 4
        %v2413 = vshll.u32 %v2331, 16
        %v2415 = vrot.slane %v2413, 5
        %v2416 = vsel %vm1124, %v2411, %v2415
        %v2418 = vshrl.u32 %v2303, 16
        %v2420 = vrot.slane %v2418, 4
        %v2421 = vshll.u32 %v2303, 16
        %v2423 = vrot.slane %v2421, 5
        %v2424 = vor.u32 %v2420, %v2423
        %v2425 = vrot.slane %v2424, 4
        %v2427 = vshll.u32 %v2304, 16
        %v2429 = vrot.slane %v2427, 5
        %v2430 = vsel %vm1124, %v2425, %v2429
        %v2431 = vshrl.u32 %v2304, 16
        %v2433 = vrot.slane %v2431, 4
        %v2434 = vor.u32 %v2433, %v2429
        %v2435 = vrot.slane %v2434, 4
        %v2437 = vshll.u32 %v2332, 16
        %v2439 = vrot.slane %v2437, 5
        %v2440 = vsel %vm1124, %v2435, %v2439
        %v2442 = vshrl.u32 %v2305, 16
        %v2444 = vrot.slane %v2442, 4
        %v2445 = vshll.u32 %v2305, 16
        %v2447 = vrot.slane %v2445, 5
        %v2448 = vor.u32 %v2444, %v2447
        %v2449 = vrot.slane %v2448, 4
        %v2451 = vshll.u32 %v2306, 16
        %v2453 = vrot.slane %v2451, 5
        %v2454 = vsel %vm1124, %v2449, %v2453
        %v2455 = vshrl.u32 %v2306, 16
        %v2457 = vrot.slane %v2455, 4
        %v2458 = vor.u32 %v2457, %v2453
        %v2459 = vrot.slane %v2458, 4
        %v2461 = vshll.u32 %v2333, 16
        %v2463 = vrot.slane %v2461, 5
        %v2464 = vsel %vm1124, %v2459, %v2463
        %v2466 = vshrl.u32 %v2307, 16
        %v2468 = vrot.slane %v2466, 4
        %v2469 = vshll.u32 %v2307, 16
        %v2471 = vrot.slane %v2469, 5
        %v2472 = vor.u32 %v2468, %v2471
        %v2473 = vrot.slane %v2472, 4
        %v2475 = vshll.u32 %v2308, 16
        %v2477 = vrot.slane %v2475, 5
        %v2478 = vsel %vm1124, %v2473, %v2477
        %v2479 = vshrl.u32 %v2308, 16
        %v2481 = vrot.slane %v2479, 4
        %v2482 = vor.u32 %v2481, %v2477
        %v2483 = vrot.slane %v2482, 4
        %v2485 = vshll.u32 %v2334, 16
        %v2487 = vrot.slane %v2485, 5
        %v2488 = vsel %vm1124, %v2483, %v2487
        %v2490 = vshrl.u32 %v2309, 16
        %v2492 = vrot.slane %v2490, 4
        %v2493 = vshll.u32 %v2309, 16
        %v2495 = vrot.slane %v2493, 5
        %v2496 = vor.u32 %v2492, %v2495
        %v2497 = vrot.slane %v2496, 4
        %v2499 = vshll.u32 %v2310, 16
        %v2501 = vrot.slane %v2499, 5
        %v2502 = vsel %vm1124, %v2497, %v2501
        %v2503 = vshrl.u32 %v2310, 16
        %v2505 = vrot.slane %v2503, 4
        %v2506 = vor.u32 %v2505, %v2501
        %v2507 = vrot.slane %v2506, 4
        %v2509 = vshll.u32 %v2335, 16
        %v2511 = vrot.slane %v2509, 5
        %v2512 = vsel %vm1124, %v2507, %v2511
        %v2514 = vshrl.u32 %v2311, 16
        %v2516 = vrot.slane %v2514, 4
        %v2517 = vshll.u32 %v2311, 16
        %v2519 = vrot.slane %v2517, 5
        %v2520 = vor.u32 %v2516, %v2519
        %v2521 = vrot.slane %v2520, 4
        %v2523 = vshll.u32 %v2312, 16
        %v2525 = vrot.slane %v2523, 5
        %v2526 = vsel %vm1124, %v2521, %v2525
        %v2527 = vshrl.u32 %v2312, 16
        %v2529 = vrot.slane %v2527, 4
        %v2530 = vor.u32 %v2529, %v2525
        %v2531 = vrot.slane %v2530, 4
        %v2533 = vshll.u32 %v2336, 16
        %v2535 = vrot.slane %v2533, 5
        %v2536 = vsel %vm1124, %v2531, %v2535
        %v2538 = vshrl.u32 %v2313, 16
        %v2540 = vrot.slane %v2538, 4
        %v2541 = vshll.u32 %v2313, 16
        %v2543 = vrot.slane %v2541, 5
        %v2544 = vor.u32 %v2540, %v2543
        %v2545 = vrot.slane %v2544, 4
        %v2547 = vshll.u32 %v2314, 16
        %v2549 = vrot.slane %v2547, 5
        %v2550 = vsel %vm1124, %v2545, %v2549
        %v2551 = vshrl.u32 %v2314, 16
        %v2553 = vrot.slane %v2551, 4
        %v2554 = vor.u32 %v2553, %v2549
        %v2555 = vrot.slane %v2554, 4
        %v2557 = vshll.u32 %v2337, 16
        %v2559 = vrot.slane %v2557, 5
        %v2560 = vsel %vm1124, %v2555, %v2559
        %v2562 = vshrl.u32 %v2315, 16
        %v2564 = vrot.slane %v2562, 4
        %v2565 = vshll.u32 %v2315, 16
        %v2567 = vrot.slane %v2565, 5
        %v2568 = vor.u32 %v2564, %v2567
        %v2569 = vrot.slane %v2568, 4
        %v2571 = vshll.u32 %v2316, 16
        %v2573 = vrot.slane %v2571, 5
        %v2574 = vsel %vm1124, %v2569, %v2573
        %v2575 = vshrl.u32 %v2316, 16
        %v2577 = vrot.slane %v2575, 4
        %v2578 = vor.u32 %v2577, %v2573
        %v2579 = vrot.slane %v2578, 4
        %v2581 = vshll.u32 %v2338, 16
        %v2583 = vrot.slane %v2581, 5
        %v2584 = vsel %vm1124, %v2579, %v2583
        %v2586 = vshrl.u32 %v2317, 16
        %v2588 = vrot.slane %v2586, 4
        %v2589 = vshll.u32 %v2317, 16
        %v2591 = vrot.slane %v2589, 5
        %v2592 = vor.u32 %v2588, %v2591
        %v2593 = vrot.slane %v2592, 4
        %v2595 = vshll.u32 %v2318, 16
        %v2597 = vrot.slane %v2595, 5
        %v2598 = vsel %vm1124, %v2593, %v2597
        %v2599 = vshrl.u32 %v2318, 16
        %v2601 = vrot.slane %v2599, 4
        %v2602 = vor.u32 %v2601, %v2597
        %v2603 = vrot.slane %v2602, 4
        %v2605 = vshll.u32 %v2339, 16
        %v2607 = vrot.slane %v2605, 5
        %v2608 = vsel %vm1124, %v2603, %v2607
        %v2610 = vshrl.u32 %v2319, 16
        %v2612 = vrot.slane %v2610, 4
        %v2613 = vshll.u32 %v2319, 16
        %v2615 = vrot.slane %v2613, 5
        %v2616 = vor.u32 %v2612, %v2615
        %v2617 = vrot.slane %v2616, 4
        %v2619 = vshll.u32 %v2320, 16
        %v2621 = vrot.slane %v2619, 5
        %v2622 = vsel %vm1124, %v2617, %v2621
        %v2623 = vshrl.u32 %v2320, 16
        %v2625 = vrot.slane %v2623, 4
        %v2626 = vor.u32 %v2625, %v2621
        %v2627 = vrot.slane %v2626, 4
        %v2629 = vshll.u32 %v2340, 16
        %v2631 = vrot.slane %v2629, 5
        %v2632 = vsel %vm1124, %v2627, %v2631
        %v2634 = vshrl.u32 %v2321, 16
        %v2636 = vrot.slane %v2634, 4
        %v2637 = vshll.u32 %v2321, 16
        %v2639 = vrot.slane %v2637, 5
        %v2640 = vor.u32 %v2636, %v2639
        %v2641 = vrot.slane %v2640, 4
        %v2643 = vshll.u32 %v2322, 16
        %v2645 = vrot.slane %v2643, 5
        %v2646 = vsel %vm1124, %v2641, %v2645
        %v2647 = vshrl.u32 %v2322, 16
        %v2649 = vrot.slane %v2647, 4
        %v2650 = vor.u32 %v2649, %v2645
        %v2651 = vrot.slane %v2650, 4
        %v2653 = vshll.u32 %v2341, 16
        %v2655 = vrot.slane %v2653, 5
        %v2656 = vsel %vm1124, %v2651, %v2655
        %v2658 = vshrl.u32 %v2323, 16
        %v2660 = vrot.slane %v2658, 4
        %v2661 = vshll.u32 %v2323, 16
        %v2663 = vrot.slane %v2661, 5
        %v2664 = vor.u32 %v2660, %v2663
        %v2665 = vrot.slane %v2664, 4
        %v2667 = vshll.u32 %v2324, 16
        %v2669 = vrot.slane %v2667, 5
        %v2670 = vsel %vm1124, %v2665, %v2669
        %v2671 = vshrl.u32 %v2324, 16
        %v2673 = vrot.slane %v2671, 4
        %v2674 = vor.u32 %v2673, %v2669
        %v2675 = vrot.slane %v2674, 4
        %v2677 = vshll.u32 %v2342, 16
        %v2679 = vrot.slane %v2677, 5
        %v2680 = vsel %vm1124, %v2675, %v2679
        %v2682 = vshrl.u32 %v2325, 16
        %v2684 = vrot.slane %v2682, 4
        %v2685 = vshll.u32 %v2325, 16
        %v2687 = vrot.slane %v2685, 5
        %v2688 = vor.u32 %v2684, %v2687
        %v2689 = vrot.slane %v2688, 4
        %v2691 = vshll.u32 %v2326, 16
        %v2693 = vrot.slane %v2691, 5
        %v2694 = vsel %vm1124, %v2689, %v2693
        %v2695 = vshrl.u32 %v2326, 16
        %v2697 = vrot.slane %v2695, 4
        %v2698 = vor.u32 %v2697, %v2693
        %v2699 = vrot.slane %v2698, 4
        %v2701 = vshll.u32 %v2343, 16
        %v2703 = vrot.slane %v2701, 5
        %v2704 = vsel %vm1124, %v2699, %v2703
        %v2706 = vshrl.u32 %v2327, 16
        %v2708 = vrot.slane %v2706, 4
        %v2709 = vshll.u32 %v2327, 16
        %v2711 = vrot.slane %v2709, 5
        %v2712 = vor.u32 %v2708, %v2711
        %v2713 = vrot.slane %v2712, 4
        %v2715 = vshll.u32 %v2328, 16
        %v2717 = vrot.slane %v2715, 5
        %v2718 = vsel %vm1124, %v2713, %v2717
        %v2719 = vshrl.u32 %v2328, 16
        %v2721 = vrot.slane %v2719, 4
        %v2722 = vor.u32 %v2721, %v2717
        %v2723 = vrot.slane %v2722, 4
        %v2725 = vshll.u32 %v2344, 16
        %v2727 = vrot.slane %v2725, 5
        %v2728 = vsel %vm1124, %v2723, %v2727
        %v2729 = vld [vmem:[%s2296] sm:$0xe]
        %v2730 = vld [vmem:[%s2296 + $0xc] sm:$0xe]
        %v2731 = vld [vmem:[%s2296 + $0x18] sm:$0xe]
        %v2732 = vld [vmem:[%s2296 + $0x24] sm:$0xe]
        %v2733 = vld [vmem:[%s2296 + $0x30] sm:$0xe]
        %v2734 = vld [vmem:[%s2296 + $0x3c] sm:$0xe]
        %v2735 = vld [vmem:[%s2296 + $0x48] sm:$0xe]
        %v2736 = vld [vmem:[%s2296 + $0x54] sm:$0xe]
        %v2737 = vld [vmem:[%s2296 + $0x60] sm:$0xe]
        %v2738 = vld [vmem:[%s2296 + $0x6c] sm:$0xe]
        %v2739 = vld [vmem:[%s2296 + $0x78] sm:$0xe]
        %v2740 = vld [vmem:[%s2296 + $0x84] sm:$0xe]
        %v2741 = vld [vmem:[%s2296 + $0x90] sm:$0xe]
        %v2742 = vld [vmem:[%s2296 + $0x9c] sm:$0xe]
        %v2743 = vld [vmem:[%s2296 + $0xa8] sm:$0xe]
        %v2744 = vld [vmem:[%s2296 + $0xb4] sm:$0xe]
        %v2793 = vrot.slane %v2729, 5
        %v2794 = vrot.slane %v2793, 4
        %v2795 = vrot.slane %v2298, 5
        %v2796 = vsel %vm1575, %v2794, %v2795
        %v2797 = vrot.slane %v2795, 4
        %v2798 = vrot.slane %v2329, 5
        %v2799 = vsel %vm1575, %v2797, %v2798
        %v2800 = vrot.slane %v2730, 5
        %v2801 = vrot.slane %v2800, 4
        %v2802 = vrot.slane %v2300, 5
        %v2803 = vsel %vm1575, %v2801, %v2802
        %v2804 = vrot.slane %v2802, 4
        %v2805 = vrot.slane %v2330, 5
        %v2806 = vsel %vm1575, %v2804, %v2805
        %v2807 = vrot.slane %v2731, 5
        %v2808 = vrot.slane %v2807, 4
        %v2809 = vrot.slane %v2302, 5
        %v2810 = vsel %vm1575, %v2808, %v2809
        %v2811 = vrot.slane %v2809, 4
        %v2812 = vrot.slane %v2331, 5
        %v2813 = vsel %vm1575, %v2811, %v2812
        %v2814 = vrot.slane %v2732, 5
        %v2815 = vrot.slane %v2814, 4
        %v2816 = vrot.slane %v2304, 5
        %v2817 = vsel %vm1575, %v2815, %v2816
        %v2818 = vrot.slane %v2816, 4
        %v2819 = vrot.slane %v2332, 5
        %v2820 = vsel %vm1575, %v2818, %v2819
        %v2821 = vrot.slane %v2733, 5
        %v2822 = vrot.slane %v2821, 4
        %v2823 = vrot.slane %v2306, 5
        %v2824 = vsel %vm1575, %v2822, %v2823
        %v2825 = vrot.slane %v2823, 4
        %v2826 = vrot.slane %v2333, 5
        %v2827 = vsel %vm1575, %v2825, %v2826
        %v2828 = vrot.slane %v2734, 5
        %v2829 = vrot.slane %v2828, 4
        %v2830 = vrot.slane %v2308, 5
        %v2831 = vsel %vm1575, %v2829, %v2830
        %v2832 = vrot.slane %v2830, 4
        %v2833 = vrot.slane %v2334, 5
        %v2834 = vsel %vm1575, %v2832, %v2833
        %v2835 = vrot.slane %v2735, 5
        %v2836 = vrot.slane %v2835, 4
        %v2837 = vrot.slane %v2310, 5
        %v2838 = vsel %vm1575, %v2836, %v2837
        %v2839 = vrot.slane %v2837, 4
        %v2840 = vrot.slane %v2335, 5
        %v2841 = vsel %vm1575, %v2839, %v2840
        %v2842 = vrot.slane %v2736, 5
        %v2843 = vrot.slane %v2842, 4
        %v2844 = vrot.slane %v2312, 5
        %v2845 = vsel %vm1575, %v2843, %v2844
        %v2846 = vrot.slane %v2844, 4
        %v2847 = vrot.slane %v2336, 5
        %v2848 = vsel %vm1575, %v2846, %v2847
        %v2849 = vrot.slane %v2737, 5
        %v2850 = vrot.slane %v2849, 4
        %v2851 = vrot.slane %v2314, 5
        %v2852 = vsel %vm1575, %v2850, %v2851
        %v2853 = vrot.slane %v2851, 4
        %v2854 = vrot.slane %v2337, 5
        %v2855 = vsel %vm1575, %v2853, %v2854
        %v2856 = vrot.slane %v2738, 5
        %v2857 = vrot.slane %v2856, 4
        %v2858 = vrot.slane %v2316, 5
        %v2859 = vsel %vm1575, %v2857, %v2858
        %v2860 = vrot.slane %v2858, 4
        %v2861 = vrot.slane %v2338, 5
        %v2862 = vsel %vm1575, %v2860, %v2861
        %v2863 = vrot.slane %v2739, 5
        %v2864 = vrot.slane %v2863, 4
        %v2865 = vrot.slane %v2318, 5
        %v2866 = vsel %vm1575, %v2864, %v2865
        %v2867 = vrot.slane %v2865, 4
        %v2868 = vrot.slane %v2339, 5
        %v2869 = vsel %vm1575, %v2867, %v2868
        %v2870 = vrot.slane %v2740, 5
        %v2871 = vrot.slane %v2870, 4
        %v2872 = vrot.slane %v2320, 5
        %v2873 = vsel %vm1575, %v2871, %v2872
        %v2874 = vrot.slane %v2872, 4
        %v2875 = vrot.slane %v2340, 5
        %v2876 = vsel %vm1575, %v2874, %v2875
        %v2877 = vrot.slane %v2741, 5
        %v2878 = vrot.slane %v2877, 4
        %v2879 = vrot.slane %v2322, 5
        %v2880 = vsel %vm1575, %v2878, %v2879
        %v2881 = vrot.slane %v2879, 4
        %v2882 = vrot.slane %v2341, 5
        %v2883 = vsel %vm1575, %v2881, %v2882
        %v2884 = vrot.slane %v2742, 5
        %v2885 = vrot.slane %v2884, 4
        %v2886 = vrot.slane %v2324, 5
        %v2887 = vsel %vm1575, %v2885, %v2886
        %v2888 = vrot.slane %v2886, 4
        %v2889 = vrot.slane %v2342, 5
        %v2890 = vsel %vm1575, %v2888, %v2889
        %v2891 = vrot.slane %v2743, 5
        %v2892 = vrot.slane %v2891, 4
        %v2893 = vrot.slane %v2326, 5
        %v2894 = vsel %vm1575, %v2892, %v2893
        %v2895 = vrot.slane %v2893, 4
        %v2896 = vrot.slane %v2343, 5
        %v2897 = vsel %vm1575, %v2895, %v2896
        %v2898 = vrot.slane %v2744, 5
        %v2899 = vrot.slane %v2898, 4
        %v2900 = vrot.slane %v2328, 5
        %v2901 = vsel %vm1575, %v2899, %v2900
        %v2902 = vrot.slane %v2900, 4
        %v2903 = vrot.slane %v2344, 5
        %v2904 = vsel %vm1575, %v2902, %v2903
        %v2921 = vunpack.c.l.b16 %v1074
        %v2922 = vunpack.c.l.b16 %v1075
        %v2923 = vunpack.c.l.b16 %v1076
        %v2924 = vunpack.c.l.b16 %v1077
        %v2925 = vunpack.c.l.b16 %v1078
        %v2926 = vunpack.c.l.b16 %v1079
        %v2927 = vunpack.c.l.b16 %v1080
        %v2928 = vunpack.c.l.b16 %v1081
        %v2929 = vunpack.c.l.b16 %v1082
        %v2930 = vunpack.c.l.b16 %v1083
        %v2931 = vunpack.c.l.b16 %v1084
        %v2932 = vunpack.c.l.b16 %v1085
        %v2933 = vunpack.c.l.b16 %v1086
        %v2934 = vunpack.c.l.b16 %v1087
        %v2935 = vunpack.c.l.b16 %v1088
        %v2936 = vunpack.c.l.b16 %v1089
        %v2937 = vunpack.c.l.b16 %v1090
        %v2938 = vunpack.c.l.b16 %v1091
        %v2939 = vunpack.c.l.b16 %v1092
        %v2940 = vunpack.c.l.b16 %v1093
        %v2941 = vunpack.c.l.b16 %v1094
        %v2942 = vunpack.c.l.b16 %v1095
        %v2943 = vunpack.c.l.b16 %v1096
        %v2944 = vunpack.c.l.b16 %v1097
        %v2945 = vunpack.c.l.b16 %v1098
        %v2946 = vunpack.c.l.b16 %v1099
        %v2947 = vunpack.c.l.b16 %v1100
        %v2948 = vunpack.c.l.b16 %v1101
        %v2949 = vunpack.c.l.b16 %v1102
        %v2950 = vunpack.c.l.b16 %v1103
        %v2951 = vunpack.c.l.b16 %v1104
        %v2952 = vunpack.c.l.b16 %v1105
        %v2953 = vpack.c.b16 %v2922, %v2921
        %v2954 = vpack.c.b16 %v2924, %v2923
        %v2955 = vpack.c.b16 %v2926, %v2925
        %v2956 = vpack.c.b16 %v2928, %v2927
        %v2957 = vpack.c.b16 %v2930, %v2929
        %v2958 = vpack.c.b16 %v2932, %v2931
        %v2959 = vpack.c.b16 %v2934, %v2933
        %v2960 = vpack.c.b16 %v2936, %v2935
        %v2961 = vpack.c.b16 %v2938, %v2937
        %v2962 = vpack.c.b16 %v2940, %v2939
        %v2963 = vpack.c.b16 %v2942, %v2941
        %v2964 = vpack.c.b16 %v2944, %v2943
        %v2965 = vpack.c.b16 %v2946, %v2945
        %v2966 = vpack.c.b16 %v2948, %v2947
        %v2967 = vpack.c.b16 %v2950, %v2949
        %v2968 = vpack.c.b16 %v2952, %v2951
        %v2969 = vunpack.c.l.b16 %v1138
        %v2970 = vunpack.c.l.b16 %v1148
        %v2971 = vunpack.c.l.b16 %v1162
        %v2972 = vunpack.c.l.b16 %v1172
        %v2973 = vunpack.c.l.b16 %v1186
        %v2974 = vunpack.c.l.b16 %v1196
        %v2975 = vunpack.c.l.b16 %v1210
        %v2976 = vunpack.c.l.b16 %v1220
        %v2977 = vunpack.c.l.b16 %v1234
        %v2978 = vunpack.c.l.b16 %v1244
        %v2979 = vunpack.c.l.b16 %v1258
        %v2980 = vunpack.c.l.b16 %v1268
        %v2981 = vunpack.c.l.b16 %v1282
        %v2982 = vunpack.c.l.b16 %v1292
        %v2983 = vunpack.c.l.b16 %v1306
        %v2984 = vunpack.c.l.b16 %v1316
        %v2985 = vunpack.c.l.b16 %v1330
        %v2986 = vunpack.c.l.b16 %v1340
        %v2987 = vunpack.c.l.b16 %v1354
        %v2988 = vunpack.c.l.b16 %v1364
        %v2989 = vunpack.c.l.b16 %v1378
        %v2990 = vunpack.c.l.b16 %v1388
        %v2991 = vunpack.c.l.b16 %v1402
        %v2992 = vunpack.c.l.b16 %v1412
        %v2993 = vunpack.c.l.b16 %v1426
        %v2994 = vunpack.c.l.b16 %v1436
        %v2995 = vunpack.c.l.b16 %v1450
        %v2996 = vunpack.c.l.b16 %v1460
        %v2997 = vunpack.c.l.b16 %v1474
        %v2998 = vunpack.c.l.b16 %v1484
        %v2999 = vunpack.c.l.b16 %v1498
        %v3000 = vunpack.c.l.b16 %v1508
        %v3001 = vpack.c.b16 %v2970, %v2969
        %v3002 = vpack.c.b16 %v2972, %v2971
        %v3003 = vpack.c.b16 %v2974, %v2973
        %v3004 = vpack.c.b16 %v2976, %v2975
        %v3005 = vpack.c.b16 %v2978, %v2977
        %v3006 = vpack.c.b16 %v2980, %v2979
        %v3007 = vpack.c.b16 %v2982, %v2981
        %v3008 = vpack.c.b16 %v2984, %v2983
        %v3009 = vpack.c.b16 %v2986, %v2985
        %v3010 = vpack.c.b16 %v2988, %v2987
        %v3011 = vpack.c.b16 %v2990, %v2989
        %v3012 = vpack.c.b16 %v2992, %v2991
        %v3013 = vpack.c.b16 %v2994, %v2993
        %v3014 = vpack.c.b16 %v2996, %v2995
        %v3015 = vpack.c.b16 %v2998, %v2997
        %v3016 = vpack.c.b16 %v3000, %v2999
        %3017 = vrot.lane.b32.xlu0 %v3001, 32
        %v3018 = vpop.permute.xlu0 %3017
        %3019 = vrot.lane.b32.xlu0 %v3002, 32
        %v3020 = vpop.permute.xlu0 %3019
        %3021 = vrot.lane.b32.xlu0 %v3003, 32
        %v3022 = vpop.permute.xlu0 %3021
        %3023 = vrot.lane.b32.xlu0 %v3004, 32
        %v3024 = vpop.permute.xlu0 %3023
        %3025 = vrot.lane.b32.xlu0 %v3005, 32
        %v3026 = vpop.permute.xlu0 %3025
        %3027 = vrot.lane.b32.xlu0 %v3006, 32
        %v3028 = vpop.permute.xlu0 %3027
        %3029 = vrot.lane.b32.xlu0 %v3007, 32
        %v3030 = vpop.permute.xlu0 %3029
        %3031 = vrot.lane.b32.xlu0 %v3008, 32
        %v3032 = vpop.permute.xlu0 %3031
        %3033 = vrot.lane.b32.xlu0 %v3009, 32
        %v3034 = vpop.permute.xlu0 %3033
        %3035 = vrot.lane.b32.xlu0 %v3010, 32
        %v3036 = vpop.permute.xlu0 %3035
        %3037 = vrot.lane.b32.xlu0 %v3011, 32
        %v3038 = vpop.permute.xlu0 %3037
        %3039 = vrot.lane.b32.xlu0 %v3012, 32
        %v3040 = vpop.permute.xlu0 %3039
        %3041 = vrot.lane.b32.xlu0 %v3013, 32
        %v3042 = vpop.permute.xlu0 %3041
        %3043 = vrot.lane.b32.xlu0 %v3014, 32
        %v3044 = vpop.permute.xlu0 %3043
        %3045 = vrot.lane.b32.xlu0 %v3015, 32
        %v3046 = vpop.permute.xlu0 %3045
        %3047 = vrot.lane.b32.xlu0 %v3016, 32
        %v3048 = vpop.permute.xlu0 %3047
        %v3049 = vunpack.c.l.b16 %v1579
        %v3050 = vunpack.c.l.b16 %v1582
        %v3051 = vunpack.c.l.b16 %v1586
        %v3052 = vunpack.c.l.b16 %v1589
        %v3053 = vunpack.c.l.b16 %v1593
        %v3054 = vunpack.c.l.b16 %v1596
        %v3055 = vunpack.c.l.b16 %v1600
        %v3056 = vunpack.c.l.b16 %v1603
        %v3057 = vunpack.c.l.b16 %v1607
        %v3058 = vunpack.c.l.b16 %v1610
        %v3059 = vunpack.c.l.b16 %v1614
        %v3060 = vunpack.c.l.b16 %v1617
        %v3061 = vunpack.c.l.b16 %v1621
        %v3062 = vunpack.c.l.b16 %v1624
        %v3063 = vunpack.c.l.b16 %v1628
        %v3064 = vunpack.c.l.b16 %v1631
        %v3065 = vunpack.c.l.b16 %v1635
        %v3066 = vunpack.c.l.b16 %v1638
        %v3067 = vunpack.c.l.b16 %v1642
        %v3068 = vunpack.c.l.b16 %v1645
        %v3069 = vunpack.c.l.b16 %v1649
        %v3070 = vunpack.c.l.b16 %v1652
        %v3071 = vunpack.c.l.b16 %v1656
        %v3072 = vunpack.c.l.b16 %v1659
        %v3073 = vunpack.c.l.b16 %v1663
        %v3074 = vunpack.c.l.b16 %v1666
        %v3075 = vunpack.c.l.b16 %v1670
        %v3076 = vunpack.c.l.b16 %v1673
        %v3077 = vunpack.c.l.b16 %v1677
        %v3078 = vunpack.c.l.b16 %v1680
        %v3079 = vunpack.c.l.b16 %v1684
        %v3080 = vunpack.c.l.b16 %v1687
        %v3081 = vpack.c.b16 %v3050, %v3049
        %v3082 = vpack.c.b16 %v3052, %v3051
        %v3083 = vpack.c.b16 %v3054, %v3053
        %v3084 = vpack.c.b16 %v3056, %v3055
        %v3085 = vpack.c.b16 %v3058, %v3057
        %v3086 = vpack.c.b16 %v3060, %v3059
        %v3087 = vpack.c.b16 %v3062, %v3061
        %v3088 = vpack.c.b16 %v3064, %v3063
        %v3089 = vpack.c.b16 %v3066, %v3065
        %v3090 = vpack.c.b16 %v3068, %v3067
        %v3091 = vpack.c.b16 %v3070, %v3069
        %v3092 = vpack.c.b16 %v3072, %v3071
        %v3093 = vpack.c.b16 %v3074, %v3073
        %v3094 = vpack.c.b16 %v3076, %v3075
        %v3095 = vpack.c.b16 %v3078, %v3077
        %v3096 = vpack.c.b16 %v3080, %v3079
        %3097 = vrot.lane.b32.xlu0 %v3081, 64
        %v3098 = vpop.permute.xlu0 %3097
        %3099 = vrot.lane.b32.xlu0 %v3082, 64
        %v3100 = vpop.permute.xlu0 %3099
        %3101 = vrot.lane.b32.xlu0 %v3083, 64
        %v3102 = vpop.permute.xlu0 %3101
        %3103 = vrot.lane.b32.xlu0 %v3084, 64
        %v3104 = vpop.permute.xlu0 %3103
        %3105 = vrot.lane.b32.xlu0 %v3085, 64
        %v3106 = vpop.permute.xlu0 %3105
        %3107 = vrot.lane.b32.xlu0 %v3086, 64
        %v3108 = vpop.permute.xlu0 %3107
        %3109 = vrot.lane.b32.xlu0 %v3087, 64
        %v3110 = vpop.permute.xlu0 %3109
        %3111 = vrot.lane.b32.xlu0 %v3088, 64
        %v3112 = vpop.permute.xlu0 %3111
        %3113 = vrot.lane.b32.xlu0 %v3089, 64
        %v3114 = vpop.permute.xlu0 %3113
        %3115 = vrot.lane.b32.xlu0 %v3090, 64
        %v3116 = vpop.permute.xlu0 %3115
        %3117 = vrot.lane.b32.xlu0 %v3091, 64
        %v3118 = vpop.permute.xlu0 %3117
        %3119 = vrot.lane.b32.xlu0 %v3092, 64
        %v3120 = vpop.permute.xlu0 %3119
        %3121 = vrot.lane.b32.xlu0 %v3093, 64
        %v3122 = vpop.permute.xlu0 %3121
        %3123 = vrot.lane.b32.xlu0 %v3094, 64
        %v3124 = vpop.permute.xlu0 %3123
        %3125 = vrot.lane.b32.xlu0 %v3095, 64
        %v3126 = vpop.permute.xlu0 %3125
        %3127 = vrot.lane.b32.xlu0 %v3096, 64
        %v3128 = vpop.permute.xlu0 %3127
        %v3145 = vunpack.c.l.b16 %v1688
        %v3146 = vunpack.c.l.b16 %v1689
        %v3147 = vunpack.c.l.b16 %v1690
        %v3148 = vunpack.c.l.b16 %v1691
        %v3149 = vunpack.c.l.b16 %v1692
        %v3150 = vunpack.c.l.b16 %v1693
        %v3151 = vunpack.c.l.b16 %v1694
        %v3152 = vunpack.c.l.b16 %v1695
        %v3153 = vunpack.c.l.b16 %v1696
        %v3154 = vunpack.c.l.b16 %v1697
        %v3155 = vunpack.c.l.b16 %v1698
        %v3156 = vunpack.c.l.b16 %v1699
        %v3157 = vunpack.c.l.b16 %v1700
        %v3158 = vunpack.c.l.b16 %v1701
        %v3159 = vunpack.c.l.b16 %v1702
        %v3160 = vunpack.c.l.b16 %v1703
        %v3161 = vunpack.c.l.b16 %v1704
        %v3162 = vunpack.c.l.b16 %v1705
        %v3163 = vunpack.c.l.b16 %v1706
        %v3164 = vunpack.c.l.b16 %v1707
        %v3165 = vunpack.c.l.b16 %v1708
        %v3166 = vunpack.c.l.b16 %v1709
        %v3167 = vunpack.c.l.b16 %v1710
        %v3168 = vunpack.c.l.b16 %v1711
        %v3169 = vunpack.c.l.b16 %v1712
        %v3170 = vunpack.c.l.b16 %v1713
        %v3171 = vunpack.c.l.b16 %v1714
        %v3172 = vunpack.c.l.b16 %v1715
        %v3173 = vunpack.c.l.b16 %v1716
        %v3174 = vunpack.c.l.b16 %v1717
        %v3175 = vunpack.c.l.b16 %v1718
        %v3176 = vunpack.c.l.b16 %v1719
        %v3177 = vpack.c.b16 %v3146, %v3145
        %v3178 = vpack.c.b16 %v3148, %v3147
        %v3179 = vpack.c.b16 %v3150, %v3149
        %v3180 = vpack.c.b16 %v3152, %v3151
        %v3181 = vpack.c.b16 %v3154, %v3153
        %v3182 = vpack.c.b16 %v3156, %v3155
        %v3183 = vpack.c.b16 %v3158, %v3157
        %v3184 = vpack.c.b16 %v3160, %v3159
        %v3185 = vpack.c.b16 %v3162, %v3161
        %v3186 = vpack.c.b16 %v3164, %v3163
        %v3187 = vpack.c.b16 %v3166, %v3165
        %v3188 = vpack.c.b16 %v3168, %v3167
        %v3189 = vpack.c.b16 %v3170, %v3169
        %v3190 = vpack.c.b16 %v3172, %v3171
        %v3191 = vpack.c.b16 %v3174, %v3173
        %v3192 = vpack.c.b16 %v3176, %v3175
        %3193 = vrot.lane.b32.xlu0 %v3177, 96
        %v3194 = vpop.permute.xlu0 %3193
        %3195 = vrot.lane.b32.xlu0 %v3178, 96
        %v3196 = vpop.permute.xlu0 %3195
        %3197 = vrot.lane.b32.xlu0 %v3179, 96
        %v3198 = vpop.permute.xlu0 %3197
        %3199 = vrot.lane.b32.xlu0 %v3180, 96
        %v3200 = vpop.permute.xlu0 %3199
        %3201 = vrot.lane.b32.xlu0 %v3181, 96
        %v3202 = vpop.permute.xlu0 %3201
        %3203 = vrot.lane.b32.xlu0 %v3182, 96
        %v3204 = vpop.permute.xlu0 %3203
        %3205 = vrot.lane.b32.xlu0 %v3183, 96
        %v3206 = vpop.permute.xlu0 %3205
        %3207 = vrot.lane.b32.xlu0 %v3184, 96
        %v3208 = vpop.permute.xlu0 %3207
        %3209 = vrot.lane.b32.xlu0 %v3185, 96
        %v3210 = vpop.permute.xlu0 %3209
        %3211 = vrot.lane.b32.xlu0 %v3186, 96
        %v3212 = vpop.permute.xlu0 %3211
        %3213 = vrot.lane.b32.xlu0 %v3187, 96
        %v3214 = vpop.permute.xlu0 %3213
        %3215 = vrot.lane.b32.xlu0 %v3188, 96
        %v3216 = vpop.permute.xlu0 %3215
        %3217 = vrot.lane.b32.xlu0 %v3189, 96
        %v3218 = vpop.permute.xlu0 %3217
        %3219 = vrot.lane.b32.xlu0 %v3190, 96
        %v3220 = vpop.permute.xlu0 %3219
        %3221 = vrot.lane.b32.xlu0 %v3191, 96
        %v3222 = vpop.permute.xlu0 %3221
        %3223 = vrot.lane.b32.xlu0 %v3192, 96
        %v3224 = vpop.permute.xlu0 %3223
        %v3225 = vunpack.c.l.b16 %v1749
        %v3226 = vunpack.c.l.b16 %v1759
        %v3227 = vunpack.c.l.b16 %v1773
        %v3228 = vunpack.c.l.b16 %v1783
        %v3229 = vunpack.c.l.b16 %v1797
        %v3230 = vunpack.c.l.b16 %v1807
        %v3231 = vunpack.c.l.b16 %v1821
        %v3232 = vunpack.c.l.b16 %v1831
        %v3233 = vunpack.c.l.b16 %v1845
        %v3234 = vunpack.c.l.b16 %v1855
        %v3235 = vunpack.c.l.b16 %v1869
        %v3236 = vunpack.c.l.b16 %v1879
        %v3237 = vunpack.c.l.b16 %v1893
        %v3238 = vunpack.c.l.b16 %v1903
        %v3239 = vunpack.c.l.b16 %v1917
        %v3240 = vunpack.c.l.b16 %v1927
        %v3241 = vunpack.c.l.b16 %v1941
        %v3242 = vunpack.c.l.b16 %v1951
        %v3243 = vunpack.c.l.b16 %v1965
        %v3244 = vunpack.c.l.b16 %v1975
        %v3245 = vunpack.c.l.b16 %v1989
        %v3246 = vunpack.c.l.b16 %v1999
        %v3247 = vunpack.c.l.b16 %v2013
        %v3248 = vunpack.c.l.b16 %v2023
        %v3249 = vunpack.c.l.b16 %v2037
        %v3250 = vunpack.c.l.b16 %v2047
        %v3251 = vunpack.c.l.b16 %v2061
        %v3252 = vunpack.c.l.b16 %v2071
        %v3253 = vunpack.c.l.b16 %v2085
        %v3254 = vunpack.c.l.b16 %v2095
        %v3255 = vunpack.c.l.b16 %v2109
        %v3256 = vunpack.c.l.b16 %v2119
        %v3257 = vpack.c.b16 %v3226, %v3225
        %v3258 = vpack.c.b16 %v3228, %v3227
        %v3259 = vpack.c.b16 %v3230, %v3229
        %v3260 = vpack.c.b16 %v3232, %v3231
        %v3261 = vpack.c.b16 %v3234, %v3233
        %v3262 = vpack.c.b16 %v3236, %v3235
        %v3263 = vpack.c.b16 %v3238, %v3237
        %v3264 = vpack.c.b16 %v3240, %v3239
        %v3265 = vpack.c.b16 %v3242, %v3241
        %v3266 = vpack.c.b16 %v3244, %v3243
        %v3267 = vpack.c.b16 %v3246, %v3245
        %v3268 = vpack.c.b16 %v3248, %v3247
        %v3269 = vpack.c.b16 %v3250, %v3249
        %v3270 = vpack.c.b16 %v3252, %v3251
        %v3271 = vpack.c.b16 %v3254, %v3253
        %v3272 = vpack.c.b16 %v3256, %v3255
        %v3273 = vunpack.c.l.b16 %v2187
        %v3274 = vunpack.c.l.b16 %v2190
        %v3275 = vunpack.c.l.b16 %v2194
        %v3276 = vunpack.c.l.b16 %v2197
        %v3277 = vunpack.c.l.b16 %v2201
        %v3278 = vunpack.c.l.b16 %v2204
        %v3279 = vunpack.c.l.b16 %v2208
        %v3280 = vunpack.c.l.b16 %v2211
        %v3281 = vunpack.c.l.b16 %v2215
        %v3282 = vunpack.c.l.b16 %v2218
        %v3283 = vunpack.c.l.b16 %v2222
        %v3284 = vunpack.c.l.b16 %v2225
        %v3285 = vunpack.c.l.b16 %v2229
        %v3286 = vunpack.c.l.b16 %v2232
        %v3287 = vunpack.c.l.b16 %v2236
        %v3288 = vunpack.c.l.b16 %v2239
        %v3289 = vunpack.c.l.b16 %v2243
        %v3290 = vunpack.c.l.b16 %v2246
        %v3291 = vunpack.c.l.b16 %v2250
        %v3292 = vunpack.c.l.b16 %v2253
        %v3293 = vunpack.c.l.b16 %v2257
        %v3294 = vunpack.c.l.b16 %v2260
        %v3295 = vunpack.c.l.b16 %v2264
        %v3296 = vunpack.c.l.b16 %v2267
        %v3297 = vunpack.c.l.b16 %v2271
        %v3298 = vunpack.c.l.b16 %v2274
        %v3299 = vunpack.c.l.b16 %v2278
        %v3300 = vunpack.c.l.b16 %v2281
        %v3301 = vunpack.c.l.b16 %v2285
        %v3302 = vunpack.c.l.b16 %v2288
        %v3303 = vunpack.c.l.b16 %v2292
        %v3304 = vunpack.c.l.b16 %v2295
        %v3305 = vpack.c.b16 %v3274, %v3273
        %v3306 = vpack.c.b16 %v3276, %v3275
        %v3307 = vpack.c.b16 %v3278, %v3277
        %v3308 = vpack.c.b16 %v3280, %v3279
        %v3309 = vpack.c.b16 %v3282, %v3281
        %v3310 = vpack.c.b16 %v3284, %v3283
        %v3311 = vpack.c.b16 %v3286, %v3285
        %v3312 = vpack.c.b16 %v3288, %v3287
        %v3313 = vpack.c.b16 %v3290, %v3289
        %v3314 = vpack.c.b16 %v3292, %v3291
        %v3315 = vpack.c.b16 %v3294, %v3293
        %v3316 = vpack.c.b16 %v3296, %v3295
        %v3317 = vpack.c.b16 %v3298, %v3297
        %v3318 = vpack.c.b16 %v3300, %v3299
        %v3319 = vpack.c.b16 %v3302, %v3301
        %v3320 = vpack.c.b16 %v3304, %v3303
        %3321 = vrot.lane.b32.xlu0 %v3305, 32
        %v3322 = vpop.permute.xlu0 %3321
        %3323 = vrot.lane.b32.xlu0 %v3306, 32
        %v3324 = vpop.permute.xlu0 %3323
        %3325 = vrot.lane.b32.xlu0 %v3307, 32
        %v3326 = vpop.permute.xlu0 %3325
        %3327 = vrot.lane.b32.xlu0 %v3308, 32
        %v3328 = vpop.permute.xlu0 %3327
        %3329 = vrot.lane.b32.xlu0 %v3309, 32
        %v3330 = vpop.permute.xlu0 %3329
        %3331 = vrot.lane.b32.xlu0 %v3310, 32
        %v3332 = vpop.permute.xlu0 %3331
        %3333 = vrot.lane.b32.xlu0 %v3311, 32
        %v3334 = vpop.permute.xlu0 %3333
        %3335 = vrot.lane.b32.xlu0 %v3312, 32
        %v3336 = vpop.permute.xlu0 %3335
        %3337 = vrot.lane.b32.xlu0 %v3313, 32
        %v3338 = vpop.permute.xlu0 %3337
        %3339 = vrot.lane.b32.xlu0 %v3314, 32
        %v3340 = vpop.permute.xlu0 %3339
        %3341 = vrot.lane.b32.xlu0 %v3315, 32
        %v3342 = vpop.permute.xlu0 %3341
        %3343 = vrot.lane.b32.xlu0 %v3316, 32
        %v3344 = vpop.permute.xlu0 %3343
        %3345 = vrot.lane.b32.xlu0 %v3317, 32
        %v3346 = vpop.permute.xlu0 %3345
        %3347 = vrot.lane.b32.xlu0 %v3318, 32
        %v3348 = vpop.permute.xlu0 %3347
        %3349 = vrot.lane.b32.xlu0 %v3319, 32
        %v3350 = vpop.permute.xlu0 %3349
        %3351 = vrot.lane.b32.xlu0 %v3320, 32
        %v3352 = vpop.permute.xlu0 %3351
        %v3369 = vunpack.c.l.b16 %v2297
        %v3370 = vunpack.c.l.b16 %v2298
        %v3371 = vunpack.c.l.b16 %v2299
        %v3372 = vunpack.c.l.b16 %v2300
        %v3373 = vunpack.c.l.b16 %v2301
        %v3374 = vunpack.c.l.b16 %v2302
        %v3375 = vunpack.c.l.b16 %v2303
        %v3376 = vunpack.c.l.b16 %v2304
        %v3377 = vunpack.c.l.b16 %v2305
        %v3378 = vunpack.c.l.b16 %v2306
        %v3379 = vunpack.c.l.b16 %v2307
        %v3380 = vunpack.c.l.b16 %v2308
        %v3381 = vunpack.c.l.b16 %v2309
        %v3382 = vunpack.c.l.b16 %v2310
        %v3383 = vunpack.c.l.b16 %v2311
        %v3384 = vunpack.c.l.b16 %v2312
        %v3385 = vunpack.c.l.b16 %v2313
        %v3386 = vunpack.c.l.b16 %v2314
        %v3387 = vunpack.c.l.b16 %v2315
        %v3388 = vunpack.c.l.b16 %v2316
        %v3389 = vunpack.c.l.b16 %v2317
        %v3390 = vunpack.c.l.b16 %v2318
        %v3391 = vunpack.c.l.b16 %v2319
        %v3392 = vunpack.c.l.b16 %v2320
        %v3393 = vunpack.c.l.b16 %v2321
        %v3394 = vunpack.c.l.b16 %v2322
        %v3395 = vunpack.c.l.b16 %v2323
        %v3396 = vunpack.c.l.b16 %v2324
        %v3397 = vunpack.c.l.b16 %v2325
        %v3398 = vunpack.c.l.b16 %v2326
        %v3399 = vunpack.c.l.b16 %v2327
        %v3400 = vunpack.c.l.b16 %v2328
        %v3401 = vpack.c.b16 %v3370, %v3369
        %v3402 = vpack.c.b16 %v3372, %v3371
        %v3403 = vpack.c.b16 %v3374, %v3373
        %v3404 = vpack.c.b16 %v3376, %v3375
        %v3405 = vpack.c.b16 %v3378, %v3377
        %v3406 = vpack.c.b16 %v3380, %v3379
        %v3407 = vpack.c.b16 %v3382, %v3381
        %v3408 = vpack.c.b16 %v3384, %v3383
        %v3409 = vpack.c.b16 %v3386, %v3385
        %v3410 = vpack.c.b16 %v3388, %v3387
        %v3411 = vpack.c.b16 %v3390, %v3389
        %v3412 = vpack.c.b16 %v3392, %v3391
        %v3413 = vpack.c.b16 %v3394, %v3393
        %v3414 = vpack.c.b16 %v3396, %v3395
        %v3415 = vpack.c.b16 %v3398, %v3397
        %v3416 = vpack.c.b16 %v3400, %v3399
        %3417 = vrot.lane.b32.xlu0 %v3401, 64
        %v3418 = vpop.permute.xlu0 %3417
        %3419 = vrot.lane.b32.xlu0 %v3402, 64
        %v3420 = vpop.permute.xlu0 %3419
        %3421 = vrot.lane.b32.xlu0 %v3403, 64
        %v3422 = vpop.permute.xlu0 %3421
        %3423 = vrot.lane.b32.xlu0 %v3404, 64
        %v3424 = vpop.permute.xlu0 %3423
        %3425 = vrot.lane.b32.xlu0 %v3405, 64
        %v3426 = vpop.permute.xlu0 %3425
        %3427 = vrot.lane.b32.xlu0 %v3406, 64
        %v3428 = vpop.permute.xlu0 %3427
        %3429 = vrot.lane.b32.xlu0 %v3407, 64
        %v3430 = vpop.permute.xlu0 %3429
        %3431 = vrot.lane.b32.xlu0 %v3408, 64
        %v3432 = vpop.permute.xlu0 %3431
        %3433 = vrot.lane.b32.xlu0 %v3409, 64
        %v3434 = vpop.permute.xlu0 %3433
        %3435 = vrot.lane.b32.xlu0 %v3410, 64
        %v3436 = vpop.permute.xlu0 %3435
        %3437 = vrot.lane.b32.xlu0 %v3411, 64
        %v3438 = vpop.permute.xlu0 %3437
        %3439 = vrot.lane.b32.xlu0 %v3412, 64
        %v3440 = vpop.permute.xlu0 %3439
        %3441 = vrot.lane.b32.xlu0 %v3413, 64
        %v3442 = vpop.permute.xlu0 %3441
        %3443 = vrot.lane.b32.xlu0 %v3414, 64
        %v3444 = vpop.permute.xlu0 %3443
        %3445 = vrot.lane.b32.xlu0 %v3415, 64
        %v3446 = vpop.permute.xlu0 %3445
        %3447 = vrot.lane.b32.xlu0 %v3416, 64
        %v3448 = vpop.permute.xlu0 %3447
        %v3449 = vunpack.c.l.b16 %v2358
        %v3450 = vunpack.c.l.b16 %v2368
        %v3451 = vunpack.c.l.b16 %v2382
        %v3452 = vunpack.c.l.b16 %v2392
        %v3453 = vunpack.c.l.b16 %v2406
        %v3454 = vunpack.c.l.b16 %v2416
        %v3455 = vunpack.c.l.b16 %v2430
        %v3456 = vunpack.c.l.b16 %v2440
        %v3457 = vunpack.c.l.b16 %v2454
        %v3458 = vunpack.c.l.b16 %v2464
        %v3459 = vunpack.c.l.b16 %v2478
        %v3460 = vunpack.c.l.b16 %v2488
        %v3461 = vunpack.c.l.b16 %v2502
        %v3462 = vunpack.c.l.b16 %v2512
        %v3463 = vunpack.c.l.b16 %v2526
        %v3464 = vunpack.c.l.b16 %v2536
        %v3465 = vunpack.c.l.b16 %v2550
        %v3466 = vunpack.c.l.b16 %v2560
        %v3467 = vunpack.c.l.b16 %v2574
        %v3468 = vunpack.c.l.b16 %v2584
        %v3469 = vunpack.c.l.b16 %v2598
        %v3470 = vunpack.c.l.b16 %v2608
        %v3471 = vunpack.c.l.b16 %v2622
        %v3472 = vunpack.c.l.b16 %v2632
        %v3473 = vunpack.c.l.b16 %v2646
        %v3474 = vunpack.c.l.b16 %v2656
        %v3475 = vunpack.c.l.b16 %v2670
        %v3476 = vunpack.c.l.b16 %v2680
        %v3477 = vunpack.c.l.b16 %v2694
        %v3478 = vunpack.c.l.b16 %v2704
        %v3479 = vunpack.c.l.b16 %v2718
        %v3480 = vunpack.c.l.b16 %v2728
        %v3481 = vpack.c.b16 %v3450, %v3449
        %v3482 = vpack.c.b16 %v3452, %v3451
        %v3483 = vpack.c.b16 %v3454, %v3453
        %v3484 = vpack.c.b16 %v3456, %v3455
        %v3485 = vpack.c.b16 %v3458, %v3457
        %v3486 = vpack.c.b16 %v3460, %v3459
        %v3487 = vpack.c.b16 %v3462, %v3461
        %v3488 = vpack.c.b16 %v3464, %v3463
        %v3489 = vpack.c.b16 %v3466, %v3465
        %v3490 = vpack.c.b16 %v3468, %v3467
        %v3491 = vpack.c.b16 %v3470, %v3469
        %v3492 = vpack.c.b16 %v3472, %v3471
        %v3493 = vpack.c.b16 %v3474, %v3473
        %v3494 = vpack.c.b16 %v3476, %v3475
        %v3495 = vpack.c.b16 %v3478, %v3477
        %v3496 = vpack.c.b16 %v3480, %v3479
        %3497 = vrot.lane.b32.xlu0 %v3481, 96
        %v3498 = vpop.permute.xlu0 %3497
        %3499 = vrot.lane.b32.xlu0 %v3482, 96
        %v3500 = vpop.permute.xlu0 %3499
        %3501 = vrot.lane.b32.xlu0 %v3483, 96
        %v3502 = vpop.permute.xlu0 %3501
        %3503 = vrot.lane.b32.xlu0 %v3484, 96
        %v3504 = vpop.permute.xlu0 %3503
        %3505 = vrot.lane.b32.xlu0 %v3485, 96
        %v3506 = vpop.permute.xlu0 %3505
        %3507 = vrot.lane.b32.xlu0 %v3486, 96
        %v3508 = vpop.permute.xlu0 %3507
        %3509 = vrot.lane.b32.xlu0 %v3487, 96
        %v3510 = vpop.permute.xlu0 %3509
        %3511 = vrot.lane.b32.xlu0 %v3488, 96
        %v3512 = vpop.permute.xlu0 %3511
        %3513 = vrot.lane.b32.xlu0 %v3489, 96
        %v3514 = vpop.permute.xlu0 %3513
        %3515 = vrot.lane.b32.xlu0 %v3490, 96
        %v3516 = vpop.permute.xlu0 %3515
        %3517 = vrot.lane.b32.xlu0 %v3491, 96
        %v3518 = vpop.permute.xlu0 %3517
        %3519 = vrot.lane.b32.xlu0 %v3492, 96
        %v3520 = vpop.permute.xlu0 %3519
        %3521 = vrot.lane.b32.xlu0 %v3493, 96
        %v3522 = vpop.permute.xlu0 %3521
        %3523 = vrot.lane.b32.xlu0 %v3494, 96
        %v3524 = vpop.permute.xlu0 %3523
        %3525 = vrot.lane.b32.xlu0 %v3495, 96
        %v3526 = vpop.permute.xlu0 %3525
        %3527 = vrot.lane.b32.xlu0 %v3496, 96
        %v3528 = vpop.permute.xlu0 %3527
        %v3529 = vunpack.c.l.b16 %v2796
        %v3530 = vunpack.c.l.b16 %v2799
        %v3531 = vunpack.c.l.b16 %v2803
        %v3532 = vunpack.c.l.b16 %v2806
        %v3533 = vunpack.c.l.b16 %v2810
        %v3534 = vunpack.c.l.b16 %v2813
        %v3535 = vunpack.c.l.b16 %v2817
        %v3536 = vunpack.c.l.b16 %v2820
        %v3537 = vunpack.c.l.b16 %v2824
        %v3538 = vunpack.c.l.b16 %v2827
        %v3539 = vunpack.c.l.b16 %v2831
        %v3540 = vunpack.c.l.b16 %v2834
        %v3541 = vunpack.c.l.b16 %v2838
        %v3542 = vunpack.c.l.b16 %v2841
        %v3543 = vunpack.c.l.b16 %v2845
        %v3544 = vunpack.c.l.b16 %v2848
        %v3545 = vunpack.c.l.b16 %v2852
        %v3546 = vunpack.c.l.b16 %v2855
        %v3547 = vunpack.c.l.b16 %v2859
        %v3548 = vunpack.c.l.b16 %v2862
        %v3549 = vunpack.c.l.b16 %v2866
        %v3550 = vunpack.c.l.b16 %v2869
        %v3551 = vunpack.c.l.b16 %v2873
        %v3552 = vunpack.c.l.b16 %v2876
        %v3553 = vunpack.c.l.b16 %v2880
        %v3554 = vunpack.c.l.b16 %v2883
        %v3555 = vunpack.c.l.b16 %v2887
        %v3556 = vunpack.c.l.b16 %v2890
        %v3557 = vunpack.c.l.b16 %v2894
        %v3558 = vunpack.c.l.b16 %v2897
        %v3559 = vunpack.c.l.b16 %v2901
        %v3560 = vunpack.c.l.b16 %v2904
        %v3561 = vpack.c.b16 %v3530, %v3529
        %v3562 = vpack.c.b16 %v3532, %v3531
        %v3563 = vpack.c.b16 %v3534, %v3533
        %v3564 = vpack.c.b16 %v3536, %v3535
        %v3565 = vpack.c.b16 %v3538, %v3537
        %v3566 = vpack.c.b16 %v3540, %v3539
        %v3567 = vpack.c.b16 %v3542, %v3541
        %v3568 = vpack.c.b16 %v3544, %v3543
        %v3569 = vpack.c.b16 %v3546, %v3545
        %v3570 = vpack.c.b16 %v3548, %v3547
        %v3571 = vpack.c.b16 %v3550, %v3549
        %v3572 = vpack.c.b16 %v3552, %v3551
        %v3573 = vpack.c.b16 %v3554, %v3553
        %v3574 = vpack.c.b16 %v3556, %v3555
        %v3575 = vpack.c.b16 %v3558, %v3557
        %v3576 = vpack.c.b16 %v3560, %v3559
        %vm3577 = vcmask 261120
        %v3580 = vsel %vm3577, %v2953, %v3018
        %v3583 = vsel %vm3577, %v2954, %v3020
        %v3586 = vsel %vm3577, %v2955, %v3022
        %v3589 = vsel %vm3577, %v2956, %v3024
        %v3592 = vsel %vm3577, %v2957, %v3026
        %v3595 = vsel %vm3577, %v2958, %v3028
        %v3598 = vsel %vm3577, %v2959, %v3030
        %v3601 = vsel %vm3577, %v2960, %v3032
        %v3604 = vsel %vm3577, %v2961, %v3034
        %v3607 = vsel %vm3577, %v2962, %v3036
        %v3610 = vsel %vm3577, %v2963, %v3038
        %v3613 = vsel %vm3577, %v2964, %v3040
        %v3616 = vsel %vm3577, %v2965, %v3042
        %v3619 = vsel %vm3577, %v2966, %v3044
        %v3622 = vsel %vm3577, %v2967, %v3046
        %v3625 = vsel %vm3577, %v2968, %v3048
        %vm3626 = vcmask 523264
        %v3628 = vsel %vm3626, %v3580, %v3098
        %v3630 = vsel %vm3626, %v3583, %v3100
        %v3632 = vsel %vm3626, %v3586, %v3102
        %v3634 = vsel %vm3626, %v3589, %v3104
        %v3636 = vsel %vm3626, %v3592, %v3106
        %v3638 = vsel %vm3626, %v3595, %v3108
        %v3640 = vsel %vm3626, %v3598, %v3110
        %v3642 = vsel %vm3626, %v3601, %v3112
        %v3644 = vsel %vm3626, %v3604, %v3114
        %v3646 = vsel %vm3626, %v3607, %v3116
        %v3648 = vsel %vm3626, %v3610, %v3118
        %v3650 = vsel %vm3626, %v3613, %v3120
        %v3652 = vsel %vm3626, %v3616, %v3122
        %v3654 = vsel %vm3626, %v3619, %v3124
        %v3656 = vsel %vm3626, %v3622, %v3126
        %v3658 = vsel %vm3626, %v3625, %v3128
        %vm3659 = vcmask 785408
        %v3661 = vsel %vm3659, %v3628, %v3194
        %v3664 = vsel %vm3659, %v3630, %v3196
        %v3667 = vsel %vm3659, %v3632, %v3198
        %v3670 = vsel %vm3659, %v3634, %v3200
        %v3673 = vsel %vm3659, %v3636, %v3202
        %v3676 = vsel %vm3659, %v3638, %v3204
        %v3679 = vsel %vm3659, %v3640, %v3206
        %v3682 = vsel %vm3659, %v3642, %v3208
        %v3685 = vsel %vm3659, %v3644, %v3210
        %v3688 = vsel %vm3659, %v3646, %v3212
        %v3691 = vsel %vm3659, %v3648, %v3214
        %v3694 = vsel %vm3659, %v3650, %v3216
        %v3697 = vsel %vm3659, %v3652, %v3218
        %v3700 = vsel %vm3659, %v3654, %v3220
        %v3703 = vsel %vm3659, %v3656, %v3222
        %v3706 = vsel %vm3659, %v3658, %v3224
        %v3710 = vsel %vm3577, %v3257, %v3322
        %v3713 = vsel %vm3577, %v3258, %v3324
        %v3716 = vsel %vm3577, %v3259, %v3326
        %v3719 = vsel %vm3577, %v3260, %v3328
        %v3722 = vsel %vm3577, %v3261, %v3330
        %v3725 = vsel %vm3577, %v3262, %v3332
        %v3728 = vsel %vm3577, %v3263, %v3334
        %v3731 = vsel %vm3577, %v3264, %v3336
        %v3734 = vsel %vm3577, %v3265, %v3338
        %v3737 = vsel %vm3577, %v3266, %v3340
        %v3740 = vsel %vm3577, %v3267, %v3342
        %v3743 = vsel %vm3577, %v3268, %v3344
        %v3746 = vsel %vm3577, %v3269, %v3346
        %v3749 = vsel %vm3577, %v3270, %v3348
        %v3752 = vsel %vm3577, %v3271, %v3350
        %v3755 = vsel %vm3577, %v3272, %v3352
        %v3757 = vsel %vm3626, %v3710, %v3418
        %v3759 = vsel %vm3626, %v3713, %v3420
        %v3761 = vsel %vm3626, %v3716, %v3422
        %v3763 = vsel %vm3626, %v3719, %v3424
        %v3765 = vsel %vm3626, %v3722, %v3426
        %v3767 = vsel %vm3626, %v3725, %v3428
        %v3769 = vsel %vm3626, %v3728, %v3430
        %v3771 = vsel %vm3626, %v3731, %v3432
        %v3773 = vsel %vm3626, %v3734, %v3434
        %v3775 = vsel %vm3626, %v3737, %v3436
        %v3777 = vsel %vm3626, %v3740, %v3438
        %v3779 = vsel %vm3626, %v3743, %v3440
        %v3781 = vsel %vm3626, %v3746, %v3442
        %v3783 = vsel %vm3626, %v3749, %v3444
        %v3785 = vsel %vm3626, %v3752, %v3446
        %v3787 = vsel %vm3626, %v3755, %v3448
        %v3789 = vsel %vm3659, %v3757, %v3498
        %v3792 = vsel %vm3659, %v3759, %v3500
        %v3795 = vsel %vm3659, %v3761, %v3502
        %v3798 = vsel %vm3659, %v3763, %v3504
        %v3801 = vsel %vm3659, %v3765, %v3506
        %v3804 = vsel %vm3659, %v3767, %v3508
        %v3807 = vsel %vm3659, %v3769, %v3510
        %v3810 = vsel %vm3659, %v3771, %v3512
        %v3813 = vsel %vm3659, %v3773, %v3514
        %v3816 = vsel %vm3659, %v3775, %v3516
        %v3819 = vsel %vm3659, %v3777, %v3518
        %v3822 = vsel %vm3659, %v3779, %v3520
        %v3825 = vsel %vm3659, %v3781, %v3522
        %v3828 = vsel %vm3659, %v3783, %v3524
        %v3831 = vsel %vm3659, %v3785, %v3526
        %v3834 = vsel %vm3659, %v3787, %v3528
        %v3836 = vld [vmem:[%s3] sm:$0xf]
        %v3837 = vld [vmem:[%s3 + $0x4] sm:$0xf]
        %v3838 = vld [vmem:[%s3 + $0x8] sm:$0xf]
        %v3839 = vld [vmem:[%s3 + $0xc] sm:$0xf]
        %v3840 = vld [vmem:[%s3 + $0x10] sm:$0xf]
        %v3841 = vld [vmem:[%s3 + $0x14] sm:$0xf]
        %v3842 = vld [vmem:[%s3 + $0x18] sm:$0xf]
        %v3843 = vld [vmem:[%s3 + $0x1c] sm:$0xf]
        %v3844 = vld [vmem:[%s3 + $0x20] sm:$0xf]
        %v3845 = vld [vmem:[%s3 + $0x24] sm:$0xf]
        %v3846 = vld [vmem:[%s3 + $0x28] sm:$0xf]
        %v3847 = vld [vmem:[%s3 + $0x2c] sm:$0xf]
        %v3848 = vld [vmem:[%s3 + $0x30] sm:$0xf]
        %v3849 = vld [vmem:[%s3 + $0x34] sm:$0xf]
        %v3850 = vld [vmem:[%s3 + $0x38] sm:$0xf]
        %v3851 = vld [vmem:[%s3 + $0x3c] sm:$0xf]
        %v3852 = vld [vmem:[%s3 + $0x40] sm:$0xf]
        %v3853 = vld [vmem:[%s3 + $0x44] sm:$0xf]
        %v3854 = vld [vmem:[%s3 + $0x48] sm:$0xf]
        %v3855 = vld [vmem:[%s3 + $0x4c] sm:$0xf]
        %v3856 = vld [vmem:[%s3 + $0x50] sm:$0xf]
        %v3857 = vld [vmem:[%s3 + $0x54] sm:$0xf]
        %v3858 = vld [vmem:[%s3 + $0x58] sm:$0xf]
        %v3859 = vld [vmem:[%s3 + $0x5c] sm:$0xf]
        %v3860 = vld [vmem:[%s3 + $0x60] sm:$0xf]
        %v3861 = vld [vmem:[%s3 + $0x64] sm:$0xf]
        %v3862 = vld [vmem:[%s3 + $0x68] sm:$0xf]
        %v3863 = vld [vmem:[%s3 + $0x6c] sm:$0xf]
        %v3864 = vld [vmem:[%s3 + $0x70] sm:$0xf]
        %v3865 = vld [vmem:[%s3 + $0x74] sm:$0xf]
        %v3866 = vld [vmem:[%s3 + $0x78] sm:$0xf]
        %v3867 = vld [vmem:[%s3 + $0x7c] sm:$0xf]
        %v3868 = vld [vmem:[%s3 + $0x80] sm:$0xf]
        %v3869 = vld [vmem:[%s3 + $0x84] sm:$0xf]
        %v3870 = vld [vmem:[%s3 + $0x88] sm:$0xf]
        %v3871 = vld [vmem:[%s3 + $0x8c] sm:$0xf]
        %v3872 = vld [vmem:[%s4] sm:$0x1]
        %v3874 = vlaneseq
        %v3875 = vshrl.u32 %v3874, 7
        %v3876 = vsub.s32 0, %v3875
        %v3877 = vrot.slane %v3872, %v3876
        %v3915 = vunpack.c.l.b16 %v3836
        %v3916 = vunpack.c.l.b16 %v3837
        %v3917 = vunpack.c.l.b16 %v3838
        %v3918 = vunpack.c.l.b16 %v3839
        %v3919 = vunpack.c.l.b16 %v3840
        %v3920 = vunpack.c.l.b16 %v3841
        %v3921 = vunpack.c.l.b16 %v3842
        %v3922 = vunpack.c.l.b16 %v3843
        %v3923 = vunpack.c.l.b16 %v3844
        %v3924 = vunpack.c.l.b16 %v3845
        %v3925 = vunpack.c.l.b16 %v3846
        %v3926 = vunpack.c.l.b16 %v3847
        %v3927 = vunpack.c.l.b16 %v3848
        %v3928 = vunpack.c.l.b16 %v3849
        %v3929 = vunpack.c.l.b16 %v3850
        %v3930 = vunpack.c.l.b16 %v3851
        %v3931 = vunpack.c.l.b16 %v3852
        %v3932 = vunpack.c.l.b16 %v3853
        %v3933 = vunpack.c.l.b16 %v3854
        %v3934 = vunpack.c.l.b16 %v3855
        %v3935 = vunpack.c.l.b16 %v3856
        %v3936 = vunpack.c.l.b16 %v3857
        %v3937 = vunpack.c.l.b16 %v3858
        %v3938 = vunpack.c.l.b16 %v3859
        %v3939 = vunpack.c.l.b16 %v3860
        %v3940 = vunpack.c.l.b16 %v3861
        %v3941 = vunpack.c.l.b16 %v3862
        %v3942 = vunpack.c.l.b16 %v3863
        %v3943 = vunpack.c.l.b16 %v3864
        %v3944 = vunpack.c.l.b16 %v3865
        %v3945 = vunpack.c.l.b16 %v3866
        %v3946 = vunpack.c.l.b16 %v3867
        %v3947 = vunpack.c.l.b16 %v3868
        %v3948 = vunpack.c.l.b16 %v3869
        %v3949 = vunpack.c.l.b16 %v3870
        %v3950 = vunpack.c.l.b16 %v3871
        %v3951 = vpack.c.b16 %v3916, %v3915
        %v3952 = vpack.c.b16 %v3918, %v3917
        %v3953 = vpack.c.b16 %v3920, %v3919
        %v3954 = vpack.c.b16 %v3922, %v3921
        %v3955 = vpack.c.b16 %v3924, %v3923
        %v3956 = vpack.c.b16 %v3926, %v3925
        %v3957 = vpack.c.b16 %v3928, %v3927
        %v3958 = vpack.c.b16 %v3930, %v3929
        %v3959 = vpack.c.b16 %v3932, %v3931
        %v3960 = vpack.c.b16 %v3934, %v3933
        %v3961 = vpack.c.b16 %v3936, %v3935
        %v3962 = vpack.c.b16 %v3938, %v3937
        %v3963 = vpack.c.b16 %v3940, %v3939
        %v3964 = vpack.c.b16 %v3942, %v3941
        %v3965 = vpack.c.b16 %v3944, %v3943
        %v3966 = vpack.c.b16 %v3946, %v3945
        %v3967 = vpack.c.b16 %v3948, %v3947
        %v3968 = vpack.c.b16 %v3950, %v3949
        %v3988 = vsel %vm3577, %v3561, 0
        %v3991 = vsel %vm3577, %v3562, 0
        %v3994 = vsel %vm3577, %v3563, 0
        %v3997 = vsel %vm3577, %v3564, 0
        %v4000 = vsel %vm3577, %v3565, 0
        %v4003 = vsel %vm3577, %v3566, 0
        %v4006 = vsel %vm3577, %v3567, 0
        %v4009 = vsel %vm3577, %v3568, 0
        %v4012 = vsel %vm3577, %v3569, 0
        %v4015 = vsel %vm3577, %v3570, 0
        %v4018 = vsel %vm3577, %v3571, 0
        %v4021 = vsel %vm3577, %v3572, 0
        %v4024 = vsel %vm3577, %v3573, 0
        %v4027 = vsel %vm3577, %v3574, 0
        %v4030 = vsel %vm3577, %v3575, 0
        %v4033 = vsel %vm3577, %v3576, 0
        %4035 = vmatprep.subr.bf16.mxu0 0
        %4036 = vmatpush1.bf16.msra.mxu0 %v3951
        %4037 = vmatprep.subr.bf16.mxu0 0
        %4038 = vmatpush1.bf16.msra.mxu0 %v3952
        %4039 = vmatprep.subr.bf16.mxu0 0
        %4040 = vmatpush1.bf16.msra.mxu0 %v3953
        %4041 = vmatprep.subr.bf16.mxu0 0
        %4042 = vmatpush1.bf16.msra.mxu0 %v3954
        %4043 = vmatprep.subr.bf16.mxu0 0
        %4044 = vmatpush1.bf16.msra.mxu0 %v3955
        %4045 = vmatprep.subr.bf16.mxu0 0
        %4046 = vmatpush1.bf16.msra.mxu0 %v3956
        %4047 = vmatprep.subr.bf16.mxu0 0
        %4048 = vmatpush1.bf16.msra.mxu0 %v3957
        %4049 = vmatprep.subr.bf16.mxu0 0
        %4050 = vmatpush1.bf16.msra.mxu0 %v3958
        %4051 = vmatprep.subr.bf16.mxu0 0
        %4052 = vmatpush1.bf16.msra.mxu0 %v3959
        %4053 = vmatprep.subr.bf16.mxu0 0
        %4054 = vmatpush1.bf16.msra.mxu0 %v3960
        %4055 = vmatprep.subr.bf16.mxu0 0
        %4056 = vmatpush1.bf16.msra.mxu0 %v3961
        %4057 = vmatprep.subr.bf16.mxu0 0
        %4058 = vmatpush1.bf16.msra.mxu0 %v3962
        %4059 = vmatprep.subr.bf16.mxu0 0
        %4060 = vmatpush1.bf16.msra.mxu0 %v3963
        %4061 = vmatprep.subr.bf16.mxu0 0
        %4062 = vmatpush1.bf16.msra.mxu0 %v3964
        %4063 = vmatprep.subr.bf16.mxu0 0
        %4064 = vmatpush1.bf16.msra.mxu0 %v3965
        %4065 = vmatprep.subr.bf16.mxu0 0
        %4066 = vmatpush1.bf16.msra.mxu0 %v3966
        %4067 = vmatprep.mubr.bf16.mxu0 %v3789
        %4068 = vmatmul.mubr.bf16.gmra.mrb[0].mxu0 %v3661
        %v4069 = vpop.f32.mrb[0].mxu0
        %v4070 = vadd.f32 %v3877, %v4069
        %v4071 = vpop.f32.mrb[0].mxu0
        %v4072 = vpop.f32.mrb[0].mxu0
        %v4073 = vadd.f32 %v3877, %v4072
        %v4074 = vpop.f32.mrb[0].mxu0
        %4075 = vmatprep.mubr.bf16.mxu0 %v3792
        %4076 = vmatmul.mubr.bf16.gmra.mrb[0].mxu0 %v3664
        %v4077 = vpop.f32.mrb[0].mxu0
        %v4078 = vadd.f32 %v3877, %v4077
        %v4079 = vpop.f32.mrb[0].mxu0
        %v4080 = vpop.f32.mrb[0].mxu0
        %v4081 = vadd.f32 %v3877, %v4080
        %v4082 = vpop.f32.mrb[0].mxu0
        %4083 = vmatprep.mubr.bf16.mxu0 %v3795
        %4084 = vmatmul.mubr.bf16.gmra.mrb[0].mxu0 %v3667
        %v4085 = vpop.f32.mrb[0].mxu0
        %v4086 = vadd.f32 %v3877, %v4085
        %v4087 = vpop.f32.mrb[0].mxu0
        %v4088 = vpop.f32.mrb[0].mxu0
        %v4089 = vadd.f32 %v3877, %v4088
        %v4090 = vpop.f32.mrb[0].mxu0
        %4091 = vmatprep.mubr.bf16.mxu0 %v3798
        %4092 = vmatmul.mubr.bf16.gmra.mrb[0].mxu0 %v3670
        %v4093 = vpop.f32.mrb[0].mxu0
        %v4094 = vadd.f32 %v3877, %v4093
        %v4095 = vpop.f32.mrb[0].mxu0
        %v4096 = vpop.f32.mrb[0].mxu0
        %v4097 = vadd.f32 %v3877, %v4096
        %v4098 = vpop.f32.mrb[0].mxu0
        %4099 = vmatprep.mubr.bf16.mxu0 %v3801
        %4100 = vmatmul.mubr.bf16.gmra.mrb[0].mxu0 %v3673
        %v4101 = vpop.f32.mrb[0].mxu0
        %v4102 = vadd.f32 %v3877, %v4101
        %v4103 = vpop.f32.mrb[0].mxu0
        %v4104 = vpop.f32.mrb[0].mxu0
        %v4105 = vadd.f32 %v3877, %v4104
        %v4106 = vpop.f32.mrb[0].mxu0
        %4107 = vmatprep.mubr.bf16.mxu0 %v3804
        %4108 = vmatmul.mubr.bf16.gmra.mrb[0].mxu0 %v3676
        %v4109 = vpop.f32.mrb[0].mxu0
        %v4110 = vadd.f32 %v3877, %v4109
        %v4111 = vpop.f32.mrb[0].mxu0
        %v4112 = vpop.f32.mrb[0].mxu0
        %v4113 = vadd.f32 %v3877, %v4112
        %v4114 = vpop.f32.mrb[0].mxu0
        %4115 = vmatprep.mubr.bf16.mxu0 %v3807
        %4116 = vmatmul.mubr.bf16.gmra.mrb[0].mxu0 %v3679
        %v4117 = vpop.f32.mrb[0].mxu0
        %v4118 = vadd.f32 %v3877, %v4117
        %v4119 = vpop.f32.mrb[0].mxu0
        %v4120 = vpop.f32.mrb[0].mxu0
        %v4121 = vadd.f32 %v3877, %v4120
        %v4122 = vpop.f32.mrb[0].mxu0
        %4123 = vmatprep.mubr.bf16.mxu0 %v3810
        %4124 = vmatmul.mubr.bf16.gmra.mrb[0].mxu0 %v3682
        %v4125 = vpop.f32.mrb[0].mxu0
        %v4126 = vadd.f32 %v3877, %v4125
        %v4127 = vpop.f32.mrb[0].mxu0
        %v4128 = vpop.f32.mrb[0].mxu0
        %v4129 = vadd.f32 %v3877, %v4128
        %v4130 = vpop.f32.mrb[0].mxu0
        %4131 = vmatprep.mubr.bf16.mxu0 %v3813
        %4132 = vmatmul.mubr.bf16.gmra.mrb[0].mxu0 %v3685
        %v4133 = vpop.f32.mrb[0].mxu0
        %v4134 = vadd.f32 %v3877, %v4133
        %v4135 = vpop.f32.mrb[0].mxu0
        %v4136 = vpop.f32.mrb[0].mxu0
        %v4137 = vadd.f32 %v3877, %v4136
        %v4138 = vpop.f32.mrb[0].mxu0
        %4139 = vmatprep.mubr.bf16.mxu0 %v3816
        %4140 = vmatmul.mubr.bf16.gmra.mrb[0].mxu0 %v3688
        %v4141 = vpop.f32.mrb[0].mxu0
        %v4142 = vadd.f32 %v3877, %v4141
        %v4143 = vpop.f32.mrb[0].mxu0
        %v4144 = vpop.f32.mrb[0].mxu0
        %v4145 = vadd.f32 %v3877, %v4144
        %v4146 = vpop.f32.mrb[0].mxu0
        %4147 = vmatprep.mubr.bf16.mxu0 %v3819
        %4148 = vmatmul.mubr.bf16.gmra.mrb[0].mxu0 %v3691
        %v4149 = vpop.f32.mrb[0].mxu0
        %v4150 = vadd.f32 %v3877, %v4149
        %v4151 = vpop.f32.mrb[0].mxu0
        %v4152 = vpop.f32.mrb[0].mxu0
        %v4153 = vadd.f32 %v3877, %v4152
        %v4154 = vpop.f32.mrb[0].mxu0
        %4155 = vmatprep.mubr.bf16.mxu0 %v3822
        %4156 = vmatmul.mubr.bf16.gmra.mrb[0].mxu0 %v3694
        %v4157 = vpop.f32.mrb[0].mxu0
        %v4158 = vadd.f32 %v3877, %v4157
        %v4159 = vpop.f32.mrb[0].mxu0
        %v4160 = vpop.f32.mrb[0].mxu0
        %v4161 = vadd.f32 %v3877, %v4160
        %v4162 = vpop.f32.mrb[0].mxu0
        %4163 = vmatprep.mubr.bf16.mxu0 %v3825
        %4164 = vmatmul.mubr.bf16.gmra.mrb[0].mxu0 %v3697
        %v4165 = vpop.f32.mrb[0].mxu0
        %v4166 = vadd.f32 %v3877, %v4165
        %v4167 = vpop.f32.mrb[0].mxu0
        %v4168 = vpop.f32.mrb[0].mxu0
        %v4169 = vadd.f32 %v3877, %v4168
        %v4170 = vpop.f32.mrb[0].mxu0
        %4171 = vmatprep.mubr.bf16.mxu0 %v3828
        %4172 = vmatmul.mubr.bf16.gmra.mrb[0].mxu0 %v3700
        %v4173 = vpop.f32.mrb[0].mxu0
        %v4174 = vadd.f32 %v3877, %v4173
        %v4175 = vpop.f32.mrb[0].mxu0
        %v4176 = vpop.f32.mrb[0].mxu0
        %v4177 = vadd.f32 %v3877, %v4176
        %v4178 = vpop.f32.mrb[0].mxu0
        %4179 = vmatprep.mubr.bf16.mxu0 %v3831
        %4180 = vmatmul.mubr.bf16.gmra.mrb[0].mxu0 %v3703
        %v4181 = vpop.f32.mrb[0].mxu0
        %v4182 = vadd.f32 %v3877, %v4181
        %v4183 = vpop.f32.mrb[0].mxu0
        %v4184 = vpop.f32.mrb[0].mxu0
        %v4185 = vadd.f32 %v3877, %v4184
        %v4186 = vpop.f32.mrb[0].mxu0
        %4187 = vmatprep.mubr.bf16.mxu0 %v3834
        %4188 = vmatmul.mubr.bf16.gmra.mrb[0].mxu0 %v3706
        %v4189 = vpop.f32.mrb[0].mxu0
        %v4190 = vadd.f32 %v3877, %v4189
        %v4191 = vpop.f32.mrb[0].mxu0
        %v4192 = vpop.f32.mrb[0].mxu0
        %v4193 = vadd.f32 %v3877, %v4192
        %v4194 = vpop.f32.mrb[0].mxu0
        %4195 = vdwg.mxu0
        %4196 = vmatprep.subr.bf16.mxu0 0
        %4197 = vmatpush1.bf16.msra.mxu0 %v3967
        %4198 = vmatprep.subr.bf16.mxu0 0
        %4199 = vmatpush1.bf16.msra.mxu0 %v3968
        %4200 = vmatprep.subr.bf16.mxu0 0
        %4201 = vmatpush1.bf16.msra.mxu0 0
        %4202 = vmatprep.subr.bf16.mxu0 0
        %4203 = vmatpush1.bf16.msra.mxu0 0
        %4204 = vmatprep.subr.bf16.mxu0 0
        %4205 = vmatpush1.bf16.msra.mxu0 0
        %4206 = vmatprep.subr.bf16.mxu0 0
        %4207 = vmatpush1.bf16.msra.mxu0 0
        %4208 = vmatprep.subr.bf16.mxu0 0
        %4209 = vmatpush1.bf16.msra.mxu0 0
        %4210 = vmatprep.subr.bf16.mxu0 0
        %4211 = vmatpush1.bf16.msra.mxu0 0
        %4212 = vmatprep.subr.bf16.mxu0 0
        %4213 = vmatpush1.bf16.msra.mxu0 0
        %4214 = vmatprep.subr.bf16.mxu0 0
        %4215 = vmatpush1.bf16.msra.mxu0 0
        %4216 = vmatprep.subr.bf16.mxu0 0
        %4217 = vmatpush1.bf16.msra.mxu0 0
        %4218 = vmatprep.subr.bf16.mxu0 0
        %4219 = vmatpush1.bf16.msra.mxu0 0
        %4220 = vmatprep.subr.bf16.mxu0 0
        %4221 = vmatpush1.bf16.msra.mxu0 0
        %4222 = vmatprep.subr.bf16.mxu0 0
        %4223 = vmatpush1.bf16.msra.mxu0 0
        %4224 = vmatprep.subr.bf16.mxu0 0
        %4225 = vmatpush1.bf16.msra.mxu0 0
        %4226 = vmatprep.subr.bf16.mxu0 0
        %4227 = vmatpush1.bf16.msra.mxu0 0
        %4228 = vmatprep.mubr.bf16.mxu0 0
        %4229 = vmatmul.mubr.bf16.gmra.mrb[0].mxu0 %v3988
        %v4230 = vpop.f32.mrb[0].mxu0
        %v4231 = vadd.f32 %v4070, %v4230
        %v4232 = vpop.f32.mrb[0].mxu0
        %v4233 = vpop.f32.mrb[0].mxu0
        %v4234 = vadd.f32 %v4073, %v4233
        %v4235 = vpop.f32.mrb[0].mxu0
        %4236 = vmatprep.mubr.bf16.mxu0 0
        %4237 = vmatmul.mubr.bf16.gmra.mrb[0].mxu0 %v3991
        %v4238 = vpop.f32.mrb[0].mxu0
        %v4239 = vadd.f32 %v4078, %v4238
        %v4240 = vpop.f32.mrb[0].mxu0
        %v4241 = vpop.f32.mrb[0].mxu0
        %v4242 = vadd.f32 %v4081, %v4241
        %v4243 = vpop.f32.mrb[0].mxu0
        %4244 = vmatprep.mubr.bf16.mxu0 0
        %4245 = vmatmul.mubr.bf16.gmra.mrb[0].mxu0 %v3994
        %v4246 = vpop.f32.mrb[0].mxu0
        %v4247 = vadd.f32 %v4086, %v4246
        %v4248 = vpop.f32.mrb[0].mxu0
        %v4249 = vpop.f32.mrb[0].mxu0
        %v4250 = vadd.f32 %v4089, %v4249
        %v4251 = vpop.f32.mrb[0].mxu0
        %4252 = vmatprep.mubr.bf16.mxu0 0
        %4253 = vmatmul.mubr.bf16.gmra.mrb[0].mxu0 %v3997
        %v4254 = vpop.f32.mrb[0].mxu0
        %v4255 = vadd.f32 %v4094, %v4254
        %v4256 = vpop.f32.mrb[0].mxu0
        %v4257 = vpop.f32.mrb[0].mxu0
        %v4258 = vadd.f32 %v4097, %v4257
        %v4259 = vpop.f32.mrb[0].mxu0
        %4260 = vmatprep.mubr.bf16.mxu0 0
        %4261 = vmatmul.mubr.bf16.gmra.mrb[0].mxu0 %v4000
        %v4262 = vpop.f32.mrb[0].mxu0
        %v4263 = vadd.f32 %v4102, %v4262
        %v4264 = vpop.f32.mrb[0].mxu0
        %v4265 = vpop.f32.mrb[0].mxu0
        %v4266 = vadd.f32 %v4105, %v4265
        %v4267 = vpop.f32.mrb[0].mxu0
        %4268 = vmatprep.mubr.bf16.mxu0 0
        %4269 = vmatmul.mubr.bf16.gmra.mrb[0].mxu0 %v4003
        %v4270 = vpop.f32.mrb[0].mxu0
        %v4271 = vadd.f32 %v4110, %v4270
        %v4272 = vpop.f32.mrb[0].mxu0
        %v4273 = vpop.f32.mrb[0].mxu0
        %v4274 = vadd.f32 %v4113, %v4273
        %v4275 = vpop.f32.mrb[0].mxu0
        %4276 = vmatprep.mubr.bf16.mxu0 0
        %4277 = vmatmul.mubr.bf16.gmra.mrb[0].mxu0 %v4006
        %v4278 = vpop.f32.mrb[0].mxu0
        %v4279 = vadd.f32 %v4118, %v4278
        %v4280 = vpop.f32.mrb[0].mxu0
        %v4281 = vpop.f32.mrb[0].mxu0
        %v4282 = vadd.f32 %v4121, %v4281
        %v4283 = vpop.f32.mrb[0].mxu0
        %4284 = vmatprep.mubr.bf16.mxu0 0
        %4285 = vmatmul.mubr.bf16.gmra.mrb[0].mxu0 %v4009
        %v4286 = vpop.f32.mrb[0].mxu0
        %v4287 = vadd.f32 %v4126, %v4286
        %v4288 = vpop.f32.mrb[0].mxu0
        %v4289 = vpop.f32.mrb[0].mxu0
        %v4290 = vadd.f32 %v4129, %v4289
        %v4291 = vpop.f32.mrb[0].mxu0
        %4292 = vmatprep.mubr.bf16.mxu0 0
        %4293 = vmatmul.mubr.bf16.gmra.mrb[0].mxu0 %v4012
        %v4294 = vpop.f32.mrb[0].mxu0
        %v4295 = vadd.f32 %v4134, %v4294
        %v4296 = vpop.f32.mrb[0].mxu0
        %v4297 = vpop.f32.mrb[0].mxu0
        %v4298 = vadd.f32 %v4137, %v4297
        %v4299 = vpop.f32.mrb[0].mxu0
        %4300 = vmatprep.mubr.bf16.mxu0 0
        %4301 = vmatmul.mubr.bf16.gmra.mrb[0].mxu0 %v4015
        %v4302 = vpop.f32.mrb[0].mxu0
        %v4303 = vadd.f32 %v4142, %v4302
        %v4304 = vpop.f32.mrb[0].mxu0
        %v4305 = vpop.f32.mrb[0].mxu0
        %v4306 = vadd.f32 %v4145, %v4305
        %v4307 = vpop.f32.mrb[0].mxu0
        %4308 = vmatprep.mubr.bf16.mxu0 0
        %4309 = vmatmul.mubr.bf16.gmra.mrb[0].mxu0 %v4018
        %v4310 = vpop.f32.mrb[0].mxu0
        %v4311 = vadd.f32 %v4150, %v4310
        %v4312 = vpop.f32.mrb[0].mxu0
        %v4313 = vpop.f32.mrb[0].mxu0
        %v4314 = vadd.f32 %v4153, %v4313
        %v4315 = vpop.f32.mrb[0].mxu0
        %4316 = vmatprep.mubr.bf16.mxu0 0
        %4317 = vmatmul.mubr.bf16.gmra.mrb[0].mxu0 %v4021
        %v4318 = vpop.f32.mrb[0].mxu0
        %v4319 = vadd.f32 %v4158, %v4318
        %v4320 = vpop.f32.mrb[0].mxu0
        %v4321 = vpop.f32.mrb[0].mxu0
        %v4322 = vadd.f32 %v4161, %v4321
        %v4323 = vpop.f32.mrb[0].mxu0
        %4324 = vmatprep.mubr.bf16.mxu0 0
        %4325 = vmatmul.mubr.bf16.gmra.mrb[0].mxu0 %v4024
        %v4326 = vpop.f32.mrb[0].mxu0
        %v4327 = vadd.f32 %v4166, %v4326
        %v4328 = vpop.f32.mrb[0].mxu0
        %v4329 = vpop.f32.mrb[0].mxu0
        %v4330 = vadd.f32 %v4169, %v4329
        %v4331 = vpop.f32.mrb[0].mxu0
        %4332 = vmatprep.mubr.bf16.mxu0 0
        %4333 = vmatmul.mubr.bf16.gmra.mrb[0].mxu0 %v4027
        %v4334 = vpop.f32.mrb[0].mxu0
        %v4335 = vadd.f32 %v4174, %v4334
        %v4336 = vpop.f32.mrb[0].mxu0
        %v4337 = vpop.f32.mrb[0].mxu0
        %v4338 = vadd.f32 %v4177, %v4337
        %v4339 = vpop.f32.mrb[0].mxu0
        %4340 = vmatprep.mubr.bf16.mxu0 0
        %4341 = vmatmul.mubr.bf16.gmra.mrb[0].mxu0 %v4030
        %v4342 = vpop.f32.mrb[0].mxu0
        %v4343 = vadd.f32 %v4182, %v4342
        %v4344 = vpop.f32.mrb[0].mxu0
        %v4345 = vpop.f32.mrb[0].mxu0
        %v4346 = vadd.f32 %v4185, %v4345
        %v4347 = vpop.f32.mrb[0].mxu0
        %4348 = vmatprep.mubr.bf16.mxu0 0
        %4349 = vmatmul.mubr.bf16.gmra.mrb[0].mxu0 %v4033
        %v4350 = vpop.f32.mrb[0].mxu0
        %v4351 = vadd.f32 %v4190, %v4350
        %v4352 = vpop.f32.mrb[0].mxu0
        %v4353 = vpop.f32.mrb[0].mxu0
        %v4354 = vadd.f32 %v4193, %v4353
        %v4355 = vpop.f32.mrb[0].mxu0
        %4356 = vdwg.mxu0
        %v4357 = vsel %vm3626, %v4231, 0.0
        %v4358 = vsel %vm3626, %v4234, 0.0
        %v4359 = vadd.f32 %v4357, %v4358
        %v4360 = vsel %vm3626, %v4239, 0.0
        %v4361 = vadd.f32 %v4359, %v4360
        %v4362 = vsel %vm3626, %v4242, 0.0
        %v4363 = vadd.f32 %v4361, %v4362
        %v4364 = vsel %vm3626, %v4247, 0.0
        %v4365 = vadd.f32 %v4363, %v4364
        %v4366 = vsel %vm3626, %v4250, 0.0
        %v4367 = vadd.f32 %v4365, %v4366
        %v4368 = vsel %vm3626, %v4255, 0.0
        %v4369 = vadd.f32 %v4367, %v4368
        %v4370 = vsel %vm3626, %v4258, 0.0
        %v4371 = vadd.f32 %v4369, %v4370
        %v4372 = vsel %vm3626, %v4263, 0.0
        %v4373 = vadd.f32 %v4371, %v4372
        %v4374 = vsel %vm3626, %v4266, 0.0
        %v4375 = vadd.f32 %v4373, %v4374
        %v4376 = vsel %vm3626, %v4271, 0.0
        %v4377 = vadd.f32 %v4375, %v4376
        %v4378 = vsel %vm3626, %v4274, 0.0
        %v4379 = vadd.f32 %v4377, %v4378
        %v4380 = vsel %vm3626, %v4279, 0.0
        %v4381 = vadd.f32 %v4379, %v4380
        %v4382 = vsel %vm3626, %v4282, 0.0
        %v4383 = vadd.f32 %v4381, %v4382
        %v4384 = vsel %vm3626, %v4287, 0.0
        %v4385 = vadd.f32 %v4383, %v4384
        %v4386 = vsel %vm3626, %v4290, 0.0
        %v4387 = vadd.f32 %v4385, %v4386
        %v4388 = vsel %vm3626, %v4295, 0.0
        %v4389 = vadd.f32 %v4387, %v4388
        %v4390 = vsel %vm3626, %v4298, 0.0
        %v4391 = vadd.f32 %v4389, %v4390
        %v4392 = vsel %vm3626, %v4303, 0.0
        %v4393 = vadd.f32 %v4391, %v4392
        %v4394 = vsel %vm3626, %v4306, 0.0
        %v4395 = vadd.f32 %v4393, %v4394
        %v4396 = vsel %vm3626, %v4311, 0.0
        %v4397 = vadd.f32 %v4395, %v4396
        %v4398 = vsel %vm3626, %v4314, 0.0
        %v4399 = vadd.f32 %v4397, %v4398
        %v4400 = vsel %vm3626, %v4319, 0.0
        %v4401 = vadd.f32 %v4399, %v4400
        %v4402 = vsel %vm3626, %v4322, 0.0
        %v4403 = vadd.f32 %v4401, %v4402
        %v4404 = vsel %vm3626, %v4327, 0.0
        %v4405 = vadd.f32 %v4403, %v4404
        %v4406 = vsel %vm3626, %v4330, 0.0
        %v4407 = vadd.f32 %v4405, %v4406
        %v4408 = vsel %vm3626, %v4335, 0.0
        %v4409 = vadd.f32 %v4407, %v4408
        %v4410 = vsel %vm3626, %v4338, 0.0
        %v4411 = vadd.f32 %v4409, %v4410
        %v4412 = vsel %vm3626, %v4343, 0.0
        %v4413 = vadd.f32 %v4411, %v4412
        %v4414 = vsel %vm3626, %v4346, 0.0
        %v4415 = vadd.f32 %v4413, %v4414
        %v4416 = vsel %vm3626, %v4351, 0.0
        %v4417 = vadd.f32 %v4415, %v4416
        %v4418 = vsel %vm3626, %v4354, 0.0
        %v4419 = vadd.f32 %v4417, %v4418
        %v4420 = vrot.slane %v4419, 4
        %v4421 = vadd.f32 %v4419, %v4420
        %v4422 = vrot.slane %v4421, 2
        %v4423 = vadd.f32 %v4421, %v4422
        %v4424 = vrot.slane %v4423, 1
        %v4425 = vadd.f32 %v4423, %v4424
        %v4426 = vmul.f32 %v4231, %v4231
        %v4427 = vmul.f32 %v4234, %v4234
        %v4428 = vmul.f32 %v4239, %v4239
        %v4429 = vmul.f32 %v4242, %v4242
        %v4430 = vmul.f32 %v4247, %v4247
        %v4431 = vmul.f32 %v4250, %v4250
        %v4432 = vmul.f32 %v4255, %v4255
        %v4433 = vmul.f32 %v4258, %v4258
        %v4434 = vmul.f32 %v4263, %v4263
        %v4435 = vmul.f32 %v4266, %v4266
        %v4436 = vmul.f32 %v4271, %v4271
        %v4437 = vmul.f32 %v4274, %v4274
        %v4438 = vmul.f32 %v4279, %v4279
        %v4439 = vmul.f32 %v4282, %v4282
        %v4440 = vmul.f32 %v4287, %v4287
        %v4441 = vmul.f32 %v4290, %v4290
        %v4442 = vmul.f32 %v4295, %v4295
        %v4443 = vmul.f32 %v4298, %v4298
        %v4444 = vmul.f32 %v4303, %v4303
        %v4445 = vmul.f32 %v4306, %v4306
        %v4446 = vmul.f32 %v4311, %v4311
        %v4447 = vmul.f32 %v4314, %v4314
        %v4448 = vmul.f32 %v4319, %v4319
        %v4449 = vmul.f32 %v4322, %v4322
        %v4450 = vmul.f32 %v4327, %v4327
        %v4451 = vmul.f32 %v4330, %v4330
        %v4452 = vmul.f32 %v4335, %v4335
        %v4453 = vmul.f32 %v4338, %v4338
        %v4454 = vmul.f32 %v4343, %v4343
        %v4455 = vmul.f32 %v4346, %v4346
        %v4456 = vmul.f32 %v4351, %v4351
        %v4457 = vmul.f32 %v4354, %v4354
        %v4458 = vsel %vm3626, %v4426, 0.0
        %v4459 = vsel %vm3626, %v4427, 0.0
        %v4460 = vadd.f32 %v4458, %v4459
        %v4461 = vsel %vm3626, %v4428, 0.0
        %v4462 = vadd.f32 %v4460, %v4461
        %v4463 = vsel %vm3626, %v4429, 0.0
        %v4464 = vadd.f32 %v4462, %v4463
        %v4465 = vsel %vm3626, %v4430, 0.0
        %v4466 = vadd.f32 %v4464, %v4465
        %v4467 = vsel %vm3626, %v4431, 0.0
        %v4468 = vadd.f32 %v4466, %v4467
        %v4469 = vsel %vm3626, %v4432, 0.0
        %v4470 = vadd.f32 %v4468, %v4469
        %v4471 = vsel %vm3626, %v4433, 0.0
        %v4472 = vadd.f32 %v4470, %v4471
        %v4473 = vsel %vm3626, %v4434, 0.0
        %v4474 = vadd.f32 %v4472, %v4473
        %v4475 = vsel %vm3626, %v4435, 0.0
        %v4476 = vadd.f32 %v4474, %v4475
        %v4477 = vsel %vm3626, %v4436, 0.0
        %v4478 = vadd.f32 %v4476, %v4477
        %v4479 = vsel %vm3626, %v4437, 0.0
        %v4480 = vadd.f32 %v4478, %v4479
        %v4481 = vsel %vm3626, %v4438, 0.0
        %v4482 = vadd.f32 %v4480, %v4481
        %v4483 = vsel %vm3626, %v4439, 0.0
        %v4484 = vadd.f32 %v4482, %v4483
        %v4485 = vsel %vm3626, %v4440, 0.0
        %v4486 = vadd.f32 %v4484, %v4485
        %v4487 = vsel %vm3626, %v4441, 0.0
        %v4488 = vadd.f32 %v4486, %v4487
        %v4489 = vsel %vm3626, %v4442, 0.0
        %v4490 = vadd.f32 %v4488, %v4489
        %v4491 = vsel %vm3626, %v4443, 0.0
        %v4492 = vadd.f32 %v4490, %v4491
        %v4493 = vsel %vm3626, %v4444, 0.0
        %v4494 = vadd.f32 %v4492, %v4493
        %v4495 = vsel %vm3626, %v4445, 0.0
        %v4496 = vadd.f32 %v4494, %v4495
        %v4497 = vsel %vm3626, %v4446, 0.0
        %v4498 = vadd.f32 %v4496, %v4497
        %v4499 = vsel %vm3626, %v4447, 0.0
        %v4500 = vadd.f32 %v4498, %v4499
        %v4501 = vsel %vm3626, %v4448, 0.0
        %v4502 = vadd.f32 %v4500, %v4501
        %v4503 = vsel %vm3626, %v4449, 0.0
        %v4504 = vadd.f32 %v4502, %v4503
        %v4505 = vsel %vm3626, %v4450, 0.0
        %v4506 = vadd.f32 %v4504, %v4505
        %v4507 = vsel %vm3626, %v4451, 0.0
        %v4508 = vadd.f32 %v4506, %v4507
        %v4509 = vsel %vm3626, %v4452, 0.0
        %v4510 = vadd.f32 %v4508, %v4509
        %v4511 = vsel %vm3626, %v4453, 0.0
        %v4512 = vadd.f32 %v4510, %v4511
        %v4513 = vsel %vm3626, %v4454, 0.0
        %v4514 = vadd.f32 %v4512, %v4513
        %v4515 = vsel %vm3626, %v4455, 0.0
        %v4516 = vadd.f32 %v4514, %v4515
        %v4517 = vsel %vm3626, %v4456, 0.0
        %v4518 = vadd.f32 %v4516, %v4517
        %v4519 = vsel %vm3626, %v4457, 0.0
        %v4520 = vadd.f32 %v4518, %v4519
        %v4521 = vrot.slane %v4520, 4
        %v4522 = vadd.f32 %v4520, %v4521
        %v4523 = vrot.slane %v4522, 2
        %v4524 = vadd.f32 %v4522, %v4523
        %v4525 = vrot.slane %v4524, 1
        %v4526 = vadd.f32 %v4524, %v4525
        %vm4527 = vcmask 1040384
        %v4528 = vsel %vm4527, %v4425, %v4526
        %v4529 = vld [vmem:[%s11] sm:$0xff]
        %v4530 = vld [vmem:[%s11 + $0x8] sm:$0xff]
        %v4531 = vld [vmem:[%s11 + $0x10] sm:$0xff]
        %v4532 = vld [vmem:[%s11 + $0x18] sm:$0xff]
        %v4533 = vld [vmem:[%s11 + $0x20] sm:$0xff]
        %v4534 = vld [vmem:[%s11 + $0x28] sm:$0xff]
        %v4535 = vld [vmem:[%s11 + $0x30] sm:$0xff]
        %v4536 = vld [vmem:[%s11 + $0x38] sm:$0xff]
        %v4538 = vsel %vm3626, %v4528, 0
        %4540 = vmatprep.subr.mxu0 0.0
        %4541 = vmatpush1.msra.mxu0 %v4529
        %4542 = vmatprep.subr.mxu0 0.0
        %4543 = vmatpush1.msra.mxu0 %v4530
        %4544 = vmatprep.subr.mxu0 0.0
        %4545 = vmatpush1.msra.mxu0 %v4531
        %4546 = vmatprep.subr.mxu0 0.0
        %4547 = vmatpush1.msra.mxu0 %v4532
        %4548 = vmatprep.subr.mxu0 0.0
        %4549 = vmatpush1.msra.mxu0 %v4533
        %4550 = vmatprep.subr.mxu0 0.0
        %4551 = vmatpush1.msra.mxu0 %v4534
        %4552 = vmatprep.subr.mxu0 0.0
        %4553 = vmatpush1.msra.mxu0 %v4535
        %4554 = vmatprep.subr.mxu0 0.0
        %4555 = vmatpush1.msra.mxu0 %v4536
        %4556 = vmatprep.subr.mxu0 0.0
        %4557 = vmatpush1.msra.mxu0 0.0
        %4558 = vmatprep.subr.mxu0 0.0
        %4559 = vmatpush1.msra.mxu0 0.0
        %4560 = vmatprep.subr.mxu0 0.0
        %4561 = vmatpush1.msra.mxu0 0.0
        %4562 = vmatprep.subr.mxu0 0.0
        %4563 = vmatpush1.msra.mxu0 0.0
        %4564 = vmatprep.subr.mxu0 0.0
        %4565 = vmatpush1.msra.mxu0 0.0
        %4566 = vmatprep.subr.mxu0 0.0
        %4567 = vmatpush1.msra.mxu0 0.0
        %4568 = vmatprep.subr.mxu0 0.0
        %4569 = vmatpush1.msra.mxu0 0.0
        %4570 = vmatprep.subr.mxu0 0.0
        %4571 = vmatpush1.msra.mxu0 0.0
        %4572 = vmatprep.subr.mxu0 0.0
        %4573 = vmatpush1.msra.mxu0 0.0
        %4574 = vmatprep.subr.mxu0 0.0
        %4575 = vmatpush1.msra.mxu0 0.0
        %4576 = vmatprep.subr.mxu0 0.0
        %4577 = vmatpush1.msra.mxu0 0.0
        %4578 = vmatprep.subr.mxu0 0.0
        %4579 = vmatpush1.msra.mxu0 0.0
        %4580 = vmatprep.subr.mxu0 0.0
        %4581 = vmatpush1.msra.mxu0 0.0
        %4582 = vmatprep.subr.mxu0 0.0
        %4583 = vmatpush1.msra.mxu0 0.0
        %4584 = vmatprep.subr.mxu0 0.0
        %4585 = vmatpush1.msra.mxu0 0.0
        %4586 = vmatprep.subr.mxu0 0.0
        %4587 = vmatpush1.msra.mxu0 0.0
        %4588 = vmatprep.subr.mxu0 0.0
        %4589 = vmatpush1.msra.mxu0 0.0
        %4590 = vmatprep.subr.mxu0 0.0
        %4591 = vmatpush1.msra.mxu0 0.0
        %4592 = vmatprep.subr.mxu0 0.0
        %4593 = vmatpush1.msra.mxu0 0.0
        %4594 = vmatprep.subr.mxu0 0.0
        %4595 = vmatpush1.msra.mxu0 0.0
        %4596 = vmatprep.subr.mxu0 0.0
        %4597 = vmatpush1.msra.mxu0 0.0
        %4598 = vmatprep.subr.mxu0 0.0
        %4599 = vmatpush1.msra.mxu0 0.0
        %4600 = vmatprep.subr.mxu0 0.0
        %4601 = vmatpush1.msra.mxu0 0.0
        %4602 = vmatprep.subr.mxu0 0.0
        %4603 = vmatpush1.msra.mxu0 0.0
        %4604 = vmatprep.mubr.f32.mxu0 0.0
        %4605 = vmatmul.mubr.f32.gmra.mrb[0].mxu0 %v4538
        %v4606 = vpop.f32.mrb[0].mxu0
        %v4607 = vadd.f32 0.0, %v4606
        %v4608 = vpop.f32.mrb[0].mxu0
        %4609 = vdwg.mxu0
        %v4610 = vmul.f32 %v4607, %v4607
        %v4612 = vrot.slane %v4610, 7
        %v4614 = vsub.f32 %v4607, %v4612
        %v4615 = vadd.f32 %v4614, 1e-05
        %v4616 = vrsqrt.pop %v4615
        %v4617 = vld [vmem:[%s5] sm:$0x1]
        %v4619 = vlaneseq
        %v4620 = vshrl.u32 %v4619, 7
        %v4621 = vsub.s32 0, %v4620
        %v4622 = vrot.slane %v4617, %v4621
        %v4624 = vmul.f32 %v4616, %v4622
        %v4625 = vld [vmem:[%s6] sm:$0x1]
        %v4627 = vrot.slane %v4624, 1
        %v4629 = vmul.f32 %v4607, %v4627
        %v4630 = vsub.f32 %v4625, %v4629
        %v4631 = vld [vmem:[%s490] sm:$0x1]
        %v4632 = vadd.f32 %v4631, 1.0
        %v4634 = vlaneseq
        %v4635 = vshrl.u32 %v4634, 7
        %v4636 = vsub.s32 0, %v4635
        %v4637 = vrot.slane %v4632, %v4636
        %v4639 = vmul.f32 %v4624, %v4637
        %v4640 = vmul.f32 %v4630, %v4632
        %v4641 = vld [vmem:[%s493] sm:$0x1]
        %v4642 = vadd.f32 %v4640, %v4641
        %v4643 = vlaneseq
        %v4644 = vshrl.u32 %v4643, 7
        %v4645 = vsub.s32 1, %v4644
        %v4646 = vrot.slane %v4639, %v4645
        %v4647 = vmul.f32 %v4231, %v4646
        %v4648 = vmul.f32 %v4234, %v4646
        %v4649 = vmul.f32 %v4239, %v4646
        %v4650 = vmul.f32 %v4242, %v4646
        %v4651 = vmul.f32 %v4247, %v4646
        %v4652 = vmul.f32 %v4250, %v4646
        %v4653 = vmul.f32 %v4255, %v4646
        %v4654 = vmul.f32 %v4258, %v4646
        %v4655 = vmul.f32 %v4263, %v4646
        %v4656 = vmul.f32 %v4266, %v4646
        %v4657 = vmul.f32 %v4271, %v4646
        %v4658 = vmul.f32 %v4274, %v4646
        %v4659 = vmul.f32 %v4279, %v4646
        %v4660 = vmul.f32 %v4282, %v4646
        %v4661 = vmul.f32 %v4287, %v4646
        %v4662 = vmul.f32 %v4290, %v4646
        %v4663 = vmul.f32 %v4295, %v4646
        %v4664 = vmul.f32 %v4298, %v4646
        %v4665 = vmul.f32 %v4303, %v4646
        %v4666 = vmul.f32 %v4306, %v4646
        %v4667 = vmul.f32 %v4311, %v4646
        %v4668 = vmul.f32 %v4314, %v4646
        %v4669 = vmul.f32 %v4319, %v4646
        %v4670 = vmul.f32 %v4322, %v4646
        %v4671 = vmul.f32 %v4327, %v4646
        %v4672 = vmul.f32 %v4330, %v4646
        %v4673 = vmul.f32 %v4335, %v4646
        %v4674 = vmul.f32 %v4338, %v4646
        %v4675 = vmul.f32 %v4343, %v4646
        %v4676 = vmul.f32 %v4346, %v4646
        %v4677 = vmul.f32 %v4351, %v4646
        %v4678 = vmul.f32 %v4354, %v4646
        %v4680 = vlaneseq
        %v4681 = vshrl.u32 %v4680, 7
        %v4682 = vsub.s32 0, %v4681
        %v4683 = vrot.slane %v4642, %v4682
        %v4685 = vadd.f32 %v4647, %v4683
        %v4686 = vadd.f32 %v4648, %v4683
        %v4687 = vadd.f32 %v4649, %v4683
        %v4688 = vadd.f32 %v4650, %v4683
        %v4689 = vadd.f32 %v4651, %v4683
        %v4690 = vadd.f32 %v4652, %v4683
        %v4691 = vadd.f32 %v4653, %v4683
        %v4692 = vadd.f32 %v4654, %v4683
        %v4693 = vadd.f32 %v4655, %v4683
        %v4694 = vadd.f32 %v4656, %v4683
        %v4695 = vadd.f32 %v4657, %v4683
        %v4696 = vadd.f32 %v4658, %v4683
        %v4697 = vadd.f32 %v4659, %v4683
        %v4698 = vadd.f32 %v4660, %v4683
        %v4699 = vadd.f32 %v4661, %v4683
        %v4700 = vadd.f32 %v4662, %v4683
        %v4701 = vadd.f32 %v4663, %v4683
        %v4702 = vadd.f32 %v4664, %v4683
        %v4703 = vadd.f32 %v4665, %v4683
        %v4704 = vadd.f32 %v4666, %v4683
        %v4705 = vadd.f32 %v4667, %v4683
        %v4706 = vadd.f32 %v4668, %v4683
        %v4707 = vadd.f32 %v4669, %v4683
        %v4708 = vadd.f32 %v4670, %v4683
        %v4709 = vadd.f32 %v4671, %v4683
        %v4710 = vadd.f32 %v4672, %v4683
        %v4711 = vadd.f32 %v4673, %v4683
        %v4712 = vadd.f32 %v4674, %v4683
        %v4713 = vadd.f32 %v4675, %v4683
        %v4714 = vadd.f32 %v4676, %v4683
        %v4715 = vadd.f32 %v4677, %v4683
        %v4716 = vadd.f32 %v4678, %v4683
        %v4717 = vsub.f32 0.0, %v4685
        %v4718 = vsub.f32 0.0, %v4686
        %v4719 = vsub.f32 0.0, %v4687
        %v4720 = vsub.f32 0.0, %v4688
        %v4721 = vsub.f32 0.0, %v4689
        %v4722 = vsub.f32 0.0, %v4690
        %v4723 = vsub.f32 0.0, %v4691
        %v4724 = vsub.f32 0.0, %v4692
        %v4725 = vsub.f32 0.0, %v4693
        %v4726 = vsub.f32 0.0, %v4694
        %v4727 = vsub.f32 0.0, %v4695
        %v4728 = vsub.f32 0.0, %v4696
        %v4729 = vsub.f32 0.0, %v4697
        %v4730 = vsub.f32 0.0, %v4698
        %v4731 = vsub.f32 0.0, %v4699
        %v4732 = vsub.f32 0.0, %v4700
        %v4733 = vsub.f32 0.0, %v4701
        %v4734 = vsub.f32 0.0, %v4702
        %v4735 = vsub.f32 0.0, %v4703
        %v4736 = vsub.f32 0.0, %v4704
        %v4737 = vsub.f32 0.0, %v4705
        %v4738 = vsub.f32 0.0, %v4706
        %v4739 = vsub.f32 0.0, %v4707
        %v4740 = vsub.f32 0.0, %v4708
        %v4741 = vsub.f32 0.0, %v4709
        %v4742 = vsub.f32 0.0, %v4710
        %v4743 = vsub.f32 0.0, %v4711
        %v4744 = vsub.f32 0.0, %v4712
        %v4745 = vsub.f32 0.0, %v4713
        %v4746 = vsub.f32 0.0, %v4714
        %v4747 = vsub.f32 0.0, %v4715
        %v4748 = vsub.f32 0.0, %v4716
        %v4749 = vmul.f32 %v4717, 1.442695
        %v4750 = vpow.pop %v4749
        %v4751 = vmul.f32 %v4718, 1.442695
        %v4752 = vpow.pop %v4751
        %v4753 = vmul.f32 %v4719, 1.442695
        %v4754 = vpow.pop %v4753
        %v4755 = vmul.f32 %v4720, 1.442695
        %v4756 = vpow.pop %v4755
        %v4757 = vmul.f32 %v4721, 1.442695
        %v4758 = vpow.pop %v4757
        %v4759 = vmul.f32 %v4722, 1.442695
        %v4760 = vpow.pop %v4759
        %v4761 = vmul.f32 %v4723, 1.442695
        %v4762 = vpow.pop %v4761
        %v4763 = vmul.f32 %v4724, 1.442695
        %v4764 = vpow.pop %v4763
        %v4765 = vmul.f32 %v4725, 1.442695
        %v4766 = vpow.pop %v4765
        %v4767 = vmul.f32 %v4726, 1.442695
        %v4768 = vpow.pop %v4767
        %v4769 = vmul.f32 %v4727, 1.442695
        %v4770 = vpow.pop %v4769
        %v4771 = vmul.f32 %v4728, 1.442695
        %v4772 = vpow.pop %v4771
        %v4773 = vmul.f32 %v4729, 1.442695
        %v4774 = vpow.pop %v4773
        %v4775 = vmul.f32 %v4730, 1.442695
        %v4776 = vpow.pop %v4775
        %v4777 = vmul.f32 %v4731, 1.442695
        %v4778 = vpow.pop %v4777
        %v4779 = vmul.f32 %v4732, 1.442695
        %v4780 = vpow.pop %v4779
        %v4781 = vmul.f32 %v4733, 1.442695
        %v4782 = vpow.pop %v4781
        %v4783 = vmul.f32 %v4734, 1.442695
        %v4784 = vpow.pop %v4783
        %v4785 = vmul.f32 %v4735, 1.442695
        %v4786 = vpow.pop %v4785
        %v4787 = vmul.f32 %v4736, 1.442695
        %v4788 = vpow.pop %v4787
        %v4789 = vmul.f32 %v4737, 1.442695
        %v4790 = vpow.pop %v4789
        %v4791 = vmul.f32 %v4738, 1.442695
        %v4792 = vpow.pop %v4791
        %v4793 = vmul.f32 %v4739, 1.442695
        %v4794 = vpow.pop %v4793
        %v4795 = vmul.f32 %v4740, 1.442695
        %v4796 = vpow.pop %v4795
        %v4797 = vmul.f32 %v4741, 1.442695
        %v4798 = vpow.pop %v4797
        %v4799 = vmul.f32 %v4742, 1.442695
        %v4800 = vpow.pop %v4799
        %v4801 = vmul.f32 %v4743, 1.442695
        %v4802 = vpow.pop %v4801
        %v4803 = vmul.f32 %v4744, 1.442695
        %v4804 = vpow.pop %v4803
        %v4805 = vmul.f32 %v4745, 1.442695
        %v4806 = vpow.pop %v4805
        %v4807 = vmul.f32 %v4746, 1.442695
        %v4808 = vpow.pop %v4807
        %v4809 = vmul.f32 %v4747, 1.442695
        %v4810 = vpow.pop %v4809
        %v4811 = vmul.f32 %v4748, 1.442695
        %v4812 = vpow.pop %v4811
        %v4813 = vadd.f32 %v4750, 1.0
        %v4814 = vadd.f32 %v4752, 1.0
        %v4815 = vadd.f32 %v4754, 1.0
        %v4816 = vadd.f32 %v4756, 1.0
        %v4817 = vadd.f32 %v4758, 1.0
        %v4818 = vadd.f32 %v4760, 1.0
        %v4819 = vadd.f32 %v4762, 1.0
        %v4820 = vadd.f32 %v4764, 1.0
        %v4821 = vadd.f32 %v4766, 1.0
        %v4822 = vadd.f32 %v4768, 1.0
        %v4823 = vadd.f32 %v4770, 1.0
        %v4824 = vadd.f32 %v4772, 1.0
        %v4825 = vadd.f32 %v4774, 1.0
        %v4826 = vadd.f32 %v4776, 1.0
        %v4827 = vadd.f32 %v4778, 1.0
        %v4828 = vadd.f32 %v4780, 1.0
        %v4829 = vadd.f32 %v4782, 1.0
        %v4830 = vadd.f32 %v4784, 1.0
        %v4831 = vadd.f32 %v4786, 1.0
        %v4832 = vadd.f32 %v4788, 1.0
        %v4833 = vadd.f32 %v4790, 1.0
        %v4834 = vadd.f32 %v4792, 1.0
        %v4835 = vadd.f32 %v4794, 1.0
        %v4836 = vadd.f32 %v4796, 1.0
        %v4837 = vadd.f32 %v4798, 1.0
        %v4838 = vadd.f32 %v4800, 1.0
        %v4839 = vadd.f32 %v4802, 1.0
        %v4840 = vadd.f32 %v4804, 1.0
        %v4841 = vadd.f32 %v4806, 1.0
        %v4842 = vadd.f32 %v4808, 1.0
        %v4843 = vadd.f32 %v4810, 1.0
        %v4844 = vadd.f32 %v4812, 1.0
        %v4845 = vrcp.pop %v4813
        %v4846 = vrcp.pop %v4814
        %v4847 = vrcp.pop %v4815
        %v4848 = vrcp.pop %v4816
        %v4849 = vrcp.pop %v4817
        %v4850 = vrcp.pop %v4818
        %v4851 = vrcp.pop %v4819
        %v4852 = vrcp.pop %v4820
        %v4853 = vrcp.pop %v4821
        %v4854 = vrcp.pop %v4822
        %v4855 = vrcp.pop %v4823
        %v4856 = vrcp.pop %v4824
        %v4857 = vrcp.pop %v4825
        %v4858 = vrcp.pop %v4826
        %v4859 = vrcp.pop %v4827
        %v4860 = vrcp.pop %v4828
        %v4861 = vrcp.pop %v4829
        %v4862 = vrcp.pop %v4830
        %v4863 = vrcp.pop %v4831
        %v4864 = vrcp.pop %v4832
        %v4865 = vrcp.pop %v4833
        %v4866 = vrcp.pop %v4834
        %v4867 = vrcp.pop %v4835
        %v4868 = vrcp.pop %v4836
        %v4869 = vrcp.pop %v4837
        %v4870 = vrcp.pop %v4838
        %v4871 = vrcp.pop %v4839
        %v4872 = vrcp.pop %v4840
        %v4873 = vrcp.pop %v4841
        %v4874 = vrcp.pop %v4842
        %v4875 = vrcp.pop %v4843
        %v4876 = vrcp.pop %v4844
        %v4877 = vmul.f32 %v4685, %v4845
        %v4878 = vmul.f32 %v4686, %v4846
        %v4879 = vmul.f32 %v4687, %v4847
        %v4880 = vmul.f32 %v4688, %v4848
        %v4881 = vmul.f32 %v4689, %v4849
        %v4882 = vmul.f32 %v4690, %v4850
        %v4883 = vmul.f32 %v4691, %v4851
        %v4884 = vmul.f32 %v4692, %v4852
        %v4885 = vmul.f32 %v4693, %v4853
        %v4886 = vmul.f32 %v4694, %v4854
        %v4887 = vmul.f32 %v4695, %v4855
        %v4888 = vmul.f32 %v4696, %v4856
        %v4889 = vmul.f32 %v4697, %v4857
        %v4890 = vmul.f32 %v4698, %v4858
        %v4891 = vmul.f32 %v4699, %v4859
        %v4892 = vmul.f32 %v4700, %v4860
        %v4893 = vmul.f32 %v4701, %v4861
        %v4894 = vmul.f32 %v4702, %v4862
        %v4895 = vmul.f32 %v4703, %v4863
        %v4896 = vmul.f32 %v4704, %v4864
        %v4897 = vmul.f32 %v4705, %v4865
        %v4898 = vmul.f32 %v4706, %v4866
        %v4899 = vmul.f32 %v4707, %v4867
        %v4900 = vmul.f32 %v4708, %v4868
        %v4901 = vmul.f32 %v4709, %v4869
        %v4902 = vmul.f32 %v4710, %v4870
        %v4903 = vmul.f32 %v4711, %v4871
        %v4904 = vmul.f32 %v4712, %v4872
        %v4905 = vmul.f32 %v4713, %v4873
        %v4906 = vmul.f32 %v4714, %v4874
        %v4907 = vmul.f32 %v4715, %v4875
        %v4908 = vmul.f32 %v4716, %v4876
        %v4909 = vpack.c.bf16 %v4878, %v4877
        %v4910 = vpack.c.bf16 %v4880, %v4879
        %v4911 = vpack.c.bf16 %v4882, %v4881
        %v4912 = vpack.c.bf16 %v4884, %v4883
        %v4913 = vpack.c.bf16 %v4886, %v4885
        %v4914 = vpack.c.bf16 %v4888, %v4887
        %v4915 = vpack.c.bf16 %v4890, %v4889
        %v4916 = vpack.c.bf16 %v4892, %v4891
        %v4917 = vpack.c.bf16 %v4894, %v4893
        %v4918 = vpack.c.bf16 %v4896, %v4895
        %v4919 = vpack.c.bf16 %v4898, %v4897
        %v4920 = vpack.c.bf16 %v4900, %v4899
        %v4921 = vpack.c.bf16 %v4902, %v4901
        %v4922 = vpack.c.bf16 %v4904, %v4903
        %v4923 = vpack.c.bf16 %v4906, %v4905
        %v4924 = vpack.c.bf16 %v4908, %v4907
        %vm4925 = vcmask 519168
        %4926 = vst.msk [vmem:[#allocation3] sm:$0xf] %vm4925, 0
        %4927 = vst.msk [vmem:[#allocation3 + $0x4] sm:$0xf] %vm4925, 0
        %vm4928 = vcmask 516096
        %4929 = vst.msk [vmem:[#allocation3 + $0x8] sm:$0x1] %vm4928, 0
        %s4930 = scalar_lea.vmem [#allocation3], 204
        %4931 = vst.msk [vmem:[%s4930] sm:$0xf] %vm4925, 0
        %4932 = vst.msk [vmem:[%s4930 + $0x4] sm:$0xf] %vm4925, 0
        %4933 = vst.msk [vmem:[%s4930 + $0x8] sm:$0x1] %vm4928, 0
        %s4934 = scalar_lea.vmem [#allocation3], 12
        %vm4935 = vcmask 516096
        %vm4936 = vmand %vm4935, %vm538
        %v4937 = vld [vmem:[%s4934] sm:$0x1]
        %v4938 = vsel %vm4936, 0, %v4937
        %4939 = vst [vmem:[%s4934] sm:$0x1] %v4938
        %v4940 = vld [vmem:[%s4934 + $0xc] sm:$0x1]
        %v4941 = vsel %vm4936, 0, %v4940
        %4942 = vst [vmem:[%s4934 + $0xc] sm:$0x1] %v4941
        %v4943 = vld [vmem:[%s4934 + $0x18] sm:$0x1]
        %v4944 = vsel %vm4936, 0, %v4943
        %4945 = vst [vmem:[%s4934 + $0x18] sm:$0x1] %v4944
        %v4946 = vld [vmem:[%s4934 + $0x24] sm:$0x1]
        %v4947 = vsel %vm4936, 0, %v4946
        %4948 = vst [vmem:[%s4934 + $0x24] sm:$0x1] %v4947
        %v4949 = vld [vmem:[%s4934 + $0x30] sm:$0x1]
        %v4950 = vsel %vm4936, 0, %v4949
        %4951 = vst [vmem:[%s4934 + $0x30] sm:$0x1] %v4950
        %v4952 = vld [vmem:[%s4934 + $0x3c] sm:$0x1]
        %v4953 = vsel %vm4936, 0, %v4952
        %4954 = vst [vmem:[%s4934 + $0x3c] sm:$0x1] %v4953
        %v4955 = vld [vmem:[%s4934 + $0x48] sm:$0x1]
        %v4956 = vsel %vm4936, 0, %v4955
        %4957 = vst [vmem:[%s4934 + $0x48] sm:$0x1] %v4956
        %v4958 = vld [vmem:[%s4934 + $0x54] sm:$0x1]
        %v4959 = vsel %vm4936, 0, %v4958
        %4960 = vst [vmem:[%s4934 + $0x54] sm:$0x1] %v4959
        %v4961 = vld [vmem:[%s4934 + $0x60] sm:$0x1]
        %v4962 = vsel %vm4936, 0, %v4961
        %4963 = vst [vmem:[%s4934 + $0x60] sm:$0x1] %v4962
        %v4964 = vld [vmem:[%s4934 + $0x6c] sm:$0x1]
        %v4965 = vsel %vm4936, 0, %v4964
        %4966 = vst [vmem:[%s4934 + $0x6c] sm:$0x1] %v4965
        %v4967 = vld [vmem:[%s4934 + $0x78] sm:$0x1]
        %v4968 = vsel %vm4936, 0, %v4967
        %4969 = vst [vmem:[%s4934 + $0x78] sm:$0x1] %v4968
        %v4970 = vld [vmem:[%s4934 + $0x84] sm:$0x1]
        %v4971 = vsel %vm4936, 0, %v4970
        %4972 = vst [vmem:[%s4934 + $0x84] sm:$0x1] %v4971
        %v4973 = vld [vmem:[%s4934 + $0x90] sm:$0x1]
        %v4974 = vsel %vm4936, 0, %v4973
        %4975 = vst [vmem:[%s4934 + $0x90] sm:$0x1] %v4974
        %v4976 = vld [vmem:[%s4934 + $0x9c] sm:$0x1]
        %v4977 = vsel %vm4936, 0, %v4976
        %4978 = vst [vmem:[%s4934 + $0x9c] sm:$0x1] %v4977
        %v4979 = vld [vmem:[%s4934 + $0xa8] sm:$0x1]
        %v4980 = vsel %vm4936, 0, %v4979
        %4981 = vst [vmem:[%s4934 + $0xa8] sm:$0x1] %v4980
        %v4982 = vld [vmem:[%s4934 + $0xb4] sm:$0x1]
        %v4983 = vsel %vm4936, 0, %v4982
        %4984 = vst [vmem:[%s4934 + $0xb4] sm:$0x1] %v4983
        %vm4985 = vmand %vm4935, %vm588
        %v4986 = vld [vmem:[%s4934 + $0x8] sm:$0x1]
        %v4987 = vsel %vm4985, 0, %v4986
        %4988 = vst [vmem:[%s4934 + $0x8] sm:$0x1] %v4987
        %v4989 = vld [vmem:[%s4934 + $0x14] sm:$0x1]
        %v4990 = vsel %vm4985, 0, %v4989
        %4991 = vst [vmem:[%s4934 + $0x14] sm:$0x1] %v4990
        %v4992 = vld [vmem:[%s4934 + $0x20] sm:$0x1]
        %v4993 = vsel %vm4985, 0, %v4992
        %4994 = vst [vmem:[%s4934 + $0x20] sm:$0x1] %v4993
        %v4995 = vld [vmem:[%s4934 + $0x2c] sm:$0x1]
        %v4996 = vsel %vm4985, 0, %v4995
        %4997 = vst [vmem:[%s4934 + $0x2c] sm:$0x1] %v4996
        %v4998 = vld [vmem:[%s4934 + $0x38] sm:$0x1]
        %v4999 = vsel %vm4985, 0, %v4998
        %5000 = vst [vmem:[%s4934 + $0x38] sm:$0x1] %v4999
        %v5001 = vld [vmem:[%s4934 + $0x44] sm:$0x1]
        %v5002 = vsel %vm4985, 0, %v5001
        %5003 = vst [vmem:[%s4934 + $0x44] sm:$0x1] %v5002
        %v5004 = vld [vmem:[%s4934 + $0x50] sm:$0x1]
        %v5005 = vsel %vm4985, 0, %v5004
        %5006 = vst [vmem:[%s4934 + $0x50] sm:$0x1] %v5005
        %v5007 = vld [vmem:[%s4934 + $0x5c] sm:$0x1]
        %v5008 = vsel %vm4985, 0, %v5007
        %5009 = vst [vmem:[%s4934 + $0x5c] sm:$0x1] %v5008
        %v5010 = vld [vmem:[%s4934 + $0x68] sm:$0x1]
        %v5011 = vsel %vm4985, 0, %v5010
        %5012 = vst [vmem:[%s4934 + $0x68] sm:$0x1] %v5011
        %v5013 = vld [vmem:[%s4934 + $0x74] sm:$0x1]
        %v5014 = vsel %vm4985, 0, %v5013
        %5015 = vst [vmem:[%s4934 + $0x74] sm:$0x1] %v5014
        %v5016 = vld [vmem:[%s4934 + $0x80] sm:$0x1]
        %v5017 = vsel %vm4985, 0, %v5016
        %5018 = vst [vmem:[%s4934 + $0x80] sm:$0x1] %v5017
        %v5019 = vld [vmem:[%s4934 + $0x8c] sm:$0x1]
        %v5020 = vsel %vm4985, 0, %v5019
        %5021 = vst [vmem:[%s4934 + $0x8c] sm:$0x1] %v5020
        %v5022 = vld [vmem:[%s4934 + $0x98] sm:$0x1]
        %v5023 = vsel %vm4985, 0, %v5022
        %5024 = vst [vmem:[%s4934 + $0x98] sm:$0x1] %v5023
        %v5025 = vld [vmem:[%s4934 + $0xa4] sm:$0x1]
        %v5026 = vsel %vm4985, 0, %v5025
        %5027 = vst [vmem:[%s4934 + $0xa4] sm:$0x1] %v5026
        %v5028 = vld [vmem:[%s4934 + $0xb0] sm:$0x1]
        %v5029 = vsel %vm4985, 0, %v5028
        %5030 = vst [vmem:[%s4934 + $0xb0] sm:$0x1] %v5029
        %v5031 = vld [vmem:[%s4934 + $0xbc] sm:$0x1]
        %v5032 = vsel %vm4985, 0, %v5031
        %5033 = vst [vmem:[%s4934 + $0xbc] sm:$0x1] %v5032
        %v5050 = vunpack.c.l.b16 %v4909
        %v5051 = vunpack.c.h.b16 %v4909
        %v5052 = vunpack.c.l.b16 %v4910
        %v5053 = vunpack.c.h.b16 %v4910
        %v5054 = vunpack.c.l.b16 %v4911
        %v5055 = vunpack.c.h.b16 %v4911
        %v5056 = vunpack.c.l.b16 %v4912
        %v5057 = vunpack.c.h.b16 %v4912
        %v5058 = vunpack.c.l.b16 %v4913
        %v5059 = vunpack.c.h.b16 %v4913
        %v5060 = vunpack.c.l.b16 %v4914
        %v5061 = vunpack.c.h.b16 %v4914
        %v5062 = vunpack.c.l.b16 %v4915
        %v5063 = vunpack.c.h.b16 %v4915
        %v5064 = vunpack.c.l.b16 %v4916
        %v5065 = vunpack.c.h.b16 %v4916
        %v5066 = vunpack.c.l.b16 %v4917
        %v5067 = vunpack.c.h.b16 %v4917
        %v5068 = vunpack.c.l.b16 %v4918
        %v5069 = vunpack.c.h.b16 %v4918
        %v5070 = vunpack.c.l.b16 %v4919
        %v5071 = vunpack.c.h.b16 %v4919
        %v5072 = vunpack.c.l.b16 %v4920
        %v5073 = vunpack.c.h.b16 %v4920
        %v5074 = vunpack.c.l.b16 %v4921
        %v5075 = vunpack.c.h.b16 %v4921
        %v5076 = vunpack.c.l.b16 %v4922
        %v5077 = vunpack.c.h.b16 %v4922
        %v5078 = vunpack.c.l.b16 %v4923
        %v5079 = vunpack.c.h.b16 %v4923
        %v5080 = vunpack.c.l.b16 %v4924
        %v5081 = vunpack.c.h.b16 %v4924
        %v5082 = vpack.c.b16 %v5050, %v5050
        %v5083 = vpack.c.b16 %v5051, %v5051
        %v5084 = vpack.c.b16 %v5052, %v5052
        %v5085 = vpack.c.b16 %v5053, %v5053
        %v5086 = vpack.c.b16 %v5054, %v5054
        %v5087 = vpack.c.b16 %v5055, %v5055
        %v5088 = vpack.c.b16 %v5056, %v5056
        %v5089 = vpack.c.b16 %v5057, %v5057
        %v5090 = vpack.c.b16 %v5058, %v5058
        %v5091 = vpack.c.b16 %v5059, %v5059
        %v5092 = vpack.c.b16 %v5060, %v5060
        %v5093 = vpack.c.b16 %v5061, %v5061
        %v5094 = vpack.c.b16 %v5062, %v5062
        %v5095 = vpack.c.b16 %v5063, %v5063
        %v5096 = vpack.c.b16 %v5064, %v5064
        %v5097 = vpack.c.b16 %v5065, %v5065
        %v5098 = vpack.c.b16 %v5066, %v5066
        %v5099 = vpack.c.b16 %v5067, %v5067
        %v5100 = vpack.c.b16 %v5068, %v5068
        %v5101 = vpack.c.b16 %v5069, %v5069
        %v5102 = vpack.c.b16 %v5070, %v5070
        %v5103 = vpack.c.b16 %v5071, %v5071
        %v5104 = vpack.c.b16 %v5072, %v5072
        %v5105 = vpack.c.b16 %v5073, %v5073
        %v5106 = vpack.c.b16 %v5074, %v5074
        %v5107 = vpack.c.b16 %v5075, %v5075
        %v5108 = vpack.c.b16 %v5076, %v5076
        %v5109 = vpack.c.b16 %v5077, %v5077
        %v5110 = vpack.c.b16 %v5078, %v5078
        %v5111 = vpack.c.b16 %v5079, %v5079
        %v5112 = vpack.c.b16 %v5080, %v5080
        %v5113 = vpack.c.b16 %v5081, %v5081
        %v5115 = vshrl.u32 %v5082, 16
        %v5117 = vrot.slane %v5115, 7
        %v5118 = vshll.u32 %v5082, 16
        %v5120 = vor.u32 %v5117, %v5118
        %v5121 = vrot.slane %v5117, 4
        %v5123 = vshrl.u32 %v5083, 16
        %v5125 = vrot.slane %v5123, 7
        %v5126 = vshll.u32 %v5083, 16
        %v5128 = vor.u32 %v5125, %v5126
        %v5129 = vsel %vm639, %v5121, %v5128
        %v5130 = vrot.slane %v5125, 4
        %v5132 = vshrl.u32 %v5084, 16
        %v5134 = vrot.slane %v5132, 7
        %v5135 = vshll.u32 %v5084, 16
        %v5137 = vor.u32 %v5134, %v5135
        %v5138 = vrot.slane %v5134, 4
        %v5140 = vshrl.u32 %v5085, 16
        %v5142 = vrot.slane %v5140, 7
        %v5143 = vshll.u32 %v5085, 16
        %v5145 = vor.u32 %v5142, %v5143
        %v5146 = vsel %vm639, %v5138, %v5145
        %v5147 = vrot.slane %v5142, 4
        %v5149 = vshrl.u32 %v5086, 16
        %v5151 = vrot.slane %v5149, 7
        %v5152 = vshll.u32 %v5086, 16
        %v5154 = vor.u32 %v5151, %v5152
        %v5155 = vrot.slane %v5151, 4
        %v5157 = vshrl.u32 %v5087, 16
        %v5159 = vrot.slane %v5157, 7
        %v5160 = vshll.u32 %v5087, 16
        %v5162 = vor.u32 %v5159, %v5160
        %v5163 = vsel %vm639, %v5155, %v5162
        %v5164 = vrot.slane %v5159, 4
        %v5166 = vshrl.u32 %v5088, 16
        %v5168 = vrot.slane %v5166, 7
        %v5169 = vshll.u32 %v5088, 16
        %v5171 = vor.u32 %v5168, %v5169
        %v5172 = vrot.slane %v5168, 4
        %v5174 = vshrl.u32 %v5089, 16
        %v5176 = vrot.slane %v5174, 7
        %v5177 = vshll.u32 %v5089, 16
        %v5179 = vor.u32 %v5176, %v5177
        %v5180 = vsel %vm639, %v5172, %v5179
        %v5181 = vrot.slane %v5176, 4
        %v5183 = vshrl.u32 %v5090, 16
        %v5185 = vrot.slane %v5183, 7
        %v5186 = vshll.u32 %v5090, 16
        %v5188 = vor.u32 %v5185, %v5186
        %v5189 = vrot.slane %v5185, 4
        %v5191 = vshrl.u32 %v5091, 16
        %v5193 = vrot.slane %v5191, 7
        %v5194 = vshll.u32 %v5091, 16
        %v5196 = vor.u32 %v5193, %v5194
        %v5197 = vsel %vm639, %v5189, %v5196
        %v5198 = vrot.slane %v5193, 4
        %v5200 = vshrl.u32 %v5092, 16
        %v5202 = vrot.slane %v5200, 7
        %v5203 = vshll.u32 %v5092, 16
        %v5205 = vor.u32 %v5202, %v5203
        %v5206 = vrot.slane %v5202, 4
        %v5208 = vshrl.u32 %v5093, 16
        %v5210 = vrot.slane %v5208, 7
        %v5211 = vshll.u32 %v5093, 16
        %v5213 = vor.u32 %v5210, %v5211
        %v5214 = vsel %vm639, %v5206, %v5213
        %v5215 = vrot.slane %v5210, 4
        %v5217 = vshrl.u32 %v5094, 16
        %v5219 = vrot.slane %v5217, 7
        %v5220 = vshll.u32 %v5094, 16
        %v5222 = vor.u32 %v5219, %v5220
        %v5223 = vrot.slane %v5219, 4
        %v5225 = vshrl.u32 %v5095, 16
        %v5227 = vrot.slane %v5225, 7
        %v5228 = vshll.u32 %v5095, 16
        %v5230 = vor.u32 %v5227, %v5228
        %v5231 = vsel %vm639, %v5223, %v5230
        %v5232 = vrot.slane %v5227, 4
        %v5234 = vshrl.u32 %v5096, 16
        %v5236 = vrot.slane %v5234, 7
        %v5237 = vshll.u32 %v5096, 16
        %v5239 = vor.u32 %v5236, %v5237
        %v5240 = vrot.slane %v5236, 4
        %v5242 = vshrl.u32 %v5097, 16
        %v5244 = vrot.slane %v5242, 7
        %v5245 = vshll.u32 %v5097, 16
        %v5247 = vor.u32 %v5244, %v5245
        %v5248 = vsel %vm639, %v5240, %v5247
        %v5249 = vrot.slane %v5244, 4
        %v5251 = vshrl.u32 %v5098, 16
        %v5253 = vrot.slane %v5251, 7
        %v5254 = vshll.u32 %v5098, 16
        %v5256 = vor.u32 %v5253, %v5254
        %v5257 = vrot.slane %v5253, 4
        %v5259 = vshrl.u32 %v5099, 16
        %v5261 = vrot.slane %v5259, 7
        %v5262 = vshll.u32 %v5099, 16
        %v5264 = vor.u32 %v5261, %v5262
        %v5265 = vsel %vm639, %v5257, %v5264
        %v5266 = vrot.slane %v5261, 4
        %v5268 = vshrl.u32 %v5100, 16
        %v5270 = vrot.slane %v5268, 7
        %v5271 = vshll.u32 %v5100, 16
        %v5273 = vor.u32 %v5270, %v5271
        %v5274 = vrot.slane %v5270, 4
        %v5276 = vshrl.u32 %v5101, 16
        %v5278 = vrot.slane %v5276, 7
        %v5279 = vshll.u32 %v5101, 16
        %v5281 = vor.u32 %v5278, %v5279
        %v5282 = vsel %vm639, %v5274, %v5281
        %v5283 = vrot.slane %v5278, 4
        %v5285 = vshrl.u32 %v5102, 16
        %v5287 = vrot.slane %v5285, 7
        %v5288 = vshll.u32 %v5102, 16
        %v5290 = vor.u32 %v5287, %v5288
        %v5291 = vrot.slane %v5287, 4
        %v5293 = vshrl.u32 %v5103, 16
        %v5295 = vrot.slane %v5293, 7
        %v5296 = vshll.u32 %v5103, 16
        %v5298 = vor.u32 %v5295, %v5296
        %v5299 = vsel %vm639, %v5291, %v5298
        %v5300 = vrot.slane %v5295, 4
        %v5302 = vshrl.u32 %v5104, 16
        %v5304 = vrot.slane %v5302, 7
        %v5305 = vshll.u32 %v5104, 16
        %v5307 = vor.u32 %v5304, %v5305
        %v5308 = vrot.slane %v5304, 4
        %v5310 = vshrl.u32 %v5105, 16
        %v5312 = vrot.slane %v5310, 7
        %v5313 = vshll.u32 %v5105, 16
        %v5315 = vor.u32 %v5312, %v5313
        %v5316 = vsel %vm639, %v5308, %v5315
        %v5317 = vrot.slane %v5312, 4
        %v5319 = vshrl.u32 %v5106, 16
        %v5321 = vrot.slane %v5319, 7
        %v5322 = vshll.u32 %v5106, 16
        %v5324 = vor.u32 %v5321, %v5322
        %v5325 = vrot.slane %v5321, 4
        %v5327 = vshrl.u32 %v5107, 16
        %v5329 = vrot.slane %v5327, 7
        %v5330 = vshll.u32 %v5107, 16
        %v5332 = vor.u32 %v5329, %v5330
        %v5333 = vsel %vm639, %v5325, %v5332
        %v5334 = vrot.slane %v5329, 4
        %v5336 = vshrl.u32 %v5108, 16
        %v5338 = vrot.slane %v5336, 7
        %v5339 = vshll.u32 %v5108, 16
        %v5341 = vor.u32 %v5338, %v5339
        %v5342 = vrot.slane %v5338, 4
        %v5344 = vshrl.u32 %v5109, 16
        %v5346 = vrot.slane %v5344, 7
        %v5347 = vshll.u32 %v5109, 16
        %v5349 = vor.u32 %v5346, %v5347
        %v5350 = vsel %vm639, %v5342, %v5349
        %v5351 = vrot.slane %v5346, 4
        %v5353 = vshrl.u32 %v5110, 16
        %v5355 = vrot.slane %v5353, 7
        %v5356 = vshll.u32 %v5110, 16
        %v5358 = vor.u32 %v5355, %v5356
        %v5359 = vrot.slane %v5355, 4
        %v5361 = vshrl.u32 %v5111, 16
        %v5363 = vrot.slane %v5361, 7
        %v5364 = vshll.u32 %v5111, 16
        %v5366 = vor.u32 %v5363, %v5364
        %v5367 = vsel %vm639, %v5359, %v5366
        %v5368 = vrot.slane %v5363, 4
        %v5370 = vshrl.u32 %v5112, 16
        %v5372 = vrot.slane %v5370, 7
        %v5373 = vshll.u32 %v5112, 16
        %v5375 = vor.u32 %v5372, %v5373
        %v5376 = vrot.slane %v5372, 4
        %v5378 = vshrl.u32 %v5113, 16
        %v5380 = vrot.slane %v5378, 7
        %v5381 = vshll.u32 %v5113, 16
        %v5383 = vor.u32 %v5380, %v5381
        %v5384 = vsel %vm639, %v5376, %v5383
        %v5385 = vrot.slane %v5380, 4
        %vm5434 = vcmask 519168
        %vm5435 = vmand %vm5434, %vm588
        %v5436 = vld [vmem:[%s4934] sm:$0xf]
        %v5437 = vsel %vm5435, %v5120, %v5436
        %5438 = vst [vmem:[%s4934] sm:$0xf] %v5437
        %5439 = vst.msk [vmem:[%s4934 + $0x4] sm:$0xf] %vm4925, %v5129
        %v5440 = vld [vmem:[%s4934 + $0x8] sm:$0x1]
        %v5441 = vsel %vm4936, %v5130, %v5440
        %5442 = vst [vmem:[%s4934 + $0x8] sm:$0x1] %v5441
        %v5443 = vld [vmem:[%s4934 + $0xc] sm:$0xf]
        %v5444 = vsel %vm5435, %v5137, %v5443
        %5445 = vst [vmem:[%s4934 + $0xc] sm:$0xf] %v5444
        %5446 = vst.msk [vmem:[%s4934 + $0x10] sm:$0xf] %vm4925, %v5146
        %v5447 = vld [vmem:[%s4934 + $0x14] sm:$0x1]
        %v5448 = vsel %vm4936, %v5147, %v5447
        %5449 = vst [vmem:[%s4934 + $0x14] sm:$0x1] %v5448
        %v5450 = vld [vmem:[%s4934 + $0x18] sm:$0xf]
        %v5451 = vsel %vm5435, %v5154, %v5450
        %5452 = vst [vmem:[%s4934 + $0x18] sm:$0xf] %v5451
        %5453 = vst.msk [vmem:[%s4934 + $0x1c] sm:$0xf] %vm4925, %v5163
        %v5454 = vld [vmem:[%s4934 + $0x20] sm:$0x1]
        %v5455 = vsel %vm4936, %v5164, %v5454
        %5456 = vst [vmem:[%s4934 + $0x20] sm:$0x1] %v5455
        %v5457 = vld [vmem:[%s4934 + $0x24] sm:$0xf]
        %v5458 = vsel %vm5435, %v5171, %v5457
        %5459 = vst [vmem:[%s4934 + $0x24] sm:$0xf] %v5458
        %5460 = vst.msk [vmem:[%s4934 + $0x28] sm:$0xf] %vm4925, %v5180
        %v5461 = vld [vmem:[%s4934 + $0x2c] sm:$0x1]
        %v5462 = vsel %vm4936, %v5181, %v5461
        %5463 = vst [vmem:[%s4934 + $0x2c] sm:$0x1] %v5462
        %v5464 = vld [vmem:[%s4934 + $0x30] sm:$0xf]
        %v5465 = vsel %vm5435, %v5188, %v5464
        %5466 = vst [vmem:[%s4934 + $0x30] sm:$0xf] %v5465
        %5467 = vst.msk [vmem:[%s4934 + $0x34] sm:$0xf] %vm4925, %v5197
        %v5468 = vld [vmem:[%s4934 + $0x38] sm:$0x1]
        %v5469 = vsel %vm4936, %v5198, %v5468
        %5470 = vst [vmem:[%s4934 + $0x38] sm:$0x1] %v5469
        %v5471 = vld [vmem:[%s4934 + $0x3c] sm:$0xf]
        %v5472 = vsel %vm5435, %v5205, %v5471
        %5473 = vst [vmem:[%s4934 + $0x3c] sm:$0xf] %v5472
        %5474 = vst.msk [vmem:[%s4934 + $0x40] sm:$0xf] %vm4925, %v5214
        %v5475 = vld [vmem:[%s4934 + $0x44] sm:$0x1]
        %v5476 = vsel %vm4936, %v5215, %v5475
        %5477 = vst [vmem:[%s4934 + $0x44] sm:$0x1] %v5476
        %v5478 = vld [vmem:[%s4934 + $0x48] sm:$0xf]
        %v5479 = vsel %vm5435, %v5222, %v5478
        %5480 = vst [vmem:[%s4934 + $0x48] sm:$0xf] %v5479
        %5481 = vst.msk [vmem:[%s4934 + $0x4c] sm:$0xf] %vm4925, %v5231
        %v5482 = vld [vmem:[%s4934 + $0x50] sm:$0x1]
        %v5483 = vsel %vm4936, %v5232, %v5482
        %5484 = vst [vmem:[%s4934 + $0x50] sm:$0x1] %v5483
        %v5485 = vld [vmem:[%s4934 + $0x54] sm:$0xf]
        %v5486 = vsel %vm5435, %v5239, %v5485
        %5487 = vst [vmem:[%s4934 + $0x54] sm:$0xf] %v5486
        %5488 = vst.msk [vmem:[%s4934 + $0x58] sm:$0xf] %vm4925, %v5248
        %v5489 = vld [vmem:[%s4934 + $0x5c] sm:$0x1]
        %v5490 = vsel %vm4936, %v5249, %v5489
        %5491 = vst [vmem:[%s4934 + $0x5c] sm:$0x1] %v5490
        %v5492 = vld [vmem:[%s4934 + $0x60] sm:$0xf]
        %v5493 = vsel %vm5435, %v5256, %v5492
        %5494 = vst [vmem:[%s4934 + $0x60] sm:$0xf] %v5493
        %5495 = vst.msk [vmem:[%s4934 + $0x64] sm:$0xf] %vm4925, %v5265
        %v5496 = vld [vmem:[%s4934 + $0x68] sm:$0x1]
        %v5497 = vsel %vm4936, %v5266, %v5496
        %5498 = vst [vmem:[%s4934 + $0x68] sm:$0x1] %v5497
        %v5499 = vld [vmem:[%s4934 + $0x6c] sm:$0xf]
        %v5500 = vsel %vm5435, %v5273, %v5499
        %5501 = vst [vmem:[%s4934 + $0x6c] sm:$0xf] %v5500
        %5502 = vst.msk [vmem:[%s4934 + $0x70] sm:$0xf] %vm4925, %v5282
        %v5503 = vld [vmem:[%s4934 + $0x74] sm:$0x1]
        %v5504 = vsel %vm4936, %v5283, %v5503
        %5505 = vst [vmem:[%s4934 + $0x74] sm:$0x1] %v5504
        %v5506 = vld [vmem:[%s4934 + $0x78] sm:$0xf]
        %v5507 = vsel %vm5435, %v5290, %v5506
        %5508 = vst [vmem:[%s4934 + $0x78] sm:$0xf] %v5507
        %5509 = vst.msk [vmem:[%s4934 + $0x7c] sm:$0xf] %vm4925, %v5299
        %v5510 = vld [vmem:[%s4934 + $0x80] sm:$0x1]
        %v5511 = vsel %vm4936, %v5300, %v5510
        %5512 = vst [vmem:[%s4934 + $0x80] sm:$0x1] %v5511
        %v5513 = vld [vmem:[%s4934 + $0x84] sm:$0xf]
        %v5514 = vsel %vm5435, %v5307, %v5513
        %5515 = vst [vmem:[%s4934 + $0x84] sm:$0xf] %v5514
        %5516 = vst.msk [vmem:[%s4934 + $0x88] sm:$0xf] %vm4925, %v5316
        %v5517 = vld [vmem:[%s4934 + $0x8c] sm:$0x1]
        %v5518 = vsel %vm4936, %v5317, %v5517
        %5519 = vst [vmem:[%s4934 + $0x8c] sm:$0x1] %v5518
        %v5520 = vld [vmem:[%s4934 + $0x90] sm:$0xf]
        %v5521 = vsel %vm5435, %v5324, %v5520
        %5522 = vst [vmem:[%s4934 + $0x90] sm:$0xf] %v5521
        %5523 = vst.msk [vmem:[%s4934 + $0x94] sm:$0xf] %vm4925, %v5333
        %v5524 = vld [vmem:[%s4934 + $0x98] sm:$0x1]
        %v5525 = vsel %vm4936, %v5334, %v5524
        %5526 = vst [vmem:[%s4934 + $0x98] sm:$0x1] %v5525
        %v5527 = vld [vmem:[%s4934 + $0x9c] sm:$0xf]
        %v5528 = vsel %vm5435, %v5341, %v5527
        %5529 = vst [vmem:[%s4934 + $0x9c] sm:$0xf] %v5528
        %5530 = vst.msk [vmem:[%s4934 + $0xa0] sm:$0xf] %vm4925, %v5350
        %v5531 = vld [vmem:[%s4934 + $0xa4] sm:$0x1]
        %v5532 = vsel %vm4936, %v5351, %v5531
        %5533 = vst [vmem:[%s4934 + $0xa4] sm:$0x1] %v5532
        %v5534 = vld [vmem:[%s4934 + $0xa8] sm:$0xf]
        %v5535 = vsel %vm5435, %v5358, %v5534
        %5536 = vst [vmem:[%s4934 + $0xa8] sm:$0xf] %v5535
        %5537 = vst.msk [vmem:[%s4934 + $0xac] sm:$0xf] %vm4925, %v5367
        %v5538 = vld [vmem:[%s4934 + $0xb0] sm:$0x1]
        %v5539 = vsel %vm4936, %v5368, %v5538
        %5540 = vst [vmem:[%s4934 + $0xb0] sm:$0x1] %v5539
        %v5541 = vld [vmem:[%s4934 + $0xb4] sm:$0xf]
        %v5542 = vsel %vm5435, %v5375, %v5541
        %5543 = vst [vmem:[%s4934 + $0xb4] sm:$0xf] %v5542
        %5544 = vst.msk [vmem:[%s4934 + $0xb8] sm:$0xf] %vm4925, %v5384
        %v5545 = vld [vmem:[%s4934 + $0xbc] sm:$0x1]
        %v5546 = vsel %vm4936, %v5385, %v5545
        %5547 = vst [vmem:[%s4934 + $0xbc] sm:$0x1] %v5546
        %v5548 = vld [vmem:[#allocation3] sm:$0xf]
        %v5549 = vld [vmem:[#allocation3 + $0x4] sm:$0xf]
        %v5550 = vld [vmem:[#allocation3 + $0xc] sm:$0xf]
        %v5551 = vld [vmem:[#allocation3 + $0x10] sm:$0xf]
        %v5552 = vld [vmem:[#allocation3 + $0x18] sm:$0xf]
        %v5553 = vld [vmem:[#allocation3 + $0x1c] sm:$0xf]
        %v5554 = vld [vmem:[#allocation3 + $0x24] sm:$0xf]
        %v5555 = vld [vmem:[#allocation3 + $0x28] sm:$0xf]
        %v5556 = vld [vmem:[#allocation3 + $0x30] sm:$0xf]
        %v5557 = vld [vmem:[#allocation3 + $0x34] sm:$0xf]
        %v5558 = vld [vmem:[#allocation3 + $0x3c] sm:$0xf]
        %v5559 = vld [vmem:[#allocation3 + $0x40] sm:$0xf]
        %v5560 = vld [vmem:[#allocation3 + $0x48] sm:$0xf]
        %v5561 = vld [vmem:[#allocation3 + $0x4c] sm:$0xf]
        %v5562 = vld [vmem:[#allocation3 + $0x54] sm:$0xf]
        %v5563 = vld [vmem:[#allocation3 + $0x58] sm:$0xf]
        %v5564 = vld [vmem:[#allocation3 + $0x60] sm:$0xf]
        %v5565 = vld [vmem:[#allocation3 + $0x64] sm:$0xf]
        %v5566 = vld [vmem:[#allocation3 + $0x6c] sm:$0xf]
        %v5567 = vld [vmem:[#allocation3 + $0x70] sm:$0xf]
        %v5568 = vld [vmem:[#allocation3 + $0x78] sm:$0xf]
        %v5569 = vld [vmem:[#allocation3 + $0x7c] sm:$0xf]
        %v5570 = vld [vmem:[#allocation3 + $0x84] sm:$0xf]
        %v5571 = vld [vmem:[#allocation3 + $0x88] sm:$0xf]
        %v5572 = vld [vmem:[#allocation3 + $0x90] sm:$0xf]
        %v5573 = vld [vmem:[#allocation3 + $0x94] sm:$0xf]
        %v5574 = vld [vmem:[#allocation3 + $0x9c] sm:$0xf]
        %v5575 = vld [vmem:[#allocation3 + $0xa0] sm:$0xf]
        %v5576 = vld [vmem:[#allocation3 + $0xa8] sm:$0xf]
        %v5577 = vld [vmem:[#allocation3 + $0xac] sm:$0xf]
        %v5578 = vld [vmem:[#allocation3 + $0xb4] sm:$0xf]
        %v5579 = vld [vmem:[#allocation3 + $0xb8] sm:$0xf]
        %v5580 = vld [vmem:[#allocation3 + $0x8] sm:$0x1]
        %v5581 = vld [vmem:[#allocation3 + $0x14] sm:$0x1]
        %v5582 = vld [vmem:[#allocation3 + $0x20] sm:$0x1]
        %v5583 = vld [vmem:[#allocation3 + $0x2c] sm:$0x1]
        %v5584 = vld [vmem:[#allocation3 + $0x38] sm:$0x1]
        %v5585 = vld [vmem:[#allocation3 + $0x44] sm:$0x1]
        %v5586 = vld [vmem:[#allocation3 + $0x50] sm:$0x1]
        %v5587 = vld [vmem:[#allocation3 + $0x5c] sm:$0x1]
        %v5588 = vld [vmem:[#allocation3 + $0x68] sm:$0x1]
        %v5589 = vld [vmem:[#allocation3 + $0x74] sm:$0x1]
        %v5590 = vld [vmem:[#allocation3 + $0x80] sm:$0x1]
        %v5591 = vld [vmem:[#allocation3 + $0x8c] sm:$0x1]
        %v5592 = vld [vmem:[#allocation3 + $0x98] sm:$0x1]
        %v5593 = vld [vmem:[#allocation3 + $0xa4] sm:$0x1]
        %v5594 = vld [vmem:[#allocation3 + $0xb0] sm:$0x1]
        %v5595 = vld [vmem:[#allocation3 + $0xbc] sm:$0x1]
        %v5597 = vshrl.u32 %v5548, 16
        %v5599 = vrot.slane %v5597, 4
        %v5600 = vshll.u32 %v5548, 16
        %v5602 = vrot.slane %v5600, 5
        %v5603 = vor.u32 %v5599, %v5602
        %v5604 = vrot.slane %v5603, 4
        %v5606 = vshll.u32 %v5549, 16
        %v5608 = vrot.slane %v5606, 5
        %v5609 = vsel %vm1124, %v5604, %v5608
        %v5610 = vshrl.u32 %v5549, 16
        %v5612 = vrot.slane %v5610, 4
        %v5613 = vor.u32 %v5612, %v5608
        %v5614 = vrot.slane %v5613, 4
        %v5616 = vshll.u32 %v5580, 16
        %v5618 = vrot.slane %v5616, 5
        %v5619 = vsel %vm1124, %v5614, %v5618
        %v5621 = vshrl.u32 %v5550, 16
        %v5623 = vrot.slane %v5621, 4
        %v5624 = vshll.u32 %v5550, 16
        %v5626 = vrot.slane %v5624, 5
        %v5627 = vor.u32 %v5623, %v5626
        %v5628 = vrot.slane %v5627, 4
        %v5630 = vshll.u32 %v5551, 16
        %v5632 = vrot.slane %v5630, 5
        %v5633 = vsel %vm1124, %v5628, %v5632
        %v5634 = vshrl.u32 %v5551, 16
        %v5636 = vrot.slane %v5634, 4
        %v5637 = vor.u32 %v5636, %v5632
        %v5638 = vrot.slane %v5637, 4
        %v5640 = vshll.u32 %v5581, 16
        %v5642 = vrot.slane %v5640, 5
        %v5643 = vsel %vm1124, %v5638, %v5642
        %v5645 = vshrl.u32 %v5552, 16
        %v5647 = vrot.slane %v5645, 4
        %v5648 = vshll.u32 %v5552, 16
        %v5650 = vrot.slane %v5648, 5
        %v5651 = vor.u32 %v5647, %v5650
        %v5652 = vrot.slane %v5651, 4
        %v5654 = vshll.u32 %v5553, 16
        %v5656 = vrot.slane %v5654, 5
        %v5657 = vsel %vm1124, %v5652, %v5656
        %v5658 = vshrl.u32 %v5553, 16
        %v5660 = vrot.slane %v5658, 4
        %v5661 = vor.u32 %v5660, %v5656
        %v5662 = vrot.slane %v5661, 4
        %v5664 = vshll.u32 %v5582, 16
        %v5666 = vrot.slane %v5664, 5
        %v5667 = vsel %vm1124, %v5662, %v5666
        %v5669 = vshrl.u32 %v5554, 16
        %v5671 = vrot.slane %v5669, 4
        %v5672 = vshll.u32 %v5554, 16
        %v5674 = vrot.slane %v5672, 5
        %v5675 = vor.u32 %v5671, %v5674
        %v5676 = vrot.slane %v5675, 4
        %v5678 = vshll.u32 %v5555, 16
        %v5680 = vrot.slane %v5678, 5
        %v5681 = vsel %vm1124, %v5676, %v5680
        %v5682 = vshrl.u32 %v5555, 16
        %v5684 = vrot.slane %v5682, 4
        %v5685 = vor.u32 %v5684, %v5680
        %v5686 = vrot.slane %v5685, 4
        %v5688 = vshll.u32 %v5583, 16
        %v5690 = vrot.slane %v5688, 5
        %v5691 = vsel %vm1124, %v5686, %v5690
        %v5693 = vshrl.u32 %v5556, 16
        %v5695 = vrot.slane %v5693, 4
        %v5696 = vshll.u32 %v5556, 16
        %v5698 = vrot.slane %v5696, 5
        %v5699 = vor.u32 %v5695, %v5698
        %v5700 = vrot.slane %v5699, 4
        %v5702 = vshll.u32 %v5557, 16
        %v5704 = vrot.slane %v5702, 5
        %v5705 = vsel %vm1124, %v5700, %v5704
        %v5706 = vshrl.u32 %v5557, 16
        %v5708 = vrot.slane %v5706, 4
        %v5709 = vor.u32 %v5708, %v5704
        %v5710 = vrot.slane %v5709, 4
        %v5712 = vshll.u32 %v5584, 16
        %v5714 = vrot.slane %v5712, 5
        %v5715 = vsel %vm1124, %v5710, %v5714
        %v5717 = vshrl.u32 %v5558, 16
        %v5719 = vrot.slane %v5717, 4
        %v5720 = vshll.u32 %v5558, 16
        %v5722 = vrot.slane %v5720, 5
        %v5723 = vor.u32 %v5719, %v5722
        %v5724 = vrot.slane %v5723, 4
        %v5726 = vshll.u32 %v5559, 16
        %v5728 = vrot.slane %v5726, 5
        %v5729 = vsel %vm1124, %v5724, %v5728
        %v5730 = vshrl.u32 %v5559, 16
        %v5732 = vrot.slane %v5730, 4
        %v5733 = vor.u32 %v5732, %v5728
        %v5734 = vrot.slane %v5733, 4
        %v5736 = vshll.u32 %v5585, 16
        %v5738 = vrot.slane %v5736, 5
        %v5739 = vsel %vm1124, %v5734, %v5738
        %v5741 = vshrl.u32 %v5560, 16
        %v5743 = vrot.slane %v5741, 4
        %v5744 = vshll.u32 %v5560, 16
        %v5746 = vrot.slane %v5744, 5
        %v5747 = vor.u32 %v5743, %v5746
        %v5748 = vrot.slane %v5747, 4
        %v5750 = vshll.u32 %v5561, 16
        %v5752 = vrot.slane %v5750, 5
        %v5753 = vsel %vm1124, %v5748, %v5752
        %v5754 = vshrl.u32 %v5561, 16
        %v5756 = vrot.slane %v5754, 4
        %v5757 = vor.u32 %v5756, %v5752
        %v5758 = vrot.slane %v5757, 4
        %v5760 = vshll.u32 %v5586, 16
        %v5762 = vrot.slane %v5760, 5
        %v5763 = vsel %vm1124, %v5758, %v5762
        %v5765 = vshrl.u32 %v5562, 16
        %v5767 = vrot.slane %v5765, 4
        %v5768 = vshll.u32 %v5562, 16
        %v5770 = vrot.slane %v5768, 5
        %v5771 = vor.u32 %v5767, %v5770
        %v5772 = vrot.slane %v5771, 4
        %v5774 = vshll.u32 %v5563, 16
        %v5776 = vrot.slane %v5774, 5
        %v5777 = vsel %vm1124, %v5772, %v5776
        %v5778 = vshrl.u32 %v5563, 16
        %v5780 = vrot.slane %v5778, 4
        %v5781 = vor.u32 %v5780, %v5776
        %v5782 = vrot.slane %v5781, 4
        %v5784 = vshll.u32 %v5587, 16
        %v5786 = vrot.slane %v5784, 5
        %v5787 = vsel %vm1124, %v5782, %v5786
        %v5789 = vshrl.u32 %v5564, 16
        %v5791 = vrot.slane %v5789, 4
        %v5792 = vshll.u32 %v5564, 16
        %v5794 = vrot.slane %v5792, 5
        %v5795 = vor.u32 %v5791, %v5794
        %v5796 = vrot.slane %v5795, 4
        %v5798 = vshll.u32 %v5565, 16
        %v5800 = vrot.slane %v5798, 5
        %v5801 = vsel %vm1124, %v5796, %v5800
        %v5802 = vshrl.u32 %v5565, 16
        %v5804 = vrot.slane %v5802, 4
        %v5805 = vor.u32 %v5804, %v5800
        %v5806 = vrot.slane %v5805, 4
        %v5808 = vshll.u32 %v5588, 16
        %v5810 = vrot.slane %v5808, 5
        %v5811 = vsel %vm1124, %v5806, %v5810
        %v5813 = vshrl.u32 %v5566, 16
        %v5815 = vrot.slane %v5813, 4
        %v5816 = vshll.u32 %v5566, 16
        %v5818 = vrot.slane %v5816, 5
        %v5819 = vor.u32 %v5815, %v5818
        %v5820 = vrot.slane %v5819, 4
        %v5822 = vshll.u32 %v5567, 16
        %v5824 = vrot.slane %v5822, 5
        %v5825 = vsel %vm1124, %v5820, %v5824
        %v5826 = vshrl.u32 %v5567, 16
        %v5828 = vrot.slane %v5826, 4
        %v5829 = vor.u32 %v5828, %v5824
        %v5830 = vrot.slane %v5829, 4
        %v5832 = vshll.u32 %v5589, 16
        %v5834 = vrot.slane %v5832, 5
        %v5835 = vsel %vm1124, %v5830, %v5834
        %v5837 = vshrl.u32 %v5568, 16
        %v5839 = vrot.slane %v5837, 4
        %v5840 = vshll.u32 %v5568, 16
        %v5842 = vrot.slane %v5840, 5
        %v5843 = vor.u32 %v5839, %v5842
        %v5844 = vrot.slane %v5843, 4
        %v5846 = vshll.u32 %v5569, 16
        %v5848 = vrot.slane %v5846, 5
        %v5849 = vsel %vm1124, %v5844, %v5848
        %v5850 = vshrl.u32 %v5569, 16
        %v5852 = vrot.slane %v5850, 4
        %v5853 = vor.u32 %v5852, %v5848
        %v5854 = vrot.slane %v5853, 4
        %v5856 = vshll.u32 %v5590, 16
        %v5858 = vrot.slane %v5856, 5
        %v5859 = vsel %vm1124, %v5854, %v5858
        %v5861 = vshrl.u32 %v5570, 16
        %v5863 = vrot.slane %v5861, 4
        %v5864 = vshll.u32 %v5570, 16
        %v5866 = vrot.slane %v5864, 5
        %v5867 = vor.u32 %v5863, %v5866
        %v5868 = vrot.slane %v5867, 4
        %v5870 = vshll.u32 %v5571, 16
        %v5872 = vrot.slane %v5870, 5
        %v5873 = vsel %vm1124, %v5868, %v5872
        %v5874 = vshrl.u32 %v5571, 16
        %v5876 = vrot.slane %v5874, 4
        %v5877 = vor.u32 %v5876, %v5872
        %v5878 = vrot.slane %v5877, 4
        %v5880 = vshll.u32 %v5591, 16
        %v5882 = vrot.slane %v5880, 5
        %v5883 = vsel %vm1124, %v5878, %v5882
        %v5885 = vshrl.u32 %v5572, 16
        %v5887 = vrot.slane %v5885, 4
        %v5888 = vshll.u32 %v5572, 16
        %v5890 = vrot.slane %v5888, 5
        %v5891 = vor.u32 %v5887, %v5890
        %v5892 = vrot.slane %v5891, 4
        %v5894 = vshll.u32 %v5573, 16
        %v5896 = vrot.slane %v5894, 5
        %v5897 = vsel %vm1124, %v5892, %v5896
        %v5898 = vshrl.u32 %v5573, 16
        %v5900 = vrot.slane %v5898, 4
        %v5901 = vor.u32 %v5900, %v5896
        %v5902 = vrot.slane %v5901, 4
        %v5904 = vshll.u32 %v5592, 16
        %v5906 = vrot.slane %v5904, 5
        %v5907 = vsel %vm1124, %v5902, %v5906
        %v5909 = vshrl.u32 %v5574, 16
        %v5911 = vrot.slane %v5909, 4
        %v5912 = vshll.u32 %v5574, 16
        %v5914 = vrot.slane %v5912, 5
        %v5915 = vor.u32 %v5911, %v5914
        %v5916 = vrot.slane %v5915, 4
        %v5918 = vshll.u32 %v5575, 16
        %v5920 = vrot.slane %v5918, 5
        %v5921 = vsel %vm1124, %v5916, %v5920
        %v5922 = vshrl.u32 %v5575, 16
        %v5924 = vrot.slane %v5922, 4
        %v5925 = vor.u32 %v5924, %v5920
        %v5926 = vrot.slane %v5925, 4
        %v5928 = vshll.u32 %v5593, 16
        %v5930 = vrot.slane %v5928, 5
        %v5931 = vsel %vm1124, %v5926, %v5930
        %v5933 = vshrl.u32 %v5576, 16
        %v5935 = vrot.slane %v5933, 4
        %v5936 = vshll.u32 %v5576, 16
        %v5938 = vrot.slane %v5936, 5
        %v5939 = vor.u32 %v5935, %v5938
        %v5940 = vrot.slane %v5939, 4
        %v5942 = vshll.u32 %v5577, 16
        %v5944 = vrot.slane %v5942, 5
        %v5945 = vsel %vm1124, %v5940, %v5944
        %v5946 = vshrl.u32 %v5577, 16
        %v5948 = vrot.slane %v5946, 4
        %v5949 = vor.u32 %v5948, %v5944
        %v5950 = vrot.slane %v5949, 4
        %v5952 = vshll.u32 %v5594, 16
        %v5954 = vrot.slane %v5952, 5
        %v5955 = vsel %vm1124, %v5950, %v5954
        %v5957 = vshrl.u32 %v5578, 16
        %v5959 = vrot.slane %v5957, 4
        %v5960 = vshll.u32 %v5578, 16
        %v5962 = vrot.slane %v5960, 5
        %v5963 = vor.u32 %v5959, %v5962
        %v5964 = vrot.slane %v5963, 4
        %v5966 = vshll.u32 %v5579, 16
        %v5968 = vrot.slane %v5966, 5
        %v5969 = vsel %vm1124, %v5964, %v5968
        %v5970 = vshrl.u32 %v5579, 16
        %v5972 = vrot.slane %v5970, 4
        %v5973 = vor.u32 %v5972, %v5968
        %v5974 = vrot.slane %v5973, 4
        %v5976 = vshll.u32 %v5595, 16
        %v5978 = vrot.slane %v5976, 5
        %v5979 = vsel %vm1124, %v5974, %v5978
        %v5980 = vld [vmem:[#allocation3] sm:$0xe]
        %v5981 = vld [vmem:[#allocation3 + $0xc] sm:$0xe]
        %v5982 = vld [vmem:[#allocation3 + $0x18] sm:$0xe]
        %v5983 = vld [vmem:[#allocation3 + $0x24] sm:$0xe]
        %v5984 = vld [vmem:[#allocation3 + $0x30] sm:$0xe]
        %v5985 = vld [vmem:[#allocation3 + $0x3c] sm:$0xe]
        %v5986 = vld [vmem:[#allocation3 + $0x48] sm:$0xe]
        %v5987 = vld [vmem:[#allocation3 + $0x54] sm:$0xe]
        %v5988 = vld [vmem:[#allocation3 + $0x60] sm:$0xe]
        %v5989 = vld [vmem:[#allocation3 + $0x6c] sm:$0xe]
        %v5990 = vld [vmem:[#allocation3 + $0x78] sm:$0xe]
        %v5991 = vld [vmem:[#allocation3 + $0x84] sm:$0xe]
        %v5992 = vld [vmem:[#allocation3 + $0x90] sm:$0xe]
        %v5993 = vld [vmem:[#allocation3 + $0x9c] sm:$0xe]
        %v5994 = vld [vmem:[#allocation3 + $0xa8] sm:$0xe]
        %v5995 = vld [vmem:[#allocation3 + $0xb4] sm:$0xe]
        %v6044 = vrot.slane %v5980, 5
        %v6045 = vrot.slane %v6044, 4
        %v6046 = vrot.slane %v5549, 5
        %v6047 = vsel %vm1575, %v6045, %v6046
        %v6048 = vrot.slane %v6046, 4
        %v6049 = vrot.slane %v5580, 5
        %v6050 = vsel %vm1575, %v6048, %v6049
        %v6051 = vrot.slane %v5981, 5
        %v6052 = vrot.slane %v6051, 4
        %v6053 = vrot.slane %v5551, 5
        %v6054 = vsel %vm1575, %v6052, %v6053
        %v6055 = vrot.slane %v6053, 4
        %v6056 = vrot.slane %v5581, 5
        %v6057 = vsel %vm1575, %v6055, %v6056
        %v6058 = vrot.slane %v5982, 5
        %v6059 = vrot.slane %v6058, 4
        %v6060 = vrot.slane %v5553, 5
        %v6061 = vsel %vm1575, %v6059, %v6060
        %v6062 = vrot.slane %v6060, 4
        %v6063 = vrot.slane %v5582, 5
        %v6064 = vsel %vm1575, %v6062, %v6063
        %v6065 = vrot.slane %v5983, 5
        %v6066 = vrot.slane %v6065, 4
        %v6067 = vrot.slane %v5555, 5
        %v6068 = vsel %vm1575, %v6066, %v6067
        %v6069 = vrot.slane %v6067, 4
        %v6070 = vrot.slane %v5583, 5
        %v6071 = vsel %vm1575, %v6069, %v6070
        %v6072 = vrot.slane %v5984, 5
        %v6073 = vrot.slane %v6072, 4
        %v6074 = vrot.slane %v5557, 5
        %v6075 = vsel %vm1575, %v6073, %v6074
        %v6076 = vrot.slane %v6074, 4
        %v6077 = vrot.slane %v5584, 5
        %v6078 = vsel %vm1575, %v6076, %v6077
        %v6079 = vrot.slane %v5985, 5
        %v6080 = vrot.slane %v6079, 4
        %v6081 = vrot.slane %v5559, 5
        %v6082 = vsel %vm1575, %v6080, %v6081
        %v6083 = vrot.slane %v6081, 4
        %v6084 = vrot.slane %v5585, 5
        %v6085 = vsel %vm1575, %v6083, %v6084
        %v6086 = vrot.slane %v5986, 5
        %v6087 = vrot.slane %v6086, 4
        %v6088 = vrot.slane %v5561, 5
        %v6089 = vsel %vm1575, %v6087, %v6088
        %v6090 = vrot.slane %v6088, 4
        %v6091 = vrot.slane %v5586, 5
        %v6092 = vsel %vm1575, %v6090, %v6091
        %v6093 = vrot.slane %v5987, 5
        %v6094 = vrot.slane %v6093, 4
        %v6095 = vrot.slane %v5563, 5
        %v6096 = vsel %vm1575, %v6094, %v6095
        %v6097 = vrot.slane %v6095, 4
        %v6098 = vrot.slane %v5587, 5
        %v6099 = vsel %vm1575, %v6097, %v6098
        %v6100 = vrot.slane %v5988, 5
        %v6101 = vrot.slane %v6100, 4
        %v6102 = vrot.slane %v5565, 5
        %v6103 = vsel %vm1575, %v6101, %v6102
        %v6104 = vrot.slane %v6102, 4
        %v6105 = vrot.slane %v5588, 5
        %v6106 = vsel %vm1575, %v6104, %v6105
        %v6107 = vrot.slane %v5989, 5
        %v6108 = vrot.slane %v6107, 4
        %v6109 = vrot.slane %v5567, 5
        %v6110 = vsel %vm1575, %v6108, %v6109
        %v6111 = vrot.slane %v6109, 4
        %v6112 = vrot.slane %v5589, 5
        %v6113 = vsel %vm1575, %v6111, %v6112
        %v6114 = vrot.slane %v5990, 5
        %v6115 = vrot.slane %v6114, 4
        %v6116 = vrot.slane %v5569, 5
        %v6117 = vsel %vm1575, %v6115, %v6116
        %v6118 = vrot.slane %v6116, 4
        %v6119 = vrot.slane %v5590, 5
        %v6120 = vsel %vm1575, %v6118, %v6119
        %v6121 = vrot.slane %v5991, 5
        %v6122 = vrot.slane %v6121, 4
        %v6123 = vrot.slane %v5571, 5
        %v6124 = vsel %vm1575, %v6122, %v6123
        %v6125 = vrot.slane %v6123, 4
        %v6126 = vrot.slane %v5591, 5
        %v6127 = vsel %vm1575, %v6125, %v6126
        %v6128 = vrot.slane %v5992, 5
        %v6129 = vrot.slane %v6128, 4
        %v6130 = vrot.slane %v5573, 5
        %v6131 = vsel %vm1575, %v6129, %v6130
        %v6132 = vrot.slane %v6130, 4
        %v6133 = vrot.slane %v5592, 5
        %v6134 = vsel %vm1575, %v6132, %v6133
        %v6135 = vrot.slane %v5993, 5
        %v6136 = vrot.slane %v6135, 4
        %v6137 = vrot.slane %v5575, 5
        %v6138 = vsel %vm1575, %v6136, %v6137
        %v6139 = vrot.slane %v6137, 4
        %v6140 = vrot.slane %v5593, 5
        %v6141 = vsel %vm1575, %v6139, %v6140
        %v6142 = vrot.slane %v5994, 5
        %v6143 = vrot.slane %v6142, 4
        %v6144 = vrot.slane %v5577, 5
        %v6145 = vsel %vm1575, %v6143, %v6144
        %v6146 = vrot.slane %v6144, 4
        %v6147 = vrot.slane %v5594, 5
        %v6148 = vsel %vm1575, %v6146, %v6147
        %v6149 = vrot.slane %v5995, 5
        %v6150 = vrot.slane %v6149, 4
        %v6151 = vrot.slane %v5579, 5
        %v6152 = vsel %vm1575, %v6150, %v6151
        %v6153 = vrot.slane %v6151, 4
        %v6154 = vrot.slane %v5595, 5
        %v6155 = vsel %vm1575, %v6153, %v6154
        %v6156 = vld [vmem:[%s4934] sm:$0xf]
        %v6157 = vld [vmem:[%s4934 + $0x4] sm:$0xf]
        %v6158 = vld [vmem:[%s4934 + $0xc] sm:$0xf]
        %v6159 = vld [vmem:[%s4934 + $0x10] sm:$0xf]
        %v6160 = vld [vmem:[%s4934 + $0x18] sm:$0xf]
        %v6161 = vld [vmem:[%s4934 + $0x1c] sm:$0xf]
        %v6162 = vld [vmem:[%s4934 + $0x24] sm:$0xf]
        %v6163 = vld [vmem:[%s4934 + $0x28] sm:$0xf]
        %v6164 = vld [vmem:[%s4934 + $0x30] sm:$0xf]
        %v6165 = vld [vmem:[%s4934 + $0x34] sm:$0xf]
        %v6166 = vld [vmem:[%s4934 + $0x3c] sm:$0xf]
        %v6167 = vld [vmem:[%s4934 + $0x40] sm:$0xf]
        %v6168 = vld [vmem:[%s4934 + $0x48] sm:$0xf]
        %v6169 = vld [vmem:[%s4934 + $0x4c] sm:$0xf]
        %v6170 = vld [vmem:[%s4934 + $0x54] sm:$0xf]
        %v6171 = vld [vmem:[%s4934 + $0x58] sm:$0xf]
        %v6172 = vld [vmem:[%s4934 + $0x60] sm:$0xf]
        %v6173 = vld [vmem:[%s4934 + $0x64] sm:$0xf]
        %v6174 = vld [vmem:[%s4934 + $0x6c] sm:$0xf]
        %v6175 = vld [vmem:[%s4934 + $0x70] sm:$0xf]
        %v6176 = vld [vmem:[%s4934 + $0x78] sm:$0xf]
        %v6177 = vld [vmem:[%s4934 + $0x7c] sm:$0xf]
        %v6178 = vld [vmem:[%s4934 + $0x84] sm:$0xf]
        %v6179 = vld [vmem:[%s4934 + $0x88] sm:$0xf]
        %v6180 = vld [vmem:[%s4934 + $0x90] sm:$0xf]
        %v6181 = vld [vmem:[%s4934 + $0x94] sm:$0xf]
        %v6182 = vld [vmem:[%s4934 + $0x9c] sm:$0xf]
        %v6183 = vld [vmem:[%s4934 + $0xa0] sm:$0xf]
        %v6184 = vld [vmem:[%s4934 + $0xa8] sm:$0xf]
        %v6185 = vld [vmem:[%s4934 + $0xac] sm:$0xf]
        %v6186 = vld [vmem:[%s4934 + $0xb4] sm:$0xf]
        %v6187 = vld [vmem:[%s4934 + $0xb8] sm:$0xf]
        %v6188 = vld [vmem:[%s4934 + $0x8] sm:$0x1]
        %v6189 = vld [vmem:[%s4934 + $0x14] sm:$0x1]
        %v6190 = vld [vmem:[%s4934 + $0x20] sm:$0x1]
        %v6191 = vld [vmem:[%s4934 + $0x2c] sm:$0x1]
        %v6192 = vld [vmem:[%s4934 + $0x38] sm:$0x1]
        %v6193 = vld [vmem:[%s4934 + $0x44] sm:$0x1]
        %v6194 = vld [vmem:[%s4934 + $0x50] sm:$0x1]
        %v6195 = vld [vmem:[%s4934 + $0x5c] sm:$0x1]
        %v6196 = vld [vmem:[%s4934 + $0x68] sm:$0x1]
        %v6197 = vld [vmem:[%s4934 + $0x74] sm:$0x1]
        %v6198 = vld [vmem:[%s4934 + $0x80] sm:$0x1]
        %v6199 = vld [vmem:[%s4934 + $0x8c] sm:$0x1]
        %v6200 = vld [vmem:[%s4934 + $0x98] sm:$0x1]
        %v6201 = vld [vmem:[%s4934 + $0xa4] sm:$0x1]
        %v6202 = vld [vmem:[%s4934 + $0xb0] sm:$0x1]
        %v6203 = vld [vmem:[%s4934 + $0xbc] sm:$0x1]
        %v6205 = vshrl.u32 %v6156, 16
        %v6207 = vrot.slane %v6205, 4
        %v6208 = vshll.u32 %v6156, 16
        %v6210 = vrot.slane %v6208, 5
        %v6211 = vor.u32 %v6207, %v6210
        %v6212 = vrot.slane %v6211, 4
        %v6214 = vshll.u32 %v6157, 16
        %v6216 = vrot.slane %v6214, 5
        %v6217 = vsel %vm1124, %v6212, %v6216
        %v6218 = vshrl.u32 %v6157, 16
        %v6220 = vrot.slane %v6218, 4
        %v6221 = vor.u32 %v6220, %v6216
        %v6222 = vrot.slane %v6221, 4
        %v6224 = vshll.u32 %v6188, 16
        %v6226 = vrot.slane %v6224, 5
        %v6227 = vsel %vm1124, %v6222, %v6226
        %v6229 = vshrl.u32 %v6158, 16
        %v6231 = vrot.slane %v6229, 4
        %v6232 = vshll.u32 %v6158, 16
        %v6234 = vrot.slane %v6232, 5
        %v6235 = vor.u32 %v6231, %v6234
        %v6236 = vrot.slane %v6235, 4
        %v6238 = vshll.u32 %v6159, 16
        %v6240 = vrot.slane %v6238, 5
        %v6241 = vsel %vm1124, %v6236, %v6240
        %v6242 = vshrl.u32 %v6159, 16
        %v6244 = vrot.slane %v6242, 4
        %v6245 = vor.u32 %v6244, %v6240
        %v6246 = vrot.slane %v6245, 4
        %v6248 = vshll.u32 %v6189, 16
        %v6250 = vrot.slane %v6248, 5
        %v6251 = vsel %vm1124, %v6246, %v6250
        %v6253 = vshrl.u32 %v6160, 16
        %v6255 = vrot.slane %v6253, 4
        %v6256 = vshll.u32 %v6160, 16
        %v6258 = vrot.slane %v6256, 5
        %v6259 = vor.u32 %v6255, %v6258
        %v6260 = vrot.slane %v6259, 4
        %v6262 = vshll.u32 %v6161, 16
        %v6264 = vrot.slane %v6262, 5
        %v6265 = vsel %vm1124, %v6260, %v6264
        %v6266 = vshrl.u32 %v6161, 16
        %v6268 = vrot.slane %v6266, 4
        %v6269 = vor.u32 %v6268, %v6264
        %v6270 = vrot.slane %v6269, 4
        %v6272 = vshll.u32 %v6190, 16
        %v6274 = vrot.slane %v6272, 5
        %v6275 = vsel %vm1124, %v6270, %v6274
        %v6277 = vshrl.u32 %v6162, 16
        %v6279 = vrot.slane %v6277, 4
        %v6280 = vshll.u32 %v6162, 16
        %v6282 = vrot.slane %v6280, 5
        %v6283 = vor.u32 %v6279, %v6282
        %v6284 = vrot.slane %v6283, 4
        %v6286 = vshll.u32 %v6163, 16
        %v6288 = vrot.slane %v6286, 5
        %v6289 = vsel %vm1124, %v6284, %v6288
        %v6290 = vshrl.u32 %v6163, 16
        %v6292 = vrot.slane %v6290, 4
        %v6293 = vor.u32 %v6292, %v6288
        %v6294 = vrot.slane %v6293, 4
        %v6296 = vshll.u32 %v6191, 16
        %v6298 = vrot.slane %v6296, 5
        %v6299 = vsel %vm1124, %v6294, %v6298
        %v6301 = vshrl.u32 %v6164, 16
        %v6303 = vrot.slane %v6301, 4
        %v6304 = vshll.u32 %v6164, 16
        %v6306 = vrot.slane %v6304, 5
        %v6307 = vor.u32 %v6303, %v6306
        %v6308 = vrot.slane %v6307, 4
        %v6310 = vshll.u32 %v6165, 16
        %v6312 = vrot.slane %v6310, 5
        %v6313 = vsel %vm1124, %v6308, %v6312
        %v6314 = vshrl.u32 %v6165, 16
        %v6316 = vrot.slane %v6314, 4
        %v6317 = vor.u32 %v6316, %v6312
        %v6318 = vrot.slane %v6317, 4
        %v6320 = vshll.u32 %v6192, 16
        %v6322 = vrot.slane %v6320, 5
        %v6323 = vsel %vm1124, %v6318, %v6322
        %v6325 = vshrl.u32 %v6166, 16
        %v6327 = vrot.slane %v6325, 4
        %v6328 = vshll.u32 %v6166, 16
        %v6330 = vrot.slane %v6328, 5
        %v6331 = vor.u32 %v6327, %v6330
        %v6332 = vrot.slane %v6331, 4
        %v6334 = vshll.u32 %v6167, 16
        %v6336 = vrot.slane %v6334, 5
        %v6337 = vsel %vm1124, %v6332, %v6336
        %v6338 = vshrl.u32 %v6167, 16
        %v6340 = vrot.slane %v6338, 4
        %v6341 = vor.u32 %v6340, %v6336
        %v6342 = vrot.slane %v6341, 4
        %v6344 = vshll.u32 %v6193, 16
        %v6346 = vrot.slane %v6344, 5
        %v6347 = vsel %vm1124, %v6342, %v6346
        %v6349 = vshrl.u32 %v6168, 16
        %v6351 = vrot.slane %v6349, 4
        %v6352 = vshll.u32 %v6168, 16
        %v6354 = vrot.slane %v6352, 5
        %v6355 = vor.u32 %v6351, %v6354
        %v6356 = vrot.slane %v6355, 4
        %v6358 = vshll.u32 %v6169, 16
        %v6360 = vrot.slane %v6358, 5
        %v6361 = vsel %vm1124, %v6356, %v6360
        %v6362 = vshrl.u32 %v6169, 16
        %v6364 = vrot.slane %v6362, 4
        %v6365 = vor.u32 %v6364, %v6360
        %v6366 = vrot.slane %v6365, 4
        %v6368 = vshll.u32 %v6194, 16
        %v6370 = vrot.slane %v6368, 5
        %v6371 = vsel %vm1124, %v6366, %v6370
        %v6373 = vshrl.u32 %v6170, 16
        %v6375 = vrot.slane %v6373, 4
        %v6376 = vshll.u32 %v6170, 16
        %v6378 = vrot.slane %v6376, 5
        %v6379 = vor.u32 %v6375, %v6378
        %v6380 = vrot.slane %v6379, 4
        %v6382 = vshll.u32 %v6171, 16
        %v6384 = vrot.slane %v6382, 5
        %v6385 = vsel %vm1124, %v6380, %v6384
        %v6386 = vshrl.u32 %v6171, 16
        %v6388 = vrot.slane %v6386, 4
        %v6389 = vor.u32 %v6388, %v6384
        %v6390 = vrot.slane %v6389, 4
        %v6392 = vshll.u32 %v6195, 16
        %v6394 = vrot.slane %v6392, 5
        %v6395 = vsel %vm1124, %v6390, %v6394
        %v6397 = vshrl.u32 %v6172, 16
        %v6399 = vrot.slane %v6397, 4
        %v6400 = vshll.u32 %v6172, 16
        %v6402 = vrot.slane %v6400, 5
        %v6403 = vor.u32 %v6399, %v6402
        %v6404 = vrot.slane %v6403, 4
        %v6406 = vshll.u32 %v6173, 16
        %v6408 = vrot.slane %v6406, 5
        %v6409 = vsel %vm1124, %v6404, %v6408
        %v6410 = vshrl.u32 %v6173, 16
        %v6412 = vrot.slane %v6410, 4
        %v6413 = vor.u32 %v6412, %v6408
        %v6414 = vrot.slane %v6413, 4
        %v6416 = vshll.u32 %v6196, 16
        %v6418 = vrot.slane %v6416, 5
        %v6419 = vsel %vm1124, %v6414, %v6418
        %v6421 = vshrl.u32 %v6174, 16
        %v6423 = vrot.slane %v6421, 4
        %v6424 = vshll.u32 %v6174, 16
        %v6426 = vrot.slane %v6424, 5
        %v6427 = vor.u32 %v6423, %v6426
        %v6428 = vrot.slane %v6427, 4
        %v6430 = vshll.u32 %v6175, 16
        %v6432 = vrot.slane %v6430, 5
        %v6433 = vsel %vm1124, %v6428, %v6432
        %v6434 = vshrl.u32 %v6175, 16
        %v6436 = vrot.slane %v6434, 4
        %v6437 = vor.u32 %v6436, %v6432
        %v6438 = vrot.slane %v6437, 4
        %v6440 = vshll.u32 %v6197, 16
        %v6442 = vrot.slane %v6440, 5
        %v6443 = vsel %vm1124, %v6438, %v6442
        %v6445 = vshrl.u32 %v6176, 16
        %v6447 = vrot.slane %v6445, 4
        %v6448 = vshll.u32 %v6176, 16
        %v6450 = vrot.slane %v6448, 5
        %v6451 = vor.u32 %v6447, %v6450
        %v6452 = vrot.slane %v6451, 4
        %v6454 = vshll.u32 %v6177, 16
        %v6456 = vrot.slane %v6454, 5
        %v6457 = vsel %vm1124, %v6452, %v6456
        %v6458 = vshrl.u32 %v6177, 16
        %v6460 = vrot.slane %v6458, 4
        %v6461 = vor.u32 %v6460, %v6456
        %v6462 = vrot.slane %v6461, 4
        %v6464 = vshll.u32 %v6198, 16
        %v6466 = vrot.slane %v6464, 5
        %v6467 = vsel %vm1124, %v6462, %v6466
        %v6469 = vshrl.u32 %v6178, 16
        %v6471 = vrot.slane %v6469, 4
        %v6472 = vshll.u32 %v6178, 16
        %v6474 = vrot.slane %v6472, 5
        %v6475 = vor.u32 %v6471, %v6474
        %v6476 = vrot.slane %v6475, 4
        %v6478 = vshll.u32 %v6179, 16
        %v6480 = vrot.slane %v6478, 5
        %v6481 = vsel %vm1124, %v6476, %v6480
        %v6482 = vshrl.u32 %v6179, 16
        %v6484 = vrot.slane %v6482, 4
        %v6485 = vor.u32 %v6484, %v6480
        %v6486 = vrot.slane %v6485, 4
        %v6488 = vshll.u32 %v6199, 16
        %v6490 = vrot.slane %v6488, 5
        %v6491 = vsel %vm1124, %v6486, %v6490
        %v6493 = vshrl.u32 %v6180, 16
        %v6495 = vrot.slane %v6493, 4
        %v6496 = vshll.u32 %v6180, 16
        %v6498 = vrot.slane %v6496, 5
        %v6499 = vor.u32 %v6495, %v6498
        %v6500 = vrot.slane %v6499, 4
        %v6502 = vshll.u32 %v6181, 16
        %v6504 = vrot.slane %v6502, 5
        %v6505 = vsel %vm1124, %v6500, %v6504
        %v6506 = vshrl.u32 %v6181, 16
        %v6508 = vrot.slane %v6506, 4
        %v6509 = vor.u32 %v6508, %v6504
        %v6510 = vrot.slane %v6509, 4
        %v6512 = vshll.u32 %v6200, 16
        %v6514 = vrot.slane %v6512, 5
        %v6515 = vsel %vm1124, %v6510, %v6514
        %v6517 = vshrl.u32 %v6182, 16
        %v6519 = vrot.slane %v6517, 4
        %v6520 = vshll.u32 %v6182, 16
        %v6522 = vrot.slane %v6520, 5
        %v6523 = vor.u32 %v6519, %v6522
        %v6524 = vrot.slane %v6523, 4
        %v6526 = vshll.u32 %v6183, 16
        %v6528 = vrot.slane %v6526, 5
        %v6529 = vsel %vm1124, %v6524, %v6528
        %v6530 = vshrl.u32 %v6183, 16
        %v6532 = vrot.slane %v6530, 4
        %v6533 = vor.u32 %v6532, %v6528
        %v6534 = vrot.slane %v6533, 4
        %v6536 = vshll.u32 %v6201, 16
        %v6538 = vrot.slane %v6536, 5
        %v6539 = vsel %vm1124, %v6534, %v6538
        %v6541 = vshrl.u32 %v6184, 16
        %v6543 = vrot.slane %v6541, 4
        %v6544 = vshll.u32 %v6184, 16
        %v6546 = vrot.slane %v6544, 5
        %v6547 = vor.u32 %v6543, %v6546
        %v6548 = vrot.slane %v6547, 4
        %v6550 = vshll.u32 %v6185, 16
        %v6552 = vrot.slane %v6550, 5
        %v6553 = vsel %vm1124, %v6548, %v6552
        %v6554 = vshrl.u32 %v6185, 16
        %v6556 = vrot.slane %v6554, 4
        %v6557 = vor.u32 %v6556, %v6552
        %v6558 = vrot.slane %v6557, 4
        %v6560 = vshll.u32 %v6202, 16
        %v6562 = vrot.slane %v6560, 5
        %v6563 = vsel %vm1124, %v6558, %v6562
        %v6565 = vshrl.u32 %v6186, 16
        %v6567 = vrot.slane %v6565, 4
        %v6568 = vshll.u32 %v6186, 16
        %v6570 = vrot.slane %v6568, 5
        %v6571 = vor.u32 %v6567, %v6570
        %v6572 = vrot.slane %v6571, 4
        %v6574 = vshll.u32 %v6187, 16
        %v6576 = vrot.slane %v6574, 5
        %v6577 = vsel %vm1124, %v6572, %v6576
        %v6578 = vshrl.u32 %v6187, 16
        %v6580 = vrot.slane %v6578, 4
        %v6581 = vor.u32 %v6580, %v6576
        %v6582 = vrot.slane %v6581, 4
        %v6584 = vshll.u32 %v6203, 16
        %v6586 = vrot.slane %v6584, 5
        %v6587 = vsel %vm1124, %v6582, %v6586
        %v6588 = vld [vmem:[%s4934] sm:$0xe]
        %v6589 = vld [vmem:[%s4934 + $0xc] sm:$0xe]
        %v6590 = vld [vmem:[%s4934 + $0x18] sm:$0xe]
        %v6591 = vld [vmem:[%s4934 + $0x24] sm:$0xe]
        %v6592 = vld [vmem:[%s4934 + $0x30] sm:$0xe]
        %v6593 = vld [vmem:[%s4934 + $0x3c] sm:$0xe]
        %v6594 = vld [vmem:[%s4934 + $0x48] sm:$0xe]
        %v6595 = vld [vmem:[%s4934 + $0x54] sm:$0xe]
        %v6596 = vld [vmem:[%s4934 + $0x60] sm:$0xe]
        %v6597 = vld [vmem:[%s4934 + $0x6c] sm:$0xe]
        %v6598 = vld [vmem:[%s4934 + $0x78] sm:$0xe]
        %v6599 = vld [vmem:[%s4934 + $0x84] sm:$0xe]
        %v6600 = vld [vmem:[%s4934 + $0x90] sm:$0xe]
        %v6601 = vld [vmem:[%s4934 + $0x9c] sm:$0xe]
        %v6602 = vld [vmem:[%s4934 + $0xa8] sm:$0xe]
        %v6603 = vld [vmem:[%s4934 + $0xb4] sm:$0xe]
        %v6652 = vrot.slane %v6588, 5
        %v6653 = vrot.slane %v6652, 4
        %v6654 = vrot.slane %v6157, 5
        %v6655 = vsel %vm1575, %v6653, %v6654
        %v6656 = vrot.slane %v6654, 4
        %v6657 = vrot.slane %v6188, 5
        %v6658 = vsel %vm1575, %v6656, %v6657
        %v6659 = vrot.slane %v6589, 5
        %v6660 = vrot.slane %v6659, 4
        %v6661 = vrot.slane %v6159, 5
        %v6662 = vsel %vm1575, %v6660, %v6661
        %v6663 = vrot.slane %v6661, 4
        %v6664 = vrot.slane %v6189, 5
        %v6665 = vsel %vm1575, %v6663, %v6664
        %v6666 = vrot.slane %v6590, 5
        %v6667 = vrot.slane %v6666, 4
        %v6668 = vrot.slane %v6161, 5
        %v6669 = vsel %vm1575, %v6667, %v6668
        %v6670 = vrot.slane %v6668, 4
        %v6671 = vrot.slane %v6190, 5
        %v6672 = vsel %vm1575, %v6670, %v6671
        %v6673 = vrot.slane %v6591, 5
        %v6674 = vrot.slane %v6673, 4
        %v6675 = vrot.slane %v6163, 5
        %v6676 = vsel %vm1575, %v6674, %v6675
        %v6677 = vrot.slane %v6675, 4
        %v6678 = vrot.slane %v6191, 5
        %v6679 = vsel %vm1575, %v6677, %v6678
        %v6680 = vrot.slane %v6592, 5
        %v6681 = vrot.slane %v6680, 4
        %v6682 = vrot.slane %v6165, 5
        %v6683 = vsel %vm1575, %v6681, %v6682
        %v6684 = vrot.slane %v6682, 4
        %v6685 = vrot.slane %v6192, 5
        %v6686 = vsel %vm1575, %v6684, %v6685
        %v6687 = vrot.slane %v6593, 5
        %v6688 = vrot.slane %v6687, 4
        %v6689 = vrot.slane %v6167, 5
        %v6690 = vsel %vm1575, %v6688, %v6689
        %v6691 = vrot.slane %v6689, 4
        %v6692 = vrot.slane %v6193, 5
        %v6693 = vsel %vm1575, %v6691, %v6692
        %v6694 = vrot.slane %v6594, 5
        %v6695 = vrot.slane %v6694, 4
        %v6696 = vrot.slane %v6169, 5
        %v6697 = vsel %vm1575, %v6695, %v6696
        %v6698 = vrot.slane %v6696, 4
        %v6699 = vrot.slane %v6194, 5
        %v6700 = vsel %vm1575, %v6698, %v6699
        %v6701 = vrot.slane %v6595, 5
        %v6702 = vrot.slane %v6701, 4
        %v6703 = vrot.slane %v6171, 5
        %v6704 = vsel %vm1575, %v6702, %v6703
        %v6705 = vrot.slane %v6703, 4
        %v6706 = vrot.slane %v6195, 5
        %v6707 = vsel %vm1575, %v6705, %v6706
        %v6708 = vrot.slane %v6596, 5
        %v6709 = vrot.slane %v6708, 4
        %v6710 = vrot.slane %v6173, 5
        %v6711 = vsel %vm1575, %v6709, %v6710
        %v6712 = vrot.slane %v6710, 4
        %v6713 = vrot.slane %v6196, 5
        %v6714 = vsel %vm1575, %v6712, %v6713
        %v6715 = vrot.slane %v6597, 5
        %v6716 = vrot.slane %v6715, 4
        %v6717 = vrot.slane %v6175, 5
        %v6718 = vsel %vm1575, %v6716, %v6717
        %v6719 = vrot.slane %v6717, 4
        %v6720 = vrot.slane %v6197, 5
        %v6721 = vsel %vm1575, %v6719, %v6720
        %v6722 = vrot.slane %v6598, 5
        %v6723 = vrot.slane %v6722, 4
        %v6724 = vrot.slane %v6177, 5
        %v6725 = vsel %vm1575, %v6723, %v6724
        %v6726 = vrot.slane %v6724, 4
        %v6727 = vrot.slane %v6198, 5
        %v6728 = vsel %vm1575, %v6726, %v6727
        %v6729 = vrot.slane %v6599, 5
        %v6730 = vrot.slane %v6729, 4
        %v6731 = vrot.slane %v6179, 5
        %v6732 = vsel %vm1575, %v6730, %v6731
        %v6733 = vrot.slane %v6731, 4
        %v6734 = vrot.slane %v6199, 5
        %v6735 = vsel %vm1575, %v6733, %v6734
        %v6736 = vrot.slane %v6600, 5
        %v6737 = vrot.slane %v6736, 4
        %v6738 = vrot.slane %v6181, 5
        %v6739 = vsel %vm1575, %v6737, %v6738
        %v6740 = vrot.slane %v6738, 4
        %v6741 = vrot.slane %v6200, 5
        %v6742 = vsel %vm1575, %v6740, %v6741
        %v6743 = vrot.slane %v6601, 5
        %v6744 = vrot.slane %v6743, 4
        %v6745 = vrot.slane %v6183, 5
        %v6746 = vsel %vm1575, %v6744, %v6745
        %v6747 = vrot.slane %v6745, 4
        %v6748 = vrot.slane %v6201, 5
        %v6749 = vsel %vm1575, %v6747, %v6748
        %v6750 = vrot.slane %v6602, 5
        %v6751 = vrot.slane %v6750, 4
        %v6752 = vrot.slane %v6185, 5
        %v6753 = vsel %vm1575, %v6751, %v6752
        %v6754 = vrot.slane %v6752, 4
        %v6755 = vrot.slane %v6202, 5
        %v6756 = vsel %vm1575, %v6754, %v6755
        %v6757 = vrot.slane %v6603, 5
        %v6758 = vrot.slane %v6757, 4
        %v6759 = vrot.slane %v6187, 5
        %v6760 = vsel %vm1575, %v6758, %v6759
        %v6761 = vrot.slane %v6759, 4
        %v6762 = vrot.slane %v6203, 5
        %v6763 = vsel %vm1575, %v6761, %v6762
        %s6764 = scalar_lea.vmem [#allocation3], 24
        %v6765 = vld [vmem:[%s6764] sm:$0xf]
        %v6766 = vld [vmem:[%s6764 + $0x4] sm:$0xf]
        %v6767 = vld [vmem:[%s6764 + $0xc] sm:$0xf]
        %v6768 = vld [vmem:[%s6764 + $0x10] sm:$0xf]
        %v6769 = vld [vmem:[%s6764 + $0x18] sm:$0xf]
        %v6770 = vld [vmem:[%s6764 + $0x1c] sm:$0xf]
        %v6771 = vld [vmem:[%s6764 + $0x24] sm:$0xf]
        %v6772 = vld [vmem:[%s6764 + $0x28] sm:$0xf]
        %v6773 = vld [vmem:[%s6764 + $0x30] sm:$0xf]
        %v6774 = vld [vmem:[%s6764 + $0x34] sm:$0xf]
        %v6775 = vld [vmem:[%s6764 + $0x3c] sm:$0xf]
        %v6776 = vld [vmem:[%s6764 + $0x40] sm:$0xf]
        %v6777 = vld [vmem:[%s6764 + $0x48] sm:$0xf]
        %v6778 = vld [vmem:[%s6764 + $0x4c] sm:$0xf]
        %v6779 = vld [vmem:[%s6764 + $0x54] sm:$0xf]
        %v6780 = vld [vmem:[%s6764 + $0x58] sm:$0xf]
        %v6781 = vld [vmem:[%s6764 + $0x60] sm:$0xf]
        %v6782 = vld [vmem:[%s6764 + $0x64] sm:$0xf]
        %v6783 = vld [vmem:[%s6764 + $0x6c] sm:$0xf]
        %v6784 = vld [vmem:[%s6764 + $0x70] sm:$0xf]
        %v6785 = vld [vmem:[%s6764 + $0x78] sm:$0xf]
        %v6786 = vld [vmem:[%s6764 + $0x7c] sm:$0xf]
        %v6787 = vld [vmem:[%s6764 + $0x84] sm:$0xf]
        %v6788 = vld [vmem:[%s6764 + $0x88] sm:$0xf]
        %v6789 = vld [vmem:[%s6764 + $0x90] sm:$0xf]
        %v6790 = vld [vmem:[%s6764 + $0x94] sm:$0xf]
        %v6791 = vld [vmem:[%s6764 + $0x9c] sm:$0xf]
        %v6792 = vld [vmem:[%s6764 + $0xa0] sm:$0xf]
        %v6793 = vld [vmem:[%s6764 + $0xa8] sm:$0xf]
        %v6794 = vld [vmem:[%s6764 + $0xac] sm:$0xf]
        %v6795 = vld [vmem:[%s6764 + $0xb4] sm:$0xf]
        %v6796 = vld [vmem:[%s6764 + $0xb8] sm:$0xf]
        %v6797 = vld [vmem:[%s6764 + $0x8] sm:$0x1]
        %v6798 = vld [vmem:[%s6764 + $0x14] sm:$0x1]
        %v6799 = vld [vmem:[%s6764 + $0x20] sm:$0x1]
        %v6800 = vld [vmem:[%s6764 + $0x2c] sm:$0x1]
        %v6801 = vld [vmem:[%s6764 + $0x38] sm:$0x1]
        %v6802 = vld [vmem:[%s6764 + $0x44] sm:$0x1]
        %v6803 = vld [vmem:[%s6764 + $0x50] sm:$0x1]
        %v6804 = vld [vmem:[%s6764 + $0x5c] sm:$0x1]
        %v6805 = vld [vmem:[%s6764 + $0x68] sm:$0x1]
        %v6806 = vld [vmem:[%s6764 + $0x74] sm:$0x1]
        %v6807 = vld [vmem:[%s6764 + $0x80] sm:$0x1]
        %v6808 = vld [vmem:[%s6764 + $0x8c] sm:$0x1]
        %v6809 = vld [vmem:[%s6764 + $0x98] sm:$0x1]
        %v6810 = vld [vmem:[%s6764 + $0xa4] sm:$0x1]
        %v6811 = vld [vmem:[%s6764 + $0xb0] sm:$0x1]
        %v6812 = vld [vmem:[%s6764 + $0xbc] sm:$0x1]
        %v6814 = vshrl.u32 %v6765, 16
        %v6816 = vrot.slane %v6814, 4
        %v6817 = vshll.u32 %v6765, 16
        %v6819 = vrot.slane %v6817, 5
        %v6820 = vor.u32 %v6816, %v6819
        %v6821 = vrot.slane %v6820, 4
        %v6823 = vshll.u32 %v6766, 16
        %v6825 = vrot.slane %v6823, 5
        %v6826 = vsel %vm1124, %v6821, %v6825
        %v6827 = vshrl.u32 %v6766, 16
        %v6829 = vrot.slane %v6827, 4
        %v6830 = vor.u32 %v6829, %v6825
        %v6831 = vrot.slane %v6830, 4
        %v6833 = vshll.u32 %v6797, 16
        %v6835 = vrot.slane %v6833, 5
        %v6836 = vsel %vm1124, %v6831, %v6835
        %v6838 = vshrl.u32 %v6767, 16
        %v6840 = vrot.slane %v6838, 4
        %v6841 = vshll.u32 %v6767, 16
        %v6843 = vrot.slane %v6841, 5
        %v6844 = vor.u32 %v6840, %v6843
        %v6845 = vrot.slane %v6844, 4
        %v6847 = vshll.u32 %v6768, 16
        %v6849 = vrot.slane %v6847, 5
        %v6850 = vsel %vm1124, %v6845, %v6849
        %v6851 = vshrl.u32 %v6768, 16
        %v6853 = vrot.slane %v6851, 4
        %v6854 = vor.u32 %v6853, %v6849
        %v6855 = vrot.slane %v6854, 4
        %v6857 = vshll.u32 %v6798, 16
        %v6859 = vrot.slane %v6857, 5
        %v6860 = vsel %vm1124, %v6855, %v6859
        %v6862 = vshrl.u32 %v6769, 16
        %v6864 = vrot.slane %v6862, 4
        %v6865 = vshll.u32 %v6769, 16
        %v6867 = vrot.slane %v6865, 5
        %v6868 = vor.u32 %v6864, %v6867
        %v6869 = vrot.slane %v6868, 4
        %v6871 = vshll.u32 %v6770, 16
        %v6873 = vrot.slane %v6871, 5
        %v6874 = vsel %vm1124, %v6869, %v6873
        %v6875 = vshrl.u32 %v6770, 16
        %v6877 = vrot.slane %v6875, 4
        %v6878 = vor.u32 %v6877, %v6873
        %v6879 = vrot.slane %v6878, 4
        %v6881 = vshll.u32 %v6799, 16
        %v6883 = vrot.slane %v6881, 5
        %v6884 = vsel %vm1124, %v6879, %v6883
        %v6886 = vshrl.u32 %v6771, 16
        %v6888 = vrot.slane %v6886, 4
        %v6889 = vshll.u32 %v6771, 16
        %v6891 = vrot.slane %v6889, 5
        %v6892 = vor.u32 %v6888, %v6891
        %v6893 = vrot.slane %v6892, 4
        %v6895 = vshll.u32 %v6772, 16
        %v6897 = vrot.slane %v6895, 5
        %v6898 = vsel %vm1124, %v6893, %v6897
        %v6899 = vshrl.u32 %v6772, 16
        %v6901 = vrot.slane %v6899, 4
        %v6902 = vor.u32 %v6901, %v6897
        %v6903 = vrot.slane %v6902, 4
        %v6905 = vshll.u32 %v6800, 16
        %v6907 = vrot.slane %v6905, 5
        %v6908 = vsel %vm1124, %v6903, %v6907
        %v6910 = vshrl.u32 %v6773, 16
        %v6912 = vrot.slane %v6910, 4
        %v6913 = vshll.u32 %v6773, 16
        %v6915 = vrot.slane %v6913, 5
        %v6916 = vor.u32 %v6912, %v6915
        %v6917 = vrot.slane %v6916, 4
        %v6919 = vshll.u32 %v6774, 16
        %v6921 = vrot.slane %v6919, 5
        %v6922 = vsel %vm1124, %v6917, %v6921
        %v6923 = vshrl.u32 %v6774, 16
        %v6925 = vrot.slane %v6923, 4
        %v6926 = vor.u32 %v6925, %v6921
        %v6927 = vrot.slane %v6926, 4
        %v6929 = vshll.u32 %v6801, 16
        %v6931 = vrot.slane %v6929, 5
        %v6932 = vsel %vm1124, %v6927, %v6931
        %v6934 = vshrl.u32 %v6775, 16
        %v6936 = vrot.slane %v6934, 4
        %v6937 = vshll.u32 %v6775, 16
        %v6939 = vrot.slane %v6937, 5
        %v6940 = vor.u32 %v6936, %v6939
        %v6941 = vrot.slane %v6940, 4
        %v6943 = vshll.u32 %v6776, 16
        %v6945 = vrot.slane %v6943, 5
        %v6946 = vsel %vm1124, %v6941, %v6945
        %v6947 = vshrl.u32 %v6776, 16
        %v6949 = vrot.slane %v6947, 4
        %v6950 = vor.u32 %v6949, %v6945
        %v6951 = vrot.slane %v6950, 4
        %v6953 = vshll.u32 %v6802, 16
        %v6955 = vrot.slane %v6953, 5
        %v6956 = vsel %vm1124, %v6951, %v6955
        %v6958 = vshrl.u32 %v6777, 16
        %v6960 = vrot.slane %v6958, 4
        %v6961 = vshll.u32 %v6777, 16
        %v6963 = vrot.slane %v6961, 5
        %v6964 = vor.u32 %v6960, %v6963
        %v6965 = vrot.slane %v6964, 4
        %v6967 = vshll.u32 %v6778, 16
        %v6969 = vrot.slane %v6967, 5
        %v6970 = vsel %vm1124, %v6965, %v6969
        %v6971 = vshrl.u32 %v6778, 16
        %v6973 = vrot.slane %v6971, 4
        %v6974 = vor.u32 %v6973, %v6969
        %v6975 = vrot.slane %v6974, 4
        %v6977 = vshll.u32 %v6803, 16
        %v6979 = vrot.slane %v6977, 5
        %v6980 = vsel %vm1124, %v6975, %v6979
        %v6982 = vshrl.u32 %v6779, 16
        %v6984 = vrot.slane %v6982, 4
        %v6985 = vshll.u32 %v6779, 16
        %v6987 = vrot.slane %v6985, 5
        %v6988 = vor.u32 %v6984, %v6987
        %v6989 = vrot.slane %v6988, 4
        %v6991 = vshll.u32 %v6780, 16
        %v6993 = vrot.slane %v6991, 5
        %v6994 = vsel %vm1124, %v6989, %v6993
        %v6995 = vshrl.u32 %v6780, 16
        %v6997 = vrot.slane %v6995, 4
        %v6998 = vor.u32 %v6997, %v6993
        %v6999 = vrot.slane %v6998, 4
        %v7001 = vshll.u32 %v6804, 16
        %v7003 = vrot.slane %v7001, 5
        %v7004 = vsel %vm1124, %v6999, %v7003
        %v7006 = vshrl.u32 %v6781, 16
        %v7008 = vrot.slane %v7006, 4
        %v7009 = vshll.u32 %v6781, 16
        %v7011 = vrot.slane %v7009, 5
        %v7012 = vor.u32 %v7008, %v7011
        %v7013 = vrot.slane %v7012, 4
        %v7015 = vshll.u32 %v6782, 16
        %v7017 = vrot.slane %v7015, 5
        %v7018 = vsel %vm1124, %v7013, %v7017
        %v7019 = vshrl.u32 %v6782, 16
        %v7021 = vrot.slane %v7019, 4
        %v7022 = vor.u32 %v7021, %v7017
        %v7023 = vrot.slane %v7022, 4
        %v7025 = vshll.u32 %v6805, 16
        %v7027 = vrot.slane %v7025, 5
        %v7028 = vsel %vm1124, %v7023, %v7027
        %v7030 = vshrl.u32 %v6783, 16
        %v7032 = vrot.slane %v7030, 4
        %v7033 = vshll.u32 %v6783, 16
        %v7035 = vrot.slane %v7033, 5
        %v7036 = vor.u32 %v7032, %v7035
        %v7037 = vrot.slane %v7036, 4
        %v7039 = vshll.u32 %v6784, 16
        %v7041 = vrot.slane %v7039, 5
        %v7042 = vsel %vm1124, %v7037, %v7041
        %v7043 = vshrl.u32 %v6784, 16
        %v7045 = vrot.slane %v7043, 4
        %v7046 = vor.u32 %v7045, %v7041
        %v7047 = vrot.slane %v7046, 4
        %v7049 = vshll.u32 %v6806, 16
        %v7051 = vrot.slane %v7049, 5
        %v7052 = vsel %vm1124, %v7047, %v7051
        %v7054 = vshrl.u32 %v6785, 16
        %v7056 = vrot.slane %v7054, 4
        %v7057 = vshll.u32 %v6785, 16
        %v7059 = vrot.slane %v7057, 5
        %v7060 = vor.u32 %v7056, %v7059
        %v7061 = vrot.slane %v7060, 4
        %v7063 = vshll.u32 %v6786, 16
        %v7065 = vrot.slane %v7063, 5
        %v7066 = vsel %vm1124, %v7061, %v7065
        %v7067 = vshrl.u32 %v6786, 16
        %v7069 = vrot.slane %v7067, 4
        %v7070 = vor.u32 %v7069, %v7065
        %v7071 = vrot.slane %v7070, 4
        %v7073 = vshll.u32 %v6807, 16
        %v7075 = vrot.slane %v7073, 5
        %v7076 = vsel %vm1124, %v7071, %v7075
        %v7078 = vshrl.u32 %v6787, 16
        %v7080 = vrot.slane %v7078, 4
        %v7081 = vshll.u32 %v6787, 16
        %v7083 = vrot.slane %v7081, 5
        %v7084 = vor.u32 %v7080, %v7083
        %v7085 = vrot.slane %v7084, 4
        %v7087 = vshll.u32 %v6788, 16
        %v7089 = vrot.slane %v7087, 5
        %v7090 = vsel %vm1124, %v7085, %v7089
        %v7091 = vshrl.u32 %v6788, 16
        %v7093 = vrot.slane %v7091, 4
        %v7094 = vor.u32 %v7093, %v7089
        %v7095 = vrot.slane %v7094, 4
        %v7097 = vshll.u32 %v6808, 16
        %v7099 = vrot.slane %v7097, 5
        %v7100 = vsel %vm1124, %v7095, %v7099
        %v7102 = vshrl.u32 %v6789, 16
        %v7104 = vrot.slane %v7102, 4
        %v7105 = vshll.u32 %v6789, 16
        %v7107 = vrot.slane %v7105, 5
        %v7108 = vor.u32 %v7104, %v7107
        %v7109 = vrot.slane %v7108, 4
        %v7111 = vshll.u32 %v6790, 16
        %v7113 = vrot.slane %v7111, 5
        %v7114 = vsel %vm1124, %v7109, %v7113
        %v7115 = vshrl.u32 %v6790, 16
        %v7117 = vrot.slane %v7115, 4
        %v7118 = vor.u32 %v7117, %v7113
        %v7119 = vrot.slane %v7118, 4
        %v7121 = vshll.u32 %v6809, 16
        %v7123 = vrot.slane %v7121, 5
        %v7124 = vsel %vm1124, %v7119, %v7123
        %v7126 = vshrl.u32 %v6791, 16
        %v7128 = vrot.slane %v7126, 4
        %v7129 = vshll.u32 %v6791, 16
        %v7131 = vrot.slane %v7129, 5
        %v7132 = vor.u32 %v7128, %v7131
        %v7133 = vrot.slane %v7132, 4
        %v7135 = vshll.u32 %v6792, 16
        %v7137 = vrot.slane %v7135, 5
        %v7138 = vsel %vm1124, %v7133, %v7137
        %v7139 = vshrl.u32 %v6792, 16
        %v7141 = vrot.slane %v7139, 4
        %v7142 = vor.u32 %v7141, %v7137
        %v7143 = vrot.slane %v7142, 4
        %v7145 = vshll.u32 %v6810, 16
        %v7147 = vrot.slane %v7145, 5
        %v7148 = vsel %vm1124, %v7143, %v7147
        %v7150 = vshrl.u32 %v6793, 16
        %v7152 = vrot.slane %v7150, 4
        %v7153 = vshll.u32 %v6793, 16
        %v7155 = vrot.slane %v7153, 5
        %v7156 = vor.u32 %v7152, %v7155
        %v7157 = vrot.slane %v7156, 4
        %v7159 = vshll.u32 %v6794, 16
        %v7161 = vrot.slane %v7159, 5
        %v7162 = vsel %vm1124, %v7157, %v7161
        %v7163 = vshrl.u32 %v6794, 16
        %v7165 = vrot.slane %v7163, 4
        %v7166 = vor.u32 %v7165, %v7161
        %v7167 = vrot.slane %v7166, 4
        %v7169 = vshll.u32 %v6811, 16
        %v7171 = vrot.slane %v7169, 5
        %v7172 = vsel %vm1124, %v7167, %v7171
        %v7174 = vshrl.u32 %v6795, 16
        %v7176 = vrot.slane %v7174, 4
        %v7177 = vshll.u32 %v6795, 16
        %v7179 = vrot.slane %v7177, 5
        %v7180 = vor.u32 %v7176, %v7179
        %v7181 = vrot.slane %v7180, 4
        %v7183 = vshll.u32 %v6796, 16
        %v7185 = vrot.slane %v7183, 5
        %v7186 = vsel %vm1124, %v7181, %v7185
        %v7187 = vshrl.u32 %v6796, 16
        %v7189 = vrot.slane %v7187, 4
        %v7190 = vor.u32 %v7189, %v7185
        %v7191 = vrot.slane %v7190, 4
        %v7193 = vshll.u32 %v6812, 16
        %v7195 = vrot.slane %v7193, 5
        %v7196 = vsel %vm1124, %v7191, %v7195
        %v7197 = vld [vmem:[%s6764] sm:$0xe]
        %v7198 = vld [vmem:[%s6764 + $0xc] sm:$0xe]
        %v7199 = vld [vmem:[%s6764 + $0x18] sm:$0xe]
        %v7200 = vld [vmem:[%s6764 + $0x24] sm:$0xe]
        %v7201 = vld [vmem:[%s6764 + $0x30] sm:$0xe]
        %v7202 = vld [vmem:[%s6764 + $0x3c] sm:$0xe]
        %v7203 = vld [vmem:[%s6764 + $0x48] sm:$0xe]
        %v7204 = vld [vmem:[%s6764 + $0x54] sm:$0xe]
        %v7205 = vld [vmem:[%s6764 + $0x60] sm:$0xe]
        %v7206 = vld [vmem:[%s6764 + $0x6c] sm:$0xe]
        %v7207 = vld [vmem:[%s6764 + $0x78] sm:$0xe]
        %v7208 = vld [vmem:[%s6764 + $0x84] sm:$0xe]
        %v7209 = vld [vmem:[%s6764 + $0x90] sm:$0xe]
        %v7210 = vld [vmem:[%s6764 + $0x9c] sm:$0xe]
        %v7211 = vld [vmem:[%s6764 + $0xa8] sm:$0xe]
        %v7212 = vld [vmem:[%s6764 + $0xb4] sm:$0xe]
        %v7261 = vrot.slane %v7197, 5
        %v7262 = vrot.slane %v7261, 4
        %v7263 = vrot.slane %v6766, 5
        %v7264 = vsel %vm1575, %v7262, %v7263
        %v7265 = vrot.slane %v7263, 4
        %v7266 = vrot.slane %v6797, 5
        %v7267 = vsel %vm1575, %v7265, %v7266
        %v7268 = vrot.slane %v7198, 5
        %v7269 = vrot.slane %v7268, 4
        %v7270 = vrot.slane %v6768, 5
        %v7271 = vsel %vm1575, %v7269, %v7270
        %v7272 = vrot.slane %v7270, 4
        %v7273 = vrot.slane %v6798, 5
        %v7274 = vsel %vm1575, %v7272, %v7273
        %v7275 = vrot.slane %v7199, 5
        %v7276 = vrot.slane %v7275, 4
        %v7277 = vrot.slane %v6770, 5
        %v7278 = vsel %vm1575, %v7276, %v7277
        %v7279 = vrot.slane %v7277, 4
        %v7280 = vrot.slane %v6799, 5
        %v7281 = vsel %vm1575, %v7279, %v7280
        %v7282 = vrot.slane %v7200, 5
        %v7283 = vrot.slane %v7282, 4
        %v7284 = vrot.slane %v6772, 5
        %v7285 = vsel %vm1575, %v7283, %v7284
        %v7286 = vrot.slane %v7284, 4
        %v7287 = vrot.slane %v6800, 5
        %v7288 = vsel %vm1575, %v7286, %v7287
        %v7289 = vrot.slane %v7201, 5
        %v7290 = vrot.slane %v7289, 4
        %v7291 = vrot.slane %v6774, 5
        %v7292 = vsel %vm1575, %v7290, %v7291
        %v7293 = vrot.slane %v7291, 4
        %v7294 = vrot.slane %v6801, 5
        %v7295 = vsel %vm1575, %v7293, %v7294
        %v7296 = vrot.slane %v7202, 5
        %v7297 = vrot.slane %v7296, 4
        %v7298 = vrot.slane %v6776, 5
        %v7299 = vsel %vm1575, %v7297, %v7298
        %v7300 = vrot.slane %v7298, 4
        %v7301 = vrot.slane %v6802, 5
        %v7302 = vsel %vm1575, %v7300, %v7301
        %v7303 = vrot.slane %v7203, 5
        %v7304 = vrot.slane %v7303, 4
        %v7305 = vrot.slane %v6778, 5
        %v7306 = vsel %vm1575, %v7304, %v7305
        %v7307 = vrot.slane %v7305, 4
        %v7308 = vrot.slane %v6803, 5
        %v7309 = vsel %vm1575, %v7307, %v7308
        %v7310 = vrot.slane %v7204, 5
        %v7311 = vrot.slane %v7310, 4
        %v7312 = vrot.slane %v6780, 5
        %v7313 = vsel %vm1575, %v7311, %v7312
        %v7314 = vrot.slane %v7312, 4
        %v7315 = vrot.slane %v6804, 5
        %v7316 = vsel %vm1575, %v7314, %v7315
        %v7317 = vrot.slane %v7205, 5
        %v7318 = vrot.slane %v7317, 4
        %v7319 = vrot.slane %v6782, 5
        %v7320 = vsel %vm1575, %v7318, %v7319
        %v7321 = vrot.slane %v7319, 4
        %v7322 = vrot.slane %v6805, 5
        %v7323 = vsel %vm1575, %v7321, %v7322
        %v7324 = vrot.slane %v7206, 5
        %v7325 = vrot.slane %v7324, 4
        %v7326 = vrot.slane %v6784, 5
        %v7327 = vsel %vm1575, %v7325, %v7326
        %v7328 = vrot.slane %v7326, 4
        %v7329 = vrot.slane %v6806, 5
        %v7330 = vsel %vm1575, %v7328, %v7329
        %v7331 = vrot.slane %v7207, 5
        %v7332 = vrot.slane %v7331, 4
        %v7333 = vrot.slane %v6786, 5
        %v7334 = vsel %vm1575, %v7332, %v7333
        %v7335 = vrot.slane %v7333, 4
        %v7336 = vrot.slane %v6807, 5
        %v7337 = vsel %vm1575, %v7335, %v7336
        %v7338 = vrot.slane %v7208, 5
        %v7339 = vrot.slane %v7338, 4
        %v7340 = vrot.slane %v6788, 5
        %v7341 = vsel %vm1575, %v7339, %v7340
        %v7342 = vrot.slane %v7340, 4
        %v7343 = vrot.slane %v6808, 5
        %v7344 = vsel %vm1575, %v7342, %v7343
        %v7345 = vrot.slane %v7209, 5
        %v7346 = vrot.slane %v7345, 4
        %v7347 = vrot.slane %v6790, 5
        %v7348 = vsel %vm1575, %v7346, %v7347
        %v7349 = vrot.slane %v7347, 4
        %v7350 = vrot.slane %v6809, 5
        %v7351 = vsel %vm1575, %v7349, %v7350
        %v7352 = vrot.slane %v7210, 5
        %v7353 = vrot.slane %v7352, 4
        %v7354 = vrot.slane %v6792, 5
        %v7355 = vsel %vm1575, %v7353, %v7354
        %v7356 = vrot.slane %v7354, 4
        %v7357 = vrot.slane %v6810, 5
        %v7358 = vsel %vm1575, %v7356, %v7357
        %v7359 = vrot.slane %v7211, 5
        %v7360 = vrot.slane %v7359, 4
        %v7361 = vrot.slane %v6794, 5
        %v7362 = vsel %vm1575, %v7360, %v7361
        %v7363 = vrot.slane %v7361, 4
        %v7364 = vrot.slane %v6811, 5
        %v7365 = vsel %vm1575, %v7363, %v7364
        %v7366 = vrot.slane %v7212, 5
        %v7367 = vrot.slane %v7366, 4
        %v7368 = vrot.slane %v6796, 5
        %v7369 = vsel %vm1575, %v7367, %v7368
        %v7370 = vrot.slane %v7368, 4
        %v7371 = vrot.slane %v6812, 5
        %v7372 = vsel %vm1575, %v7370, %v7371
        %v7389 = vunpack.c.l.b16 %v5548
        %v7390 = vunpack.c.l.b16 %v5549
        %v7391 = vunpack.c.l.b16 %v5550
        %v7392 = vunpack.c.l.b16 %v5551
        %v7393 = vunpack.c.l.b16 %v5552
        %v7394 = vunpack.c.l.b16 %v5553
        %v7395 = vunpack.c.l.b16 %v5554
        %v7396 = vunpack.c.l.b16 %v5555
        %v7397 = vunpack.c.l.b16 %v5556
        %v7398 = vunpack.c.l.b16 %v5557
        %v7399 = vunpack.c.l.b16 %v5558
        %v7400 = vunpack.c.l.b16 %v5559
        %v7401 = vunpack.c.l.b16 %v5560
        %v7402 = vunpack.c.l.b16 %v5561
        %v7403 = vunpack.c.l.b16 %v5562
        %v7404 = vunpack.c.l.b16 %v5563
        %v7405 = vunpack.c.l.b16 %v5564
        %v7406 = vunpack.c.l.b16 %v5565
        %v7407 = vunpack.c.l.b16 %v5566
        %v7408 = vunpack.c.l.b16 %v5567
        %v7409 = vunpack.c.l.b16 %v5568
        %v7410 = vunpack.c.l.b16 %v5569
        %v7411 = vunpack.c.l.b16 %v5570
        %v7412 = vunpack.c.l.b16 %v5571
        %v7413 = vunpack.c.l.b16 %v5572
        %v7414 = vunpack.c.l.b16 %v5573
        %v7415 = vunpack.c.l.b16 %v5574
        %v7416 = vunpack.c.l.b16 %v5575
        %v7417 = vunpack.c.l.b16 %v5576
        %v7418 = vunpack.c.l.b16 %v5577
        %v7419 = vunpack.c.l.b16 %v5578
        %v7420 = vunpack.c.l.b16 %v5579
        %v7421 = vpack.c.b16 %v7390, %v7389
        %v7422 = vpack.c.b16 %v7392, %v7391
        %v7423 = vpack.c.b16 %v7394, %v7393
        %v7424 = vpack.c.b16 %v7396, %v7395
        %v7425 = vpack.c.b16 %v7398, %v7397
        %v7426 = vpack.c.b16 %v7400, %v7399
        %v7427 = vpack.c.b16 %v7402, %v7401
        %v7428 = vpack.c.b16 %v7404, %v7403
        %v7429 = vpack.c.b16 %v7406, %v7405
        %v7430 = vpack.c.b16 %v7408, %v7407
        %v7431 = vpack.c.b16 %v7410, %v7409
        %v7432 = vpack.c.b16 %v7412, %v7411
        %v7433 = vpack.c.b16 %v7414, %v7413
        %v7434 = vpack.c.b16 %v7416, %v7415
        %v7435 = vpack.c.b16 %v7418, %v7417
        %v7436 = vpack.c.b16 %v7420, %v7419
        %v7437 = vunpack.c.l.b16 %v5609
        %v7438 = vunpack.c.l.b16 %v5619
        %v7439 = vunpack.c.l.b16 %v5633
        %v7440 = vunpack.c.l.b16 %v5643
        %v7441 = vunpack.c.l.b16 %v5657
        %v7442 = vunpack.c.l.b16 %v5667
        %v7443 = vunpack.c.l.b16 %v5681
        %v7444 = vunpack.c.l.b16 %v5691
        %v7445 = vunpack.c.l.b16 %v5705
        %v7446 = vunpack.c.l.b16 %v5715
        %v7447 = vunpack.c.l.b16 %v5729
        %v7448 = vunpack.c.l.b16 %v5739
        %v7449 = vunpack.c.l.b16 %v5753
        %v7450 = vunpack.c.l.b16 %v5763
        %v7451 = vunpack.c.l.b16 %v5777
        %v7452 = vunpack.c.l.b16 %v5787
        %v7453 = vunpack.c.l.b16 %v5801
        %v7454 = vunpack.c.l.b16 %v5811
        %v7455 = vunpack.c.l.b16 %v5825
        %v7456 = vunpack.c.l.b16 %v5835
        %v7457 = vunpack.c.l.b16 %v5849
        %v7458 = vunpack.c.l.b16 %v5859
        %v7459 = vunpack.c.l.b16 %v5873
        %v7460 = vunpack.c.l.b16 %v5883
        %v7461 = vunpack.c.l.b16 %v5897
        %v7462 = vunpack.c.l.b16 %v5907
        %v7463 = vunpack.c.l.b16 %v5921
        %v7464 = vunpack.c.l.b16 %v5931
        %v7465 = vunpack.c.l.b16 %v5945
        %v7466 = vunpack.c.l.b16 %v5955
        %v7467 = vunpack.c.l.b16 %v5969
        %v7468 = vunpack.c.l.b16 %v5979
        %v7469 = vpack.c.b16 %v7438, %v7437
        %v7470 = vpack.c.b16 %v7440, %v7439
        %v7471 = vpack.c.b16 %v7442, %v7441
        %v7472 = vpack.c.b16 %v7444, %v7443
        %v7473 = vpack.c.b16 %v7446, %v7445
        %v7474 = vpack.c.b16 %v7448, %v7447
        %v7475 = vpack.c.b16 %v7450, %v7449
        %v7476 = vpack.c.b16 %v7452, %v7451
        %v7477 = vpack.c.b16 %v7454, %v7453
        %v7478 = vpack.c.b16 %v7456, %v7455
        %v7479 = vpack.c.b16 %v7458, %v7457
        %v7480 = vpack.c.b16 %v7460, %v7459
        %v7481 = vpack.c.b16 %v7462, %v7461
        %v7482 = vpack.c.b16 %v7464, %v7463
        %v7483 = vpack.c.b16 %v7466, %v7465
        %v7484 = vpack.c.b16 %v7468, %v7467
        %7485 = vrot.lane.b32.xlu0 %v7469, 64
        %v7486 = vpop.permute.xlu0 %7485
        %7487 = vrot.lane.b32.xlu0 %v7470, 64
        %v7488 = vpop.permute.xlu0 %7487
        %7489 = vrot.lane.b32.xlu0 %v7471, 64
        %v7490 = vpop.permute.xlu0 %7489
        %7491 = vrot.lane.b32.xlu0 %v7472, 64
        %v7492 = vpop.permute.xlu0 %7491
        %7493 = vrot.lane.b32.xlu0 %v7473, 64
        %v7494 = vpop.permute.xlu0 %7493
        %7495 = vrot.lane.b32.xlu0 %v7474, 64
        %v7496 = vpop.permute.xlu0 %7495
        %7497 = vrot.lane.b32.xlu0 %v7475, 64
        %v7498 = vpop.permute.xlu0 %7497
        %7499 = vrot.lane.b32.xlu0 %v7476, 64
        %v7500 = vpop.permute.xlu0 %7499
        %7501 = vrot.lane.b32.xlu0 %v7477, 64
        %v7502 = vpop.permute.xlu0 %7501
        %7503 = vrot.lane.b32.xlu0 %v7478, 64
        %v7504 = vpop.permute.xlu0 %7503
        %7505 = vrot.lane.b32.xlu0 %v7479, 64
        %v7506 = vpop.permute.xlu0 %7505
        %7507 = vrot.lane.b32.xlu0 %v7480, 64
        %v7508 = vpop.permute.xlu0 %7507
        %7509 = vrot.lane.b32.xlu0 %v7481, 64
        %v7510 = vpop.permute.xlu0 %7509
        %7511 = vrot.lane.b32.xlu0 %v7482, 64
        %v7512 = vpop.permute.xlu0 %7511
        %7513 = vrot.lane.b32.xlu0 %v7483, 64
        %v7514 = vpop.permute.xlu0 %7513
        %7515 = vrot.lane.b32.xlu0 %v7484, 64
        %v7516 = vpop.permute.xlu0 %7515
        %v7517 = vunpack.c.l.b16 %v6047
        %v7518 = vunpack.c.l.b16 %v6050
        %v7519 = vunpack.c.l.b16 %v6054
        %v7520 = vunpack.c.l.b16 %v6057
        %v7521 = vunpack.c.l.b16 %v6061
        %v7522 = vunpack.c.l.b16 %v6064
        %v7523 = vunpack.c.l.b16 %v6068
        %v7524 = vunpack.c.l.b16 %v6071
        %v7525 = vunpack.c.l.b16 %v6075
        %v7526 = vunpack.c.l.b16 %v6078
        %v7527 = vunpack.c.l.b16 %v6082
        %v7528 = vunpack.c.l.b16 %v6085
        %v7529 = vunpack.c.l.b16 %v6089
        %v7530 = vunpack.c.l.b16 %v6092
        %v7531 = vunpack.c.l.b16 %v6096
        %v7532 = vunpack.c.l.b16 %v6099
        %v7533 = vunpack.c.l.b16 %v6103
        %v7534 = vunpack.c.l.b16 %v6106
        %v7535 = vunpack.c.l.b16 %v6110
        %v7536 = vunpack.c.l.b16 %v6113
        %v7537 = vunpack.c.l.b16 %v6117
        %v7538 = vunpack.c.l.b16 %v6120
        %v7539 = vunpack.c.l.b16 %v6124
        %v7540 = vunpack.c.l.b16 %v6127
        %v7541 = vunpack.c.l.b16 %v6131
        %v7542 = vunpack.c.l.b16 %v6134
        %v7543 = vunpack.c.l.b16 %v6138
        %v7544 = vunpack.c.l.b16 %v6141
        %v7545 = vunpack.c.l.b16 %v6145
        %v7546 = vunpack.c.l.b16 %v6148
        %v7547 = vunpack.c.l.b16 %v6152
        %v7548 = vunpack.c.l.b16 %v6155
        %v7549 = vpack.c.b16 %v7518, %v7517
        %v7550 = vpack.c.b16 %v7520, %v7519
        %v7551 = vpack.c.b16 %v7522, %v7521
        %v7552 = vpack.c.b16 %v7524, %v7523
        %v7553 = vpack.c.b16 %v7526, %v7525
        %v7554 = vpack.c.b16 %v7528, %v7527
        %v7555 = vpack.c.b16 %v7530, %v7529
        %v7556 = vpack.c.b16 %v7532, %v7531
        %v7557 = vpack.c.b16 %v7534, %v7533
        %v7558 = vpack.c.b16 %v7536, %v7535
        %v7559 = vpack.c.b16 %v7538, %v7537
        %v7560 = vpack.c.b16 %v7540, %v7539
        %v7561 = vpack.c.b16 %v7542, %v7541
        %v7562 = vpack.c.b16 %v7544, %v7543
        %v7563 = vpack.c.b16 %v7546, %v7545
        %v7564 = vpack.c.b16 %v7548, %v7547
        %v7581 = vunpack.c.l.b16 %v6156
        %v7582 = vunpack.c.l.b16 %v6157
        %v7583 = vunpack.c.l.b16 %v6158
        %v7584 = vunpack.c.l.b16 %v6159
        %v7585 = vunpack.c.l.b16 %v6160
        %v7586 = vunpack.c.l.b16 %v6161
        %v7587 = vunpack.c.l.b16 %v6162
        %v7588 = vunpack.c.l.b16 %v6163
        %v7589 = vunpack.c.l.b16 %v6164
        %v7590 = vunpack.c.l.b16 %v6165
        %v7591 = vunpack.c.l.b16 %v6166
        %v7592 = vunpack.c.l.b16 %v6167
        %v7593 = vunpack.c.l.b16 %v6168
        %v7594 = vunpack.c.l.b16 %v6169
        %v7595 = vunpack.c.l.b16 %v6170
        %v7596 = vunpack.c.l.b16 %v6171
        %v7597 = vunpack.c.l.b16 %v6172
        %v7598 = vunpack.c.l.b16 %v6173
        %v7599 = vunpack.c.l.b16 %v6174
        %v7600 = vunpack.c.l.b16 %v6175
        %v7601 = vunpack.c.l.b16 %v6176
        %v7602 = vunpack.c.l.b16 %v6177
        %v7603 = vunpack.c.l.b16 %v6178
        %v7604 = vunpack.c.l.b16 %v6179
        %v7605 = vunpack.c.l.b16 %v6180
        %v7606 = vunpack.c.l.b16 %v6181
        %v7607 = vunpack.c.l.b16 %v6182
        %v7608 = vunpack.c.l.b16 %v6183
        %v7609 = vunpack.c.l.b16 %v6184
        %v7610 = vunpack.c.l.b16 %v6185
        %v7611 = vunpack.c.l.b16 %v6186
        %v7612 = vunpack.c.l.b16 %v6187
        %v7613 = vpack.c.b16 %v7582, %v7581
        %v7614 = vpack.c.b16 %v7584, %v7583
        %v7615 = vpack.c.b16 %v7586, %v7585
        %v7616 = vpack.c.b16 %v7588, %v7587
        %v7617 = vpack.c.b16 %v7590, %v7589
        %v7618 = vpack.c.b16 %v7592, %v7591
        %v7619 = vpack.c.b16 %v7594, %v7593
        %v7620 = vpack.c.b16 %v7596, %v7595
        %v7621 = vpack.c.b16 %v7598, %v7597
        %v7622 = vpack.c.b16 %v7600, %v7599
        %v7623 = vpack.c.b16 %v7602, %v7601
        %v7624 = vpack.c.b16 %v7604, %v7603
        %v7625 = vpack.c.b16 %v7606, %v7605
        %v7626 = vpack.c.b16 %v7608, %v7607
        %v7627 = vpack.c.b16 %v7610, %v7609
        %v7628 = vpack.c.b16 %v7612, %v7611
        %7629 = vrot.lane.b32.xlu0 %v7613, 64
        %v7630 = vpop.permute.xlu0 %7629
        %7631 = vrot.lane.b32.xlu0 %v7614, 64
        %v7632 = vpop.permute.xlu0 %7631
        %7633 = vrot.lane.b32.xlu0 %v7615, 64
        %v7634 = vpop.permute.xlu0 %7633
        %7635 = vrot.lane.b32.xlu0 %v7616, 64
        %v7636 = vpop.permute.xlu0 %7635
        %7637 = vrot.lane.b32.xlu0 %v7617, 64
        %v7638 = vpop.permute.xlu0 %7637
        %7639 = vrot.lane.b32.xlu0 %v7618, 64
        %v7640 = vpop.permute.xlu0 %7639
        %7641 = vrot.lane.b32.xlu0 %v7619, 64
        %v7642 = vpop.permute.xlu0 %7641
        %7643 = vrot.lane.b32.xlu0 %v7620, 64
        %v7644 = vpop.permute.xlu0 %7643
        %7645 = vrot.lane.b32.xlu0 %v7621, 64
        %v7646 = vpop.permute.xlu0 %7645
        %7647 = vrot.lane.b32.xlu0 %v7622, 64
        %v7648 = vpop.permute.xlu0 %7647
        %7649 = vrot.lane.b32.xlu0 %v7623, 64
        %v7650 = vpop.permute.xlu0 %7649
        %7651 = vrot.lane.b32.xlu0 %v7624, 64
        %v7652 = vpop.permute.xlu0 %7651
        %7653 = vrot.lane.b32.xlu0 %v7625, 64
        %v7654 = vpop.permute.xlu0 %7653
        %7655 = vrot.lane.b32.xlu0 %v7626, 64
        %v7656 = vpop.permute.xlu0 %7655
        %7657 = vrot.lane.b32.xlu0 %v7627, 64
        %v7658 = vpop.permute.xlu0 %7657
        %7659 = vrot.lane.b32.xlu0 %v7628, 64
        %v7660 = vpop.permute.xlu0 %7659
        %v7661 = vunpack.c.l.b16 %v6217
        %v7662 = vunpack.c.l.b16 %v6227
        %v7663 = vunpack.c.l.b16 %v6241
        %v7664 = vunpack.c.l.b16 %v6251
        %v7665 = vunpack.c.l.b16 %v6265
        %v7666 = vunpack.c.l.b16 %v6275
        %v7667 = vunpack.c.l.b16 %v6289
        %v7668 = vunpack.c.l.b16 %v6299
        %v7669 = vunpack.c.l.b16 %v6313
        %v7670 = vunpack.c.l.b16 %v6323
        %v7671 = vunpack.c.l.b16 %v6337
        %v7672 = vunpack.c.l.b16 %v6347
        %v7673 = vunpack.c.l.b16 %v6361
        %v7674 = vunpack.c.l.b16 %v6371
        %v7675 = vunpack.c.l.b16 %v6385
        %v7676 = vunpack.c.l.b16 %v6395
        %v7677 = vunpack.c.l.b16 %v6409
        %v7678 = vunpack.c.l.b16 %v6419
        %v7679 = vunpack.c.l.b16 %v6433
        %v7680 = vunpack.c.l.b16 %v6443
        %v7681 = vunpack.c.l.b16 %v6457
        %v7682 = vunpack.c.l.b16 %v6467
        %v7683 = vunpack.c.l.b16 %v6481
        %v7684 = vunpack.c.l.b16 %v6491
        %v7685 = vunpack.c.l.b16 %v6505
        %v7686 = vunpack.c.l.b16 %v6515
        %v7687 = vunpack.c.l.b16 %v6529
        %v7688 = vunpack.c.l.b16 %v6539
        %v7689 = vunpack.c.l.b16 %v6553
        %v7690 = vunpack.c.l.b16 %v6563
        %v7691 = vunpack.c.l.b16 %v6577
        %v7692 = vunpack.c.l.b16 %v6587
        %v7693 = vpack.c.b16 %v7662, %v7661
        %v7694 = vpack.c.b16 %v7664, %v7663
        %v7695 = vpack.c.b16 %v7666, %v7665
        %v7696 = vpack.c.b16 %v7668, %v7667
        %v7697 = vpack.c.b16 %v7670, %v7669
        %v7698 = vpack.c.b16 %v7672, %v7671
        %v7699 = vpack.c.b16 %v7674, %v7673
        %v7700 = vpack.c.b16 %v7676, %v7675
        %v7701 = vpack.c.b16 %v7678, %v7677
        %v7702 = vpack.c.b16 %v7680, %v7679
        %v7703 = vpack.c.b16 %v7682, %v7681
        %v7704 = vpack.c.b16 %v7684, %v7683
        %v7705 = vpack.c.b16 %v7686, %v7685
        %v7706 = vpack.c.b16 %v7688, %v7687
        %v7707 = vpack.c.b16 %v7690, %v7689
        %v7708 = vpack.c.b16 %v7692, %v7691
        %v7709 = vunpack.c.l.b16 %v6655
        %v7710 = vunpack.c.l.b16 %v6658
        %v7711 = vunpack.c.l.b16 %v6662
        %v7712 = vunpack.c.l.b16 %v6665
        %v7713 = vunpack.c.l.b16 %v6669
        %v7714 = vunpack.c.l.b16 %v6672
        %v7715 = vunpack.c.l.b16 %v6676
        %v7716 = vunpack.c.l.b16 %v6679
        %v7717 = vunpack.c.l.b16 %v6683
        %v7718 = vunpack.c.l.b16 %v6686
        %v7719 = vunpack.c.l.b16 %v6690
        %v7720 = vunpack.c.l.b16 %v6693
        %v7721 = vunpack.c.l.b16 %v6697
        %v7722 = vunpack.c.l.b16 %v6700
        %v7723 = vunpack.c.l.b16 %v6704
        %v7724 = vunpack.c.l.b16 %v6707
        %v7725 = vunpack.c.l.b16 %v6711
        %v7726 = vunpack.c.l.b16 %v6714
        %v7727 = vunpack.c.l.b16 %v6718
        %v7728 = vunpack.c.l.b16 %v6721
        %v7729 = vunpack.c.l.b16 %v6725
        %v7730 = vunpack.c.l.b16 %v6728
        %v7731 = vunpack.c.l.b16 %v6732
        %v7732 = vunpack.c.l.b16 %v6735
        %v7733 = vunpack.c.l.b16 %v6739
        %v7734 = vunpack.c.l.b16 %v6742
        %v7735 = vunpack.c.l.b16 %v6746
        %v7736 = vunpack.c.l.b16 %v6749
        %v7737 = vunpack.c.l.b16 %v6753
        %v7738 = vunpack.c.l.b16 %v6756
        %v7739 = vunpack.c.l.b16 %v6760
        %v7740 = vunpack.c.l.b16 %v6763
        %v7741 = vpack.c.b16 %v7710, %v7709
        %v7742 = vpack.c.b16 %v7712, %v7711
        %v7743 = vpack.c.b16 %v7714, %v7713
        %v7744 = vpack.c.b16 %v7716, %v7715
        %v7745 = vpack.c.b16 %v7718, %v7717
        %v7746 = vpack.c.b16 %v7720, %v7719
        %v7747 = vpack.c.b16 %v7722, %v7721
        %v7748 = vpack.c.b16 %v7724, %v7723
        %v7749 = vpack.c.b16 %v7726, %v7725
        %v7750 = vpack.c.b16 %v7728, %v7727
        %v7751 = vpack.c.b16 %v7730, %v7729
        %v7752 = vpack.c.b16 %v7732, %v7731
        %v7753 = vpack.c.b16 %v7734, %v7733
        %v7754 = vpack.c.b16 %v7736, %v7735
        %v7755 = vpack.c.b16 %v7738, %v7737
        %v7756 = vpack.c.b16 %v7740, %v7739
        %7757 = vrot.lane.b32.xlu0 %v7741, 64
        %v7758 = vpop.permute.xlu0 %7757
        %7759 = vrot.lane.b32.xlu0 %v7742, 64
        %v7760 = vpop.permute.xlu0 %7759
        %7761 = vrot.lane.b32.xlu0 %v7743, 64
        %v7762 = vpop.permute.xlu0 %7761
        %7763 = vrot.lane.b32.xlu0 %v7744, 64
        %v7764 = vpop.permute.xlu0 %7763
        %7765 = vrot.lane.b32.xlu0 %v7745, 64
        %v7766 = vpop.permute.xlu0 %7765
        %7767 = vrot.lane.b32.xlu0 %v7746, 64
        %v7768 = vpop.permute.xlu0 %7767
        %7769 = vrot.lane.b32.xlu0 %v7747, 64
        %v7770 = vpop.permute.xlu0 %7769
        %7771 = vrot.lane.b32.xlu0 %v7748, 64
        %v7772 = vpop.permute.xlu0 %7771
        %7773 = vrot.lane.b32.xlu0 %v7749, 64
        %v7774 = vpop.permute.xlu0 %7773
        %7775 = vrot.lane.b32.xlu0 %v7750, 64
        %v7776 = vpop.permute.xlu0 %7775
        %7777 = vrot.lane.b32.xlu0 %v7751, 64
        %v7778 = vpop.permute.xlu0 %7777
        %7779 = vrot.lane.b32.xlu0 %v7752, 64
        %v7780 = vpop.permute.xlu0 %7779
        %7781 = vrot.lane.b32.xlu0 %v7753, 64
        %v7782 = vpop.permute.xlu0 %7781
        %7783 = vrot.lane.b32.xlu0 %v7754, 64
        %v7784 = vpop.permute.xlu0 %7783
        %7785 = vrot.lane.b32.xlu0 %v7755, 64
        %v7786 = vpop.permute.xlu0 %7785
        %7787 = vrot.lane.b32.xlu0 %v7756, 64
        %v7788 = vpop.permute.xlu0 %7787
        %v7805 = vunpack.c.l.b16 %v6765
        %v7806 = vunpack.c.l.b16 %v6766
        %v7807 = vunpack.c.l.b16 %v6767
        %v7808 = vunpack.c.l.b16 %v6768
        %v7809 = vunpack.c.l.b16 %v6769
        %v7810 = vunpack.c.l.b16 %v6770
        %v7811 = vunpack.c.l.b16 %v6771
        %v7812 = vunpack.c.l.b16 %v6772
        %v7813 = vunpack.c.l.b16 %v6773
        %v7814 = vunpack.c.l.b16 %v6774
        %v7815 = vunpack.c.l.b16 %v6775
        %v7816 = vunpack.c.l.b16 %v6776
        %v7817 = vunpack.c.l.b16 %v6777
        %v7818 = vunpack.c.l.b16 %v6778
        %v7819 = vunpack.c.l.b16 %v6779
        %v7820 = vunpack.c.l.b16 %v6780
        %v7821 = vunpack.c.l.b16 %v6781
        %v7822 = vunpack.c.l.b16 %v6782
        %v7823 = vunpack.c.l.b16 %v6783
        %v7824 = vunpack.c.l.b16 %v6784
        %v7825 = vunpack.c.l.b16 %v6785
        %v7826 = vunpack.c.l.b16 %v6786
        %v7827 = vunpack.c.l.b16 %v6787
        %v7828 = vunpack.c.l.b16 %v6788
        %v7829 = vunpack.c.l.b16 %v6789
        %v7830 = vunpack.c.l.b16 %v6790
        %v7831 = vunpack.c.l.b16 %v6791
        %v7832 = vunpack.c.l.b16 %v6792
        %v7833 = vunpack.c.l.b16 %v6793
        %v7834 = vunpack.c.l.b16 %v6794
        %v7835 = vunpack.c.l.b16 %v6795
        %v7836 = vunpack.c.l.b16 %v6796
        %v7837 = vpack.c.b16 %v7806, %v7805
        %v7838 = vpack.c.b16 %v7808, %v7807
        %v7839 = vpack.c.b16 %v7810, %v7809
        %v7840 = vpack.c.b16 %v7812, %v7811
        %v7841 = vpack.c.b16 %v7814, %v7813
        %v7842 = vpack.c.b16 %v7816, %v7815
        %v7843 = vpack.c.b16 %v7818, %v7817
        %v7844 = vpack.c.b16 %v7820, %v7819
        %v7845 = vpack.c.b16 %v7822, %v7821
        %v7846 = vpack.c.b16 %v7824, %v7823
        %v7847 = vpack.c.b16 %v7826, %v7825
        %v7848 = vpack.c.b16 %v7828, %v7827
        %v7849 = vpack.c.b16 %v7830, %v7829
        %v7850 = vpack.c.b16 %v7832, %v7831
        %v7851 = vpack.c.b16 %v7834, %v7833
        %v7852 = vpack.c.b16 %v7836, %v7835
        %v7853 = vunpack.c.l.b16 %v6826
        %v7854 = vunpack.c.l.b16 %v6836
        %v7855 = vunpack.c.l.b16 %v6850
        %v7856 = vunpack.c.l.b16 %v6860
        %v7857 = vunpack.c.l.b16 %v6874
        %v7858 = vunpack.c.l.b16 %v6884
        %v7859 = vunpack.c.l.b16 %v6898
        %v7860 = vunpack.c.l.b16 %v6908
        %v7861 = vunpack.c.l.b16 %v6922
        %v7862 = vunpack.c.l.b16 %v6932
        %v7863 = vunpack.c.l.b16 %v6946
        %v7864 = vunpack.c.l.b16 %v6956
        %v7865 = vunpack.c.l.b16 %v6970
        %v7866 = vunpack.c.l.b16 %v6980
        %v7867 = vunpack.c.l.b16 %v6994
        %v7868 = vunpack.c.l.b16 %v7004
        %v7869 = vunpack.c.l.b16 %v7018
        %v7870 = vunpack.c.l.b16 %v7028
        %v7871 = vunpack.c.l.b16 %v7042
        %v7872 = vunpack.c.l.b16 %v7052
        %v7873 = vunpack.c.l.b16 %v7066
        %v7874 = vunpack.c.l.b16 %v7076
        %v7875 = vunpack.c.l.b16 %v7090
        %v7876 = vunpack.c.l.b16 %v7100
        %v7877 = vunpack.c.l.b16 %v7114
        %v7878 = vunpack.c.l.b16 %v7124
        %v7879 = vunpack.c.l.b16 %v7138
        %v7880 = vunpack.c.l.b16 %v7148
        %v7881 = vunpack.c.l.b16 %v7162
        %v7882 = vunpack.c.l.b16 %v7172
        %v7883 = vunpack.c.l.b16 %v7186
        %v7884 = vunpack.c.l.b16 %v7196
        %v7885 = vpack.c.b16 %v7854, %v7853
        %v7886 = vpack.c.b16 %v7856, %v7855
        %v7887 = vpack.c.b16 %v7858, %v7857
        %v7888 = vpack.c.b16 %v7860, %v7859
        %v7889 = vpack.c.b16 %v7862, %v7861
        %v7890 = vpack.c.b16 %v7864, %v7863
        %v7891 = vpack.c.b16 %v7866, %v7865
        %v7892 = vpack.c.b16 %v7868, %v7867
        %v7893 = vpack.c.b16 %v7870, %v7869
        %v7894 = vpack.c.b16 %v7872, %v7871
        %v7895 = vpack.c.b16 %v7874, %v7873
        %v7896 = vpack.c.b16 %v7876, %v7875
        %v7897 = vpack.c.b16 %v7878, %v7877
        %v7898 = vpack.c.b16 %v7880, %v7879
        %v7899 = vpack.c.b16 %v7882, %v7881
        %v7900 = vpack.c.b16 %v7884, %v7883
        %7901 = vrot.lane.b32.xlu0 %v7885, 64
        %v7902 = vpop.permute.xlu0 %7901
        %7903 = vrot.lane.b32.xlu0 %v7886, 64
        %v7904 = vpop.permute.xlu0 %7903
        %7905 = vrot.lane.b32.xlu0 %v7887, 64
        %v7906 = vpop.permute.xlu0 %7905
        %7907 = vrot.lane.b32.xlu0 %v7888, 64
        %v7908 = vpop.permute.xlu0 %7907
        %7909 = vrot.lane.b32.xlu0 %v7889, 64
        %v7910 = vpop.permute.xlu0 %7909
        %7911 = vrot.lane.b32.xlu0 %v7890, 64
        %v7912 = vpop.permute.xlu0 %7911
        %7913 = vrot.lane.b32.xlu0 %v7891, 64
        %v7914 = vpop.permute.xlu0 %7913
        %7915 = vrot.lane.b32.xlu0 %v7892, 64
        %v7916 = vpop.permute.xlu0 %7915
        %7917 = vrot.lane.b32.xlu0 %v7893, 64
        %v7918 = vpop.permute.xlu0 %7917
        %7919 = vrot.lane.b32.xlu0 %v7894, 64
        %v7920 = vpop.permute.xlu0 %7919
        %7921 = vrot.lane.b32.xlu0 %v7895, 64
        %v7922 = vpop.permute.xlu0 %7921
        %7923 = vrot.lane.b32.xlu0 %v7896, 64
        %v7924 = vpop.permute.xlu0 %7923
        %7925 = vrot.lane.b32.xlu0 %v7897, 64
        %v7926 = vpop.permute.xlu0 %7925
        %7927 = vrot.lane.b32.xlu0 %v7898, 64
        %v7928 = vpop.permute.xlu0 %7927
        %7929 = vrot.lane.b32.xlu0 %v7899, 64
        %v7930 = vpop.permute.xlu0 %7929
        %7931 = vrot.lane.b32.xlu0 %v7900, 64
        %v7932 = vpop.permute.xlu0 %7931
        %v7933 = vunpack.c.l.b16 %v7264
        %v7934 = vunpack.c.l.b16 %v7267
        %v7935 = vunpack.c.l.b16 %v7271
        %v7936 = vunpack.c.l.b16 %v7274
        %v7937 = vunpack.c.l.b16 %v7278
        %v7938 = vunpack.c.l.b16 %v7281
        %v7939 = vunpack.c.l.b16 %v7285
        %v7940 = vunpack.c.l.b16 %v7288
        %v7941 = vunpack.c.l.b16 %v7292
        %v7942 = vunpack.c.l.b16 %v7295
        %v7943 = vunpack.c.l.b16 %v7299
        %v7944 = vunpack.c.l.b16 %v7302
        %v7945 = vunpack.c.l.b16 %v7306
        %v7946 = vunpack.c.l.b16 %v7309
        %v7947 = vunpack.c.l.b16 %v7313
        %v7948 = vunpack.c.l.b16 %v7316
        %v7949 = vunpack.c.l.b16 %v7320
        %v7950 = vunpack.c.l.b16 %v7323
        %v7951 = vunpack.c.l.b16 %v7327
        %v7952 = vunpack.c.l.b16 %v7330
        %v7953 = vunpack.c.l.b16 %v7334
        %v7954 = vunpack.c.l.b16 %v7337
        %v7955 = vunpack.c.l.b16 %v7341
        %v7956 = vunpack.c.l.b16 %v7344
        %v7957 = vunpack.c.l.b16 %v7348
        %v7958 = vunpack.c.l.b16 %v7351
        %v7959 = vunpack.c.l.b16 %v7355
        %v7960 = vunpack.c.l.b16 %v7358
        %v7961 = vunpack.c.l.b16 %v7362
        %v7962 = vunpack.c.l.b16 %v7365
        %v7963 = vunpack.c.l.b16 %v7369
        %v7964 = vunpack.c.l.b16 %v7372
        %v7965 = vpack.c.b16 %v7934, %v7933
        %v7966 = vpack.c.b16 %v7936, %v7935
        %v7967 = vpack.c.b16 %v7938, %v7937
        %v7968 = vpack.c.b16 %v7940, %v7939
        %v7969 = vpack.c.b16 %v7942, %v7941
        %v7970 = vpack.c.b16 %v7944, %v7943
        %v7971 = vpack.c.b16 %v7946, %v7945
        %v7972 = vpack.c.b16 %v7948, %v7947
        %v7973 = vpack.c.b16 %v7950, %v7949
        %v7974 = vpack.c.b16 %v7952, %v7951
        %v7975 = vpack.c.b16 %v7954, %v7953
        %v7976 = vpack.c.b16 %v7956, %v7955
        %v7977 = vpack.c.b16 %v7958, %v7957
        %v7978 = vpack.c.b16 %v7960, %v7959
        %v7979 = vpack.c.b16 %v7962, %v7961
        %v7980 = vpack.c.b16 %v7964, %v7963
        %v7983 = vsel %vm3626, %v7421, %v7486
        %v7987 = vsel %vm3626, %v7422, %v7488
        %v7991 = vsel %vm3626, %v7423, %v7490
        %v7995 = vsel %vm3626, %v7424, %v7492
        %v7999 = vsel %vm3626, %v7425, %v7494
        %v8003 = vsel %vm3626, %v7426, %v7496
        %v8007 = vsel %vm3626, %v7427, %v7498
        %v8011 = vsel %vm3626, %v7428, %v7500
        %v8015 = vsel %vm3626, %v7429, %v7502
        %v8019 = vsel %vm3626, %v7430, %v7504
        %v8023 = vsel %vm3626, %v7431, %v7506
        %v8027 = vsel %vm3626, %v7432, %v7508
        %v8031 = vsel %vm3626, %v7433, %v7510
        %v8035 = vsel %vm3626, %v7434, %v7512
        %v8039 = vsel %vm3626, %v7435, %v7514
        %v8043 = vsel %vm3626, %v7436, %v7516
        %v8047 = vsel %vm3626, %v7549, %v7630
        %v8051 = vsel %vm3626, %v7550, %v7632
        %v8055 = vsel %vm3626, %v7551, %v7634
        %v8059 = vsel %vm3626, %v7552, %v7636
        %v8063 = vsel %vm3626, %v7553, %v7638
        %v8067 = vsel %vm3626, %v7554, %v7640
        %v8071 = vsel %vm3626, %v7555, %v7642
        %v8075 = vsel %vm3626, %v7556, %v7644
        %v8079 = vsel %vm3626, %v7557, %v7646
        %v8083 = vsel %vm3626, %v7558, %v7648
        %v8087 = vsel %vm3626, %v7559, %v7650
        %v8091 = vsel %vm3626, %v7560, %v7652
        %v8095 = vsel %vm3626, %v7561, %v7654
        %v8099 = vsel %vm3626, %v7562, %v7656
        %v8103 = vsel %vm3626, %v7563, %v7658
        %v8107 = vsel %vm3626, %v7564, %v7660
        %v8111 = vsel %vm3626, %v7693, %v7758
        %v8115 = vsel %vm3626, %v7694, %v7760
        %v8119 = vsel %vm3626, %v7695, %v7762
        %v8123 = vsel %vm3626, %v7696, %v7764
        %v8127 = vsel %vm3626, %v7697, %v7766
        %v8131 = vsel %vm3626, %v7698, %v7768
        %v8135 = vsel %vm3626, %v7699, %v7770
        %v8139 = vsel %vm3626, %v7700, %v7772
        %v8143 = vsel %vm3626, %v7701, %v7774
        %v8147 = vsel %vm3626, %v7702, %v7776
        %v8151 = vsel %vm3626, %v7703, %v7778
        %v8155 = vsel %vm3626, %v7704, %v7780
        %v8159 = vsel %vm3626, %v7705, %v7782
        %v8163 = vsel %vm3626, %v7706, %v7784
        %v8167 = vsel %vm3626, %v7707, %v7786
        %v8171 = vsel %vm3626, %v7708, %v7788
        %v8175 = vsel %vm3626, %v7837, %v7902
        %v8179 = vsel %vm3626, %v7838, %v7904
        %v8183 = vsel %vm3626, %v7839, %v7906
        %v8187 = vsel %vm3626, %v7840, %v7908
        %v8191 = vsel %vm3626, %v7841, %v7910
        %v8195 = vsel %vm3626, %v7842, %v7912
        %v8199 = vsel %vm3626, %v7843, %v7914
        %v8203 = vsel %vm3626, %v7844, %v7916
        %v8207 = vsel %vm3626, %v7845, %v7918
        %v8211 = vsel %vm3626, %v7846, %v7920
        %v8215 = vsel %vm3626, %v7847, %v7922
        %v8219 = vsel %vm3626, %v7848, %v7924
        %v8223 = vsel %vm3626, %v7849, %v7926
        %v8227 = vsel %vm3626, %v7850, %v7928
        %v8231 = vsel %vm3626, %v7851, %v7930
        %v8235 = vsel %vm3626, %v7852, %v7932
        %v8237 = vld [vmem:[%s7] sm:$0xf]
        %v8238 = vld [vmem:[%s7 + $0x4] sm:$0xf]
        %v8239 = vld [vmem:[%s7 + $0x8] sm:$0xf]
        %v8240 = vld [vmem:[%s7 + $0xc] sm:$0xf]
        %v8241 = vld [vmem:[%s7 + $0x10] sm:$0xf]
        %v8242 = vld [vmem:[%s7 + $0x14] sm:$0xf]
        %v8243 = vld [vmem:[%s7 + $0x18] sm:$0xf]
        %v8244 = vld [vmem:[%s7 + $0x1c] sm:$0xf]
        %v8245 = vld [vmem:[%s7 + $0x20] sm:$0xf]
        %v8246 = vld [vmem:[%s7 + $0x24] sm:$0xf]
        %v8247 = vld [vmem:[%s7 + $0x28] sm:$0xf]
        %v8248 = vld [vmem:[%s7 + $0x2c] sm:$0xf]
        %v8249 = vld [vmem:[%s7 + $0x30] sm:$0xf]
        %v8250 = vld [vmem:[%s7 + $0x34] sm:$0xf]
        %v8251 = vld [vmem:[%s7 + $0x38] sm:$0xf]
        %v8252 = vld [vmem:[%s7 + $0x3c] sm:$0xf]
        %v8253 = vld [vmem:[%s7 + $0x40] sm:$0xf]
        %v8254 = vld [vmem:[%s7 + $0x44] sm:$0xf]
        %v8255 = vld [vmem:[%s7 + $0x48] sm:$0xf]
        %v8256 = vld [vmem:[%s7 + $0x4c] sm:$0xf]
        %v8257 = vld [vmem:[%s7 + $0x50] sm:$0xf]
        %v8258 = vld [vmem:[%s7 + $0x54] sm:$0xf]
        %v8259 = vld [vmem:[%s7 + $0x58] sm:$0xf]
        %v8260 = vld [vmem:[%s7 + $0x5c] sm:$0xf]
        %v8261 = vld [vmem:[%s7 + $0x60] sm:$0xf]
        %v8262 = vld [vmem:[%s7 + $0x64] sm:$0xf]
        %v8263 = vld [vmem:[%s7 + $0x68] sm:$0xf]
        %v8264 = vld [vmem:[%s7 + $0x6c] sm:$0xf]
        %v8265 = vld [vmem:[%s7 + $0x70] sm:$0xf]
        %v8266 = vld [vmem:[%s7 + $0x74] sm:$0xf]
        %v8267 = vld [vmem:[%s7 + $0x78] sm:$0xf]
        %v8268 = vld [vmem:[%s7 + $0x7c] sm:$0xf]
        %v8269 = vld [vmem:[%s7 + $0x80] sm:$0xf]
        %v8270 = vld [vmem:[%s7 + $0x84] sm:$0xf]
        %v8271 = vld [vmem:[%s7 + $0x88] sm:$0xf]
        %v8272 = vld [vmem:[%s7 + $0x8c] sm:$0xf]
        %v8273 = vld [vmem:[%s7 + $0x90] sm:$0xf]
        %v8274 = vld [vmem:[%s7 + $0x94] sm:$0xf]
        %v8275 = vld [vmem:[%s7 + $0x98] sm:$0xf]
        %v8276 = vld [vmem:[%s7 + $0x9c] sm:$0xf]
        %v8277 = vld [vmem:[%s7 + $0xa0] sm:$0xf]
        %v8278 = vld [vmem:[%s7 + $0xa4] sm:$0xf]
        %v8279 = vld [vmem:[%s7 + $0xa8] sm:$0xf]
        %v8280 = vld [vmem:[%s7 + $0xac] sm:$0xf]
        %v8281 = vld [vmem:[%s7 + $0xb0] sm:$0xf]
        %v8282 = vld [vmem:[%s7 + $0xb4] sm:$0xf]
        %v8283 = vld [vmem:[%s7 + $0xb8] sm:$0xf]
        %v8284 = vld [vmem:[%s7 + $0xbc] sm:$0xf]
        %v8285 = vld [vmem:[%s7 + $0xc0] sm:$0xf]
        %v8286 = vld [vmem:[%s7 + $0xc4] sm:$0xf]
        %v8287 = vld [vmem:[%s7 + $0xc8] sm:$0xf]
        %v8288 = vld [vmem:[%s7 + $0xcc] sm:$0xf]
        %v8289 = vld [vmem:[%s7 + $0xd0] sm:$0xf]
        %v8290 = vld [vmem:[%s7 + $0xd4] sm:$0xf]
        %v8291 = vld [vmem:[%s7 + $0xd8] sm:$0xf]
        %v8292 = vld [vmem:[%s7 + $0xdc] sm:$0xf]
        %v8293 = vld [vmem:[%s7 + $0xe0] sm:$0xf]
        %v8294 = vld [vmem:[%s7 + $0xe4] sm:$0xf]
        %v8295 = vld [vmem:[%s7 + $0xe8] sm:$0xf]
        %v8296 = vld [vmem:[%s7 + $0xec] sm:$0xf]
        %v8297 = vld [vmem:[%s7 + $0xf0] sm:$0xf]
        %v8298 = vld [vmem:[%s7 + $0xf4] sm:$0xf]
        %v8299 = vld [vmem:[%s7 + $0xf8] sm:$0xf]
        %v8300 = vld [vmem:[%s7 + $0xfc] sm:$0xf]
        %v8301 = vld [vmem:[%s7 + $0x100] sm:$0xf]
        %v8302 = vld [vmem:[%s7 + $0x104] sm:$0xf]
        %v8303 = vld [vmem:[%s7 + $0x108] sm:$0xf]
        %v8304 = vld [vmem:[%s7 + $0x10c] sm:$0xf]
        %v8305 = vld [vmem:[%s7 + $0x110] sm:$0xf]
        %v8306 = vld [vmem:[%s7 + $0x114] sm:$0xf]
        %v8307 = vld [vmem:[%s7 + $0x118] sm:$0xf]
        %v8308 = vld [vmem:[%s7 + $0x11c] sm:$0xf]
        %v8309 = vld [vmem:[%s8] sm:$0x1]
        %v8311 = vlaneseq
        %v8312 = vshrl.u32 %v8311, 7
        %v8313 = vsub.s32 0, %v8312
        %v8314 = vrot.slane %v8309, %v8313
        %v8388 = vunpack.c.l.b16 %v8237
        %v8389 = vunpack.c.l.b16 %v8238
        %v8390 = vunpack.c.l.b16 %v8239
        %v8391 = vunpack.c.l.b16 %v8240
        %v8392 = vunpack.c.l.b16 %v8241
        %v8393 = vunpack.c.l.b16 %v8242
        %v8394 = vunpack.c.l.b16 %v8243
        %v8395 = vunpack.c.l.b16 %v8244
        %v8396 = vunpack.c.l.b16 %v8245
        %v8397 = vunpack.c.l.b16 %v8246
        %v8398 = vunpack.c.l.b16 %v8247
        %v8399 = vunpack.c.l.b16 %v8248
        %v8400 = vunpack.c.l.b16 %v8249
        %v8401 = vunpack.c.l.b16 %v8250
        %v8402 = vunpack.c.l.b16 %v8251
        %v8403 = vunpack.c.l.b16 %v8252
        %v8404 = vunpack.c.l.b16 %v8253
        %v8405 = vunpack.c.l.b16 %v8254
        %v8406 = vunpack.c.l.b16 %v8255
        %v8407 = vunpack.c.l.b16 %v8256
        %v8408 = vunpack.c.l.b16 %v8257
        %v8409 = vunpack.c.l.b16 %v8258
        %v8410 = vunpack.c.l.b16 %v8259
        %v8411 = vunpack.c.l.b16 %v8260
        %v8412 = vunpack.c.l.b16 %v8261
        %v8413 = vunpack.c.l.b16 %v8262
        %v8414 = vunpack.c.l.b16 %v8263
        %v8415 = vunpack.c.l.b16 %v8264
        %v8416 = vunpack.c.l.b16 %v8265
        %v8417 = vunpack.c.l.b16 %v8266
        %v8418 = vunpack.c.l.b16 %v8267
        %v8419 = vunpack.c.l.b16 %v8268
        %v8420 = vunpack.c.l.b16 %v8269
        %v8421 = vunpack.c.l.b16 %v8270
        %v8422 = vunpack.c.l.b16 %v8271
        %v8423 = vunpack.c.l.b16 %v8272
        %v8424 = vunpack.c.l.b16 %v8273
        %v8425 = vunpack.c.l.b16 %v8274
        %v8426 = vunpack.c.l.b16 %v8275
        %v8427 = vunpack.c.l.b16 %v8276
        %v8428 = vunpack.c.l.b16 %v8277
        %v8429 = vunpack.c.l.b16 %v8278
        %v8430 = vunpack.c.l.b16 %v8279
        %v8431 = vunpack.c.l.b16 %v8280
        %v8432 = vunpack.c.l.b16 %v8281
        %v8433 = vunpack.c.l.b16 %v8282
        %v8434 = vunpack.c.l.b16 %v8283
        %v8435 = vunpack.c.l.b16 %v8284
        %v8436 = vunpack.c.l.b16 %v8285
        %v8437 = vunpack.c.l.b16 %v8286
        %v8438 = vunpack.c.l.b16 %v8287
        %v8439 = vunpack.c.l.b16 %v8288
        %v8440 = vunpack.c.l.b16 %v8289
        %v8441 = vunpack.c.l.b16 %v8290
        %v8442 = vunpack.c.l.b16 %v8291
        %v8443 = vunpack.c.l.b16 %v8292
        %v8444 = vunpack.c.l.b16 %v8293
        %v8445 = vunpack.c.l.b16 %v8294
        %v8446 = vunpack.c.l.b16 %v8295
        %v8447 = vunpack.c.l.b16 %v8296
        %v8448 = vunpack.c.l.b16 %v8297
        %v8449 = vunpack.c.l.b16 %v8298
        %v8450 = vunpack.c.l.b16 %v8299
        %v8451 = vunpack.c.l.b16 %v8300
        %v8452 = vunpack.c.l.b16 %v8301
        %v8453 = vunpack.c.l.b16 %v8302
        %v8454 = vunpack.c.l.b16 %v8303
        %v8455 = vunpack.c.l.b16 %v8304
        %v8456 = vunpack.c.l.b16 %v8305
        %v8457 = vunpack.c.l.b16 %v8306
        %v8458 = vunpack.c.l.b16 %v8307
        %v8459 = vunpack.c.l.b16 %v8308
        %v8460 = vpack.c.b16 %v8389, %v8388
        %v8461 = vpack.c.b16 %v8391, %v8390
        %v8462 = vpack.c.b16 %v8393, %v8392
        %v8463 = vpack.c.b16 %v8395, %v8394
        %v8464 = vpack.c.b16 %v8397, %v8396
        %v8465 = vpack.c.b16 %v8399, %v8398
        %v8466 = vpack.c.b16 %v8401, %v8400
        %v8467 = vpack.c.b16 %v8403, %v8402
        %v8468 = vpack.c.b16 %v8405, %v8404
        %v8469 = vpack.c.b16 %v8407, %v8406
        %v8470 = vpack.c.b16 %v8409, %v8408
        %v8471 = vpack.c.b16 %v8411, %v8410
        %v8472 = vpack.c.b16 %v8413, %v8412
        %v8473 = vpack.c.b16 %v8415, %v8414
        %v8474 = vpack.c.b16 %v8417, %v8416
        %v8475 = vpack.c.b16 %v8419, %v8418
        %v8476 = vpack.c.b16 %v8421, %v8420
        %v8477 = vpack.c.b16 %v8423, %v8422
        %v8478 = vpack.c.b16 %v8425, %v8424
        %v8479 = vpack.c.b16 %v8427, %v8426
        %v8480 = vpack.c.b16 %v8429, %v8428
        %v8481 = vpack.c.b16 %v8431, %v8430
        %v8482 = vpack.c.b16 %v8433, %v8432
        %v8483 = vpack.c.b16 %v8435, %v8434
        %v8484 = vpack.c.b16 %v8437, %v8436
        %v8485 = vpack.c.b16 %v8439, %v8438
        %v8486 = vpack.c.b16 %v8441, %v8440
        %v8487 = vpack.c.b16 %v8443, %v8442
        %v8488 = vpack.c.b16 %v8445, %v8444
        %v8489 = vpack.c.b16 %v8447, %v8446
        %v8490 = vpack.c.b16 %v8449, %v8448
        %v8491 = vpack.c.b16 %v8451, %v8450
        %v8492 = vpack.c.b16 %v8453, %v8452
        %v8493 = vpack.c.b16 %v8455, %v8454
        %v8494 = vpack.c.b16 %v8457, %v8456
        %v8495 = vpack.c.b16 %v8459, %v8458
        %v8533 = vsel %vm3626, %v7965, 0
        %v8536 = vsel %vm3626, %v7966, 0
        %v8539 = vsel %vm3626, %v7967, 0
        %v8542 = vsel %vm3626, %v7968, 0
        %v8545 = vsel %vm3626, %v7969, 0
        %v8548 = vsel %vm3626, %v7970, 0
        %v8551 = vsel %vm3626, %v7971, 0
        %v8554 = vsel %vm3626, %v7972, 0
        %v8557 = vsel %vm3626, %v7973, 0
        %v8560 = vsel %vm3626, %v7974, 0
        %v8563 = vsel %vm3626, %v7975, 0
        %v8566 = vsel %vm3626, %v7976, 0
        %v8569 = vsel %vm3626, %v7977, 0
        %v8572 = vsel %vm3626, %v7978, 0
        %v8575 = vsel %vm3626, %v7979, 0
        %v8578 = vsel %vm3626, %v7980, 0
        %8580 = vmatprep.subr.bf16.mxu0 0
        %8581 = vmatpush1.bf16.msra.mxu0 %v8460
        %8582 = vmatprep.subr.bf16.mxu0 0
        %8583 = vmatpush1.bf16.msra.mxu0 %v8461
        %8584 = vmatprep.subr.bf16.mxu0 0
        %8585 = vmatpush1.bf16.msra.mxu0 %v8462
        %8586 = vmatprep.subr.bf16.mxu0 0
        %8587 = vmatpush1.bf16.msra.mxu0 %v8463
        %8588 = vmatprep.subr.bf16.mxu0 0
        %8589 = vmatpush1.bf16.msra.mxu0 %v8464
        %8590 = vmatprep.subr.bf16.mxu0 0
        %8591 = vmatpush1.bf16.msra.mxu0 %v8465
        %8592 = vmatprep.subr.bf16.mxu0 0
        %8593 = vmatpush1.bf16.msra.mxu0 %v8466
        %8594 = vmatprep.subr.bf16.mxu0 0
        %8595 = vmatpush1.bf16.msra.mxu0 %v8467
        %8596 = vmatprep.subr.bf16.mxu0 0
        %8597 = vmatpush1.bf16.msra.mxu0 %v8468
        %8598 = vmatprep.subr.bf16.mxu0 0
        %8599 = vmatpush1.bf16.msra.mxu0 %v8469
        %8600 = vmatprep.subr.bf16.mxu0 0
        %8601 = vmatpush1.bf16.msra.mxu0 %v8470
        %8602 = vmatprep.subr.bf16.mxu0 0
        %8603 = vmatpush1.bf16.msra.mxu0 %v8471
        %8604 = vmatprep.subr.bf16.mxu0 0
        %8605 = vmatpush1.bf16.msra.mxu0 %v8472
        %8606 = vmatprep.subr.bf16.mxu0 0
        %8607 = vmatpush1.bf16.msra.mxu0 %v8473
        %8608 = vmatprep.subr.bf16.mxu0 0
        %8609 = vmatpush1.bf16.msra.mxu0 %v8474
        %8610 = vmatprep.subr.bf16.mxu0 0
        %8611 = vmatpush1.bf16.msra.mxu0 %v8475
        %8612 = vmatprep.mubr.bf16.mxu0 %v8047
        %8613 = vmatmul.mubr.bf16.gmra.mrb[0].mxu0 %v7983
        %v8614 = vpop.f32.mrb[0].mxu0
        %v8615 = vadd.f32 %v8314, %v8614
        %v8616 = vpop.f32.mrb[0].mxu0
        %v8617 = vpop.f32.mrb[0].mxu0
        %v8618 = vadd.f32 %v8314, %v8617
        %v8619 = vpop.f32.mrb[0].mxu0
        %8620 = vmatprep.mubr.bf16.mxu0 %v8051
        %8621 = vmatmul.mubr.bf16.gmra.mrb[0].mxu0 %v7987
        %v8622 = vpop.f32.mrb[0].mxu0
        %v8623 = vadd.f32 %v8314, %v8622
        %v8624 = vpop.f32.mrb[0].mxu0
        %v8625 = vpop.f32.mrb[0].mxu0
        %v8626 = vadd.f32 %v8314, %v8625
        %v8627 = vpop.f32.mrb[0].mxu0
        %8628 = vmatprep.mubr.bf16.mxu0 %v8055
        %8629 = vmatmul.mubr.bf16.gmra.mrb[0].mxu0 %v7991
        %v8630 = vpop.f32.mrb[0].mxu0
        %v8631 = vadd.f32 %v8314, %v8630
        %v8632 = vpop.f32.mrb[0].mxu0
        %v8633 = vpop.f32.mrb[0].mxu0
        %v8634 = vadd.f32 %v8314, %v8633
        %v8635 = vpop.f32.mrb[0].mxu0
        %8636 = vmatprep.mubr.bf16.mxu0 %v8059
        %8637 = vmatmul.mubr.bf16.gmra.mrb[0].mxu0 %v7995
        %v8638 = vpop.f32.mrb[0].mxu0
        %v8639 = vadd.f32 %v8314, %v8638
        %v8640 = vpop.f32.mrb[0].mxu0
        %v8641 = vpop.f32.mrb[0].mxu0
        %v8642 = vadd.f32 %v8314, %v8641
        %v8643 = vpop.f32.mrb[0].mxu0
        %8644 = vmatprep.mubr.bf16.mxu0 %v8063
        %8645 = vmatmul.mubr.bf16.gmra.mrb[0].mxu0 %v7999
        %v8646 = vpop.f32.mrb[0].mxu0
        %v8647 = vadd.f32 %v8314, %v8646
        %v8648 = vpop.f32.mrb[0].mxu0
        %v8649 = vpop.f32.mrb[0].mxu0
        %v8650 = vadd.f32 %v8314, %v8649
        %v8651 = vpop.f32.mrb[0].mxu0
        %8652 = vmatprep.mubr.bf16.mxu0 %v8067
        %8653 = vmatmul.mubr.bf16.gmra.mrb[0].mxu0 %v8003
        %v8654 = vpop.f32.mrb[0].mxu0
        %v8655 = vadd.f32 %v8314, %v8654
        %v8656 = vpop.f32.mrb[0].mxu0
        %v8657 = vpop.f32.mrb[0].mxu0
        %v8658 = vadd.f32 %v8314, %v8657
        %v8659 = vpop.f32.mrb[0].mxu0
        %8660 = vmatprep.mubr.bf16.mxu0 %v8071
        %8661 = vmatmul.mubr.bf16.gmra.mrb[0].mxu0 %v8007
        %v8662 = vpop.f32.mrb[0].mxu0
        %v8663 = vadd.f32 %v8314, %v8662
        %v8664 = vpop.f32.mrb[0].mxu0
        %v8665 = vpop.f32.mrb[0].mxu0
        %v8666 = vadd.f32 %v8314, %v8665
        %v8667 = vpop.f32.mrb[0].mxu0
        %8668 = vmatprep.mubr.bf16.mxu0 %v8075
        %8669 = vmatmul.mubr.bf16.gmra.mrb[0].mxu0 %v8011
        %v8670 = vpop.f32.mrb[0].mxu0
        %v8671 = vadd.f32 %v8314, %v8670
        %v8672 = vpop.f32.mrb[0].mxu0
        %v8673 = vpop.f32.mrb[0].mxu0
        %v8674 = vadd.f32 %v8314, %v8673
        %v8675 = vpop.f32.mrb[0].mxu0
        %8676 = vmatprep.mubr.bf16.mxu0 %v8079
        %8677 = vmatmul.mubr.bf16.gmra.mrb[0].mxu0 %v8015
        %v8678 = vpop.f32.mrb[0].mxu0
        %v8679 = vadd.f32 %v8314, %v8678
        %v8680 = vpop.f32.mrb[0].mxu0
        %v8681 = vpop.f32.mrb[0].mxu0
        %v8682 = vadd.f32 %v8314, %v8681
        %v8683 = vpop.f32.mrb[0].mxu0
        %8684 = vmatprep.mubr.bf16.mxu0 %v8083
        %8685 = vmatmul.mubr.bf16.gmra.mrb[0].mxu0 %v8019
        %v8686 = vpop.f32.mrb[0].mxu0
        %v8687 = vadd.f32 %v8314, %v8686
        %v8688 = vpop.f32.mrb[0].mxu0
        %v8689 = vpop.f32.mrb[0].mxu0
        %v8690 = vadd.f32 %v8314, %v8689
        %v8691 = vpop.f32.mrb[0].mxu0
        %8692 = vmatprep.mubr.bf16.mxu0 %v8087
        %8693 = vmatmul.mubr.bf16.gmra.mrb[0].mxu0 %v8023
        %v8694 = vpop.f32.mrb[0].mxu0
        %v8695 = vadd.f32 %v8314, %v8694
        %v8696 = vpop.f32.mrb[0].mxu0
        %v8697 = vpop.f32.mrb[0].mxu0
        %v8698 = vadd.f32 %v8314, %v8697
        %v8699 = vpop.f32.mrb[0].mxu0
        %8700 = vmatprep.mubr.bf16.mxu0 %v8091
        %8701 = vmatmul.mubr.bf16.gmra.mrb[0].mxu0 %v8027
        %v8702 = vpop.f32.mrb[0].mxu0
        %v8703 = vadd.f32 %v8314, %v8702
        %v8704 = vpop.f32.mrb[0].mxu0
        %v8705 = vpop.f32.mrb[0].mxu0
        %v8706 = vadd.f32 %v8314, %v8705
        %v8707 = vpop.f32.mrb[0].mxu0
        %8708 = vmatprep.mubr.bf16.mxu0 %v8095
        %8709 = vmatmul.mubr.bf16.gmra.mrb[0].mxu0 %v8031
        %v8710 = vpop.f32.mrb[0].mxu0
        %v8711 = vadd.f32 %v8314, %v8710
        %v8712 = vpop.f32.mrb[0].mxu0
        %v8713 = vpop.f32.mrb[0].mxu0
        %v8714 = vadd.f32 %v8314, %v8713
        %v8715 = vpop.f32.mrb[0].mxu0
        %8716 = vmatprep.mubr.bf16.mxu0 %v8099
        %8717 = vmatmul.mubr.bf16.gmra.mrb[0].mxu0 %v8035
        %v8718 = vpop.f32.mrb[0].mxu0
        %v8719 = vadd.f32 %v8314, %v8718
        %v8720 = vpop.f32.mrb[0].mxu0
        %v8721 = vpop.f32.mrb[0].mxu0
        %v8722 = vadd.f32 %v8314, %v8721
        %v8723 = vpop.f32.mrb[0].mxu0
        %8724 = vmatprep.mubr.bf16.mxu0 %v8103
        %8725 = vmatmul.mubr.bf16.gmra.mrb[0].mxu0 %v8039
        %v8726 = vpop.f32.mrb[0].mxu0
        %v8727 = vadd.f32 %v8314, %v8726
        %v8728 = vpop.f32.mrb[0].mxu0
        %v8729 = vpop.f32.mrb[0].mxu0
        %v8730 = vadd.f32 %v8314, %v8729
        %v8731 = vpop.f32.mrb[0].mxu0
        %8732 = vmatprep.mubr.bf16.mxu0 %v8107
        %8733 = vmatmul.mubr.bf16.gmra.mrb[0].mxu0 %v8043
        %v8734 = vpop.f32.mrb[0].mxu0
        %v8735 = vadd.f32 %v8314, %v8734
        %v8736 = vpop.f32.mrb[0].mxu0
        %v8737 = vpop.f32.mrb[0].mxu0
        %v8738 = vadd.f32 %v8314, %v8737
        %v8739 = vpop.f32.mrb[0].mxu0
        %8740 = vdwg.mxu0
        %8741 = vmatprep.subr.bf16.mxu0 0
        %8742 = vmatpush1.bf16.msra.mxu0 %v8476
        %8743 = vmatprep.subr.bf16.mxu0 0
        %8744 = vmatpush1.bf16.msra.mxu0 %v8477
        %8745 = vmatprep.subr.bf16.mxu0 0
        %8746 = vmatpush1.bf16.msra.mxu0 %v8478
        %8747 = vmatprep.subr.bf16.mxu0 0
        %8748 = vmatpush1.bf16.msra.mxu0 %v8479
        %8749 = vmatprep.subr.bf16.mxu0 0
        %8750 = vmatpush1.bf16.msra.mxu0 %v8480
        %8751 = vmatprep.subr.bf16.mxu0 0
        %8752 = vmatpush1.bf16.msra.mxu0 %v8481
        %8753 = vmatprep.subr.bf16.mxu0 0
        %8754 = vmatpush1.bf16.msra.mxu0 %v8482
        %8755 = vmatprep.subr.bf16.mxu0 0
        %8756 = vmatpush1.bf16.msra.mxu0 %v8483
        %8757 = vmatprep.subr.bf16.mxu0 0
        %8758 = vmatpush1.bf16.msra.mxu0 %v8484
        %8759 = vmatprep.subr.bf16.mxu0 0
        %8760 = vmatpush1.bf16.msra.mxu0 %v8485
        %8761 = vmatprep.subr.bf16.mxu0 0
        %8762 = vmatpush1.bf16.msra.mxu0 %v8486
        %8763 = vmatprep.subr.bf16.mxu0 0
        %8764 = vmatpush1.bf16.msra.mxu0 %v8487
        %8765 = vmatprep.subr.bf16.mxu0 0
        %8766 = vmatpush1.bf16.msra.mxu0 %v8488
        %8767 = vmatprep.subr.bf16.mxu0 0
        %8768 = vmatpush1.bf16.msra.mxu0 %v8489
        %8769 = vmatprep.subr.bf16.mxu0 0
        %8770 = vmatpush1.bf16.msra.mxu0 %v8490
        %8771 = vmatprep.subr.bf16.mxu0 0
        %8772 = vmatpush1.bf16.msra.mxu0 %v8491
        %8773 = vmatprep.mubr.bf16.mxu0 %v8175
        %8774 = vmatmul.mubr.bf16.gmra.mrb[0].mxu0 %v8111
        %v8775 = vpop.f32.mrb[0].mxu0
        %v8776 = vadd.f32 %v8615, %v8775
        %v8777 = vpop.f32.mrb[0].mxu0
        %v8778 = vpop.f32.mrb[0].mxu0
        %v8779 = vadd.f32 %v8618, %v8778
        %v8780 = vpop.f32.mrb[0].mxu0
        %8781 = vmatprep.mubr.bf16.mxu0 %v8179
        %8782 = vmatmul.mubr.bf16.gmra.mrb[0].mxu0 %v8115
        %v8783 = vpop.f32.mrb[0].mxu0
        %v8784 = vadd.f32 %v8623, %v8783
        %v8785 = vpop.f32.mrb[0].mxu0
        %v8786 = vpop.f32.mrb[0].mxu0
        %v8787 = vadd.f32 %v8626, %v8786
        %v8788 = vpop.f32.mrb[0].mxu0
        %8789 = vmatprep.mubr.bf16.mxu0 %v8183
        %8790 = vmatmul.mubr.bf16.gmra.mrb[0].mxu0 %v8119
        %v8791 = vpop.f32.mrb[0].mxu0
        %v8792 = vadd.f32 %v8631, %v8791
        %v8793 = vpop.f32.mrb[0].mxu0
        %v8794 = vpop.f32.mrb[0].mxu0
        %v8795 = vadd.f32 %v8634, %v8794
        %v8796 = vpop.f32.mrb[0].mxu0
        %8797 = vmatprep.mubr.bf16.mxu0 %v8187
        %8798 = vmatmul.mubr.bf16.gmra.mrb[0].mxu0 %v8123
        %v8799 = vpop.f32.mrb[0].mxu0
        %v8800 = vadd.f32 %v8639, %v8799
        %v8801 = vpop.f32.mrb[0].mxu0
        %v8802 = vpop.f32.mrb[0].mxu0
        %v8803 = vadd.f32 %v8642, %v8802
        %v8804 = vpop.f32.mrb[0].mxu0
        %8805 = vmatprep.mubr.bf16.mxu0 %v8191
        %8806 = vmatmul.mubr.bf16.gmra.mrb[0].mxu0 %v8127
        %v8807 = vpop.f32.mrb[0].mxu0
        %v8808 = vadd.f32 %v8647, %v8807
        %v8809 = vpop.f32.mrb[0].mxu0
        %v8810 = vpop.f32.mrb[0].mxu0
        %v8811 = vadd.f32 %v8650, %v8810
        %v8812 = vpop.f32.mrb[0].mxu0
        %8813 = vmatprep.mubr.bf16.mxu0 %v8195
        %8814 = vmatmul.mubr.bf16.gmra.mrb[0].mxu0 %v8131
        %v8815 = vpop.f32.mrb[0].mxu0
        %v8816 = vadd.f32 %v8655, %v8815
        %v8817 = vpop.f32.mrb[0].mxu0
        %v8818 = vpop.f32.mrb[0].mxu0
        %v8819 = vadd.f32 %v8658, %v8818
        %v8820 = vpop.f32.mrb[0].mxu0
        %8821 = vmatprep.mubr.bf16.mxu0 %v8199
        %8822 = vmatmul.mubr.bf16.gmra.mrb[0].mxu0 %v8135
        %v8823 = vpop.f32.mrb[0].mxu0
        %v8824 = vadd.f32 %v8663, %v8823
        %v8825 = vpop.f32.mrb[0].mxu0
        %v8826 = vpop.f32.mrb[0].mxu0
        %v8827 = vadd.f32 %v8666, %v8826
        %v8828 = vpop.f32.mrb[0].mxu0
        %8829 = vmatprep.mubr.bf16.mxu0 %v8203
        %8830 = vmatmul.mubr.bf16.gmra.mrb[0].mxu0 %v8139
        %v8831 = vpop.f32.mrb[0].mxu0
        %v8832 = vadd.f32 %v8671, %v8831
        %v8833 = vpop.f32.mrb[0].mxu0
        %v8834 = vpop.f32.mrb[0].mxu0
        %v8835 = vadd.f32 %v8674, %v8834
        %v8836 = vpop.f32.mrb[0].mxu0
        %8837 = vmatprep.mubr.bf16.mxu0 %v8207
        %8838 = vmatmul.mubr.bf16.gmra.mrb[0].mxu0 %v8143
        %v8839 = vpop.f32.mrb[0].mxu0
        %v8840 = vadd.f32 %v8679, %v8839
        %v8841 = vpop.f32.mrb[0].mxu0
        %v8842 = vpop.f32.mrb[0].mxu0
        %v8843 = vadd.f32 %v8682, %v8842
        %v8844 = vpop.f32.mrb[0].mxu0
        %8845 = vmatprep.mubr.bf16.mxu0 %v8211
        %8846 = vmatmul.mubr.bf16.gmra.mrb[0].mxu0 %v8147
        %v8847 = vpop.f32.mrb[0].mxu0
        %v8848 = vadd.f32 %v8687, %v8847
        %v8849 = vpop.f32.mrb[0].mxu0
        %v8850 = vpop.f32.mrb[0].mxu0
        %v8851 = vadd.f32 %v8690, %v8850
        %v8852 = vpop.f32.mrb[0].mxu0
        %8853 = vmatprep.mubr.bf16.mxu0 %v8215
        %8854 = vmatmul.mubr.bf16.gmra.mrb[0].mxu0 %v8151
        %v8855 = vpop.f32.mrb[0].mxu0
        %v8856 = vadd.f32 %v8695, %v8855
        %v8857 = vpop.f32.mrb[0].mxu0
        %v8858 = vpop.f32.mrb[0].mxu0
        %v8859 = vadd.f32 %v8698, %v8858
        %v8860 = vpop.f32.mrb[0].mxu0
        %8861 = vmatprep.mubr.bf16.mxu0 %v8219
        %8862 = vmatmul.mubr.bf16.gmra.mrb[0].mxu0 %v8155
        %v8863 = vpop.f32.mrb[0].mxu0
        %v8864 = vadd.f32 %v8703, %v8863
        %v8865 = vpop.f32.mrb[0].mxu0
        %v8866 = vpop.f32.mrb[0].mxu0
        %v8867 = vadd.f32 %v8706, %v8866
        %v8868 = vpop.f32.mrb[0].mxu0
        %8869 = vmatprep.mubr.bf16.mxu0 %v8223
        %8870 = vmatmul.mubr.bf16.gmra.mrb[0].mxu0 %v8159
        %v8871 = vpop.f32.mrb[0].mxu0
        %v8872 = vadd.f32 %v8711, %v8871
        %v8873 = vpop.f32.mrb[0].mxu0
        %v8874 = vpop.f32.mrb[0].mxu0
        %v8875 = vadd.f32 %v8714, %v8874
        %v8876 = vpop.f32.mrb[0].mxu0
        %8877 = vmatprep.mubr.bf16.mxu0 %v8227
        %8878 = vmatmul.mubr.bf16.gmra.mrb[0].mxu0 %v8163
        %v8879 = vpop.f32.mrb[0].mxu0
        %v8880 = vadd.f32 %v8719, %v8879
        %v8881 = vpop.f32.mrb[0].mxu0
        %v8882 = vpop.f32.mrb[0].mxu0
        %v8883 = vadd.f32 %v8722, %v8882
        %v8884 = vpop.f32.mrb[0].mxu0
        %8885 = vmatprep.mubr.bf16.mxu0 %v8231
        %8886 = vmatmul.mubr.bf16.gmra.mrb[0].mxu0 %v8167
        %v8887 = vpop.f32.mrb[0].mxu0
        %v8888 = vadd.f32 %v8727, %v8887
        %v8889 = vpop.f32.mrb[0].mxu0
        %v8890 = vpop.f32.mrb[0].mxu0
        %v8891 = vadd.f32 %v8730, %v8890
        %v8892 = vpop.f32.mrb[0].mxu0
        %8893 = vmatprep.mubr.bf16.mxu0 %v8235
        %8894 = vmatmul.mubr.bf16.gmra.mrb[0].mxu0 %v8171
        %v8895 = vpop.f32.mrb[0].mxu0
        %v8896 = vadd.f32 %v8735, %v8895
        %v8897 = vpop.f32.mrb[0].mxu0
        %v8898 = vpop.f32.mrb[0].mxu0
        %v8899 = vadd.f32 %v8738, %v8898
        %v8900 = vpop.f32.mrb[0].mxu0
        %8901 = vdwg.mxu0
        %8902 = vmatprep.subr.bf16.mxu0 0
        %8903 = vmatpush1.bf16.msra.mxu0 %v8492
        %8904 = vmatprep.subr.bf16.mxu0 0
        %8905 = vmatpush1.bf16.msra.mxu0 %v8493
        %8906 = vmatprep.subr.bf16.mxu0 0
        %8907 = vmatpush1.bf16.msra.mxu0 %v8494
        %8908 = vmatprep.subr.bf16.mxu0 0
        %8909 = vmatpush1.bf16.msra.mxu0 %v8495
        %8910 = vmatprep.subr.bf16.mxu0 0
        %8911 = vmatpush1.bf16.msra.mxu0 0
        %8912 = vmatprep.subr.bf16.mxu0 0
        %8913 = vmatpush1.bf16.msra.mxu0 0
        %8914 = vmatprep.subr.bf16.mxu0 0
        %8915 = vmatpush1.bf16.msra.mxu0 0
        %8916 = vmatprep.subr.bf16.mxu0 0
        %8917 = vmatpush1.bf16.msra.mxu0 0
        %8918 = vmatprep.subr.bf16.mxu0 0
        %8919 = vmatpush1.bf16.msra.mxu0 0
        %8920 = vmatprep.subr.bf16.mxu0 0
        %8921 = vmatpush1.bf16.msra.mxu0 0
        %8922 = vmatprep.subr.bf16.mxu0 0
        %8923 = vmatpush1.bf16.msra.mxu0 0
        %8924 = vmatprep.subr.bf16.mxu0 0
        %8925 = vmatpush1.bf16.msra.mxu0 0
        %8926 = vmatprep.subr.bf16.mxu0 0
        %8927 = vmatpush1.bf16.msra.mxu0 0
        %8928 = vmatprep.subr.bf16.mxu0 0
        %8929 = vmatpush1.bf16.msra.mxu0 0
        %8930 = vmatprep.subr.bf16.mxu0 0
        %8931 = vmatpush1.bf16.msra.mxu0 0
        %8932 = vmatprep.subr.bf16.mxu0 0
        %8933 = vmatpush1.bf16.msra.mxu0 0
        %8934 = vmatprep.mubr.bf16.mxu0 0
        %8935 = vmatmul.mubr.bf16.gmra.mrb[0].mxu0 %v8533
        %v8936 = vpop.f32.mrb[0].mxu0
        %v8937 = vadd.f32 %v8776, %v8936
        %v8938 = vpop.f32.mrb[0].mxu0
        %v8939 = vpop.f32.mrb[0].mxu0
        %v8940 = vadd.f32 %v8779, %v8939
        %v8941 = vpop.f32.mrb[0].mxu0
        %8942 = vmatprep.mubr.bf16.mxu0 0
        %8943 = vmatmul.mubr.bf16.gmra.mrb[0].mxu0 %v8536
        %v8944 = vpop.f32.mrb[0].mxu0
        %v8945 = vadd.f32 %v8784, %v8944
        %v8946 = vpop.f32.mrb[0].mxu0
        %v8947 = vpop.f32.mrb[0].mxu0
        %v8948 = vadd.f32 %v8787, %v8947
        %v8949 = vpop.f32.mrb[0].mxu0
        %8950 = vmatprep.mubr.bf16.mxu0 0
        %8951 = vmatmul.mubr.bf16.gmra.mrb[0].mxu0 %v8539
        %v8952 = vpop.f32.mrb[0].mxu0
        %v8953 = vadd.f32 %v8792, %v8952
        %v8954 = vpop.f32.mrb[0].mxu0
        %v8955 = vpop.f32.mrb[0].mxu0
        %v8956 = vadd.f32 %v8795, %v8955
        %v8957 = vpop.f32.mrb[0].mxu0
        %8958 = vmatprep.mubr.bf16.mxu0 0
        %8959 = vmatmul.mubr.bf16.gmra.mrb[0].mxu0 %v8542
        %v8960 = vpop.f32.mrb[0].mxu0
        %v8961 = vadd.f32 %v8800, %v8960
        %v8962 = vpop.f32.mrb[0].mxu0
        %v8963 = vpop.f32.mrb[0].mxu0
        %v8964 = vadd.f32 %v8803, %v8963
        %v8965 = vpop.f32.mrb[0].mxu0
        %8966 = vmatprep.mubr.bf16.mxu0 0
        %8967 = vmatmul.mubr.bf16.gmra.mrb[0].mxu0 %v8545
        %v8968 = vpop.f32.mrb[0].mxu0
        %v8969 = vadd.f32 %v8808, %v8968
        %v8970 = vpop.f32.mrb[0].mxu0
        %v8971 = vpop.f32.mrb[0].mxu0
        %v8972 = vadd.f32 %v8811, %v8971
        %v8973 = vpop.f32.mrb[0].mxu0
        %8974 = vmatprep.mubr.bf16.mxu0 0
        %8975 = vmatmul.mubr.bf16.gmra.mrb[0].mxu0 %v8548
        %v8976 = vpop.f32.mrb[0].mxu0
        %v8977 = vadd.f32 %v8816, %v8976
        %v8978 = vpop.f32.mrb[0].mxu0
        %v8979 = vpop.f32.mrb[0].mxu0
        %v8980 = vadd.f32 %v8819, %v8979
        %v8981 = vpop.f32.mrb[0].mxu0
        %8982 = vmatprep.mubr.bf16.mxu0 0
        %8983 = vmatmul.mubr.bf16.gmra.mrb[0].mxu0 %v8551
        %v8984 = vpop.f32.mrb[0].mxu0
        %v8985 = vadd.f32 %v8824, %v8984
        %v8986 = vpop.f32.mrb[0].mxu0
        %v8987 = vpop.f32.mrb[0].mxu0
        %v8988 = vadd.f32 %v8827, %v8987
        %v8989 = vpop.f32.mrb[0].mxu0
        %8990 = vmatprep.mubr.bf16.mxu0 0
        %8991 = vmatmul.mubr.bf16.gmra.mrb[0].mxu0 %v8554
        %v8992 = vpop.f32.mrb[0].mxu0
        %v8993 = vadd.f32 %v8832, %v8992
        %v8994 = vpop.f32.mrb[0].mxu0
        %v8995 = vpop.f32.mrb[0].mxu0
        %v8996 = vadd.f32 %v8835, %v8995
        %v8997 = vpop.f32.mrb[0].mxu0
        %8998 = vmatprep.mubr.bf16.mxu0 0
        %8999 = vmatmul.mubr.bf16.gmra.mrb[0].mxu0 %v8557
        %v9000 = vpop.f32.mrb[0].mxu0
        %v9001 = vadd.f32 %v8840, %v9000
        %v9002 = vpop.f32.mrb[0].mxu0
        %v9003 = vpop.f32.mrb[0].mxu0
        %v9004 = vadd.f32 %v8843, %v9003
        %v9005 = vpop.f32.mrb[0].mxu0
        %9006 = vmatprep.mubr.bf16.mxu0 0
        %9007 = vmatmul.mubr.bf16.gmra.mrb[0].mxu0 %v8560
        %v9008 = vpop.f32.mrb[0].mxu0
        %v9009 = vadd.f32 %v8848, %v9008
        %v9010 = vpop.f32.mrb[0].mxu0
        %v9011 = vpop.f32.mrb[0].mxu0
        %v9012 = vadd.f32 %v8851, %v9011
        %v9013 = vpop.f32.mrb[0].mxu0
        %9014 = vmatprep.mubr.bf16.mxu0 0
        %9015 = vmatmul.mubr.bf16.gmra.mrb[0].mxu0 %v8563
        %v9016 = vpop.f32.mrb[0].mxu0
        %v9017 = vadd.f32 %v8856, %v9016
        %v9018 = vpop.f32.mrb[0].mxu0
        %v9019 = vpop.f32.mrb[0].mxu0
        %v9020 = vadd.f32 %v8859, %v9019
        %v9021 = vpop.f32.mrb[0].mxu0
        %9022 = vmatprep.mubr.bf16.mxu0 0
        %9023 = vmatmul.mubr.bf16.gmra.mrb[0].mxu0 %v8566
        %v9024 = vpop.f32.mrb[0].mxu0
        %v9025 = vadd.f32 %v8864, %v9024
        %v9026 = vpop.f32.mrb[0].mxu0
        %v9027 = vpop.f32.mrb[0].mxu0
        %v9028 = vadd.f32 %v8867, %v9027
        %v9029 = vpop.f32.mrb[0].mxu0
        %9030 = vmatprep.mubr.bf16.mxu0 0
        %9031 = vmatmul.mubr.bf16.gmra.mrb[0].mxu0 %v8569
        %v9032 = vpop.f32.mrb[0].mxu0
        %v9033 = vadd.f32 %v8872, %v9032
        %v9034 = vpop.f32.mrb[0].mxu0
        %v9035 = vpop.f32.mrb[0].mxu0
        %v9036 = vadd.f32 %v8875, %v9035
        %v9037 = vpop.f32.mrb[0].mxu0
        %9038 = vmatprep.mubr.bf16.mxu0 0
        %9039 = vmatmul.mubr.bf16.gmra.mrb[0].mxu0 %v8572
        %v9040 = vpop.f32.mrb[0].mxu0
        %v9041 = vadd.f32 %v8880, %v9040
        %v9042 = vpop.f32.mrb[0].mxu0
        %v9043 = vpop.f32.mrb[0].mxu0
        %v9044 = vadd.f32 %v8883, %v9043
        %v9045 = vpop.f32.mrb[0].mxu0
        %9046 = vmatprep.mubr.bf16.mxu0 0
        %9047 = vmatmul.mubr.bf16.gmra.mrb[0].mxu0 %v8575
        %v9048 = vpop.f32.mrb[0].mxu0
        %v9049 = vadd.f32 %v8888, %v9048
        %v9050 = vpop.f32.mrb[0].mxu0
        %v9051 = vpop.f32.mrb[0].mxu0
        %v9052 = vadd.f32 %v8891, %v9051
        %v9053 = vpop.f32.mrb[0].mxu0
        %9054 = vmatprep.mubr.bf16.mxu0 0
        %9055 = vmatmul.mubr.bf16.gmra.mrb[0].mxu0 %v8578
        %v9056 = vpop.f32.mrb[0].mxu0
        %v9057 = vadd.f32 %v8896, %v9056
        %v9058 = vpop.f32.mrb[0].mxu0
        %v9059 = vpop.f32.mrb[0].mxu0
        %v9060 = vadd.f32 %v8899, %v9059
        %v9061 = vpop.f32.mrb[0].mxu0
        %9062 = vdwg.mxu0
        %v9063 = vsel %vm3626, %v8937, 0.0
        %v9064 = vsel %vm3626, %v8940, 0.0
        %v9065 = vadd.f32 %v9063, %v9064
        %v9066 = vsel %vm3626, %v8945, 0.0
        %v9067 = vadd.f32 %v9065, %v9066
        %v9068 = vsel %vm3626, %v8948, 0.0
        %v9069 = vadd.f32 %v9067, %v9068
        %v9070 = vsel %vm3626, %v8953, 0.0
        %v9071 = vadd.f32 %v9069, %v9070
        %v9072 = vsel %vm3626, %v8956, 0.0
        %v9073 = vadd.f32 %v9071, %v9072
        %v9074 = vsel %vm3626, %v8961, 0.0
        %v9075 = vadd.f32 %v9073, %v9074
        %v9076 = vsel %vm3626, %v8964, 0.0
        %v9077 = vadd.f32 %v9075, %v9076
        %v9078 = vsel %vm3626, %v8969, 0.0
        %v9079 = vadd.f32 %v9077, %v9078
        %v9080 = vsel %vm3626, %v8972, 0.0
        %v9081 = vadd.f32 %v9079, %v9080
        %v9082 = vsel %vm3626, %v8977, 0.0
        %v9083 = vadd.f32 %v9081, %v9082
        %v9084 = vsel %vm3626, %v8980, 0.0
        %v9085 = vadd.f32 %v9083, %v9084
        %v9086 = vsel %vm3626, %v8985, 0.0
        %v9087 = vadd.f32 %v9085, %v9086
        %v9088 = vsel %vm3626, %v8988, 0.0
        %v9089 = vadd.f32 %v9087, %v9088
        %v9090 = vsel %vm3626, %v8993, 0.0
        %v9091 = vadd.f32 %v9089, %v9090
        %v9092 = vsel %vm3626, %v8996, 0.0
        %v9093 = vadd.f32 %v9091, %v9092
        %v9094 = vsel %vm3626, %v9001, 0.0
        %v9095 = vadd.f32 %v9093, %v9094
        %v9096 = vsel %vm3626, %v9004, 0.0
        %v9097 = vadd.f32 %v9095, %v9096
        %v9098 = vsel %vm3626, %v9009, 0.0
        %v9099 = vadd.f32 %v9097, %v9098
        %v9100 = vsel %vm3626, %v9012, 0.0
        %v9101 = vadd.f32 %v9099, %v9100
        %v9102 = vsel %vm3626, %v9017, 0.0
        %v9103 = vadd.f32 %v9101, %v9102
        %v9104 = vsel %vm3626, %v9020, 0.0
        %v9105 = vadd.f32 %v9103, %v9104
        %v9106 = vsel %vm3626, %v9025, 0.0
        %v9107 = vadd.f32 %v9105, %v9106
        %v9108 = vsel %vm3626, %v9028, 0.0
        %v9109 = vadd.f32 %v9107, %v9108
        %v9110 = vsel %vm3626, %v9033, 0.0
        %v9111 = vadd.f32 %v9109, %v9110
        %v9112 = vsel %vm3626, %v9036, 0.0
        %v9113 = vadd.f32 %v9111, %v9112
        %v9114 = vsel %vm3626, %v9041, 0.0
        %v9115 = vadd.f32 %v9113, %v9114
        %v9116 = vsel %vm3626, %v9044, 0.0
        %v9117 = vadd.f32 %v9115, %v9116
        %v9118 = vsel %vm3626, %v9049, 0.0
        %v9119 = vadd.f32 %v9117, %v9118
        %v9120 = vsel %vm3626, %v9052, 0.0
        %v9121 = vadd.f32 %v9119, %v9120
        %v9122 = vsel %vm3626, %v9057, 0.0
        %v9123 = vadd.f32 %v9121, %v9122
        %v9124 = vsel %vm3626, %v9060, 0.0
        %v9125 = vadd.f32 %v9123, %v9124
        %v9126 = vrot.slane %v9125, 4
        %v9127 = vadd.f32 %v9125, %v9126
        %v9128 = vrot.slane %v9127, 2
        %v9129 = vadd.f32 %v9127, %v9128
        %v9130 = vrot.slane %v9129, 1
        %v9131 = vadd.f32 %v9129, %v9130
        %v9132 = vmul.f32 %v8937, %v8937
        %v9133 = vmul.f32 %v8940, %v8940
        %v9134 = vmul.f32 %v8945, %v8945
        %v9135 = vmul.f32 %v8948, %v8948
        %v9136 = vmul.f32 %v8953, %v8953
        %v9137 = vmul.f32 %v8956, %v8956
        %v9138 = vmul.f32 %v8961, %v8961
        %v9139 = vmul.f32 %v8964, %v8964
        %v9140 = vmul.f32 %v8969, %v8969
        %v9141 = vmul.f32 %v8972, %v8972
        %v9142 = vmul.f32 %v8977, %v8977
        %v9143 = vmul.f32 %v8980, %v8980
        %v9144 = vmul.f32 %v8985, %v8985
        %v9145 = vmul.f32 %v8988, %v8988
        %v9146 = vmul.f32 %v8993, %v8993
        %v9147 = vmul.f32 %v8996, %v8996
        %v9148 = vmul.f32 %v9001, %v9001
        %v9149 = vmul.f32 %v9004, %v9004
        %v9150 = vmul.f32 %v9009, %v9009
        %v9151 = vmul.f32 %v9012, %v9012
        %v9152 = vmul.f32 %v9017, %v9017
        %v9153 = vmul.f32 %v9020, %v9020
        %v9154 = vmul.f32 %v9025, %v9025
        %v9155 = vmul.f32 %v9028, %v9028
        %v9156 = vmul.f32 %v9033, %v9033
        %v9157 = vmul.f32 %v9036, %v9036
        %v9158 = vmul.f32 %v9041, %v9041
        %v9159 = vmul.f32 %v9044, %v9044
        %v9160 = vmul.f32 %v9049, %v9049
        %v9161 = vmul.f32 %v9052, %v9052
        %v9162 = vmul.f32 %v9057, %v9057
        %v9163 = vmul.f32 %v9060, %v9060
        %v9164 = vsel %vm3626, %v9132, 0.0
        %v9165 = vsel %vm3626, %v9133, 0.0
        %v9166 = vadd.f32 %v9164, %v9165
        %v9167 = vsel %vm3626, %v9134, 0.0
        %v9168 = vadd.f32 %v9166, %v9167
        %v9169 = vsel %vm3626, %v9135, 0.0
        %v9170 = vadd.f32 %v9168, %v9169
        %v9171 = vsel %vm3626, %v9136, 0.0
        %v9172 = vadd.f32 %v9170, %v9171
        %v9173 = vsel %vm3626, %v9137, 0.0
        %v9174 = vadd.f32 %v9172, %v9173
        %v9175 = vsel %vm3626, %v9138, 0.0
        %v9176 = vadd.f32 %v9174, %v9175
        %v9177 = vsel %vm3626, %v9139, 0.0
        %v9178 = vadd.f32 %v9176, %v9177
        %v9179 = vsel %vm3626, %v9140, 0.0
        %v9180 = vadd.f32 %v9178, %v9179
        %v9181 = vsel %vm3626, %v9141, 0.0
        %v9182 = vadd.f32 %v9180, %v9181
        %v9183 = vsel %vm3626, %v9142, 0.0
        %v9184 = vadd.f32 %v9182, %v9183
        %v9185 = vsel %vm3626, %v9143, 0.0
        %v9186 = vadd.f32 %v9184, %v9185
        %v9187 = vsel %vm3626, %v9144, 0.0
        %v9188 = vadd.f32 %v9186, %v9187
        %v9189 = vsel %vm3626, %v9145, 0.0
        %v9190 = vadd.f32 %v9188, %v9189
        %v9191 = vsel %vm3626, %v9146, 0.0
        %v9192 = vadd.f32 %v9190, %v9191
        %v9193 = vsel %vm3626, %v9147, 0.0
        %v9194 = vadd.f32 %v9192, %v9193
        %v9195 = vsel %vm3626, %v9148, 0.0
        %v9196 = vadd.f32 %v9194, %v9195
        %v9197 = vsel %vm3626, %v9149, 0.0
        %v9198 = vadd.f32 %v9196, %v9197
        %v9199 = vsel %vm3626, %v9150, 0.0
        %v9200 = vadd.f32 %v9198, %v9199
        %v9201 = vsel %vm3626, %v9151, 0.0
        %v9202 = vadd.f32 %v9200, %v9201
        %v9203 = vsel %vm3626, %v9152, 0.0
        %v9204 = vadd.f32 %v9202, %v9203
        %v9205 = vsel %vm3626, %v9153, 0.0
        %v9206 = vadd.f32 %v9204, %v9205
        %v9207 = vsel %vm3626, %v9154, 0.0
        %v9208 = vadd.f32 %v9206, %v9207
        %v9209 = vsel %vm3626, %v9155, 0.0
        %v9210 = vadd.f32 %v9208, %v9209
        %v9211 = vsel %vm3626, %v9156, 0.0
        %v9212 = vadd.f32 %v9210, %v9211
        %v9213 = vsel %vm3626, %v9157, 0.0
        %v9214 = vadd.f32 %v9212, %v9213
        %v9215 = vsel %vm3626, %v9158, 0.0
        %v9216 = vadd.f32 %v9214, %v9215
        %v9217 = vsel %vm3626, %v9159, 0.0
        %v9218 = vadd.f32 %v9216, %v9217
        %v9219 = vsel %vm3626, %v9160, 0.0
        %v9220 = vadd.f32 %v9218, %v9219
        %v9221 = vsel %vm3626, %v9161, 0.0
        %v9222 = vadd.f32 %v9220, %v9221
        %v9223 = vsel %vm3626, %v9162, 0.0
        %v9224 = vadd.f32 %v9222, %v9223
        %v9225 = vsel %vm3626, %v9163, 0.0
        %v9226 = vadd.f32 %v9224, %v9225
        %v9227 = vrot.slane %v9226, 4
        %v9228 = vadd.f32 %v9226, %v9227
        %v9229 = vrot.slane %v9228, 2
        %v9230 = vadd.f32 %v9228, %v9229
        %v9231 = vrot.slane %v9230, 1
        %v9232 = vadd.f32 %v9230, %v9231
        %v9233 = vsel %vm4527, %v9131, %v9232
        %v9234 = vld [vmem:[%s11] sm:$0xff]
        %v9235 = vld [vmem:[%s11 + $0x8] sm:$0xff]
        %v9236 = vld [vmem:[%s11 + $0x10] sm:$0xff]
        %v9237 = vld [vmem:[%s11 + $0x18] sm:$0xff]
        %v9238 = vld [vmem:[%s11 + $0x20] sm:$0xff]
        %v9239 = vld [vmem:[%s11 + $0x28] sm:$0xff]
        %v9240 = vld [vmem:[%s11 + $0x30] sm:$0xff]
        %v9241 = vld [vmem:[%s11 + $0x38] sm:$0xff]
        %v9243 = vsel %vm3626, %v9233, 0
        %9245 = vmatprep.subr.mxu0 0.0
        %9246 = vmatpush1.msra.mxu0 %v9234
        %9247 = vmatprep.subr.mxu0 0.0
        %9248 = vmatpush1.msra.mxu0 %v9235
        %9249 = vmatprep.subr.mxu0 0.0
        %9250 = vmatpush1.msra.mxu0 %v9236
        %9251 = vmatprep.subr.mxu0 0.0
        %9252 = vmatpush1.msra.mxu0 %v9237
        %9253 = vmatprep.subr.mxu0 0.0
        %9254 = vmatpush1.msra.mxu0 %v9238
        %9255 = vmatprep.subr.mxu0 0.0
        %9256 = vmatpush1.msra.mxu0 %v9239
        %9257 = vmatprep.subr.mxu0 0.0
        %9258 = vmatpush1.msra.mxu0 %v9240
        %9259 = vmatprep.subr.mxu0 0.0
        %9260 = vmatpush1.msra.mxu0 %v9241
        %9261 = vmatprep.subr.mxu0 0.0
        %9262 = vmatpush1.msra.mxu0 0.0
        %9263 = vmatprep.subr.mxu0 0.0
        %9264 = vmatpush1.msra.mxu0 0.0
        %9265 = vmatprep.subr.mxu0 0.0
        %9266 = vmatpush1.msra.mxu0 0.0
        %9267 = vmatprep.subr.mxu0 0.0
        %9268 = vmatpush1.msra.mxu0 0.0
        %9269 = vmatprep.subr.mxu0 0.0
        %9270 = vmatpush1.msra.mxu0 0.0
        %9271 = vmatprep.subr.mxu0 0.0
        %9272 = vmatpush1.msra.mxu0 0.0
        %9273 = vmatprep.subr.mxu0 0.0
        %9274 = vmatpush1.msra.mxu0 0.0
        %9275 = vmatprep.subr.mxu0 0.0
        %9276 = vmatpush1.msra.mxu0 0.0
        %9277 = vmatprep.subr.mxu0 0.0
        %9278 = vmatpush1.msra.mxu0 0.0
        %9279 = vmatprep.subr.mxu0 0.0
        %9280 = vmatpush1.msra.mxu0 0.0
        %9281 = vmatprep.subr.mxu0 0.0
        %9282 = vmatpush1.msra.mxu0 0.0
        %9283 = vmatprep.subr.mxu0 0.0
        %9284 = vmatpush1.msra.mxu0 0.0
        %9285 = vmatprep.subr.mxu0 0.0
        %9286 = vmatpush1.msra.mxu0 0.0
        %9287 = vmatprep.subr.mxu0 0.0
        %9288 = vmatpush1.msra.mxu0 0.0
        %9289 = vmatprep.subr.mxu0 0.0
        %9290 = vmatpush1.msra.mxu0 0.0
        %9291 = vmatprep.subr.mxu0 0.0
        %9292 = vmatpush1.msra.mxu0 0.0
        %9293 = vmatprep.subr.mxu0 0.0
        %9294 = vmatpush1.msra.mxu0 0.0
        %9295 = vmatprep.subr.mxu0 0.0
        %9296 = vmatpush1.msra.mxu0 0.0
        %9297 = vmatprep.subr.mxu0 0.0
        %9298 = vmatpush1.msra.mxu0 0.0
        %9299 = vmatprep.subr.mxu0 0.0
        %9300 = vmatpush1.msra.mxu0 0.0
        %9301 = vmatprep.subr.mxu0 0.0
        %9302 = vmatpush1.msra.mxu0 0.0
        %9303 = vmatprep.subr.mxu0 0.0
        %9304 = vmatpush1.msra.mxu0 0.0
        %9305 = vmatprep.subr.mxu0 0.0
        %9306 = vmatpush1.msra.mxu0 0.0
        %9307 = vmatprep.subr.mxu0 0.0
        %9308 = vmatpush1.msra.mxu0 0.0
        %9309 = vmatprep.mubr.f32.mxu0 0.0
        %9310 = vmatmul.mubr.f32.gmra.mrb[0].mxu0 %v9243
        %v9311 = vpop.f32.mrb[0].mxu0
        %v9312 = vadd.f32 0.0, %v9311
        %v9313 = vpop.f32.mrb[0].mxu0
        %9314 = vdwg.mxu0
        %v9315 = vmul.f32 %v9312, %v9312
        %v9317 = vrot.slane %v9315, 7
        %v9319 = vsub.f32 %v9312, %v9317
        %v9320 = vadd.f32 %v9319, 1e-05
        %v9321 = vrsqrt.pop %v9320
        %v9322 = vld [vmem:[%s9] sm:$0x1]
        %v9324 = vlaneseq
        %v9325 = vshrl.u32 %v9324, 7
        %v9326 = vsub.s32 0, %v9325
        %v9327 = vrot.slane %v9322, %v9326
        %v9329 = vmul.f32 %v9321, %v9327
        %v9330 = vld [vmem:[%s10] sm:$0x1]
        %v9332 = vrot.slane %v9329, 1
        %v9334 = vmul.f32 %v9312, %v9332
        %v9335 = vsub.f32 %v9330, %v9334
        %v9336 = vlaneseq
        %v9337 = vshrl.u32 %v9336, 7
        %v9338 = vsub.s32 1, %v9337
        %v9339 = vrot.slane %v9329, %v9338
        %v9340 = vmul.f32 %v8937, %v9339
        %v9341 = vmul.f32 %v8940, %v9339
        %v9342 = vmul.f32 %v8945, %v9339
        %v9343 = vmul.f32 %v8948, %v9339
        %v9344 = vmul.f32 %v8953, %v9339
        %v9345 = vmul.f32 %v8956, %v9339
        %v9346 = vmul.f32 %v8961, %v9339
        %v9347 = vmul.f32 %v8964, %v9339
        %v9348 = vmul.f32 %v8969, %v9339
        %v9349 = vmul.f32 %v8972, %v9339
        %v9350 = vmul.f32 %v8977, %v9339
        %v9351 = vmul.f32 %v8980, %v9339
        %v9352 = vmul.f32 %v8985, %v9339
        %v9353 = vmul.f32 %v8988, %v9339
        %v9354 = vmul.f32 %v8993, %v9339
        %v9355 = vmul.f32 %v8996, %v9339
        %v9356 = vmul.f32 %v9001, %v9339
        %v9357 = vmul.f32 %v9004, %v9339
        %v9358 = vmul.f32 %v9009, %v9339
        %v9359 = vmul.f32 %v9012, %v9339
        %v9360 = vmul.f32 %v9017, %v9339
        %v9361 = vmul.f32 %v9020, %v9339
        %v9362 = vmul.f32 %v9025, %v9339
        %v9363 = vmul.f32 %v9028, %v9339
        %v9364 = vmul.f32 %v9033, %v9339
        %v9365 = vmul.f32 %v9036, %v9339
        %v9366 = vmul.f32 %v9041, %v9339
        %v9367 = vmul.f32 %v9044, %v9339
        %v9368 = vmul.f32 %v9049, %v9339
        %v9369 = vmul.f32 %v9052, %v9339
        %v9370 = vmul.f32 %v9057, %v9339
        %v9371 = vmul.f32 %v9060, %v9339
        %v9373 = vlaneseq
        %v9374 = vshrl.u32 %v9373, 7
        %v9375 = vsub.s32 0, %v9374
        %v9376 = vrot.slane %v9335, %v9375
        %v9378 = vadd.f32 %v9340, %v9376
        %v9379 = vadd.f32 %v9341, %v9376
        %v9380 = vadd.f32 %v9342, %v9376
        %v9381 = vadd.f32 %v9343, %v9376
        %v9382 = vadd.f32 %v9344, %v9376
        %v9383 = vadd.f32 %v9345, %v9376
        %v9384 = vadd.f32 %v9346, %v9376
        %v9385 = vadd.f32 %v9347, %v9376
        %v9386 = vadd.f32 %v9348, %v9376
        %v9387 = vadd.f32 %v9349, %v9376
        %v9388 = vadd.f32 %v9350, %v9376
        %v9389 = vadd.f32 %v9351, %v9376
        %v9390 = vadd.f32 %v9352, %v9376
        %v9391 = vadd.f32 %v9353, %v9376
        %v9392 = vadd.f32 %v9354, %v9376
        %v9393 = vadd.f32 %v9355, %v9376
        %v9394 = vadd.f32 %v9356, %v9376
        %v9395 = vadd.f32 %v9357, %v9376
        %v9396 = vadd.f32 %v9358, %v9376
        %v9397 = vadd.f32 %v9359, %v9376
        %v9398 = vadd.f32 %v9360, %v9376
        %v9399 = vadd.f32 %v9361, %v9376
        %v9400 = vadd.f32 %v9362, %v9376
        %v9401 = vadd.f32 %v9363, %v9376
        %v9402 = vadd.f32 %v9364, %v9376
        %v9403 = vadd.f32 %v9365, %v9376
        %v9404 = vadd.f32 %v9366, %v9376
        %v9405 = vadd.f32 %v9367, %v9376
        %v9406 = vadd.f32 %v9368, %v9376
        %v9407 = vadd.f32 %v9369, %v9376
        %v9408 = vadd.f32 %v9370, %v9376
        %v9409 = vadd.f32 %v9371, %v9376
        %v9410 = vsub.f32 0.0, %v9378
        %v9411 = vsub.f32 0.0, %v9379
        %v9412 = vsub.f32 0.0, %v9380
        %v9413 = vsub.f32 0.0, %v9381
        %v9414 = vsub.f32 0.0, %v9382
        %v9415 = vsub.f32 0.0, %v9383
        %v9416 = vsub.f32 0.0, %v9384
        %v9417 = vsub.f32 0.0, %v9385
        %v9418 = vsub.f32 0.0, %v9386
        %v9419 = vsub.f32 0.0, %v9387
        %v9420 = vsub.f32 0.0, %v9388
        %v9421 = vsub.f32 0.0, %v9389
        %v9422 = vsub.f32 0.0, %v9390
        %v9423 = vsub.f32 0.0, %v9391
        %v9424 = vsub.f32 0.0, %v9392
        %v9425 = vsub.f32 0.0, %v9393
        %v9426 = vsub.f32 0.0, %v9394
        %v9427 = vsub.f32 0.0, %v9395
        %v9428 = vsub.f32 0.0, %v9396
        %v9429 = vsub.f32 0.0, %v9397
        %v9430 = vsub.f32 0.0, %v9398
        %v9431 = vsub.f32 0.0, %v9399
        %v9432 = vsub.f32 0.0, %v9400
        %v9433 = vsub.f32 0.0, %v9401
        %v9434 = vsub.f32 0.0, %v9402
        %v9435 = vsub.f32 0.0, %v9403
        %v9436 = vsub.f32 0.0, %v9404
        %v9437 = vsub.f32 0.0, %v9405
        %v9438 = vsub.f32 0.0, %v9406
        %v9439 = vsub.f32 0.0, %v9407
        %v9440 = vsub.f32 0.0, %v9408
        %v9441 = vsub.f32 0.0, %v9409
        %v9442 = vmul.f32 %v9410, 1.442695
        %v9443 = vpow.pop %v9442
        %v9444 = vmul.f32 %v9411, 1.442695
        %v9445 = vpow.pop %v9444
        %v9446 = vmul.f32 %v9412, 1.442695
        %v9447 = vpow.pop %v9446
        %v9448 = vmul.f32 %v9413, 1.442695
        %v9449 = vpow.pop %v9448
        %v9450 = vmul.f32 %v9414, 1.442695
        %v9451 = vpow.pop %v9450
        %v9452 = vmul.f32 %v9415, 1.442695
        %v9453 = vpow.pop %v9452
        %v9454 = vmul.f32 %v9416, 1.442695
        %v9455 = vpow.pop %v9454
        %v9456 = vmul.f32 %v9417, 1.442695
        %v9457 = vpow.pop %v9456
        %v9458 = vmul.f32 %v9418, 1.442695
        %v9459 = vpow.pop %v9458
        %v9460 = vmul.f32 %v9419, 1.442695
        %v9461 = vpow.pop %v9460
        %v9462 = vmul.f32 %v9420, 1.442695
        %v9463 = vpow.pop %v9462
        %v9464 = vmul.f32 %v9421, 1.442695
        %v9465 = vpow.pop %v9464
        %v9466 = vmul.f32 %v9422, 1.442695
        %v9467 = vpow.pop %v9466
        %v9468 = vmul.f32 %v9423, 1.442695
        %v9469 = vpow.pop %v9468
        %v9470 = vmul.f32 %v9424, 1.442695
        %v9471 = vpow.pop %v9470
        %v9472 = vmul.f32 %v9425, 1.442695
        %v9473 = vpow.pop %v9472
        %v9474 = vmul.f32 %v9426, 1.442695
        %v9475 = vpow.pop %v9474
        %v9476 = vmul.f32 %v9427, 1.442695
        %v9477 = vpow.pop %v9476
        %v9478 = vmul.f32 %v9428, 1.442695
        %v9479 = vpow.pop %v9478
        %v9480 = vmul.f32 %v9429, 1.442695
        %v9481 = vpow.pop %v9480
        %v9482 = vmul.f32 %v9430, 1.442695
        %v9483 = vpow.pop %v9482
        %v9484 = vmul.f32 %v9431, 1.442695
        %v9485 = vpow.pop %v9484
        %v9486 = vmul.f32 %v9432, 1.442695
        %v9487 = vpow.pop %v9486
        %v9488 = vmul.f32 %v9433, 1.442695
        %v9489 = vpow.pop %v9488
        %v9490 = vmul.f32 %v9434, 1.442695
        %v9491 = vpow.pop %v9490
        %v9492 = vmul.f32 %v9435, 1.442695
        %v9493 = vpow.pop %v9492
        %v9494 = vmul.f32 %v9436, 1.442695
        %v9495 = vpow.pop %v9494
        %v9496 = vmul.f32 %v9437, 1.442695
        %v9497 = vpow.pop %v9496
        %v9498 = vmul.f32 %v9438, 1.442695
        %v9499 = vpow.pop %v9498
        %v9500 = vmul.f32 %v9439, 1.442695
        %v9501 = vpow.pop %v9500
        %v9502 = vmul.f32 %v9440, 1.442695
        %v9503 = vpow.pop %v9502
        %v9504 = vmul.f32 %v9441, 1.442695
        %v9505 = vpow.pop %v9504
        %v9506 = vadd.f32 %v9443, 1.0
        %v9507 = vadd.f32 %v9445, 1.0
        %v9508 = vadd.f32 %v9447, 1.0
        %v9509 = vadd.f32 %v9449, 1.0
        %v9510 = vadd.f32 %v9451, 1.0
        %v9511 = vadd.f32 %v9453, 1.0
        %v9512 = vadd.f32 %v9455, 1.0
        %v9513 = vadd.f32 %v9457, 1.0
        %v9514 = vadd.f32 %v9459, 1.0
        %v9515 = vadd.f32 %v9461, 1.0
        %v9516 = vadd.f32 %v9463, 1.0
        %v9517 = vadd.f32 %v9465, 1.0
        %v9518 = vadd.f32 %v9467, 1.0
        %v9519 = vadd.f32 %v9469, 1.0
        %v9520 = vadd.f32 %v9471, 1.0
        %v9521 = vadd.f32 %v9473, 1.0
        %v9522 = vadd.f32 %v9475, 1.0
        %v9523 = vadd.f32 %v9477, 1.0
        %v9524 = vadd.f32 %v9479, 1.0
        %v9525 = vadd.f32 %v9481, 1.0
        %v9526 = vadd.f32 %v9483, 1.0
        %v9527 = vadd.f32 %v9485, 1.0
        %v9528 = vadd.f32 %v9487, 1.0
        %v9529 = vadd.f32 %v9489, 1.0
        %v9530 = vadd.f32 %v9491, 1.0
        %v9531 = vadd.f32 %v9493, 1.0
        %v9532 = vadd.f32 %v9495, 1.0
        %v9533 = vadd.f32 %v9497, 1.0
        %v9534 = vadd.f32 %v9499, 1.0
        %v9535 = vadd.f32 %v9501, 1.0
        %v9536 = vadd.f32 %v9503, 1.0
        %v9537 = vadd.f32 %v9505, 1.0
        %v9538 = vrcp.pop %v9506
        %v9539 = vrcp.pop %v9507
        %v9540 = vrcp.pop %v9508
        %v9541 = vrcp.pop %v9509
        %v9542 = vrcp.pop %v9510
        %v9543 = vrcp.pop %v9511
        %v9544 = vrcp.pop %v9512
        %v9545 = vrcp.pop %v9513
        %v9546 = vrcp.pop %v9514
        %v9547 = vrcp.pop %v9515
        %v9548 = vrcp.pop %v9516
        %v9549 = vrcp.pop %v9517
        %v9550 = vrcp.pop %v9518
        %v9551 = vrcp.pop %v9519
        %v9552 = vrcp.pop %v9520
        %v9553 = vrcp.pop %v9521
        %v9554 = vrcp.pop %v9522
        %v9555 = vrcp.pop %v9523
        %v9556 = vrcp.pop %v9524
        %v9557 = vrcp.pop %v9525
        %v9558 = vrcp.pop %v9526
        %v9559 = vrcp.pop %v9527
        %v9560 = vrcp.pop %v9528
        %v9561 = vrcp.pop %v9529
        %v9562 = vrcp.pop %v9530
        %v9563 = vrcp.pop %v9531
        %v9564 = vrcp.pop %v9532
        %v9565 = vrcp.pop %v9533
        %v9566 = vrcp.pop %v9534
        %v9567 = vrcp.pop %v9535
        %v9568 = vrcp.pop %v9536
        %v9569 = vrcp.pop %v9537
        %v9570 = vmul.f32 %v9378, %v9538
        %v9571 = vmul.f32 %v9379, %v9539
        %v9572 = vmul.f32 %v9380, %v9540
        %v9573 = vmul.f32 %v9381, %v9541
        %v9574 = vmul.f32 %v9382, %v9542
        %v9575 = vmul.f32 %v9383, %v9543
        %v9576 = vmul.f32 %v9384, %v9544
        %v9577 = vmul.f32 %v9385, %v9545
        %v9578 = vmul.f32 %v9386, %v9546
        %v9579 = vmul.f32 %v9387, %v9547
        %v9580 = vmul.f32 %v9388, %v9548
        %v9581 = vmul.f32 %v9389, %v9549
        %v9582 = vmul.f32 %v9390, %v9550
        %v9583 = vmul.f32 %v9391, %v9551
        %v9584 = vmul.f32 %v9392, %v9552
        %v9585 = vmul.f32 %v9393, %v9553
        %v9586 = vmul.f32 %v9394, %v9554
        %v9587 = vmul.f32 %v9395, %v9555
        %v9588 = vmul.f32 %v9396, %v9556
        %v9589 = vmul.f32 %v9397, %v9557
        %v9590 = vmul.f32 %v9398, %v9558
        %v9591 = vmul.f32 %v9399, %v9559
        %v9592 = vmul.f32 %v9400, %v9560
        %v9593 = vmul.f32 %v9401, %v9561
        %v9594 = vmul.f32 %v9402, %v9562
        %v9595 = vmul.f32 %v9403, %v9563
        %v9596 = vmul.f32 %v9404, %v9564
        %v9597 = vmul.f32 %v9405, %v9565
        %v9598 = vmul.f32 %v9406, %v9566
        %v9599 = vmul.f32 %v9407, %v9567
        %v9600 = vmul.f32 %v9408, %v9568
        %v9601 = vmul.f32 %v9409, %v9569
        %v9602 = vld [vmem:[%s12] sm:$0xf]
        %v9603 = vld [vmem:[%s12 + $0x4] sm:$0xf]
        %v9604 = vld [vmem:[%s12 + $0x8] sm:$0xf]
        %v9605 = vld [vmem:[%s12 + $0xc] sm:$0xf]
        %v9606 = vld [vmem:[%s13] sm:$0x1]
        %v9608 = vlaneseq
        %v9609 = vshrl.u32 %v9608, 7
        %v9610 = vsub.s32 0, %v9609
        %v9611 = vrot.slane %v9606, %v9610
        %v9645 = vunpack.c.l.b16 %v495
        %v9646 = vunpack.c.l.b16 %v496
        %v9647 = vunpack.c.l.b16 %v497
        %v9648 = vunpack.c.l.b16 %v498
        %v9649 = vunpack.c.l.b16 %v499
        %v9650 = vunpack.c.l.b16 %v500
        %v9651 = vunpack.c.l.b16 %v501
        %v9652 = vunpack.c.l.b16 %v502
        %v9653 = vunpack.c.l.b16 %v503
        %v9654 = vunpack.c.l.b16 %v504
        %v9655 = vunpack.c.l.b16 %v505
        %v9656 = vunpack.c.l.b16 %v506
        %v9657 = vunpack.c.l.b16 %v507
        %v9658 = vunpack.c.l.b16 %v508
        %v9659 = vunpack.c.l.b16 %v509
        %v9660 = vunpack.c.l.b16 %v510
        %v9661 = vunpack.c.l.b16 %v511
        %v9662 = vunpack.c.l.b16 %v512
        %v9663 = vunpack.c.l.b16 %v513
        %v9664 = vunpack.c.l.b16 %v514
        %v9665 = vunpack.c.l.b16 %v515
        %v9666 = vunpack.c.l.b16 %v516
        %v9667 = vunpack.c.l.b16 %v517
        %v9668 = vunpack.c.l.b16 %v518
        %v9669 = vunpack.c.l.b16 %v519
        %v9670 = vunpack.c.l.b16 %v520
        %v9671 = vunpack.c.l.b16 %v521
        %v9672 = vunpack.c.l.b16 %v522
        %v9673 = vunpack.c.l.b16 %v523
        %v9674 = vunpack.c.l.b16 %v524
        %v9675 = vunpack.c.l.b16 %v525
        %v9676 = vunpack.c.l.b16 %v526
        %v9677 = vpack.c.b16 %v9646, %v9645
        %v9678 = vpack.c.b16 %v9648, %v9647
        %v9679 = vpack.c.b16 %v9650, %v9649
        %v9680 = vpack.c.b16 %v9652, %v9651
        %v9681 = vpack.c.b16 %v9654, %v9653
        %v9682 = vpack.c.b16 %v9656, %v9655
        %v9683 = vpack.c.b16 %v9658, %v9657
        %v9684 = vpack.c.b16 %v9660, %v9659
        %v9685 = vpack.c.b16 %v9662, %v9661
        %v9686 = vpack.c.b16 %v9664, %v9663
        %v9687 = vpack.c.b16 %v9666, %v9665
        %v9688 = vpack.c.b16 %v9668, %v9667
        %v9689 = vpack.c.b16 %v9670, %v9669
        %v9690 = vpack.c.b16 %v9672, %v9671
        %v9691 = vpack.c.b16 %v9674, %v9673
        %v9692 = vpack.c.b16 %v9676, %v9675
        %v9697 = vunpack.c.l.b16 %v9602
        %v9698 = vunpack.c.l.b16 %v9603
        %v9699 = vunpack.c.l.b16 %v9604
        %v9700 = vunpack.c.l.b16 %v9605
        %v9701 = vpack.c.b16 %v9698, %v9697
        %v9702 = vpack.c.b16 %v9700, %v9699
        %v9706 = vsel %vm3577, %v9677, 0
        %v9709 = vsel %vm3577, %v9678, 0
        %v9712 = vsel %vm3577, %v9679, 0
        %v9715 = vsel %vm3577, %v9680, 0
        %v9718 = vsel %vm3577, %v9681, 0
        %v9721 = vsel %vm3577, %v9682, 0
        %v9724 = vsel %vm3577, %v9683, 0
        %v9727 = vsel %vm3577, %v9684, 0
        %v9730 = vsel %vm3577, %v9685, 0
        %v9733 = vsel %vm3577, %v9686, 0
        %v9736 = vsel %vm3577, %v9687, 0
        %v9739 = vsel %vm3577, %v9688, 0
        %v9742 = vsel %vm3577, %v9689, 0
        %v9745 = vsel %vm3577, %v9690, 0
        %v9748 = vsel %vm3577, %v9691, 0
        %v9751 = vsel %vm3577, %v9692, 0
        %9753 = vmatprep.subr.bf16.mxu0 0
        %9754 = vmatpush1.bf16.msra.mxu0 %v9701
        %9755 = vmatprep.subr.bf16.mxu0 0
        %9756 = vmatpush1.bf16.msra.mxu0 %v9702
        %9757 = vmatprep.subr.bf16.mxu0 0
        %9758 = vmatpush1.bf16.msra.mxu0 0
        %9759 = vmatprep.subr.bf16.mxu0 0
        %9760 = vmatpush1.bf16.msra.mxu0 0
        %9761 = vmatprep.subr.bf16.mxu0 0
        %9762 = vmatpush1.bf16.msra.mxu0 0
        %9763 = vmatprep.subr.bf16.mxu0 0
        %9764 = vmatpush1.bf16.msra.mxu0 0
        %9765 = vmatprep.subr.bf16.mxu0 0
        %9766 = vmatpush1.bf16.msra.mxu0 0
        %9767 = vmatprep.subr.bf16.mxu0 0
        %9768 = vmatpush1.bf16.msra.mxu0 0
        %9769 = vmatprep.subr.bf16.mxu0 0
        %9770 = vmatpush1.bf16.msra.mxu0 0
        %9771 = vmatprep.subr.bf16.mxu0 0
        %9772 = vmatpush1.bf16.msra.mxu0 0
        %9773 = vmatprep.subr.bf16.mxu0 0
        %9774 = vmatpush1.bf16.msra.mxu0 0
        %9775 = vmatprep.subr.bf16.mxu0 0
        %9776 = vmatpush1.bf16.msra.mxu0 0
        %9777 = vmatprep.subr.bf16.mxu0 0
        %9778 = vmatpush1.bf16.msra.mxu0 0
        %9779 = vmatprep.subr.bf16.mxu0 0
        %9780 = vmatpush1.bf16.msra.mxu0 0
        %9781 = vmatprep.subr.bf16.mxu0 0
        %9782 = vmatpush1.bf16.msra.mxu0 0
        %9783 = vmatprep.subr.bf16.mxu0 0
        %9784 = vmatpush1.bf16.msra.mxu0 0
        %9785 = vmatprep.mubr.bf16.mxu0 0
        %9786 = vmatmul.mubr.bf16.gmra.mrb[0].mxu0 %v9706
        %v9787 = vpop.f32.mrb[0].mxu0
        %v9788 = vadd.f32 %v9611, %v9787
        %v9789 = vpop.f32.mrb[0].mxu0
        %v9790 = vpop.f32.mrb[0].mxu0
        %v9791 = vadd.f32 %v9611, %v9790
        %v9792 = vpop.f32.mrb[0].mxu0
        %9793 = vmatprep.mubr.bf16.mxu0 0
        %9794 = vmatmul.mubr.bf16.gmra.mrb[0].mxu0 %v9709
        %v9795 = vpop.f32.mrb[0].mxu0
        %v9796 = vadd.f32 %v9611, %v9795
        %v9797 = vpop.f32.mrb[0].mxu0
        %v9798 = vpop.f32.mrb[0].mxu0
        %v9799 = vadd.f32 %v9611, %v9798
        %v9800 = vpop.f32.mrb[0].mxu0
        %9801 = vmatprep.mubr.bf16.mxu0 0
        %9802 = vmatmul.mubr.bf16.gmra.mrb[0].mxu0 %v9712
        %v9803 = vpop.f32.mrb[0].mxu0
        %v9804 = vadd.f32 %v9611, %v9803
        %v9805 = vpop.f32.mrb[0].mxu0
        %v9806 = vpop.f32.mrb[0].mxu0
        %v9807 = vadd.f32 %v9611, %v9806
        %v9808 = vpop.f32.mrb[0].mxu0
        %9809 = vmatprep.mubr.bf16.mxu0 0
        %9810 = vmatmul.mubr.bf16.gmra.mrb[0].mxu0 %v9715
        %v9811 = vpop.f32.mrb[0].mxu0
        %v9812 = vadd.f32 %v9611, %v9811
        %v9813 = vpop.f32.mrb[0].mxu0
        %v9814 = vpop.f32.mrb[0].mxu0
        %v9815 = vadd.f32 %v9611, %v9814
        %v9816 = vpop.f32.mrb[0].mxu0
        %9817 = vmatprep.mubr.bf16.mxu0 0
        %9818 = vmatmul.mubr.bf16.gmra.mrb[0].mxu0 %v9718
        %v9819 = vpop.f32.mrb[0].mxu0
        %v9820 = vadd.f32 %v9611, %v9819
        %v9821 = vpop.f32.mrb[0].mxu0
        %v9822 = vpop.f32.mrb[0].mxu0
        %v9823 = vadd.f32 %v9611, %v9822
        %v9824 = vpop.f32.mrb[0].mxu0
        %9825 = vmatprep.mubr.bf16.mxu0 0
        %9826 = vmatmul.mubr.bf16.gmra.mrb[0].mxu0 %v9721
        %v9827 = vpop.f32.mrb[0].mxu0
        %v9828 = vadd.f32 %v9611, %v9827
        %v9829 = vpop.f32.mrb[0].mxu0
        %v9830 = vpop.f32.mrb[0].mxu0
        %v9831 = vadd.f32 %v9611, %v9830
        %v9832 = vpop.f32.mrb[0].mxu0
        %9833 = vmatprep.mubr.bf16.mxu0 0
        %9834 = vmatmul.mubr.bf16.gmra.mrb[0].mxu0 %v9724
        %v9835 = vpop.f32.mrb[0].mxu0
        %v9836 = vadd.f32 %v9611, %v9835
        %v9837 = vpop.f32.mrb[0].mxu0
        %v9838 = vpop.f32.mrb[0].mxu0
        %v9839 = vadd.f32 %v9611, %v9838
        %v9840 = vpop.f32.mrb[0].mxu0
        %9841 = vmatprep.mubr.bf16.mxu0 0
        %9842 = vmatmul.mubr.bf16.gmra.mrb[0].mxu0 %v9727
        %v9843 = vpop.f32.mrb[0].mxu0
        %v9844 = vadd.f32 %v9611, %v9843
        %v9845 = vpop.f32.mrb[0].mxu0
        %v9846 = vpop.f32.mrb[0].mxu0
        %v9847 = vadd.f32 %v9611, %v9846
        %v9848 = vpop.f32.mrb[0].mxu0
        %9849 = vmatprep.mubr.bf16.mxu0 0
        %9850 = vmatmul.mubr.bf16.gmra.mrb[0].mxu0 %v9730
        %v9851 = vpop.f32.mrb[0].mxu0
        %v9852 = vadd.f32 %v9611, %v9851
        %v9853 = vpop.f32.mrb[0].mxu0
        %v9854 = vpop.f32.mrb[0].mxu0
        %v9855 = vadd.f32 %v9611, %v9854
        %v9856 = vpop.f32.mrb[0].mxu0
        %9857 = vmatprep.mubr.bf16.mxu0 0
        %9858 = vmatmul.mubr.bf16.gmra.mrb[0].mxu0 %v9733
        %v9859 = vpop.f32.mrb[0].mxu0
        %v9860 = vadd.f32 %v9611, %v9859
        %v9861 = vpop.f32.mrb[0].mxu0
        %v9862 = vpop.f32.mrb[0].mxu0
        %v9863 = vadd.f32 %v9611, %v9862
        %v9864 = vpop.f32.mrb[0].mxu0
        %9865 = vmatprep.mubr.bf16.mxu0 0
        %9866 = vmatmul.mubr.bf16.gmra.mrb[0].mxu0 %v9736
        %v9867 = vpop.f32.mrb[0].mxu0
        %v9868 = vadd.f32 %v9611, %v9867
        %v9869 = vpop.f32.mrb[0].mxu0
        %v9870 = vpop.f32.mrb[0].mxu0
        %v9871 = vadd.f32 %v9611, %v9870
        %v9872 = vpop.f32.mrb[0].mxu0
        %9873 = vmatprep.mubr.bf16.mxu0 0
        %9874 = vmatmul.mubr.bf16.gmra.mrb[0].mxu0 %v9739
        %v9875 = vpop.f32.mrb[0].mxu0
        %v9876 = vadd.f32 %v9611, %v9875
        %v9877 = vpop.f32.mrb[0].mxu0
        %v9878 = vpop.f32.mrb[0].mxu0
        %v9879 = vadd.f32 %v9611, %v9878
        %v9880 = vpop.f32.mrb[0].mxu0
        %9881 = vmatprep.mubr.bf16.mxu0 0
        %9882 = vmatmul.mubr.bf16.gmra.mrb[0].mxu0 %v9742
        %v9883 = vpop.f32.mrb[0].mxu0
        %v9884 = vadd.f32 %v9611, %v9883
        %v9885 = vpop.f32.mrb[0].mxu0
        %v9886 = vpop.f32.mrb[0].mxu0
        %v9887 = vadd.f32 %v9611, %v9886
        %v9888 = vpop.f32.mrb[0].mxu0
        %9889 = vmatprep.mubr.bf16.mxu0 0
        %9890 = vmatmul.mubr.bf16.gmra.mrb[0].mxu0 %v9745
        %v9891 = vpop.f32.mrb[0].mxu0
        %v9892 = vadd.f32 %v9611, %v9891
        %v9893 = vpop.f32.mrb[0].mxu0
        %v9894 = vpop.f32.mrb[0].mxu0
        %v9895 = vadd.f32 %v9611, %v9894
        %v9896 = vpop.f32.mrb[0].mxu0
        %9897 = vmatprep.mubr.bf16.mxu0 0
        %9898 = vmatmul.mubr.bf16.gmra.mrb[0].mxu0 %v9748
        %v9899 = vpop.f32.mrb[0].mxu0
        %v9900 = vadd.f32 %v9611, %v9899
        %v9901 = vpop.f32.mrb[0].mxu0
        %v9902 = vpop.f32.mrb[0].mxu0
        %v9903 = vadd.f32 %v9611, %v9902
        %v9904 = vpop.f32.mrb[0].mxu0
        %9905 = vmatprep.mubr.bf16.mxu0 0
        %9906 = vmatmul.mubr.bf16.gmra.mrb[0].mxu0 %v9751
        %v9907 = vpop.f32.mrb[0].mxu0
        %v9908 = vadd.f32 %v9611, %v9907
        %v9909 = vpop.f32.mrb[0].mxu0
        %v9910 = vpop.f32.mrb[0].mxu0
        %v9911 = vadd.f32 %v9611, %v9910
        %v9912 = vpop.f32.mrb[0].mxu0
        %9913 = vdwg.mxu0
        %v9914 = vadd.f32 %v9570, %v9788
        %v9915 = vadd.f32 %v9571, %v9791
        %v9916 = vadd.f32 %v9572, %v9796
        %v9917 = vadd.f32 %v9573, %v9799
        %v9918 = vadd.f32 %v9574, %v9804
        %v9919 = vadd.f32 %v9575, %v9807
        %v9920 = vadd.f32 %v9576, %v9812
        %v9921 = vadd.f32 %v9577, %v9815
        %v9922 = vadd.f32 %v9578, %v9820
        %v9923 = vadd.f32 %v9579, %v9823
        %v9924 = vadd.f32 %v9580, %v9828
        %v9925 = vadd.f32 %v9581, %v9831
        %v9926 = vadd.f32 %v9582, %v9836
        %v9927 = vadd.f32 %v9583, %v9839
        %v9928 = vadd.f32 %v9584, %v9844
        %v9929 = vadd.f32 %v9585, %v9847
        %v9930 = vadd.f32 %v9586, %v9852
        %v9931 = vadd.f32 %v9587, %v9855
        %v9932 = vadd.f32 %v9588, %v9860
        %v9933 = vadd.f32 %v9589, %v9863
        %v9934 = vadd.f32 %v9590, %v9868
        %v9935 = vadd.f32 %v9591, %v9871
        %v9936 = vadd.f32 %v9592, %v9876
        %v9937 = vadd.f32 %v9593, %v9879
        %v9938 = vadd.f32 %v9594, %v9884
        %v9939 = vadd.f32 %v9595, %v9887
        %v9940 = vadd.f32 %v9596, %v9892
        %v9941 = vadd.f32 %v9597, %v9895
        %v9942 = vadd.f32 %v9598, %v9900
        %v9943 = vadd.f32 %v9599, %v9903
        %v9944 = vadd.f32 %v9600, %v9908
        %v9945 = vadd.f32 %v9601, %v9911
        %9946 = vst.msk [vmem:[%s482] sm:$0xff] %vm3626, %v9914
        %9947 = vst.msk [vmem:[%s482 + $0x8] sm:$0xff] %vm3626, %v9915
        %9948 = vst.msk [vmem:[%s482 + $0x10] sm:$0xff] %vm3626, %v9916
        %9949 = vst.msk [vmem:[%s482 + $0x18] sm:$0xff] %vm3626, %v9917
        %9950 = vst.msk [vmem:[%s482 + $0x20] sm:$0xff] %vm3626, %v9918
        %9951 = vst.msk [vmem:[%s482 + $0x28] sm:$0xff] %vm3626, %v9919
        %9952 = vst.msk [vmem:[%s482 + $0x30] sm:$0xff] %vm3626, %v9920
        %9953 = vst.msk [vmem:[%s482 + $0x38] sm:$0xff] %vm3626, %v9921
        %9954 = vst.msk [vmem:[%s482 + $0x40] sm:$0xff] %vm3626, %v9922
        %9955 = vst.msk [vmem:[%s482 + $0x48] sm:$0xff] %vm3626, %v9923
        %9956 = vst.msk [vmem:[%s482 + $0x50] sm:$0xff] %vm3626, %v9924
        %9957 = vst.msk [vmem:[%s482 + $0x58] sm:$0xff] %vm3626, %v9925
        %9958 = vst.msk [vmem:[%s482 + $0x60] sm:$0xff] %vm3626, %v9926
        %9959 = vst.msk [vmem:[%s482 + $0x68] sm:$0xff] %vm3626, %v9927
        %9960 = vst.msk [vmem:[%s482 + $0x70] sm:$0xff] %vm3626, %v9928
        %9961 = vst.msk [vmem:[%s482 + $0x78] sm:$0xff] %vm3626, %v9929
        %9962 = vst.msk [vmem:[%s482 + $0x80] sm:$0xff] %vm3626, %v9930
        %9963 = vst.msk [vmem:[%s482 + $0x88] sm:$0xff] %vm3626, %v9931
        %9964 = vst.msk [vmem:[%s482 + $0x90] sm:$0xff] %vm3626, %v9932
        %9965 = vst.msk [vmem:[%s482 + $0x98] sm:$0xff] %vm3626, %v9933
        %9966 = vst.msk [vmem:[%s482 + $0xa0] sm:$0xff] %vm3626, %v9934
        %9967 = vst.msk [vmem:[%s482 + $0xa8] sm:$0xff] %vm3626, %v9935
        %9968 = vst.msk [vmem:[%s482 + $0xb0] sm:$0xff] %vm3626, %v9936
        %9969 = vst.msk [vmem:[%s482 + $0xb8] sm:$0xff] %vm3626, %v9937
        %9970 = vst.msk [vmem:[%s482 + $0xc0] sm:$0xff] %vm3626, %v9938
        %9971 = vst.msk [vmem:[%s482 + $0xc8] sm:$0xff] %vm3626, %v9939
        %9972 = vst.msk [vmem:[%s482 + $0xd0] sm:$0xff] %vm3626, %v9940
        %9973 = vst.msk [vmem:[%s482 + $0xd8] sm:$0xff] %vm3626, %v9941
        %9974 = vst.msk [vmem:[%s482 + $0xe0] sm:$0xff] %vm3626, %v9942
        %9975 = vst.msk [vmem:[%s482 + $0xe8] sm:$0xff] %vm3626, %v9943
        %9976 = vst.msk [vmem:[%s482 + $0xf0] sm:$0xff] %vm3626, %v9944
        %9977 = vst.msk [vmem:[%s482 + $0xf8] sm:$0xff] %vm3626, %v9945
        %s9978 = sand.u32 %s345, 1
        %s9979 = scalar_lea.sflag [#allocation5], %s9978
        %s9980 = sand.u32 %s345, 1
        %s9981 = smul.addr %s9980, 256
        %s9982 = scalar_lea.vmem [#allocation4], %s9981
        // Predicated region
        $region77: #{wide_weighted_resnet_block.1} parent=75 // pred_check
          %p9983 = pneg %p355
        $region78: #{wide_weighted_resnet_block.1} parent=75 // pred_check_branch
          %9985 = sbr.rel (%p9983) target = $region80
        $region79: #{wide_weighted_resnet_block.1} parent=75 // pred_region
          %s9987 = ssub.s32 4096, 4096
          %9988 = vsyncadd %s9979, %s9987
          %s9989 = smul.addr %s28, 32
          %s9990 = smul.addr %s9989, 128
          %s9991 = scalar_lea.hbm %s14, %s9990
          %s9992 = sshll.u32 %s9982, 4
          %s9993 = int_to_ptr.vmem [resolvable:$true] %s9992
          %9998 = dma.vmem_to_hbm [thread:$0]  %s9993, 4096, %s9991, %s9979, 128, 128, 8
        $region80: #{wide_weighted_resnet_block.1} parent=75 // pred_fallthru
          _
      $region76: #{wide_weighted_resnet_block.1} parent=5 // pred_fallthru
        _
      %p9999 = scmp.le.s32.totalorder 2, %s23
      // Predicated region
      $region81: #{wide_weighted_resnet_block.1} parent=5 // pred_check
        %p10000 = pneg %p9999
      $region82: #{wide_weighted_resnet_block.1} parent=5 // pred_check_branch
        %10002 = sbr.rel (%p10000) target = $region84
      $region83: #{wide_weighted_resnet_block.1} parent=5 // pred_region
        %s10003 = ssub.s32 %s23, 2
        // Predicated region
        $region85: #{wide_weighted_resnet_block.1} parent=83 // pred_check
          %p10004 = pneg %p361
        $region86: #{wide_weighted_resnet_block.1} parent=83 // pred_check_branch
          %10006 = sbr.rel (%p10004) target = $region88
        $region87: #{wide_weighted_resnet_block.1} parent=83 // pred_region
          %s10007 = sand.u32 %s346, 1
          %s10008 = scalar_lea.sflag [#allocation5], %s10007
          %s10009 = sand.u32 %s346, 1
          %s10010 = smul.addr %s10009, 256
          %s10011 = scalar_lea.vmem [#allocation4], %s10010
          %10012 = dma.done %s10008, 4096
        $region88: #{wide_weighted_resnet_block.1} parent=83 // pred_fallthru
          _
      $region84: #{wide_weighted_resnet_block.1} parent=5 // pred_fallthru
        _
    $region6: #{wide_weighted_resnet_block.1} parent=1 // loop_footer
      %s27 = sadd.s32 1, %s23
    $region7: #{wide_weighted_resnet_block.1} parent=1 // loop_footer_branch
      %22 = sbr.rel target = $region3
    $region8: #{wide_weighted_resnet_block.1} parent=1 // loop_exit
      _
    %10013 = vsyncpa [#allocation5], 1
    %s10014 = scalar_lea.sflag [#allocation5], 1
    %10015 = vsyncpa %s10014, 1

</llo_original>
